<compile_context>
chip_gen: v7x
topology: tpu7x:2x2x1
jax: 0.10.0
libtpu: 0.0.40
codegen_flags: <defaults>
</compile_context>

<pallas_src>
import functools
import math

import numpy as np
import jax
import jax.numpy as jnp
from jax.experimental import pallas as pl
from jax.experimental.pallas import tpu as pltpu  # noqa: F401  (no TPU-specific params needed at this size)


HALF_LOG_2PI = 0.5 * math.log(2.0 * math.pi)


# ------------------------------- kernel helpers --------------------------------

def _per_sample_sum(v, batch):
    """v: (n, c) with rows ordered sample-major -> (1, batch) per-sample totals.

    One lane reduce + one masked sublane reduce; no reshapes, no integer division.
    """
    n = v.shape[0]
    rows_per = n // batch
    row_tot = jnp.sum(v, axis=1, keepdims=True)                           # (n, 1)
    row = jax.lax.broadcasted_iota(jnp.int32, (n, batch), 0)
    lo = jax.lax.broadcasted_iota(jnp.int32, (n, batch), 1) * rows_per
    mask = jnp.logical_and(row >= lo, row < lo + rows_per).astype(jnp.float32)
    return jnp.sum(mask * row_tot, axis=0, keepdims=True)                 # (1, batch)


def _gather_concat(sel, x, k):
    """sel: (k*m, n) constant 0/1 selection matrix (k-major rows), x: (n, c).

    Returns (m, k*c) == [sel_0 @ x | ... | sel_{k-1} @ x]:
    one MXU matmul, k sublane-aligned row-block slices, one lane concat.
    """
    m = sel.shape[0] // k
    g = jnp.dot(sel, x, preferred_element_type=jnp.float32)               # (k*m, c)
    return jnp.concatenate([g[i * m:(i + 1) * m, :] for i in range(k)], axis=-1)


def _conv3x3(x, tap, w, b):
    """3x3 'same' conv on the (n, cin) slab: tap-selection gather matmul builds the
    im2col patches, then a single (n, 9*cin) @ (9*cin, cout) matmul (+ bias)."""
    patches = _gather_concat(tap, x, 9)
    return jnp.dot(patches, w, preferred_element_type=jnp.float32) + b


# --------------------------------- fused kernel --------------------------------

def _flow_encode_kernel(*args, batch, scales, depth, quants, alpha, numel):
    """Fused encode: dequant + logit, all scales' couplings, in-kernel chunk/squeeze,
    per-sample logdet and prior logprob.

    inputs : x0, noise (both (N0, C0) slabs), per-scale tap matrices, inter-scale
             squeeze matrices, then depth*5 coupling params per scale.
    outputs: per-scale z slabs + one (1, 2*batch) [logdet | logprior] row.
    """
    n_in = 2 + scales + (scales - 1) + scales * depth * 5
    ins, outs = args[:n_in], args[n_in:]
    x_ref, u_ref = ins[0], ins[1]
    tap_refs = ins[2:2 + scales]
    sq_refs = ins[2 + scales:2 + scales + scales - 1]
    pbase = 2 + scales + scales - 1
    coupling_refs = [[ins[pbase + (sc * depth + d) * 5: pbase + (sc * depth + d) * 5 + 5]
                      for d in range(depth)] for sc in range(scales)]
    z_refs, ldlp_ref = outs[:scales], outs[scales]

    # ---- uniform dequantisation + inverse sigmoid (elementwise, once) ----------
    # Runs directly on the (B*H*W, C) slab (16 vregs); a lane-dense pass would need a
    # lane<->sublane relayout back to slab form that costs as much as it saves here.
    z = (x_ref[...] + u_ref[...]) * (1.0 / quants)
    z = z * (1.0 - alpha) + 0.5 * alpha
    lz = jnp.log(z)
    l1z = jnp.log(1.0 - z)                      # computed once, reused for logit + logdet
    ldj = ((math.log(1.0 - alpha) - math.log(quants)) * numel
           + _per_sample_sum(-lz - l1z, batch))                            # (1, B)
    h = lz - l1z                                                           # logit, (N0, C0)
    lp = jnp.zeros_like(ldj)                                               # (1, B)

    # ---- scales (all resident, no HBM traffic between them) --------------------
    for sc in range(scales):
        tap = tap_refs[sc][...]                 # (9*N_sc, N_sc), reused by all 4 convs
        ch = h.shape[-1] // 2
        a, b = h[:, :ch], h[:, ch:]
        for d in range(depth):
            w1_r, b1_r, w2_r, b2_r, sf_r = coupling_refs[sc][d]
            cond, trans = (a, b) if d % 2 == 0 else (b, a)
            hid = jnp.maximum(_conv3x3(cond, tap, w1_r[...], b1_r[...]), 0.0)
            st = _conv3x3(hid, tap, w2_r[...], b2_r[...])                  # (N_sc, 2*ch)
            sf = sf_r[...]                                                 # (1, ch)
            s_log = jnp.tanh(st[:, :ch] * jnp.exp(-sf)) * jnp.exp(sf)      # bounded log-scale
            out = (trans + st[:, ch:]) * jnp.exp(s_log)
            ldj = ldj + _per_sample_sum(s_log, batch)
            if d % 2 == 0:
                b = out
            else:
                a = out

        last = sc == scales - 1
        # torch .chunk(2, dim=1): first half splits off (whole tensor on the last scale).
        h_split = jnp.concatenate([a, b], axis=-1) if last else a
        lp = lp + _per_sample_sum(-0.5 * h_split * h_split - HALF_LOG_2PI, batch)
        z_refs[sc][...] = h_split
        if not last:
            # Space-to-depth squeeze of the passed-through half via the constant
            # selection matmul: (N, ch) -> (N/4, 4*ch); stays in VMEM.
            h = _gather_concat(sq_refs[sc][...], b, 4)

    ldlp_ref[...] = jnp.concatenate([ldj, lp], axis=-1)                    # (1, 2*B)


# --------------------------- host-side constant builders ------------------------

def _build_tap(batch, h, w):
    """(9*N, N) 0/1 tap-selection matrix, k-major rows, block-diagonal over batch.

    Row (ky*3+kx)*N + n selects the 3x3-tap source row for slab row n (zero row for
    out-of-bounds taps -> zero padding)."""
    hw, n = h * w, batch * h * w
    t = np.zeros((9 * n, n), np.float32)
    for b in range(batch):
        for y in range(h):
            for x in range(w):
                row_n = b * hw + y * w + x
                for ky in range(3):
                    for kx in range(3):
                        yy, xx = y + ky - 1, x + kx - 1
                        if 0 <= yy < h and 0 <= xx < w:
                            t[(ky * 3 + kx) * n + row_n, b * hw + yy * w + xx] = 1.0
    return t


def _build_squeeze(batch, h, w):
    """(4*N1, N0) 0/1 selection matrix implementing the NHWC space-to-depth squeeze
    of an (h, w) grid to (h/2, w/2) with quadrant-major output channels."""
    h2, w2 = h // 2, w // 2
    hw, hw2 = h * w, h2 * w2
    n0, n1 = batch * hw, batch * hw2
    s = np.zeros((4 * n1, n0), np.float32)
    for b in range(batch):
        for y1 in range(h2):
            for x1 in range(w2):
                row_n = b * hw2 + y1 * w2 + x1
                for py in range(2):
                    for px in range(2):
                        q = py * 2 + px
                        src = b * hw + (2 * y1 + py) * w + (2 * x1 + px)
                        s[q * n1 + row_n, src] = 1.0
    return s


def build_flow_constants(batch, resolution, scales):
    taps, sqs = [], []
    for sc in range(scales):
        r = resolution // (2 ** (sc + 1))       # spatial size seen by scale sc (post-squeeze)
        taps.append(jnp.asarray(_build_tap(batch, r, r)))
        if sc < scales - 1:
            sqs.append(jnp.asarray(_build_squeeze(batch, r, r)))
    return taps, sqs


# ------------------------------- params / wrapper -------------------------------

def squeeze2d(x):
    """NHWC space-to-depth (pure XLA layout op on the known input)."""
    B, H, W, C = x.shape
    x = x.reshape(B, H // 2, 2, W // 2, 2, C)
    x = x.transpose(0, 1, 3, 2, 4, 5)
    return x.reshape(B, H // 2, W // 2, 4 * C)


def init_params(key, channels, dim, scales, scale_depth, hidden):
    # TODO(synk): synthetic coupling-net weights; caflow's GatedConvNet/ConcatELU and
    #             actnorm internals are not in the provided source.
    params = []
    for sc in range(scales):
        scale_ch = channels if sc == 0 else (2 ** ((dim - 1) * sc)) * channels
        chalf = (scale_ch * 2 ** dim) // 2      # channel half after the per-scale squeeze
        layers = []
        for _ in range(scale_depth):
            key, k1, k2 = jax.random.split(key, 3)
            layers.append(dict(
                # im2col weight layout: rows ordered (tap k, cin) to match the in-kernel
                # patch lane ordering.
                w1=0.05 * jax.random.normal(k1, (9 * chalf, hidden), jnp.float32),
                b1=jnp.zeros((1, hidden), jnp.float32),
                w2=0.05 * jax.random.normal(k2, (9 * hidden, 2 * chalf), jnp.float32),
                b2=jnp.zeros((1, 2 * chalf), jnp.float32),
                sf=jnp.zeros((1, chalf), jnp.float32),
            ))
        params.append(layers)
    return params


def unconditional_flow_encode(y_nchw, params, taps, sqs, quants, noise_key, alpha=1e-5):
    """Mirrors UnconditionalFlow.forward(y, reverse=False) -> (z_enc, logprior, logdet)."""
    B, C, H, W = y_nchw.shape
    scales, depth = len(params), len(params[0])
    numel = C * H * W

    y = jnp.transpose(y_nchw, (0, 2, 3, 1)).astype(jnp.float32)            # NCHW -> NHWC
    noise = jax.random.uniform(noise_key, y.shape, jnp.float32)

    # Initial squeeze on the known input (pure layout) -> (B*H0*W0, C0) slab.
    x0 = squeeze2d(y)
    u0 = squeeze2d(noise)
    B_, H0, W0, C0 = x0.shape
    n0 = B_ * H0 * W0
    x0 = x0.reshape(n0, C0)
    u0 = u0.reshape(n0, C0)

    # Per-scale output slab shapes (intermediate scales emit the split-off half,
    # the last scale emits everything).
    z_shapes = []
    n_sc, c_sc = n0, C0
    for sc in range(scales):
        last = sc == scales - 1
        z_shapes.append((n_sc, c_sc if last else c_sc // 2))
        n_sc, c_sc = n_sc // 4, (c_sc // 2) * 4

    inputs = [x0, u0] + list(taps) + list(sqs)
    for sc in range(scales):
        for d in range(depth):
            p = params[sc][d]
            inputs += [p["w1"], p["b1"], p["w2"], p["b2"], p["sf"]]

    kern = functools.partial(
        _flow_encode_kernel, batch=B, scales=scales, depth=depth,
        quants=float(quants), alpha=float(alpha), numel=float(numel))

    out_shape = tuple(jax.ShapeDtypeStruct(s, jnp.float32) for s in z_shapes) \
        + (jax.ShapeDtypeStruct((1, 2 * B), jnp.float32),)

    # No grid / no BlockSpecs: whole-problem residency in VMEM (~1.5 MB), one invocation.
    outs = pl.pallas_call(kern, out_shape=out_shape)(*inputs)

    z_slabs, ldlp = outs[:scales], outs[scales]
    logdet = ldlp[0, :B]
    logprior = ldlp[0, B:]

    # Slab -> NCHW (tiny XLA layout ops on the outputs).
    z_enc = []
    h_sc, w_sc = H // 2, W // 2
    for sc in range(scales):
        zc = z_shapes[sc][1]
        z_enc.append(z_slabs[sc].reshape(B, h_sc, w_sc, zc).transpose(0, 3, 1, 2))
        h_sc, w_sc = h_sc // 2, w_sc // 2
    return z_enc, logprior, logdet


# ----------------------------------- driver -----------------------------------

if __name__ == "__main__":
    B = 2
    channels = 2
    resolution = 16
    dim = 2
    scales = 2
    scale_depth = 2
    quants = 256
    hidden = 16

    key = jax.random.PRNGKey(0)
    kparam, kdata, knoise = jax.random.split(key, 3)

    params = init_params(kparam, channels, dim, scales, scale_depth, hidden)
    taps, sqs = build_flow_constants(B, resolution, scales)
    y = jax.random.randint(kdata, (B, channels, resolution, resolution),
                           0, quants).astype(jnp.float32)

    encode = jax.jit(
        lambda yy, pp, tt, ss, kk: unconditional_flow_encode(yy, pp, tt, ss, quants, kk))
    z_enc, logprior, logdet = encode(y, params, taps, sqs, knoise)
    jax.block_until_ready((z_enc, logprior, logdet))

    assert z_enc[0].shape == (B, 4, 8, 8)
    assert z_enc[1].shape == (B, 16, 4, 4)
    assert logprior.shape == (B,) and logdet.shape == (B,)
    assert bool(jnp.all(jnp.isfinite(logprior))) and bool(jnp.all(jnp.isfinite(logdet)))
    print("KERNEL_OK")
</pallas_src>

<mosaic_0001>
module attributes {stable_mosaic.version = 11 : i64} {
  func.func @_flow_encode_kernel(%arg0: memref<128x8xf32, #tpu.memory_space<vmem>>, %arg1: memref<128x8xf32, #tpu.memory_space<vmem>>, %arg2: memref<1152x128xf32, #tpu.memory_space<vmem>>, %arg3: memref<288x32xf32, #tpu.memory_space<vmem>>, %arg4: memref<128x128xf32, #tpu.memory_space<vmem>>, %arg5: memref<36x16xf32, #tpu.memory_space<vmem>>, %arg6: memref<1x16xf32, #tpu.memory_space<vmem>>, %arg7: memref<144x8xf32, #tpu.memory_space<vmem>>, %arg8: memref<1x8xf32, #tpu.memory_space<vmem>>, %arg9: memref<1x4xf32, #tpu.memory_space<vmem>>, %arg10: memref<36x16xf32, #tpu.memory_space<vmem>>, %arg11: memref<1x16xf32, #tpu.memory_space<vmem>>, %arg12: memref<144x8xf32, #tpu.memory_space<vmem>>, %arg13: memref<1x8xf32, #tpu.memory_space<vmem>>, %arg14: memref<1x4xf32, #tpu.memory_space<vmem>>, %arg15: memref<72x16xf32, #tpu.memory_space<vmem>>, %arg16: memref<1x16xf32, #tpu.memory_space<vmem>>, %arg17: memref<144x16xf32, #tpu.memory_space<vmem>>, %arg18: memref<1x16xf32, #tpu.memory_space<vmem>>, %arg19: memref<1x8xf32, #tpu.memory_space<vmem>>, %arg20: memref<72x16xf32, #tpu.memory_space<vmem>>, %arg21: memref<1x16xf32, #tpu.memory_space<vmem>>, %arg22: memref<144x16xf32, #tpu.memory_space<vmem>>, %arg23: memref<1x16xf32, #tpu.memory_space<vmem>>, %arg24: memref<1x8xf32, #tpu.memory_space<vmem>>, %arg25: memref<128x4xf32, #tpu.memory_space<vmem>>, %arg26: memref<32x16xf32, #tpu.memory_space<vmem>>, %arg27: memref<1x4xf32, #tpu.memory_space<vmem>>) attributes {dimension_semantics = [], scalar_prefetch = 0 : i64, scratch_operands = 0 : i64, tpu.core_type = #tpu.core_type<tc>} {
    %c0 = arith.constant 0 : index
    %c0_0 = arith.constant 0 : index
    %0 = vector.load %arg0[%c0, %c0_0] : memref<128x8xf32, #tpu.memory_space<vmem>>, vector<128x8xf32>
    %c0_1 = arith.constant 0 : index
    %c0_2 = arith.constant 0 : index
    %1 = vector.load %arg1[%c0_1, %c0_2] : memref<128x8xf32, #tpu.memory_space<vmem>>, vector<128x8xf32>
    %2 = arith.addf %0, %1 : vector<128x8xf32>
    %cst = arith.constant 3.906250e-03 : f32
    %3 = vector.broadcast %cst : f32 to vector<128x8xf32>
    %4 = arith.mulf %2, %3 : vector<128x8xf32>
    %cst_3 = arith.constant 0.999989986 : f32
    %5 = vector.broadcast %cst_3 : f32 to vector<128x8xf32>
    %6 = arith.mulf %4, %5 : vector<128x8xf32>
    %cst_4 = arith.constant 5.000000e-06 : f32
    %7 = vector.broadcast %cst_4 : f32 to vector<128x8xf32>
    %8 = arith.addf %6, %7 : vector<128x8xf32>
    %9 = math.log %8 : vector<128x8xf32>
    %cst_5 = arith.constant 1.000000e+00 : f32
    %10 = vector.broadcast %cst_5 : f32 to vector<128x8xf32>
    %11 = arith.subf %10, %8 : vector<128x8xf32>
    %12 = math.log %11 : vector<128x8xf32>
    %cst_6 = arith.constant 0.000000e+00 : f32
    %13 = vector.broadcast %cst_6 : f32 to vector<128x8xf32>
    %14 = arith.subf %13, %9 : vector<128x8xf32>
    %15 = arith.subf %14, %12 : vector<128x8xf32>
    %cst_7 = arith.constant dense<0.000000e+00> : vector<128xf32>
    %16 = vector.multi_reduction <add>, %15, %cst_7 [1] : vector<128x8xf32> to vector<128xf32>
    %17 = vector.shape_cast %16 : vector<128xf32> to vector<128x1xf32>
    %18 = tpu.iota {dimensions = array<i32: 0>} : vector<128x2xi32>
    %19 = tpu.iota {dimensions = array<i32: 1>} : vector<128x2xi32>
    %c64_i32 = arith.constant 64 : i32
    %20 = vector.broadcast %c64_i32 : i32 to vector<128x2xi32>
    %21 = arith.muli %19, %20 : vector<128x2xi32>
    %22 = arith.cmpi sge, %18, %21 : vector<128x2xi32>
    %c64_i32_8 = arith.constant 64 : i32
    %23 = vector.broadcast %c64_i32_8 : i32 to vector<128x2xi32>
    %24 = arith.addi %21, %23 : vector<128x2xi32>
    %25 = arith.cmpi slt, %18, %24 : vector<128x2xi32>
    %26 = arith.andi %22, %25 : vector<128x2xi1>
    %27 = arith.extui %26 : vector<128x2xi1> to vector<128x2xi32>
    %28 = arith.sitofp %27 : vector<128x2xi32> to vector<128x2xf32>
    %29 = vector.broadcast %17 : vector<128x1xf32> to vector<128x2xf32>
    %30 = arith.mulf %28, %29 : vector<128x2xf32>
    %cst_9 = arith.constant dense<0.000000e+00> : vector<2xf32>
    %31 = vector.multi_reduction <add>, %30, %cst_9 [0] : vector<128x2xf32> to vector<2xf32>
    %32 = vector.shape_cast %31 : vector<2xf32> to vector<1x2xf32>
    %cst_10 = arith.constant -2839.13599 : f32
    %33 = vector.broadcast %cst_10 : f32 to vector<1x2xf32>
    %34 = arith.addf %33, %32 : vector<1x2xf32>
    %35 = arith.subf %9, %12 : vector<128x8xf32>
    %cst_11 = arith.constant 0.000000e+00 : f32
    %36 = vector.broadcast %cst_11 : f32 to vector<1x2xf32>
    %c0_12 = arith.constant 0 : index
    %c0_13 = arith.constant 0 : index
    %37 = vector.load %arg2[%c0_12, %c0_13] : memref<1152x128xf32, #tpu.memory_space<vmem>>, vector<1152x128xf32>
    %38 = vector.extract_strided_slice %35 {offsets = [0, 0], sizes = [128, 4], strides = [1, 1]} : vector<128x8xf32> to vector<128x4xf32>
    %39 = vector.extract_strided_slice %35 {offsets = [0, 4], sizes = [128, 4], strides = [1, 1]} : vector<128x8xf32> to vector<128x4xf32>
    %c0_14 = arith.constant 0 : index
    %c0_15 = arith.constant 0 : index
    %40 = vector.load %arg5[%c0_14, %c0_15] : memref<36x16xf32, #tpu.memory_space<vmem>>, vector<36x16xf32>
    %c0_16 = arith.constant 0 : index
    %c0_17 = arith.constant 0 : index
    %41 = vector.load %arg6[%c0_16, %c0_17] : memref<1x16xf32, #tpu.memory_space<vmem>>, vector<1x16xf32>
    %cst_18 = arith.constant dense<0.000000e+00> : vector<1152x4xf32>
    %42 = tpu.matmul %37, %38, %cst_18 {dimension_numbers = #tpu.dot_dimension_numbers<[1], [0], [0], [1], [0, 0, 1, 1], [], []>} : vector<1152x128xf32>, vector<128x4xf32>, vector<1152x4xf32> -> vector<1152x4xf32>
    %43 = vector.extract_strided_slice %42 {offsets = [0, 0], sizes = [128, 4], strides = [1, 1]} : vector<1152x4xf32> to vector<128x4xf32>
    %44 = vector.extract_strided_slice %42 {offsets = [128, 0], sizes = [128, 4], strides = [1, 1]} : vector<1152x4xf32> to vector<128x4xf32>
    %45 = vector.extract_strided_slice %42 {offsets = [256, 0], sizes = [128, 4], strides = [1, 1]} : vector<1152x4xf32> to vector<128x4xf32>
    %46 = vector.extract_strided_slice %42 {offsets = [384, 0], sizes = [128, 4], strides = [1, 1]} : vector<1152x4xf32> to vector<128x4xf32>
    %47 = vector.extract_strided_slice %42 {offsets = [512, 0], sizes = [128, 4], strides = [1, 1]} : vector<1152x4xf32> to vector<128x4xf32>
    %48 = vector.extract_strided_slice %42 {offsets = [640, 0], sizes = [128, 4], strides = [1, 1]} : vector<1152x4xf32> to vector<128x4xf32>
    %49 = vector.extract_strided_slice %42 {offsets = [768, 0], sizes = [128, 4], strides = [1, 1]} : vector<1152x4xf32> to vector<128x4xf32>
    %50 = vector.extract_strided_slice %42 {offsets = [896, 0], sizes = [128, 4], strides = [1, 1]} : vector<1152x4xf32> to vector<128x4xf32>
    %51 = vector.extract_strided_slice %42 {offsets = [1024, 0], sizes = [128, 4], strides = [1, 1]} : vector<1152x4xf32> to vector<128x4xf32>
    %52 = tpu.concatenate %43, %44, %45, %46, %47, %48, %49, %50, %51 in 1 : vector<128x4xf32>, vector<128x4xf32>, vector<128x4xf32>, vector<128x4xf32>, vector<128x4xf32>, vector<128x4xf32>, vector<128x4xf32>, vector<128x4xf32>, vector<128x4xf32> -> vector<128x36xf32>
    %cst_19 = arith.constant dense<0.000000e+00> : vector<128x16xf32>
    %53 = tpu.matmul %52, %40, %cst_19 {dimension_numbers = #tpu.dot_dimension_numbers<[1], [0], [0], [1], [0, 0, 1, 1], [], []>} : vector<128x36xf32>, vector<36x16xf32>, vector<128x16xf32> -> vector<128x16xf32>
    %54 = vector.broadcast %41 : vector<1x16xf32> to vector<128x16xf32>
    %55 = arith.addf %53, %54 : vector<128x16xf32>
    %cst_20 = arith.constant 0.000000e+00 : f32
    %56 = vector.broadcast %cst_20 : f32 to vector<128x16xf32>
    %57 = arith.maximumf %55, %56 : vector<128x16xf32>
    %c0_21 = arith.constant 0 : index
    %c0_22 = arith.constant 0 : index
    %58 = vector.load %arg7[%c0_21, %c0_22] : memref<144x8xf32, #tpu.memory_space<vmem>>, vector<144x8xf32>
    %c0_23 = arith.constant 0 : index
    %c0_24 = arith.constant 0 : index
    %59 = vector.load %arg8[%c0_23, %c0_24] : memref<1x8xf32, #tpu.memory_space<vmem>>, vector<1x8xf32>
    %cst_25 = arith.constant dense<0.000000e+00> : vector<1152x16xf32>
    %60 = tpu.matmul %37, %57, %cst_25 {dimension_numbers = #tpu.dot_dimension_numbers<[1], [0], [0], [1], [0, 0, 1, 1], [], []>} : vector<1152x128xf32>, vector<128x16xf32>, vector<1152x16xf32> -> vector<1152x16xf32>
    %61 = vector.extract_strided_slice %60 {offsets = [0, 0], sizes = [128, 16], strides = [1, 1]} : vector<1152x16xf32> to vector<128x16xf32>
    %62 = vector.extract_strided_slice %60 {offsets = [128, 0], sizes = [128, 16], strides = [1, 1]} : vector<1152x16xf32> to vector<128x16xf32>
    %63 = vector.extract_strided_slice %60 {offsets = [256, 0], sizes = [128, 16], strides = [1, 1]} : vector<1152x16xf32> to vector<128x16xf32>
    %64 = vector.extract_strided_slice %60 {offsets = [384, 0], sizes = [128, 16], strides = [1, 1]} : vector<1152x16xf32> to vector<128x16xf32>
    %65 = vector.extract_strided_slice %60 {offsets = [512, 0], sizes = [128, 16], strides = [1, 1]} : vector<1152x16xf32> to vector<128x16xf32>
    %66 = vector.extract_strided_slice %60 {offsets = [640, 0], sizes = [128, 16], strides = [1, 1]} : vector<1152x16xf32> to vector<128x16xf32>
    %67 = vector.extract_strided_slice %60 {offsets = [768, 0], sizes = [128, 16], strides = [1, 1]} : vector<1152x16xf32> to vector<128x16xf32>
    %68 = vector.extract_strided_slice %60 {offsets = [896, 0], sizes = [128, 16], strides = [1, 1]} : vector<1152x16xf32> to vector<128x16xf32>
    %69 = vector.extract_strided_slice %60 {offsets = [1024, 0], sizes = [128, 16], strides = [1, 1]} : vector<1152x16xf32> to vector<128x16xf32>
    %70 = tpu.concatenate %61, %62, %63, %64, %65, %66, %67, %68, %69 in 1 : vector<128x16xf32>, vector<128x16xf32>, vector<128x16xf32>, vector<128x16xf32>, vector<128x16xf32>, vector<128x16xf32>, vector<128x16xf32>, vector<128x16xf32>, vector<128x16xf32> -> vector<128x144xf32>
    %cst_26 = arith.constant dense<0.000000e+00> : vector<128x8xf32>
    %71 = tpu.matmul %70, %58, %cst_26 {dimension_numbers = #tpu.dot_dimension_numbers<[1], [0], [0], [1], [0, 0, 1, 1], [], []>} : vector<128x144xf32>, vector<144x8xf32>, vector<128x8xf32> -> vector<128x8xf32>
    %72 = vector.broadcast %59 : vector<1x8xf32> to vector<128x8xf32>
    %73 = arith.addf %71, %72 : vector<128x8xf32>
    %c0_27 = arith.constant 0 : index
    %c0_28 = arith.constant 0 : index
    %74 = vector.load %arg9[%c0_27, %c0_28] : memref<1x4xf32, #tpu.memory_space<vmem>>, vector<1x4xf32>
    %75 = vector.extract_strided_slice %73 {offsets = [0, 0], sizes = [128, 4], strides = [1, 1]} : vector<128x8xf32> to vector<128x4xf32>
    %cst_29 = arith.constant 0.000000e+00 : f32
    %76 = vector.broadcast %cst_29 : f32 to vector<1x4xf32>
    %77 = arith.subf %76, %74 : vector<1x4xf32>
    %78 = math.exp %77 : vector<1x4xf32>
    %79 = vector.broadcast %78 : vector<1x4xf32> to vector<128x4xf32>
    %80 = arith.mulf %75, %79 : vector<128x4xf32>
    %81 = math.tanh %80 : vector<128x4xf32>
    %82 = math.exp %74 : vector<1x4xf32>
    %83 = vector.broadcast %82 : vector<1x4xf32> to vector<128x4xf32>
    %84 = arith.mulf %81, %83 : vector<128x4xf32>
    %85 = vector.extract_strided_slice %73 {offsets = [0, 4], sizes = [128, 4], strides = [1, 1]} : vector<128x8xf32> to vector<128x4xf32>
    %86 = arith.addf %39, %85 : vector<128x4xf32>
    %87 = math.exp %84 : vector<128x4xf32>
    %88 = arith.mulf %86, %87 : vector<128x4xf32>
    %cst_30 = arith.constant dense<0.000000e+00> : vector<128xf32>
    %89 = vector.multi_reduction <add>, %84, %cst_30 [1] : vector<128x4xf32> to vector<128xf32>
    %90 = vector.shape_cast %89 : vector<128xf32> to vector<128x1xf32>
    %91 = tpu.iota {dimensions = array<i32: 0>} : vector<128x2xi32>
    %92 = tpu.iota {dimensions = array<i32: 1>} : vector<128x2xi32>
    %c64_i32_31 = arith.constant 64 : i32
    %93 = vector.broadcast %c64_i32_31 : i32 to vector<128x2xi32>
    %94 = arith.muli %92, %93 : vector<128x2xi32>
    %95 = arith.cmpi sge, %91, %94 : vector<128x2xi32>
    %c64_i32_32 = arith.constant 64 : i32
    %96 = vector.broadcast %c64_i32_32 : i32 to vector<128x2xi32>
    %97 = arith.addi %94, %96 : vector<128x2xi32>
    %98 = arith.cmpi slt, %91, %97 : vector<128x2xi32>
    %99 = arith.andi %95, %98 : vector<128x2xi1>
    %100 = arith.extui %99 : vector<128x2xi1> to vector<128x2xi32>
    %101 = arith.sitofp %100 : vector<128x2xi32> to vector<128x2xf32>
    %102 = vector.broadcast %90 : vector<128x1xf32> to vector<128x2xf32>
    %103 = arith.mulf %101, %102 : vector<128x2xf32>
    %cst_33 = arith.constant dense<0.000000e+00> : vector<2xf32>
    %104 = vector.multi_reduction <add>, %103, %cst_33 [0] : vector<128x2xf32> to vector<2xf32>
    %105 = vector.shape_cast %104 : vector<2xf32> to vector<1x2xf32>
    %106 = arith.addf %34, %105 : vector<1x2xf32>
    %c0_34 = arith.constant 0 : index
    %c0_35 = arith.constant 0 : index
    %107 = vector.load %arg10[%c0_34, %c0_35] : memref<36x16xf32, #tpu.memory_space<vmem>>, vector<36x16xf32>
    %c0_36 = arith.constant 0 : index
    %c0_37 = arith.constant 0 : index
    %108 = vector.load %arg11[%c0_36, %c0_37] : memref<1x16xf32, #tpu.memory_space<vmem>>, vector<1x16xf32>
    %cst_38 = arith.constant dense<0.000000e+00> : vector<1152x4xf32>
    %109 = tpu.matmul %37, %88, %cst_38 {dimension_numbers = #tpu.dot_dimension_numbers<[1], [0], [0], [1], [0, 0, 1, 1], [], []>} : vector<1152x128xf32>, vector<128x4xf32>, vector<1152x4xf32> -> vector<1152x4xf32>
    %110 = vector.extract_strided_slice %109 {offsets = [0, 0], sizes = [128, 4], strides = [1, 1]} : vector<1152x4xf32> to vector<128x4xf32>
    %111 = vector.extract_strided_slice %109 {offsets = [128, 0], sizes = [128, 4], strides = [1, 1]} : vector<1152x4xf32> to vector<128x4xf32>
    %112 = vector.extract_strided_slice %109 {offsets = [256, 0], sizes = [128, 4], strides = [1, 1]} : vector<1152x4xf32> to vector<128x4xf32>
    %113 = vector.extract_strided_slice %109 {offsets = [384, 0], sizes = [128, 4], strides = [1, 1]} : vector<1152x4xf32> to vector<128x4xf32>
    %114 = vector.extract_strided_slice %109 {offsets = [512, 0], sizes = [128, 4], strides = [1, 1]} : vector<1152x4xf32> to vector<128x4xf32>
    %115 = vector.extract_strided_slice %109 {offsets = [640, 0], sizes = [128, 4], strides = [1, 1]} : vector<1152x4xf32> to vector<128x4xf32>
    %116 = vector.extract_strided_slice %109 {offsets = [768, 0], sizes = [128, 4], strides = [1, 1]} : vector<1152x4xf32> to vector<128x4xf32>
    %117 = vector.extract_strided_slice %109 {offsets = [896, 0], sizes = [128, 4], strides = [1, 1]} : vector<1152x4xf32> to vector<128x4xf32>
    %118 = vector.extract_strided_slice %109 {offsets = [1024, 0], sizes = [128, 4], strides = [1, 1]} : vector<1152x4xf32> to vector<128x4xf32>
    %119 = tpu.concatenate %110, %111, %112, %113, %114, %115, %116, %117, %118 in 1 : vector<128x4xf32>, vector<128x4xf32>, vector<128x4xf32>, vector<128x4xf32>, vector<128x4xf32>, vector<128x4xf32>, vector<128x4xf32>, vector<128x4xf32>, vector<128x4xf32> -> vector<128x36xf32>
    %cst_39 = arith.constant dense<0.000000e+00> : vector<128x16xf32>
    %120 = tpu.matmul %119, %107, %cst_39 {dimension_numbers = #tpu.dot_dimension_numbers<[1], [0], [0], [1], [0, 0, 1, 1], [], []>} : vector<128x36xf32>, vector<36x16xf32>, vector<128x16xf32> -> vector<128x16xf32>
    %121 = vector.broadcast %108 : vector<1x16xf32> to vector<128x16xf32>
    %122 = arith.addf %120, %121 : vector<128x16xf32>
    %cst_40 = arith.constant 0.000000e+00 : f32
    %123 = vector.broadcast %cst_40 : f32 to vector<128x16xf32>
    %124 = arith.maximumf %122, %123 : vector<128x16xf32>
    %c0_41 = arith.constant 0 : index
    %c0_42 = arith.constant 0 : index
    %125 = vector.load %arg12[%c0_41, %c0_42] : memref<144x8xf32, #tpu.memory_space<vmem>>, vector<144x8xf32>
    %c0_43 = arith.constant 0 : index
    %c0_44 = arith.constant 0 : index
    %126 = vector.load %arg13[%c0_43, %c0_44] : memref<1x8xf32, #tpu.memory_space<vmem>>, vector<1x8xf32>
    %cst_45 = arith.constant dense<0.000000e+00> : vector<1152x16xf32>
    %127 = tpu.matmul %37, %124, %cst_45 {dimension_numbers = #tpu.dot_dimension_numbers<[1], [0], [0], [1], [0, 0, 1, 1], [], []>} : vector<1152x128xf32>, vector<128x16xf32>, vector<1152x16xf32> -> vector<1152x16xf32>
    %128 = vector.extract_strided_slice %127 {offsets = [0, 0], sizes = [128, 16], strides = [1, 1]} : vector<1152x16xf32> to vector<128x16xf32>
    %129 = vector.extract_strided_slice %127 {offsets = [128, 0], sizes = [128, 16], strides = [1, 1]} : vector<1152x16xf32> to vector<128x16xf32>
    %130 = vector.extract_strided_slice %127 {offsets = [256, 0], sizes = [128, 16], strides = [1, 1]} : vector<1152x16xf32> to vector<128x16xf32>
    %131 = vector.extract_strided_slice %127 {offsets = [384, 0], sizes = [128, 16], strides = [1, 1]} : vector<1152x16xf32> to vector<128x16xf32>
    %132 = vector.extract_strided_slice %127 {offsets = [512, 0], sizes = [128, 16], strides = [1, 1]} : vector<1152x16xf32> to vector<128x16xf32>
    %133 = vector.extract_strided_slice %127 {offsets = [640, 0], sizes = [128, 16], strides = [1, 1]} : vector<1152x16xf32> to vector<128x16xf32>
    %134 = vector.extract_strided_slice %127 {offsets = [768, 0], sizes = [128, 16], strides = [1, 1]} : vector<1152x16xf32> to vector<128x16xf32>
    %135 = vector.extract_strided_slice %127 {offsets = [896, 0], sizes = [128, 16], strides = [1, 1]} : vector<1152x16xf32> to vector<128x16xf32>
    %136 = vector.extract_strided_slice %127 {offsets = [1024, 0], sizes = [128, 16], strides = [1, 1]} : vector<1152x16xf32> to vector<128x16xf32>
    %137 = tpu.concatenate %128, %129, %130, %131, %132, %133, %134, %135, %136 in 1 : vector<128x16xf32>, vector<128x16xf32>, vector<128x16xf32>, vector<128x16xf32>, vector<128x16xf32>, vector<128x16xf32>, vector<128x16xf32>, vector<128x16xf32>, vector<128x16xf32> -> vector<128x144xf32>
    %cst_46 = arith.constant dense<0.000000e+00> : vector<128x8xf32>
    %138 = tpu.matmul %137, %125, %cst_46 {dimension_numbers = #tpu.dot_dimension_numbers<[1], [0], [0], [1], [0, 0, 1, 1], [], []>} : vector<128x144xf32>, vector<144x8xf32>, vector<128x8xf32> -> vector<128x8xf32>
    %139 = vector.broadcast %126 : vector<1x8xf32> to vector<128x8xf32>
    %140 = arith.addf %138, %139 : vector<128x8xf32>
    %c0_47 = arith.constant 0 : index
    %c0_48 = arith.constant 0 : index
    %141 = vector.load %arg14[%c0_47, %c0_48] : memref<1x4xf32, #tpu.memory_space<vmem>>, vector<1x4xf32>
    %142 = vector.extract_strided_slice %140 {offsets = [0, 0], sizes = [128, 4], strides = [1, 1]} : vector<128x8xf32> to vector<128x4xf32>
    %cst_49 = arith.constant 0.000000e+00 : f32
    %143 = vector.broadcast %cst_49 : f32 to vector<1x4xf32>
    %144 = arith.subf %143, %141 : vector<1x4xf32>
    %145 = math.exp %144 : vector<1x4xf32>
    %146 = vector.broadcast %145 : vector<1x4xf32> to vector<128x4xf32>
    %147 = arith.mulf %142, %146 : vector<128x4xf32>
    %148 = math.tanh %147 : vector<128x4xf32>
    %149 = math.exp %141 : vector<1x4xf32>
    %150 = vector.broadcast %149 : vector<1x4xf32> to vector<128x4xf32>
    %151 = arith.mulf %148, %150 : vector<128x4xf32>
    %152 = vector.extract_strided_slice %140 {offsets = [0, 4], sizes = [128, 4], strides = [1, 1]} : vector<128x8xf32> to vector<128x4xf32>
    %153 = arith.addf %38, %152 : vector<128x4xf32>
    %154 = math.exp %151 : vector<128x4xf32>
    %155 = arith.mulf %153, %154 : vector<128x4xf32>
    %cst_50 = arith.constant dense<0.000000e+00> : vector<128xf32>
    %156 = vector.multi_reduction <add>, %151, %cst_50 [1] : vector<128x4xf32> to vector<128xf32>
    %157 = vector.shape_cast %156 : vector<128xf32> to vector<128x1xf32>
    %158 = tpu.iota {dimensions = array<i32: 0>} : vector<128x2xi32>
    %159 = tpu.iota {dimensions = array<i32: 1>} : vector<128x2xi32>
    %c64_i32_51 = arith.constant 64 : i32
    %160 = vector.broadcast %c64_i32_51 : i32 to vector<128x2xi32>
    %161 = arith.muli %159, %160 : vector<128x2xi32>
    %162 = arith.cmpi sge, %158, %161 : vector<128x2xi32>
    %c64_i32_52 = arith.constant 64 : i32
    %163 = vector.broadcast %c64_i32_52 : i32 to vector<128x2xi32>
    %164 = arith.addi %161, %163 : vector<128x2xi32>
    %165 = arith.cmpi slt, %158, %164 : vector<128x2xi32>
    %166 = arith.andi %162, %165 : vector<128x2xi1>
    %167 = arith.extui %166 : vector<128x2xi1> to vector<128x2xi32>
    %168 = arith.sitofp %167 : vector<128x2xi32> to vector<128x2xf32>
    %169 = vector.broadcast %157 : vector<128x1xf32> to vector<128x2xf32>
    %170 = arith.mulf %168, %169 : vector<128x2xf32>
    %cst_53 = arith.constant dense<0.000000e+00> : vector<2xf32>
    %171 = vector.multi_reduction <add>, %170, %cst_53 [0] : vector<128x2xf32> to vector<2xf32>
    %172 = vector.shape_cast %171 : vector<2xf32> to vector<1x2xf32>
    %173 = arith.addf %106, %172 : vector<1x2xf32>
    %cst_54 = arith.constant -5.000000e-01 : f32
    %174 = vector.broadcast %cst_54 : f32 to vector<128x4xf32>
    %175 = arith.mulf %174, %155 : vector<128x4xf32>
    %176 = arith.mulf %175, %155 : vector<128x4xf32>
    %cst_55 = arith.constant 0.918938517 : f32
    %177 = vector.broadcast %cst_55 : f32 to vector<128x4xf32>
    %178 = arith.subf %176, %177 : vector<128x4xf32>
    %cst_56 = arith.constant dense<0.000000e+00> : vector<128xf32>
    %179 = vector.multi_reduction <add>, %178, %cst_56 [1] : vector<128x4xf32> to vector<128xf32>
    %180 = vector.shape_cast %179 : vector<128xf32> to vector<128x1xf32>
    %181 = tpu.iota {dimensions = array<i32: 0>} : vector<128x2xi32>
    %182 = tpu.iota {dimensions = array<i32: 1>} : vector<128x2xi32>
    %c64_i32_57 = arith.constant 64 : i32
    %183 = vector.broadcast %c64_i32_57 : i32 to vector<128x2xi32>
    %184 = arith.muli %182, %183 : vector<128x2xi32>
    %185 = arith.cmpi sge, %181, %184 : vector<128x2xi32>
    %c64_i32_58 = arith.constant 64 : i32
    %186 = vector.broadcast %c64_i32_58 : i32 to vector<128x2xi32>
    %187 = arith.addi %184, %186 : vector<128x2xi32>
    %188 = arith.cmpi slt, %181, %187 : vector<128x2xi32>
    %189 = arith.andi %185, %188 : vector<128x2xi1>
    %190 = arith.extui %189 : vector<128x2xi1> to vector<128x2xi32>
    %191 = arith.sitofp %190 : vector<128x2xi32> to vector<128x2xf32>
    %192 = vector.broadcast %180 : vector<128x1xf32> to vector<128x2xf32>
    %193 = arith.mulf %191, %192 : vector<128x2xf32>
    %cst_59 = arith.constant dense<0.000000e+00> : vector<2xf32>
    %194 = vector.multi_reduction <add>, %193, %cst_59 [0] : vector<128x2xf32> to vector<2xf32>
    %195 = vector.shape_cast %194 : vector<2xf32> to vector<1x2xf32>
    %196 = arith.addf %36, %195 : vector<1x2xf32>
    %c0_60 = arith.constant 0 : index
    %c0_61 = arith.constant 0 : index
    %197 = vector.load %arg25[%c0_60, %c0_61] : memref<128x4xf32, #tpu.memory_space<vmem>>, vector<128x4xf32>
    tpu.vector_store %arg25[%c0_60, %c0_61], %155 {strides = array<i32>} : memref<128x4xf32, #tpu.memory_space<vmem>>, vector<128x4xf32>,
    %c0_62 = arith.constant 0 : index
    %c0_63 = arith.constant 0 : index
    %198 = vector.load %arg4[%c0_62, %c0_63] : memref<128x128xf32, #tpu.memory_space<vmem>>, vector<128x128xf32>
    %cst_64 = arith.constant dense<0.000000e+00> : vector<128x4xf32>
    %199 = tpu.matmul %198, %88, %cst_64 {dimension_numbers = #tpu.dot_dimension_numbers<[1], [0], [0], [1], [0, 0, 1, 1], [], []>} : vector<128x128xf32>, vector<128x4xf32>, vector<128x4xf32> -> vector<128x4xf32>
    %200 = vector.extract_strided_slice %199 {offsets = [0, 0], sizes = [32, 4], strides = [1, 1]} : vector<128x4xf32> to vector<32x4xf32>
    %201 = vector.extract_strided_slice %199 {offsets = [32, 0], sizes = [32, 4], strides = [1, 1]} : vector<128x4xf32> to vector<32x4xf32>
    %202 = vector.extract_strided_slice %199 {offsets = [64, 0], sizes = [32, 4], strides = [1, 1]} : vector<128x4xf32> to vector<32x4xf32>
    %203 = vector.extract_strided_slice %199 {offsets = [96, 0], sizes = [32, 4], strides = [1, 1]} : vector<128x4xf32> to vector<32x4xf32>
    %204 = tpu.concatenate %200, %201, %202, %203 in 1 : vector<32x4xf32>, vector<32x4xf32>, vector<32x4xf32>, vector<32x4xf32> -> vector<32x16xf32>
    %c0_65 = arith.constant 0 : index
    %c0_66 = arith.constant 0 : index
    %205 = vector.load %arg3[%c0_65, %c0_66] : memref<288x32xf32, #tpu.memory_space<vmem>>, vector<288x32xf32>
    %206 = vector.extract_strided_slice %204 {offsets = [0, 0], sizes = [32, 8], strides = [1, 1]} : vector<32x16xf32> to vector<32x8xf32>
    %207 = vector.extract_strided_slice %204 {offsets = [0, 8], sizes = [32, 8], strides = [1, 1]} : vector<32x16xf32> to vector<32x8xf32>
    %c0_67 = arith.constant 0 : index
    %c0_68 = arith.constant 0 : index
    %208 = vector.load %arg15[%c0_67, %c0_68] : memref<72x16xf32, #tpu.memory_space<vmem>>, vector<72x16xf32>
    %c0_69 = arith.constant 0 : index
    %c0_70 = arith.constant 0 : index
    %209 = vector.load %arg16[%c0_69, %c0_70] : memref<1x16xf32, #tpu.memory_space<vmem>>, vector<1x16xf32>
    %cst_71 = arith.constant dense<0.000000e+00> : vector<288x8xf32>
    %210 = tpu.matmul %205, %206, %cst_71 {dimension_numbers = #tpu.dot_dimension_numbers<[1], [0], [0], [1], [0, 0, 1, 1], [], []>} : vector<288x32xf32>, vector<32x8xf32>, vector<288x8xf32> -> vector<288x8xf32>
    %211 = vector.extract_strided_slice %210 {offsets = [0, 0], sizes = [32, 8], strides = [1, 1]} : vector<288x8xf32> to vector<32x8xf32>
    %212 = vector.extract_strided_slice %210 {offsets = [32, 0], sizes = [32, 8], strides = [1, 1]} : vector<288x8xf32> to vector<32x8xf32>
    %213 = vector.extract_strided_slice %210 {offsets = [64, 0], sizes = [32, 8], strides = [1, 1]} : vector<288x8xf32> to vector<32x8xf32>
    %214 = vector.extract_strided_slice %210 {offsets = [96, 0], sizes = [32, 8], strides = [1, 1]} : vector<288x8xf32> to vector<32x8xf32>
    %215 = vector.extract_strided_slice %210 {offsets = [128, 0], sizes = [32, 8], strides = [1, 1]} : vector<288x8xf32> to vector<32x8xf32>
    %216 = vector.extract_strided_slice %210 {offsets = [160, 0], sizes = [32, 8], strides = [1, 1]} : vector<288x8xf32> to vector<32x8xf32>
    %217 = vector.extract_strided_slice %210 {offsets = [192, 0], sizes = [32, 8], strides = [1, 1]} : vector<288x8xf32> to vector<32x8xf32>
    %218 = vector.extract_strided_slice %210 {offsets = [224, 0], sizes = [32, 8], strides = [1, 1]} : vector<288x8xf32> to vector<32x8xf32>
    %219 = vector.extract_strided_slice %210 {offsets = [256, 0], sizes = [32, 8], strides = [1, 1]} : vector<288x8xf32> to vector<32x8xf32>
    %220 = tpu.concatenate %211, %212, %213, %214, %215, %216, %217, %218, %219 in 1 : vector<32x8xf32>, vector<32x8xf32>, vector<32x8xf32>, vector<32x8xf32>, vector<32x8xf32>, vector<32x8xf32>, vector<32x8xf32>, vector<32x8xf32>, vector<32x8xf32> -> vector<32x72xf32>
    %cst_72 = arith.constant dense<0.000000e+00> : vector<32x16xf32>
    %221 = tpu.matmul %220, %208, %cst_72 {dimension_numbers = #tpu.dot_dimension_numbers<[1], [0], [0], [1], [0, 0, 1, 1], [], []>} : vector<32x72xf32>, vector<72x16xf32>, vector<32x16xf32> -> vector<32x16xf32>
    %222 = vector.broadcast %209 : vector<1x16xf32> to vector<32x16xf32>
    %223 = arith.addf %221, %222 : vector<32x16xf32>
    %cst_73 = arith.constant 0.000000e+00 : f32
    %224 = vector.broadcast %cst_73 : f32 to vector<32x16xf32>
    %225 = arith.maximumf %223, %224 : vector<32x16xf32>
    %c0_74 = arith.constant 0 : index
    %c0_75 = arith.constant 0 : index
    %226 = vector.load %arg17[%c0_74, %c0_75] : memref<144x16xf32, #tpu.memory_space<vmem>>, vector<144x16xf32>
    %c0_76 = arith.constant 0 : index
    %c0_77 = arith.constant 0 : index
    %227 = vector.load %arg18[%c0_76, %c0_77] : memref<1x16xf32, #tpu.memory_space<vmem>>, vector<1x16xf32>
    %cst_78 = arith.constant dense<0.000000e+00> : vector<288x16xf32>
    %228 = tpu.matmul %205, %225, %cst_78 {dimension_numbers = #tpu.dot_dimension_numbers<[1], [0], [0], [1], [0, 0, 1, 1], [], []>} : vector<288x32xf32>, vector<32x16xf32>, vector<288x16xf32> -> vector<288x16xf32>
    %229 = vector.extract_strided_slice %228 {offsets = [0, 0], sizes = [32, 16], strides = [1, 1]} : vector<288x16xf32> to vector<32x16xf32>
    %230 = vector.extract_strided_slice %228 {offsets = [32, 0], sizes = [32, 16], strides = [1, 1]} : vector<288x16xf32> to vector<32x16xf32>
    %231 = vector.extract_strided_slice %228 {offsets = [64, 0], sizes = [32, 16], strides = [1, 1]} : vector<288x16xf32> to vector<32x16xf32>
    %232 = vector.extract_strided_slice %228 {offsets = [96, 0], sizes = [32, 16], strides = [1, 1]} : vector<288x16xf32> to vector<32x16xf32>
    %233 = vector.extract_strided_slice %228 {offsets = [128, 0], sizes = [32, 16], strides = [1, 1]} : vector<288x16xf32> to vector<32x16xf32>
    %234 = vector.extract_strided_slice %228 {offsets = [160, 0], sizes = [32, 16], strides = [1, 1]} : vector<288x16xf32> to vector<32x16xf32>
    %235 = vector.extract_strided_slice %228 {offsets = [192, 0], sizes = [32, 16], strides = [1, 1]} : vector<288x16xf32> to vector<32x16xf32>
    %236 = vector.extract_strided_slice %228 {offsets = [224, 0], sizes = [32, 16], strides = [1, 1]} : vector<288x16xf32> to vector<32x16xf32>
    %237 = vector.extract_strided_slice %228 {offsets = [256, 0], sizes = [32, 16], strides = [1, 1]} : vector<288x16xf32> to vector<32x16xf32>
    %238 = tpu.concatenate %229, %230, %231, %232, %233, %234, %235, %236, %237 in 1 : vector<32x16xf32>, vector<32x16xf32>, vector<32x16xf32>, vector<32x16xf32>, vector<32x16xf32>, vector<32x16xf32>, vector<32x16xf32>, vector<32x16xf32>, vector<32x16xf32> -> vector<32x144xf32>
    %cst_79 = arith.constant dense<0.000000e+00> : vector<32x16xf32>
    %239 = tpu.matmul %238, %226, %cst_79 {dimension_numbers = #tpu.dot_dimension_numbers<[1], [0], [0], [1], [0, 0, 1, 1], [], []>} : vector<32x144xf32>, vector<144x16xf32>, vector<32x16xf32> -> vector<32x16xf32>
    %240 = vector.broadcast %227 : vector<1x16xf32> to vector<32x16xf32>
    %241 = arith.addf %239, %240 : vector<32x16xf32>
    %c0_80 = arith.constant 0 : index
    %c0_81 = arith.constant 0 : index
    %242 = vector.load %arg19[%c0_80, %c0_81] : memref<1x8xf32, #tpu.memory_space<vmem>>, vector<1x8xf32>
    %243 = vector.extract_strided_slice %241 {offsets = [0, 0], sizes = [32, 8], strides = [1, 1]} : vector<32x16xf32> to vector<32x8xf32>
    %cst_82 = arith.constant 0.000000e+00 : f32
    %244 = vector.broadcast %cst_82 : f32 to vector<1x8xf32>
    %245 = arith.subf %244, %242 : vector<1x8xf32>
    %246 = math.exp %245 : vector<1x8xf32>
    %247 = vector.broadcast %246 : vector<1x8xf32> to vector<32x8xf32>
    %248 = arith.mulf %243, %247 : vector<32x8xf32>
    %249 = math.tanh %248 : vector<32x8xf32>
    %250 = math.exp %242 : vector<1x8xf32>
    %251 = vector.broadcast %250 : vector<1x8xf32> to vector<32x8xf32>
    %252 = arith.mulf %249, %251 : vector<32x8xf32>
    %253 = vector.extract_strided_slice %241 {offsets = [0, 8], sizes = [32, 8], strides = [1, 1]} : vector<32x16xf32> to vector<32x8xf32>
    %254 = arith.addf %207, %253 : vector<32x8xf32>
    %255 = math.exp %252 : vector<32x8xf32>
    %256 = arith.mulf %254, %255 : vector<32x8xf32>
    %cst_83 = arith.constant dense<0.000000e+00> : vector<32xf32>
    %257 = vector.multi_reduction <add>, %252, %cst_83 [1] : vector<32x8xf32> to vector<32xf32>
    %258 = vector.shape_cast %257 : vector<32xf32> to vector<32x1xf32>
    %259 = tpu.iota {dimensions = array<i32: 0>} : vector<32x2xi32>
    %260 = tpu.iota {dimensions = array<i32: 1>} : vector<32x2xi32>
    %c16_i32 = arith.constant 16 : i32
    %261 = vector.broadcast %c16_i32 : i32 to vector<32x2xi32>
    %262 = arith.muli %260, %261 : vector<32x2xi32>
    %263 = arith.cmpi sge, %259, %262 : vector<32x2xi32>
    %c16_i32_84 = arith.constant 16 : i32
    %264 = vector.broadcast %c16_i32_84 : i32 to vector<32x2xi32>
    %265 = arith.addi %262, %264 : vector<32x2xi32>
    %266 = arith.cmpi slt, %259, %265 : vector<32x2xi32>
    %267 = arith.andi %263, %266 : vector<32x2xi1>
    %268 = arith.extui %267 : vector<32x2xi1> to vector<32x2xi32>
    %269 = arith.sitofp %268 : vector<32x2xi32> to vector<32x2xf32>
    %270 = vector.broadcast %258 : vector<32x1xf32> to vector<32x2xf32>
    %271 = arith.mulf %269, %270 : vector<32x2xf32>
    %cst_85 = arith.constant dense<0.000000e+00> : vector<2xf32>
    %272 = vector.multi_reduction <add>, %271, %cst_85 [0] : vector<32x2xf32> to vector<2xf32>
    %273 = vector.shape_cast %272 : vector<2xf32> to vector<1x2xf32>
    %274 = arith.addf %173, %273 : vector<1x2xf32>
    %c0_86 = arith.constant 0 : index
    %c0_87 = arith.constant 0 : index
    %275 = vector.load %arg20[%c0_86, %c0_87] : memref<72x16xf32, #tpu.memory_space<vmem>>, vector<72x16xf32>
    %c0_88 = arith.constant 0 : index
    %c0_89 = arith.constant 0 : index
    %276 = vector.load %arg21[%c0_88, %c0_89] : memref<1x16xf32, #tpu.memory_space<vmem>>, vector<1x16xf32>
    %cst_90 = arith.constant dense<0.000000e+00> : vector<288x8xf32>
    %277 = tpu.matmul %205, %256, %cst_90 {dimension_numbers = #tpu.dot_dimension_numbers<[1], [0], [0], [1], [0, 0, 1, 1], [], []>} : vector<288x32xf32>, vector<32x8xf32>, vector<288x8xf32> -> vector<288x8xf32>
    %278 = vector.extract_strided_slice %277 {offsets = [0, 0], sizes = [32, 8], strides = [1, 1]} : vector<288x8xf32> to vector<32x8xf32>
    %279 = vector.extract_strided_slice %277 {offsets = [32, 0], sizes = [32, 8], strides = [1, 1]} : vector<288x8xf32> to vector<32x8xf32>
    %280 = vector.extract_strided_slice %277 {offsets = [64, 0], sizes = [32, 8], strides = [1, 1]} : vector<288x8xf32> to vector<32x8xf32>
    %281 = vector.extract_strided_slice %277 {offsets = [96, 0], sizes = [32, 8], strides = [1, 1]} : vector<288x8xf32> to vector<32x8xf32>
    %282 = vector.extract_strided_slice %277 {offsets = [128, 0], sizes = [32, 8], strides = [1, 1]} : vector<288x8xf32> to vector<32x8xf32>
    %283 = vector.extract_strided_slice %277 {offsets = [160, 0], sizes = [32, 8], strides = [1, 1]} : vector<288x8xf32> to vector<32x8xf32>
    %284 = vector.extract_strided_slice %277 {offsets = [192, 0], sizes = [32, 8], strides = [1, 1]} : vector<288x8xf32> to vector<32x8xf32>
    %285 = vector.extract_strided_slice %277 {offsets = [224, 0], sizes = [32, 8], strides = [1, 1]} : vector<288x8xf32> to vector<32x8xf32>
    %286 = vector.extract_strided_slice %277 {offsets = [256, 0], sizes = [32, 8], strides = [1, 1]} : vector<288x8xf32> to vector<32x8xf32>
    %287 = tpu.concatenate %278, %279, %280, %281, %282, %283, %284, %285, %286 in 1 : vector<32x8xf32>, vector<32x8xf32>, vector<32x8xf32>, vector<32x8xf32>, vector<32x8xf32>, vector<32x8xf32>, vector<32x8xf32>, vector<32x8xf32>, vector<32x8xf32> -> vector<32x72xf32>
    %cst_91 = arith.constant dense<0.000000e+00> : vector<32x16xf32>
    %288 = tpu.matmul %287, %275, %cst_91 {dimension_numbers = #tpu.dot_dimension_numbers<[1], [0], [0], [1], [0, 0, 1, 1], [], []>} : vector<32x72xf32>, vector<72x16xf32>, vector<32x16xf32> -> vector<32x16xf32>
    %289 = vector.broadcast %276 : vector<1x16xf32> to vector<32x16xf32>
    %290 = arith.addf %288, %289 : vector<32x16xf32>
    %cst_92 = arith.constant 0.000000e+00 : f32
    %291 = vector.broadcast %cst_92 : f32 to vector<32x16xf32>
    %292 = arith.maximumf %290, %291 : vector<32x16xf32>
    %c0_93 = arith.constant 0 : index
    %c0_94 = arith.constant 0 : index
    %293 = vector.load %arg22[%c0_93, %c0_94] : memref<144x16xf32, #tpu.memory_space<vmem>>, vector<144x16xf32>
    %c0_95 = arith.constant 0 : index
    %c0_96 = arith.constant 0 : index
    %294 = vector.load %arg23[%c0_95, %c0_96] : memref<1x16xf32, #tpu.memory_space<vmem>>, vector<1x16xf32>
    %cst_97 = arith.constant dense<0.000000e+00> : vector<288x16xf32>
    %295 = tpu.matmul %205, %292, %cst_97 {dimension_numbers = #tpu.dot_dimension_numbers<[1], [0], [0], [1], [0, 0, 1, 1], [], []>} : vector<288x32xf32>, vector<32x16xf32>, vector<288x16xf32> -> vector<288x16xf32>
    %296 = vector.extract_strided_slice %295 {offsets = [0, 0], sizes = [32, 16], strides = [1, 1]} : vector<288x16xf32> to vector<32x16xf32>
    %297 = vector.extract_strided_slice %295 {offsets = [32, 0], sizes = [32, 16], strides = [1, 1]} : vector<288x16xf32> to vector<32x16xf32>
    %298 = vector.extract_strided_slice %295 {offsets = [64, 0], sizes = [32, 16], strides = [1, 1]} : vector<288x16xf32> to vector<32x16xf32>
    %299 = vector.extract_strided_slice %295 {offsets = [96, 0], sizes = [32, 16], strides = [1, 1]} : vector<288x16xf32> to vector<32x16xf32>
    %300 = vector.extract_strided_slice %295 {offsets = [128, 0], sizes = [32, 16], strides = [1, 1]} : vector<288x16xf32> to vector<32x16xf32>
    %301 = vector.extract_strided_slice %295 {offsets = [160, 0], sizes = [32, 16], strides = [1, 1]} : vector<288x16xf32> to vector<32x16xf32>
    %302 = vector.extract_strided_slice %295 {offsets = [192, 0], sizes = [32, 16], strides = [1, 1]} : vector<288x16xf32> to vector<32x16xf32>
    %303 = vector.extract_strided_slice %295 {offsets = [224, 0], sizes = [32, 16], strides = [1, 1]} : vector<288x16xf32> to vector<32x16xf32>
    %304 = vector.extract_strided_slice %295 {offsets = [256, 0], sizes = [32, 16], strides = [1, 1]} : vector<288x16xf32> to vector<32x16xf32>
    %305 = tpu.concatenate %296, %297, %298, %299, %300, %301, %302, %303, %304 in 1 : vector<32x16xf32>, vector<32x16xf32>, vector<32x16xf32>, vector<32x16xf32>, vector<32x16xf32>, vector<32x16xf32>, vector<32x16xf32>, vector<32x16xf32>, vector<32x16xf32> -> vector<32x144xf32>
    %cst_98 = arith.constant dense<0.000000e+00> : vector<32x16xf32>
    %306 = tpu.matmul %305, %293, %cst_98 {dimension_numbers = #tpu.dot_dimension_numbers<[1], [0], [0], [1], [0, 0, 1, 1], [], []>} : vector<32x144xf32>, vector<144x16xf32>, vector<32x16xf32> -> vector<32x16xf32>
    %307 = vector.broadcast %294 : vector<1x16xf32> to vector<32x16xf32>
    %308 = arith.addf %306, %307 : vector<32x16xf32>
    %c0_99 = arith.constant 0 : index
    %c0_100 = arith.constant 0 : index
    %309 = vector.load %arg24[%c0_99, %c0_100] : memref<1x8xf32, #tpu.memory_space<vmem>>, vector<1x8xf32>
    %310 = vector.extract_strided_slice %308 {offsets = [0, 0], sizes = [32, 8], strides = [1, 1]} : vector<32x16xf32> to vector<32x8xf32>
    %cst_101 = arith.constant 0.000000e+00 : f32
    %311 = vector.broadcast %cst_101 : f32 to vector<1x8xf32>
    %312 = arith.subf %311, %309 : vector<1x8xf32>
    %313 = math.exp %312 : vector<1x8xf32>
    %314 = vector.broadcast %313 : vector<1x8xf32> to vector<32x8xf32>
    %315 = arith.mulf %310, %314 : vector<32x8xf32>
    %316 = math.tanh %315 : vector<32x8xf32>
    %317 = math.exp %309 : vector<1x8xf32>
    %318 = vector.broadcast %317 : vector<1x8xf32> to vector<32x8xf32>
    %319 = arith.mulf %316, %318 : vector<32x8xf32>
    %320 = vector.extract_strided_slice %308 {offsets = [0, 8], sizes = [32, 8], strides = [1, 1]} : vector<32x16xf32> to vector<32x8xf32>
    %321 = arith.addf %206, %320 : vector<32x8xf32>
    %322 = math.exp %319 : vector<32x8xf32>
    %323 = arith.mulf %321, %322 : vector<32x8xf32>
    %cst_102 = arith.constant dense<0.000000e+00> : vector<32xf32>
    %324 = vector.multi_reduction <add>, %319, %cst_102 [1] : vector<32x8xf32> to vector<32xf32>
    %325 = vector.shape_cast %324 : vector<32xf32> to vector<32x1xf32>
    %326 = tpu.iota {dimensions = array<i32: 0>} : vector<32x2xi32>
    %327 = tpu.iota {dimensions = array<i32: 1>} : vector<32x2xi32>
    %c16_i32_103 = arith.constant 16 : i32
    %328 = vector.broadcast %c16_i32_103 : i32 to vector<32x2xi32>
    %329 = arith.muli %327, %328 : vector<32x2xi32>
    %330 = arith.cmpi sge, %326, %329 : vector<32x2xi32>
    %c16_i32_104 = arith.constant 16 : i32
    %331 = vector.broadcast %c16_i32_104 : i32 to vector<32x2xi32>
    %332 = arith.addi %329, %331 : vector<32x2xi32>
    %333 = arith.cmpi slt, %326, %332 : vector<32x2xi32>
    %334 = arith.andi %330, %333 : vector<32x2xi1>
    %335 = arith.extui %334 : vector<32x2xi1> to vector<32x2xi32>
    %336 = arith.sitofp %335 : vector<32x2xi32> to vector<32x2xf32>
    %337 = vector.broadcast %325 : vector<32x1xf32> to vector<32x2xf32>
    %338 = arith.mulf %336, %337 : vector<32x2xf32>
    %cst_105 = arith.constant dense<0.000000e+00> : vector<2xf32>
    %339 = vector.multi_reduction <add>, %338, %cst_105 [0] : vector<32x2xf32> to vector<2xf32>
    %340 = vector.shape_cast %339 : vector<2xf32> to vector<1x2xf32>
    %341 = arith.addf %274, %340 : vector<1x2xf32>
    %342 = tpu.concatenate %323, %256 in 1 : vector<32x8xf32>, vector<32x8xf32> -> vector<32x16xf32>
    %cst_106 = arith.constant -5.000000e-01 : f32
    %343 = vector.broadcast %cst_106 : f32 to vector<32x16xf32>
    %344 = arith.mulf %343, %342 : vector<32x16xf32>
    %345 = arith.mulf %344, %342 : vector<32x16xf32>
    %cst_107 = arith.constant 0.918938517 : f32
    %346 = vector.broadcast %cst_107 : f32 to vector<32x16xf32>
    %347 = arith.subf %345, %346 : vector<32x16xf32>
    %cst_108 = arith.constant dense<0.000000e+00> : vector<32xf32>
    %348 = vector.multi_reduction <add>, %347, %cst_108 [1] : vector<32x16xf32> to vector<32xf32>
    %349 = vector.shape_cast %348 : vector<32xf32> to vector<32x1xf32>
    %350 = tpu.iota {dimensions = array<i32: 0>} : vector<32x2xi32>
    %351 = tpu.iota {dimensions = array<i32: 1>} : vector<32x2xi32>
    %c16_i32_109 = arith.constant 16 : i32
    %352 = vector.broadcast %c16_i32_109 : i32 to vector<32x2xi32>
    %353 = arith.muli %351, %352 : vector<32x2xi32>
    %354 = arith.cmpi sge, %350, %353 : vector<32x2xi32>
    %c16_i32_110 = arith.constant 16 : i32
    %355 = vector.broadcast %c16_i32_110 : i32 to vector<32x2xi32>
    %356 = arith.addi %353, %355 : vector<32x2xi32>
    %357 = arith.cmpi slt, %350, %356 : vector<32x2xi32>
    %358 = arith.andi %354, %357 : vector<32x2xi1>
    %359 = arith.extui %358 : vector<32x2xi1> to vector<32x2xi32>
    %360 = arith.sitofp %359 : vector<32x2xi32> to vector<32x2xf32>
    %361 = vector.broadcast %349 : vector<32x1xf32> to vector<32x2xf32>
    %362 = arith.mulf %360, %361 : vector<32x2xf32>
    %cst_111 = arith.constant dense<0.000000e+00> : vector<2xf32>
    %363 = vector.multi_reduction <add>, %362, %cst_111 [0] : vector<32x2xf32> to vector<2xf32>
    %364 = vector.shape_cast %363 : vector<2xf32> to vector<1x2xf32>
    %365 = arith.addf %196, %364 : vector<1x2xf32>
    %c0_112 = arith.constant 0 : index
    %c0_113 = arith.constant 0 : index
    %366 = vector.load %arg26[%c0_112, %c0_113] : memref<32x16xf32, #tpu.memory_space<vmem>>, vector<32x16xf32>
    tpu.vector_store %arg26[%c0_112, %c0_113], %342 {strides = array<i32>} : memref<32x16xf32, #tpu.memory_space<vmem>>, vector<32x16xf32>,
    %367 = tpu.concatenate %341, %365 in 1 : vector<1x2xf32>, vector<1x2xf32> -> vector<1x4xf32>
    %c0_114 = arith.constant 0 : index
    %c0_115 = arith.constant 0 : index
    %368 = vector.load %arg27[%c0_114, %c0_115] : memref<1x4xf32, #tpu.memory_space<vmem>>, vector<1x4xf32>
    tpu.vector_store %arg27[%c0_114, %c0_115], %367 {strides = array<i32>} : memref<1x4xf32, #tpu.memory_space<vmem>>, vector<1x4xf32>,
    return
  }
}

</mosaic_0001>

<llo_original>
// kernel: _lambda_.1
$region0: #{_lambda_.1}
  #allocation0 [shape = 'u32[]', space=smem, size = 0x4, offset = 0x4, fixed_abs, tag = 'smem constant byte address 0x4 - core index']
  #allocation1 [shape = 'u32[144,128]{1,0:T(1,128)}', space=vmem, size = 0x12000, scoped, tag = 'internal scratch']
  %s0 = inlined_call_operand.vmem [shape: f32[128,8], index: 0, kind: input, shape index: {}]
  %s1 = inlined_call_operand.vmem [shape: f32[128,8], index: 1, kind: input, shape index: {}]
  %s2 = inlined_call_operand.vmem [shape: f32[1152,128], index: 2, kind: input, shape index: {}]
  %s3 = inlined_call_operand.vmem [shape: f32[288,32], index: 3, kind: input, shape index: {}]
  %s4 = inlined_call_operand.vmem [shape: f32[128,128], index: 4, kind: input, shape index: {}]
  %s5 = inlined_call_operand.vmem [shape: f32[36,16], index: 5, kind: input, shape index: {}]
  %s6 = inlined_call_operand.vmem [shape: f32[1,16], index: 6, kind: input, shape index: {}]
  %s7 = inlined_call_operand.vmem [shape: f32[144,8], index: 7, kind: input, shape index: {}]
  %s8 = inlined_call_operand.vmem [shape: f32[1,8], index: 8, kind: input, shape index: {}]
  %s9 = inlined_call_operand.vmem [shape: f32[1,4], index: 9, kind: input, shape index: {}]
  %s10 = inlined_call_operand.vmem [shape: f32[36,16], index: 10, kind: input, shape index: {}]
  %s11 = inlined_call_operand.vmem [shape: f32[1,16], index: 11, kind: input, shape index: {}]
  %s12 = inlined_call_operand.vmem [shape: f32[144,8], index: 12, kind: input, shape index: {}]
  %s13 = inlined_call_operand.vmem [shape: f32[1,8], index: 13, kind: input, shape index: {}]
  %s14 = inlined_call_operand.vmem [shape: f32[1,4], index: 14, kind: input, shape index: {}]
  %s15 = inlined_call_operand.vmem [shape: f32[72,16], index: 15, kind: input, shape index: {}]
  %s16 = inlined_call_operand.vmem [shape: f32[1,16], index: 16, kind: input, shape index: {}]
  %s17 = inlined_call_operand.vmem [shape: f32[144,16], index: 17, kind: input, shape index: {}]
  %s18 = inlined_call_operand.vmem [shape: f32[1,16], index: 18, kind: input, shape index: {}]
  %s19 = inlined_call_operand.vmem [shape: f32[1,8], index: 19, kind: input, shape index: {}]
  %s20 = inlined_call_operand.vmem [shape: f32[72,16], index: 20, kind: input, shape index: {}]
  %s21 = inlined_call_operand.vmem [shape: f32[1,16], index: 21, kind: input, shape index: {}]
  %s22 = inlined_call_operand.vmem [shape: f32[144,16], index: 22, kind: input, shape index: {}]
  %s23 = inlined_call_operand.vmem [shape: f32[1,16], index: 23, kind: input, shape index: {}]
  %s24 = inlined_call_operand.vmem [shape: f32[1,8], index: 24, kind: input, shape index: {}]
  %s25 = inlined_call_operand.vmem [shape: f32[128,4], index: 25, kind: output, shape index: {0}]
  %s26 = inlined_call_operand.hbm [shape: f32[32,16], index: 26, kind: output, shape index: {1}]
  %s27 = inlined_call_operand.vmem [shape: f32[1,4], index: 27, kind: output, shape index: {2}]
  %28 = xla_tuple %s25, %s26, %s27
  %s29 = sld [smem:[#allocation0]]
  $region126: #{_lambda_.1} parent=0
    _
  %s31 = ssub.s32 1, %s29
  %s32 = scalar_select 0, %s31, %s29
  $region1: #{_lambda_.1} parent=0
    #allocation2 [shape = 'u8[16384]{0}', space=vmem, size = 0x4000, scoped, tag = 'output window, operand 1, single buffered']
    #allocation3 [shape = 's32[1]{0}', space=sflag, size = 0x4, scoped, tag = 'scoped memory for _lambda_.1']
    %33 = vsyncpa [#allocation3], 0
    // Predicated region
    $region2: #{_lambda_.1} parent=1 // pred_check
      _
    $region3: #{_lambda_.1} parent=1 // pred_check_branch
      %35 = sbr.rel (0) target = $region5
    $region4: #{_lambda_.1} parent=1 // pred_region
      _
    $region5: #{_lambda_.1} parent=1 // pred_fallthru
      _
    // Predicated region
    $region6: #{_lambda_.1} parent=1 // pred_check
      _
    $region7: #{_lambda_.1} parent=1 // pred_check_branch
      %37 = sbr.rel (0) target = $region9
    $region8: #{_lambda_.1} parent=1 // pred_region
      _
    $region9: #{_lambda_.1} parent=1 // pred_fallthru
      _
    // Predicated region
    $region10: #{_lambda_.1} parent=1 // pred_check
      _
    $region11: #{_lambda_.1} parent=1 // pred_check_branch
      %39 = sbr.rel (0) target = $region13
    $region12: #{_lambda_.1} parent=1 // pred_region
      _
    $region13: #{_lambda_.1} parent=1 // pred_fallthru
      _
    // Predicated region
    $region14: #{_lambda_.1} parent=1 // pred_check
      _
    $region15: #{_lambda_.1} parent=1 // pred_check_branch
      %41 = sbr.rel (0) target = $region17
    $region16: #{_lambda_.1} parent=1 // pred_region
      _
    $region17: #{_lambda_.1} parent=1 // pred_fallthru
      _
    // Predicated region
    $region18: #{_lambda_.1} parent=1 // pred_check
      _
    $region19: #{_lambda_.1} parent=1 // pred_check_branch
      %43 = sbr.rel (0) target = $region21
    $region20: #{_lambda_.1} parent=1 // pred_region
      _
    $region21: #{_lambda_.1} parent=1 // pred_fallthru
      _
    // Predicated region
    $region22: #{_lambda_.1} parent=1 // pred_check
      _
    $region23: #{_lambda_.1} parent=1 // pred_check_branch
      %45 = sbr.rel (0) target = $region25
    $region24: #{_lambda_.1} parent=1 // pred_region
      _
    $region25: #{_lambda_.1} parent=1 // pred_fallthru
      _
    // Predicated region
    $region26: #{_lambda_.1} parent=1 // pred_check
      _
    $region27: #{_lambda_.1} parent=1 // pred_check_branch
      %47 = sbr.rel (0) target = $region29
    $region28: #{_lambda_.1} parent=1 // pred_region
      _
    $region29: #{_lambda_.1} parent=1 // pred_fallthru
      _
    // Predicated region
    $region30: #{_lambda_.1} parent=1 // pred_check
      _
    $region31: #{_lambda_.1} parent=1 // pred_check_branch
      %49 = sbr.rel (0) target = $region33
    $region32: #{_lambda_.1} parent=1 // pred_region
      _
    $region33: #{_lambda_.1} parent=1 // pred_fallthru
      _
    // Predicated region
    $region34: #{_lambda_.1} parent=1 // pred_check
      _
    $region35: #{_lambda_.1} parent=1 // pred_check_branch
      %51 = sbr.rel (0) target = $region37
    $region36: #{_lambda_.1} parent=1 // pred_region
      _
    $region37: #{_lambda_.1} parent=1 // pred_fallthru
      _
    // Predicated region
    $region38: #{_lambda_.1} parent=1 // pred_check
      _
    $region39: #{_lambda_.1} parent=1 // pred_check_branch
      %53 = sbr.rel (0) target = $region41
    $region40: #{_lambda_.1} parent=1 // pred_region
      _
    $region41: #{_lambda_.1} parent=1 // pred_fallthru
      _
    // Predicated region
    $region42: #{_lambda_.1} parent=1 // pred_check
      _
    $region43: #{_lambda_.1} parent=1 // pred_check_branch
      %55 = sbr.rel (0) target = $region45
    $region44: #{_lambda_.1} parent=1 // pred_region
      _
    $region45: #{_lambda_.1} parent=1 // pred_fallthru
      _
    // Predicated region
    $region46: #{_lambda_.1} parent=1 // pred_check
      _
    $region47: #{_lambda_.1} parent=1 // pred_check_branch
      %57 = sbr.rel (0) target = $region49
    $region48: #{_lambda_.1} parent=1 // pred_region
      _
    $region49: #{_lambda_.1} parent=1 // pred_fallthru
      _
    // Predicated region
    $region50: #{_lambda_.1} parent=1 // pred_check
      _
    $region51: #{_lambda_.1} parent=1 // pred_check_branch
      %59 = sbr.rel (0) target = $region53
    $region52: #{_lambda_.1} parent=1 // pred_region
      _
    $region53: #{_lambda_.1} parent=1 // pred_fallthru
      _
    // Predicated region
    $region54: #{_lambda_.1} parent=1 // pred_check
      _
    $region55: #{_lambda_.1} parent=1 // pred_check_branch
      %61 = sbr.rel (0) target = $region57
    $region56: #{_lambda_.1} parent=1 // pred_region
      _
    $region57: #{_lambda_.1} parent=1 // pred_fallthru
      _
    // Predicated region
    $region58: #{_lambda_.1} parent=1 // pred_check
      _
    $region59: #{_lambda_.1} parent=1 // pred_check_branch
      %63 = sbr.rel (0) target = $region61
    $region60: #{_lambda_.1} parent=1 // pred_region
      _
    $region61: #{_lambda_.1} parent=1 // pred_fallthru
      _
    // Predicated region
    $region62: #{_lambda_.1} parent=1 // pred_check
      _
    $region63: #{_lambda_.1} parent=1 // pred_check_branch
      %65 = sbr.rel (0) target = $region65
    $region64: #{_lambda_.1} parent=1 // pred_region
      _
    $region65: #{_lambda_.1} parent=1 // pred_fallthru
      _
    // Predicated region
    $region66: #{_lambda_.1} parent=1 // pred_check
      _
    $region67: #{_lambda_.1} parent=1 // pred_check_branch
      %67 = sbr.rel (0) target = $region69
    $region68: #{_lambda_.1} parent=1 // pred_region
      _
    $region69: #{_lambda_.1} parent=1 // pred_fallthru
      _
    // Predicated region
    $region70: #{_lambda_.1} parent=1 // pred_check
      _
    $region71: #{_lambda_.1} parent=1 // pred_check_branch
      %69 = sbr.rel (0) target = $region73
    $region72: #{_lambda_.1} parent=1 // pred_region
      _
    $region73: #{_lambda_.1} parent=1 // pred_fallthru
      _
    // Predicated region
    $region74: #{_lambda_.1} parent=1 // pred_check
      _
    $region75: #{_lambda_.1} parent=1 // pred_check_branch
      %71 = sbr.rel (0) target = $region77
    $region76: #{_lambda_.1} parent=1 // pred_region
      _
    $region77: #{_lambda_.1} parent=1 // pred_fallthru
      _
    // Predicated region
    $region78: #{_lambda_.1} parent=1 // pred_check
      _
    $region79: #{_lambda_.1} parent=1 // pred_check_branch
      %73 = sbr.rel (0) target = $region81
    $region80: #{_lambda_.1} parent=1 // pred_region
      _
    $region81: #{_lambda_.1} parent=1 // pred_fallthru
      _
    // Predicated region
    $region82: #{_lambda_.1} parent=1 // pred_check
      _
    $region83: #{_lambda_.1} parent=1 // pred_check_branch
      %75 = sbr.rel (0) target = $region85
    $region84: #{_lambda_.1} parent=1 // pred_region
      _
    $region85: #{_lambda_.1} parent=1 // pred_fallthru
      _
    // Predicated region
    $region86: #{_lambda_.1} parent=1 // pred_check
      _
    $region87: #{_lambda_.1} parent=1 // pred_check_branch
      %77 = sbr.rel (0) target = $region89
    $region88: #{_lambda_.1} parent=1 // pred_region
      _
    $region89: #{_lambda_.1} parent=1 // pred_fallthru
      _
    // Predicated region
    $region90: #{_lambda_.1} parent=1 // pred_check
      _
    $region91: #{_lambda_.1} parent=1 // pred_check_branch
      %79 = sbr.rel (0) target = $region93
    $region92: #{_lambda_.1} parent=1 // pred_region
      _
    $region93: #{_lambda_.1} parent=1 // pred_fallthru
      _
    // Predicated region
    $region94: #{_lambda_.1} parent=1 // pred_check
      _
    $region95: #{_lambda_.1} parent=1 // pred_check_branch
      %81 = sbr.rel (0) target = $region97
    $region96: #{_lambda_.1} parent=1 // pred_region
      _
    $region97: #{_lambda_.1} parent=1 // pred_fallthru
      _
    // Predicated region
    $region98: #{_lambda_.1} parent=1 // pred_check
      _
    $region99: #{_lambda_.1} parent=1 // pred_check_branch
      %83 = sbr.rel (0) target = $region101
    $region100: #{_lambda_.1} parent=1 // pred_region
      _
    $region101: #{_lambda_.1} parent=1 // pred_fallthru
      _
    %v84 = vld [vmem:[%s0] sm:$0xff]
    %v85 = vld [vmem:[%s0 + $0x8] sm:$0xff]
    %v86 = vld [vmem:[%s0 + $0x10] sm:$0xff]
    %v87 = vld [vmem:[%s0 + $0x18] sm:$0xff]
    %v88 = vld [vmem:[%s0 + $0x20] sm:$0xff]
    %v89 = vld [vmem:[%s0 + $0x28] sm:$0xff]
    %v90 = vld [vmem:[%s0 + $0x30] sm:$0xff]
    %v91 = vld [vmem:[%s0 + $0x38] sm:$0xff]
    %v92 = vld [vmem:[%s0 + $0x40] sm:$0xff]
    %v93 = vld [vmem:[%s0 + $0x48] sm:$0xff]
    %v94 = vld [vmem:[%s0 + $0x50] sm:$0xff]
    %v95 = vld [vmem:[%s0 + $0x58] sm:$0xff]
    %v96 = vld [vmem:[%s0 + $0x60] sm:$0xff]
    %v97 = vld [vmem:[%s0 + $0x68] sm:$0xff]
    %v98 = vld [vmem:[%s0 + $0x70] sm:$0xff]
    %v99 = vld [vmem:[%s0 + $0x78] sm:$0xff]
    %v100 = vld [vmem:[%s1] sm:$0xff]
    %v101 = vld [vmem:[%s1 + $0x8] sm:$0xff]
    %v102 = vld [vmem:[%s1 + $0x10] sm:$0xff]
    %v103 = vld [vmem:[%s1 + $0x18] sm:$0xff]
    %v104 = vld [vmem:[%s1 + $0x20] sm:$0xff]
    %v105 = vld [vmem:[%s1 + $0x28] sm:$0xff]
    %v106 = vld [vmem:[%s1 + $0x30] sm:$0xff]
    %v107 = vld [vmem:[%s1 + $0x38] sm:$0xff]
    %v108 = vld [vmem:[%s1 + $0x40] sm:$0xff]
    %v109 = vld [vmem:[%s1 + $0x48] sm:$0xff]
    %v110 = vld [vmem:[%s1 + $0x50] sm:$0xff]
    %v111 = vld [vmem:[%s1 + $0x58] sm:$0xff]
    %v112 = vld [vmem:[%s1 + $0x60] sm:$0xff]
    %v113 = vld [vmem:[%s1 + $0x68] sm:$0xff]
    %v114 = vld [vmem:[%s1 + $0x70] sm:$0xff]
    %v115 = vld [vmem:[%s1 + $0x78] sm:$0xff]
    %v116 = vadd.f32 %v84, %v100
    %v117 = vadd.f32 %v85, %v101
    %v118 = vadd.f32 %v86, %v102
    %v119 = vadd.f32 %v87, %v103
    %v120 = vadd.f32 %v88, %v104
    %v121 = vadd.f32 %v89, %v105
    %v122 = vadd.f32 %v90, %v106
    %v123 = vadd.f32 %v91, %v107
    %v124 = vadd.f32 %v92, %v108
    %v125 = vadd.f32 %v93, %v109
    %v126 = vadd.f32 %v94, %v110
    %v127 = vadd.f32 %v95, %v111
    %v128 = vadd.f32 %v96, %v112
    %v129 = vadd.f32 %v97, %v113
    %v130 = vadd.f32 %v98, %v114
    %v131 = vadd.f32 %v99, %v115
    %v132 = vmul.f32 %v116, 0.00390625
    %v133 = vmul.f32 %v117, 0.00390625
    %v134 = vmul.f32 %v118, 0.00390625
    %v135 = vmul.f32 %v119, 0.00390625
    %v136 = vmul.f32 %v120, 0.00390625
    %v137 = vmul.f32 %v121, 0.00390625
    %v138 = vmul.f32 %v122, 0.00390625
    %v139 = vmul.f32 %v123, 0.00390625
    %v140 = vmul.f32 %v124, 0.00390625
    %v141 = vmul.f32 %v125, 0.00390625
    %v142 = vmul.f32 %v126, 0.00390625
    %v143 = vmul.f32 %v127, 0.00390625
    %v144 = vmul.f32 %v128, 0.00390625
    %v145 = vmul.f32 %v129, 0.00390625
    %v146 = vmul.f32 %v130, 0.00390625
    %v147 = vmul.f32 %v131, 0.00390625
    %v148 = vmul.f32 %v132, 0.99999
    %v149 = vmul.f32 %v133, 0.99999
    %v150 = vmul.f32 %v134, 0.99999
    %v151 = vmul.f32 %v135, 0.99999
    %v152 = vmul.f32 %v136, 0.99999
    %v153 = vmul.f32 %v137, 0.99999
    %v154 = vmul.f32 %v138, 0.99999
    %v155 = vmul.f32 %v139, 0.99999
    %v156 = vmul.f32 %v140, 0.99999
    %v157 = vmul.f32 %v141, 0.99999
    %v158 = vmul.f32 %v142, 0.99999
    %v159 = vmul.f32 %v143, 0.99999
    %v160 = vmul.f32 %v144, 0.99999
    %v161 = vmul.f32 %v145, 0.99999
    %v162 = vmul.f32 %v146, 0.99999
    %v163 = vmul.f32 %v147, 0.99999
    %v164 = vadd.f32 %v148, 5e-06
    %v165 = vadd.f32 %v149, 5e-06
    %v166 = vadd.f32 %v150, 5e-06
    %v167 = vadd.f32 %v151, 5e-06
    %v168 = vadd.f32 %v152, 5e-06
    %v169 = vadd.f32 %v153, 5e-06
    %v170 = vadd.f32 %v154, 5e-06
    %v171 = vadd.f32 %v155, 5e-06
    %v172 = vadd.f32 %v156, 5e-06
    %v173 = vadd.f32 %v157, 5e-06
    %v174 = vadd.f32 %v158, 5e-06
    %v175 = vadd.f32 %v159, 5e-06
    %v176 = vadd.f32 %v160, 5e-06
    %v177 = vadd.f32 %v161, 5e-06
    %v178 = vadd.f32 %v162, 5e-06
    %v179 = vadd.f32 %v163, 5e-06
    %v180 = vlog2.pop %v164
    %v181 = vmul.f32 %v180, 0.6931472
    %v182 = vlog2.pop %v165
    %v183 = vmul.f32 %v182, 0.6931472
    %v184 = vlog2.pop %v166
    %v185 = vmul.f32 %v184, 0.6931472
    %v186 = vlog2.pop %v167
    %v187 = vmul.f32 %v186, 0.6931472
    %v188 = vlog2.pop %v168
    %v189 = vmul.f32 %v188, 0.6931472
    %v190 = vlog2.pop %v169
    %v191 = vmul.f32 %v190, 0.6931472
    %v192 = vlog2.pop %v170
    %v193 = vmul.f32 %v192, 0.6931472
    %v194 = vlog2.pop %v171
    %v195 = vmul.f32 %v194, 0.6931472
    %v196 = vlog2.pop %v172
    %v197 = vmul.f32 %v196, 0.6931472
    %v198 = vlog2.pop %v173
    %v199 = vmul.f32 %v198, 0.6931472
    %v200 = vlog2.pop %v174
    %v201 = vmul.f32 %v200, 0.6931472
    %v202 = vlog2.pop %v175
    %v203 = vmul.f32 %v202, 0.6931472
    %v204 = vlog2.pop %v176
    %v205 = vmul.f32 %v204, 0.6931472
    %v206 = vlog2.pop %v177
    %v207 = vmul.f32 %v206, 0.6931472
    %v208 = vlog2.pop %v178
    %v209 = vmul.f32 %v208, 0.6931472
    %v210 = vlog2.pop %v179
    %v211 = vmul.f32 %v210, 0.6931472
    %v212 = vsub.f32 1.0, %v164
    %v213 = vsub.f32 1.0, %v165
    %v214 = vsub.f32 1.0, %v166
    %v215 = vsub.f32 1.0, %v167
    %v216 = vsub.f32 1.0, %v168
    %v217 = vsub.f32 1.0, %v169
    %v218 = vsub.f32 1.0, %v170
    %v219 = vsub.f32 1.0, %v171
    %v220 = vsub.f32 1.0, %v172
    %v221 = vsub.f32 1.0, %v173
    %v222 = vsub.f32 1.0, %v174
    %v223 = vsub.f32 1.0, %v175
    %v224 = vsub.f32 1.0, %v176
    %v225 = vsub.f32 1.0, %v177
    %v226 = vsub.f32 1.0, %v178
    %v227 = vsub.f32 1.0, %v179
    %v228 = vlog2.pop %v212
    %v229 = vmul.f32 %v228, 0.6931472
    %v230 = vlog2.pop %v213
    %v231 = vmul.f32 %v230, 0.6931472
    %v232 = vlog2.pop %v214
    %v233 = vmul.f32 %v232, 0.6931472
    %v234 = vlog2.pop %v215
    %v235 = vmul.f32 %v234, 0.6931472
    %v236 = vlog2.pop %v216
    %v237 = vmul.f32 %v236, 0.6931472
    %v238 = vlog2.pop %v217
    %v239 = vmul.f32 %v238, 0.6931472
    %v240 = vlog2.pop %v218
    %v241 = vmul.f32 %v240, 0.6931472
    %v242 = vlog2.pop %v219
    %v243 = vmul.f32 %v242, 0.6931472
    %v244 = vlog2.pop %v220
    %v245 = vmul.f32 %v244, 0.6931472
    %v246 = vlog2.pop %v221
    %v247 = vmul.f32 %v246, 0.6931472
    %v248 = vlog2.pop %v222
    %v249 = vmul.f32 %v248, 0.6931472
    %v250 = vlog2.pop %v223
    %v251 = vmul.f32 %v250, 0.6931472
    %v252 = vlog2.pop %v224
    %v253 = vmul.f32 %v252, 0.6931472
    %v254 = vlog2.pop %v225
    %v255 = vmul.f32 %v254, 0.6931472
    %v256 = vlog2.pop %v226
    %v257 = vmul.f32 %v256, 0.6931472
    %v258 = vlog2.pop %v227
    %v259 = vmul.f32 %v258, 0.6931472
    %v260 = vsub.f32 0.0, %v181
    %v261 = vsub.f32 0.0, %v183
    %v262 = vsub.f32 0.0, %v185
    %v263 = vsub.f32 0.0, %v187
    %v264 = vsub.f32 0.0, %v189
    %v265 = vsub.f32 0.0, %v191
    %v266 = vsub.f32 0.0, %v193
    %v267 = vsub.f32 0.0, %v195
    %v268 = vsub.f32 0.0, %v197
    %v269 = vsub.f32 0.0, %v199
    %v270 = vsub.f32 0.0, %v201
    %v271 = vsub.f32 0.0, %v203
    %v272 = vsub.f32 0.0, %v205
    %v273 = vsub.f32 0.0, %v207
    %v274 = vsub.f32 0.0, %v209
    %v275 = vsub.f32 0.0, %v211
    %v276 = vsub.f32 %v260, %v229
    %v277 = vsub.f32 %v261, %v231
    %v278 = vsub.f32 %v262, %v233
    %v279 = vsub.f32 %v263, %v235
    %v280 = vsub.f32 %v264, %v237
    %v281 = vsub.f32 %v265, %v239
    %v282 = vsub.f32 %v266, %v241
    %v283 = vsub.f32 %v267, %v243
    %v284 = vsub.f32 %v268, %v245
    %v285 = vsub.f32 %v269, %v247
    %v286 = vsub.f32 %v270, %v249
    %v287 = vsub.f32 %v271, %v251
    %v288 = vsub.f32 %v272, %v253
    %v289 = vsub.f32 %v273, %v255
    %v290 = vsub.f32 %v274, %v257
    %v291 = vsub.f32 %v275, %v259
    %vm292 = vcmask 64512
    %v293 = vsel %vm292, %v276, 0.0
    %294 = vadd.xlane.f32.xlu0 %v293
    %v295 = vpop.xlane.xlu0 %294
    %v296 = vsel %vm292, %v277, 0.0
    %297 = vadd.xlane.f32.xlu0 %v296
    %v298 = vpop.xlane.xlu0 %297
    %v299 = vsel %vm292, %v278, 0.0
    %300 = vadd.xlane.f32.xlu0 %v299
    %v301 = vpop.xlane.xlu0 %300
    %v302 = vsel %vm292, %v279, 0.0
    %303 = vadd.xlane.f32.xlu0 %v302
    %v304 = vpop.xlane.xlu0 %303
    %v305 = vsel %vm292, %v280, 0.0
    %306 = vadd.xlane.f32.xlu0 %v305
    %v307 = vpop.xlane.xlu0 %306
    %v308 = vsel %vm292, %v281, 0.0
    %309 = vadd.xlane.f32.xlu0 %v308
    %v310 = vpop.xlane.xlu0 %309
    %v311 = vsel %vm292, %v282, 0.0
    %312 = vadd.xlane.f32.xlu0 %v311
    %v313 = vpop.xlane.xlu0 %312
    %v314 = vsel %vm292, %v283, 0.0
    %315 = vadd.xlane.f32.xlu0 %v314
    %v316 = vpop.xlane.xlu0 %315
    %v317 = vsel %vm292, %v284, 0.0
    %318 = vadd.xlane.f32.xlu0 %v317
    %v319 = vpop.xlane.xlu0 %318
    %v320 = vsel %vm292, %v285, 0.0
    %321 = vadd.xlane.f32.xlu0 %v320
    %v322 = vpop.xlane.xlu0 %321
    %v323 = vsel %vm292, %v286, 0.0
    %324 = vadd.xlane.f32.xlu0 %v323
    %v325 = vpop.xlane.xlu0 %324
    %v326 = vsel %vm292, %v287, 0.0
    %327 = vadd.xlane.f32.xlu0 %v326
    %v328 = vpop.xlane.xlu0 %327
    %v329 = vsel %vm292, %v288, 0.0
    %330 = vadd.xlane.f32.xlu0 %v329
    %v331 = vpop.xlane.xlu0 %330
    %v332 = vsel %vm292, %v289, 0.0
    %333 = vadd.xlane.f32.xlu0 %v332
    %v334 = vpop.xlane.xlu0 %333
    %v335 = vsel %vm292, %v290, 0.0
    %336 = vadd.xlane.f32.xlu0 %v335
    %v337 = vpop.xlane.xlu0 %336
    %v338 = vsel %vm292, %v291, 0.0
    %339 = vadd.xlane.f32.xlu0 %v338
    %v340 = vpop.xlane.xlu0 %339
    %v341 = vlaneseq
    %v342 = vshrl.u32 %v341, 7
    %v343 = vadd.s32 %v342, 8
    %v344 = vadd.s32 %v342, 16
    %v345 = vadd.s32 %v342, 24
    %v346 = vadd.s32 %v342, 32
    %v347 = vadd.s32 %v342, 40
    %v348 = vadd.s32 %v342, 48
    %v349 = vadd.s32 %v342, 56
    %v350 = vadd.s32 %v342, 64
    %v351 = vadd.s32 %v342, 72
    %v352 = vadd.s32 %v342, 80
    %v353 = vadd.s32 %v342, 88
    %v354 = vadd.s32 %v342, 96
    %v355 = vadd.s32 %v342, 104
    %v356 = vadd.s32 %v342, 112
    %v357 = vadd.s32 %v342, 120
    %v358 = vlaneseq
    %v359 = vand.u32 %v358, 127
    %v360 = vmul.u32 %v359, 64
    %vm361 = vcmp.ge.s32.totalorder %v342, %v360
    %vm362 = vcmp.ge.s32.totalorder %v343, %v360
    %vm363 = vcmp.ge.s32.totalorder %v344, %v360
    %vm364 = vcmp.ge.s32.totalorder %v345, %v360
    %vm365 = vcmp.ge.s32.totalorder %v346, %v360
    %vm366 = vcmp.ge.s32.totalorder %v347, %v360
    %vm367 = vcmp.ge.s32.totalorder %v348, %v360
    %vm368 = vcmp.ge.s32.totalorder %v349, %v360
    %vm369 = vcmp.ge.s32.totalorder %v350, %v360
    %vm370 = vcmp.ge.s32.totalorder %v351, %v360
    %vm371 = vcmp.ge.s32.totalorder %v352, %v360
    %vm372 = vcmp.ge.s32.totalorder %v353, %v360
    %vm373 = vcmp.ge.s32.totalorder %v354, %v360
    %vm374 = vcmp.ge.s32.totalorder %v355, %v360
    %vm375 = vcmp.ge.s32.totalorder %v356, %v360
    %vm376 = vcmp.ge.s32.totalorder %v357, %v360
    %v377 = vadd.s32 %v360, 64
    %vm378 = vcmp.lt.s32.totalorder %v342, %v377
    %vm379 = vcmp.lt.s32.totalorder %v343, %v377
    %vm380 = vcmp.lt.s32.totalorder %v344, %v377
    %vm381 = vcmp.lt.s32.totalorder %v345, %v377
    %vm382 = vcmp.lt.s32.totalorder %v346, %v377
    %vm383 = vcmp.lt.s32.totalorder %v347, %v377
    %vm384 = vcmp.lt.s32.totalorder %v348, %v377
    %vm385 = vcmp.lt.s32.totalorder %v349, %v377
    %vm386 = vcmp.lt.s32.totalorder %v350, %v377
    %vm387 = vcmp.lt.s32.totalorder %v351, %v377
    %vm388 = vcmp.lt.s32.totalorder %v352, %v377
    %vm389 = vcmp.lt.s32.totalorder %v353, %v377
    %vm390 = vcmp.lt.s32.totalorder %v354, %v377
    %vm391 = vcmp.lt.s32.totalorder %v355, %v377
    %vm392 = vcmp.lt.s32.totalorder %v356, %v377
    %vm393 = vcmp.lt.s32.totalorder %v357, %v377
    %vm394 = vmand %vm361, %vm378
    %vm395 = vmand %vm362, %vm379
    %vm396 = vmand %vm363, %vm380
    %vm397 = vmand %vm364, %vm381
    %vm398 = vmand %vm365, %vm382
    %vm399 = vmand %vm366, %vm383
    %vm400 = vmand %vm367, %vm384
    %vm401 = vmand %vm368, %vm385
    %vm402 = vmand %vm369, %vm386
    %vm403 = vmand %vm370, %vm387
    %vm404 = vmand %vm371, %vm388
    %vm405 = vmand %vm372, %vm389
    %vm406 = vmand %vm373, %vm390
    %vm407 = vmand %vm374, %vm391
    %vm408 = vmand %vm375, %vm392
    %vm409 = vmand %vm376, %vm393
    %v410 = vsel %vm394, 1, 0
    %v411 = vsel %vm395, 1, 0
    %v412 = vsel %vm396, 1, 0
    %v413 = vsel %vm397, 1, 0
    %v414 = vsel %vm398, 1, 0
    %v415 = vsel %vm399, 1, 0
    %v416 = vsel %vm400, 1, 0
    %v417 = vsel %vm401, 1, 0
    %v418 = vsel %vm402, 1, 0
    %v419 = vsel %vm403, 1, 0
    %v420 = vsel %vm404, 1, 0
    %v421 = vsel %vm405, 1, 0
    %v422 = vsel %vm406, 1, 0
    %v423 = vsel %vm407, 1, 0
    %v424 = vsel %vm408, 1, 0
    %v425 = vsel %vm409, 1, 0
    %v426 = vcvt.s32.f32 %v410
    %v427 = vcvt.s32.f32 %v411
    %v428 = vcvt.s32.f32 %v412
    %v429 = vcvt.s32.f32 %v413
    %v430 = vcvt.s32.f32 %v414
    %v431 = vcvt.s32.f32 %v415
    %v432 = vcvt.s32.f32 %v416
    %v433 = vcvt.s32.f32 %v417
    %v434 = vcvt.s32.f32 %v418
    %v435 = vcvt.s32.f32 %v419
    %v436 = vcvt.s32.f32 %v420
    %v437 = vcvt.s32.f32 %v421
    %v438 = vcvt.s32.f32 %v422
    %v439 = vcvt.s32.f32 %v423
    %v440 = vcvt.s32.f32 %v424
    %v441 = vcvt.s32.f32 %v425
    %v442 = vmul.f32 %v426, %v295
    %v443 = vmul.f32 %v427, %v298
    %v444 = vmul.f32 %v428, %v301
    %v445 = vmul.f32 %v429, %v304
    %v446 = vmul.f32 %v430, %v307
    %v447 = vmul.f32 %v431, %v310
    %v448 = vmul.f32 %v432, %v313
    %v449 = vmul.f32 %v433, %v316
    %v450 = vmul.f32 %v434, %v319
    %v451 = vmul.f32 %v435, %v322
    %v452 = vmul.f32 %v436, %v325
    %v453 = vmul.f32 %v437, %v328
    %v454 = vmul.f32 %v438, %v331
    %v455 = vmul.f32 %v439, %v334
    %v456 = vmul.f32 %v440, %v337
    %v457 = vmul.f32 %v441, %v340
    %vm458 = vcmask 15360
    %v459 = vsel %vm458, %v442, 0.0
    %v460 = vsel %vm458, %v443, 0.0
    %v461 = vadd.f32 %v459, %v460
    %v462 = vsel %vm458, %v444, 0.0
    %v463 = vadd.f32 %v461, %v462
    %v464 = vsel %vm458, %v445, 0.0
    %v465 = vadd.f32 %v463, %v464
    %v466 = vsel %vm458, %v446, 0.0
    %v467 = vadd.f32 %v465, %v466
    %v468 = vsel %vm458, %v447, 0.0
    %v469 = vadd.f32 %v467, %v468
    %v470 = vsel %vm458, %v448, 0.0
    %v471 = vadd.f32 %v469, %v470
    %v472 = vsel %vm458, %v449, 0.0
    %v473 = vadd.f32 %v471, %v472
    %v474 = vsel %vm458, %v450, 0.0
    %v475 = vadd.f32 %v473, %v474
    %v476 = vsel %vm458, %v451, 0.0
    %v477 = vadd.f32 %v475, %v476
    %v478 = vsel %vm458, %v452, 0.0
    %v479 = vadd.f32 %v477, %v478
    %v480 = vsel %vm458, %v453, 0.0
    %v481 = vadd.f32 %v479, %v480
    %v482 = vsel %vm458, %v454, 0.0
    %v483 = vadd.f32 %v481, %v482
    %v484 = vsel %vm458, %v455, 0.0
    %v485 = vadd.f32 %v483, %v484
    %v486 = vsel %vm458, %v456, 0.0
    %v487 = vadd.f32 %v485, %v486
    %v488 = vsel %vm458, %v457, 0.0
    %v489 = vadd.f32 %v487, %v488
    %v490 = vrot.slane %v489, 4
    %v491 = vadd.f32 %v489, %v490
    %v492 = vrot.slane %v491, 2
    %v493 = vadd.f32 %v491, %v492
    %v494 = vrot.slane %v493, 1
    %v495 = vadd.f32 %v493, %v494
    %v496 = vadd.f32 %v495, -2839.136
    %v497 = vsub.f32 %v181, %v229
    %v498 = vsub.f32 %v183, %v231
    %v499 = vsub.f32 %v185, %v233
    %v500 = vsub.f32 %v187, %v235
    %v501 = vsub.f32 %v189, %v237
    %v502 = vsub.f32 %v191, %v239
    %v503 = vsub.f32 %v193, %v241
    %v504 = vsub.f32 %v195, %v243
    %v505 = vsub.f32 %v197, %v245
    %v506 = vsub.f32 %v199, %v247
    %v507 = vsub.f32 %v201, %v249
    %v508 = vsub.f32 %v203, %v251
    %v509 = vsub.f32 %v205, %v253
    %v510 = vsub.f32 %v207, %v255
    %v511 = vsub.f32 %v209, %v257
    %v512 = vsub.f32 %v211, %v259
    %v513 = vld [vmem:[%s2] sm:$0xff]
    %v514 = vld [vmem:[%s2 + $0x8] sm:$0xff]
    %v515 = vld [vmem:[%s2 + $0x10] sm:$0xff]
    %v516 = vld [vmem:[%s2 + $0x18] sm:$0xff]
    %v517 = vld [vmem:[%s2 + $0x20] sm:$0xff]
    %v518 = vld [vmem:[%s2 + $0x28] sm:$0xff]
    %v519 = vld [vmem:[%s2 + $0x30] sm:$0xff]
    %v520 = vld [vmem:[%s2 + $0x38] sm:$0xff]
    %v521 = vld [vmem:[%s2 + $0x40] sm:$0xff]
    %v522 = vld [vmem:[%s2 + $0x48] sm:$0xff]
    %v523 = vld [vmem:[%s2 + $0x50] sm:$0xff]
    %v524 = vld [vmem:[%s2 + $0x58] sm:$0xff]
    %v525 = vld [vmem:[%s2 + $0x60] sm:$0xff]
    %v526 = vld [vmem:[%s2 + $0x68] sm:$0xff]
    %v527 = vld [vmem:[%s2 + $0x70] sm:$0xff]
    %v528 = vld [vmem:[%s2 + $0x78] sm:$0xff]
    %v529 = vld [vmem:[%s2 + $0x80] sm:$0xff]
    %v530 = vld [vmem:[%s2 + $0x88] sm:$0xff]
    %v531 = vld [vmem:[%s2 + $0x90] sm:$0xff]
    %v532 = vld [vmem:[%s2 + $0x98] sm:$0xff]
    %v533 = vld [vmem:[%s2 + $0xa0] sm:$0xff]
    %v534 = vld [vmem:[%s2 + $0xa8] sm:$0xff]
    %v535 = vld [vmem:[%s2 + $0xb0] sm:$0xff]
    %v536 = vld [vmem:[%s2 + $0xb8] sm:$0xff]
    %v537 = vld [vmem:[%s2 + $0xc0] sm:$0xff]
    %v538 = vld [vmem:[%s2 + $0xc8] sm:$0xff]
    %v539 = vld [vmem:[%s2 + $0xd0] sm:$0xff]
    %v540 = vld [vmem:[%s2 + $0xd8] sm:$0xff]
    %v541 = vld [vmem:[%s2 + $0xe0] sm:$0xff]
    %v542 = vld [vmem:[%s2 + $0xe8] sm:$0xff]
    %v543 = vld [vmem:[%s2 + $0xf0] sm:$0xff]
    %v544 = vld [vmem:[%s2 + $0xf8] sm:$0xff]
    %v545 = vld [vmem:[%s2 + $0x100] sm:$0xff]
    %v546 = vld [vmem:[%s2 + $0x108] sm:$0xff]
    %v547 = vld [vmem:[%s2 + $0x110] sm:$0xff]
    %v548 = vld [vmem:[%s2 + $0x118] sm:$0xff]
    %v549 = vld [vmem:[%s2 + $0x120] sm:$0xff]
    %v550 = vld [vmem:[%s2 + $0x128] sm:$0xff]
    %v551 = vld [vmem:[%s2 + $0x130] sm:$0xff]
    %v552 = vld [vmem:[%s2 + $0x138] sm:$0xff]
    %v553 = vld [vmem:[%s2 + $0x140] sm:$0xff]
    %v554 = vld [vmem:[%s2 + $0x148] sm:$0xff]
    %v555 = vld [vmem:[%s2 + $0x150] sm:$0xff]
    %v556 = vld [vmem:[%s2 + $0x158] sm:$0xff]
    %v557 = vld [vmem:[%s2 + $0x160] sm:$0xff]
    %v558 = vld [vmem:[%s2 + $0x168] sm:$0xff]
    %v559 = vld [vmem:[%s2 + $0x170] sm:$0xff]
    %v560 = vld [vmem:[%s2 + $0x178] sm:$0xff]
    %v561 = vld [vmem:[%s2 + $0x180] sm:$0xff]
    %v562 = vld [vmem:[%s2 + $0x188] sm:$0xff]
    %v563 = vld [vmem:[%s2 + $0x190] sm:$0xff]
    %v564 = vld [vmem:[%s2 + $0x198] sm:$0xff]
    %v565 = vld [vmem:[%s2 + $0x1a0] sm:$0xff]
    %v566 = vld [vmem:[%s2 + $0x1a8] sm:$0xff]
    %v567 = vld [vmem:[%s2 + $0x1b0] sm:$0xff]
    %v568 = vld [vmem:[%s2 + $0x1b8] sm:$0xff]
    %v569 = vld [vmem:[%s2 + $0x1c0] sm:$0xff]
    %v570 = vld [vmem:[%s2 + $0x1c8] sm:$0xff]
    %v571 = vld [vmem:[%s2 + $0x1d0] sm:$0xff]
    %v572 = vld [vmem:[%s2 + $0x1d8] sm:$0xff]
    %v573 = vld [vmem:[%s2 + $0x1e0] sm:$0xff]
    %v574 = vld [vmem:[%s2 + $0x1e8] sm:$0xff]
    %v575 = vld [vmem:[%s2 + $0x1f0] sm:$0xff]
    %v576 = vld [vmem:[%s2 + $0x1f8] sm:$0xff]
    %v577 = vld [vmem:[%s2 + $0x200] sm:$0xff]
    %v578 = vld [vmem:[%s2 + $0x208] sm:$0xff]
    %v579 = vld [vmem:[%s2 + $0x210] sm:$0xff]
    %v580 = vld [vmem:[%s2 + $0x218] sm:$0xff]
    %v581 = vld [vmem:[%s2 + $0x220] sm:$0xff]
    %v582 = vld [vmem:[%s2 + $0x228] sm:$0xff]
    %v583 = vld [vmem:[%s2 + $0x230] sm:$0xff]
    %v584 = vld [vmem:[%s2 + $0x238] sm:$0xff]
    %v585 = vld [vmem:[%s2 + $0x240] sm:$0xff]
    %v586 = vld [vmem:[%s2 + $0x248] sm:$0xff]
    %v587 = vld [vmem:[%s2 + $0x250] sm:$0xff]
    %v588 = vld [vmem:[%s2 + $0x258] sm:$0xff]
    %v589 = vld [vmem:[%s2 + $0x260] sm:$0xff]
    %v590 = vld [vmem:[%s2 + $0x268] sm:$0xff]
    %v591 = vld [vmem:[%s2 + $0x270] sm:$0xff]
    %v592 = vld [vmem:[%s2 + $0x278] sm:$0xff]
    %v593 = vld [vmem:[%s2 + $0x280] sm:$0xff]
    %v594 = vld [vmem:[%s2 + $0x288] sm:$0xff]
    %v595 = vld [vmem:[%s2 + $0x290] sm:$0xff]
    %v596 = vld [vmem:[%s2 + $0x298] sm:$0xff]
    %v597 = vld [vmem:[%s2 + $0x2a0] sm:$0xff]
    %v598 = vld [vmem:[%s2 + $0x2a8] sm:$0xff]
    %v599 = vld [vmem:[%s2 + $0x2b0] sm:$0xff]
    %v600 = vld [vmem:[%s2 + $0x2b8] sm:$0xff]
    %v601 = vld [vmem:[%s2 + $0x2c0] sm:$0xff]
    %v602 = vld [vmem:[%s2 + $0x2c8] sm:$0xff]
    %v603 = vld [vmem:[%s2 + $0x2d0] sm:$0xff]
    %v604 = vld [vmem:[%s2 + $0x2d8] sm:$0xff]
    %v605 = vld [vmem:[%s2 + $0x2e0] sm:$0xff]
    %v606 = vld [vmem:[%s2 + $0x2e8] sm:$0xff]
    %v607 = vld [vmem:[%s2 + $0x2f0] sm:$0xff]
    %v608 = vld [vmem:[%s2 + $0x2f8] sm:$0xff]
    %v609 = vld [vmem:[%s2 + $0x300] sm:$0xff]
    %v610 = vld [vmem:[%s2 + $0x308] sm:$0xff]
    %v611 = vld [vmem:[%s2 + $0x310] sm:$0xff]
    %v612 = vld [vmem:[%s2 + $0x318] sm:$0xff]
    %v613 = vld [vmem:[%s2 + $0x320] sm:$0xff]
    %v614 = vld [vmem:[%s2 + $0x328] sm:$0xff]
    %v615 = vld [vmem:[%s2 + $0x330] sm:$0xff]
    %v616 = vld [vmem:[%s2 + $0x338] sm:$0xff]
    %v617 = vld [vmem:[%s2 + $0x340] sm:$0xff]
    %v618 = vld [vmem:[%s2 + $0x348] sm:$0xff]
    %v619 = vld [vmem:[%s2 + $0x350] sm:$0xff]
    %v620 = vld [vmem:[%s2 + $0x358] sm:$0xff]
    %v621 = vld [vmem:[%s2 + $0x360] sm:$0xff]
    %v622 = vld [vmem:[%s2 + $0x368] sm:$0xff]
    %v623 = vld [vmem:[%s2 + $0x370] sm:$0xff]
    %v624 = vld [vmem:[%s2 + $0x378] sm:$0xff]
    %v625 = vld [vmem:[%s2 + $0x380] sm:$0xff]
    %v626 = vld [vmem:[%s2 + $0x388] sm:$0xff]
    %v627 = vld [vmem:[%s2 + $0x390] sm:$0xff]
    %v628 = vld [vmem:[%s2 + $0x398] sm:$0xff]
    %v629 = vld [vmem:[%s2 + $0x3a0] sm:$0xff]
    %v630 = vld [vmem:[%s2 + $0x3a8] sm:$0xff]
    %v631 = vld [vmem:[%s2 + $0x3b0] sm:$0xff]
    %v632 = vld [vmem:[%s2 + $0x3b8] sm:$0xff]
    %v633 = vld [vmem:[%s2 + $0x3c0] sm:$0xff]
    %v634 = vld [vmem:[%s2 + $0x3c8] sm:$0xff]
    %v635 = vld [vmem:[%s2 + $0x3d0] sm:$0xff]
    %v636 = vld [vmem:[%s2 + $0x3d8] sm:$0xff]
    %v637 = vld [vmem:[%s2 + $0x3e0] sm:$0xff]
    %v638 = vld [vmem:[%s2 + $0x3e8] sm:$0xff]
    %v639 = vld [vmem:[%s2 + $0x3f0] sm:$0xff]
    %v640 = vld [vmem:[%s2 + $0x3f8] sm:$0xff]
    %v641 = vld [vmem:[%s2 + $0x400] sm:$0xff]
    %v642 = vld [vmem:[%s2 + $0x408] sm:$0xff]
    %v643 = vld [vmem:[%s2 + $0x410] sm:$0xff]
    %v644 = vld [vmem:[%s2 + $0x418] sm:$0xff]
    %v645 = vld [vmem:[%s2 + $0x420] sm:$0xff]
    %v646 = vld [vmem:[%s2 + $0x428] sm:$0xff]
    %v647 = vld [vmem:[%s2 + $0x430] sm:$0xff]
    %v648 = vld [vmem:[%s2 + $0x438] sm:$0xff]
    %v649 = vld [vmem:[%s2 + $0x440] sm:$0xff]
    %v650 = vld [vmem:[%s2 + $0x448] sm:$0xff]
    %v651 = vld [vmem:[%s2 + $0x450] sm:$0xff]
    %v652 = vld [vmem:[%s2 + $0x458] sm:$0xff]
    %v653 = vld [vmem:[%s2 + $0x460] sm:$0xff]
    %v654 = vld [vmem:[%s2 + $0x468] sm:$0xff]
    %v655 = vld [vmem:[%s2 + $0x470] sm:$0xff]
    %v656 = vld [vmem:[%s2 + $0x478] sm:$0xff]
    %v657 = vld [vmem:[%s5] sm:$0xff]
    %v658 = vld [vmem:[%s5 + $0x8] sm:$0xff]
    %v659 = vld [vmem:[%s5 + $0x10] sm:$0xff]
    %v660 = vld [vmem:[%s5 + $0x18] sm:$0xff]
    %v661 = vld [vmem:[%s5 + $0x20] sm:$0xf]
    %v662 = vld [vmem:[%s6] sm:$0x1]
    %663 = vmatprep.subr.mxu0 0.0
    %664 = vmatpush1.msra.mxu0 %v497
    %665 = vmatprep.subr.mxu0 0.0
    %666 = vmatpush1.msra.mxu0 %v498
    %667 = vmatprep.subr.mxu0 0.0
    %668 = vmatpush1.msra.mxu0 %v499
    %669 = vmatprep.subr.mxu0 0.0
    %670 = vmatpush1.msra.mxu0 %v500
    %671 = vmatprep.subr.mxu0 0.0
    %672 = vmatpush1.msra.mxu0 %v501
    %673 = vmatprep.subr.mxu0 0.0
    %674 = vmatpush1.msra.mxu0 %v502
    %675 = vmatprep.subr.mxu0 0.0
    %676 = vmatpush1.msra.mxu0 %v503
    %677 = vmatprep.subr.mxu0 0.0
    %678 = vmatpush1.msra.mxu0 %v504
    %679 = vmatprep.subr.mxu0 0.0
    %680 = vmatpush1.msra.mxu0 %v505
    %681 = vmatprep.subr.mxu0 0.0
    %682 = vmatpush1.msra.mxu0 %v506
    %683 = vmatprep.subr.mxu0 0.0
    %684 = vmatpush1.msra.mxu0 %v507
    %685 = vmatprep.subr.mxu0 0.0
    %686 = vmatpush1.msra.mxu0 %v508
    %687 = vmatprep.subr.mxu0 0.0
    %688 = vmatpush1.msra.mxu0 %v509
    %689 = vmatprep.subr.mxu0 0.0
    %690 = vmatpush1.msra.mxu0 %v510
    %691 = vmatprep.subr.mxu0 0.0
    %692 = vmatpush1.msra.mxu0 %v511
    %693 = vmatprep.subr.mxu0 0.0
    %694 = vmatpush1.msra.mxu0 %v512
    %695 = vmatprep.subr.mxu0 0.0
    %696 = vmatpush1.msra.mxu0 0.0
    %697 = vmatprep.subr.mxu0 0.0
    %698 = vmatpush1.msra.mxu0 0.0
    %699 = vmatprep.subr.mxu0 0.0
    %700 = vmatpush1.msra.mxu0 0.0
    %701 = vmatprep.subr.mxu0 0.0
    %702 = vmatpush1.msra.mxu0 0.0
    %703 = vmatprep.subr.mxu0 0.0
    %704 = vmatpush1.msra.mxu0 0.0
    %705 = vmatprep.subr.mxu0 0.0
    %706 = vmatpush1.msra.mxu0 0.0
    %707 = vmatprep.subr.mxu0 0.0
    %708 = vmatpush1.msra.mxu0 0.0
    %709 = vmatprep.subr.mxu0 0.0
    %710 = vmatpush1.msra.mxu0 0.0
    %711 = vmatprep.subr.mxu0 0.0
    %712 = vmatpush1.msra.mxu0 0.0
    %713 = vmatprep.subr.mxu0 0.0
    %714 = vmatpush1.msra.mxu0 0.0
    %715 = vmatprep.subr.mxu0 0.0
    %716 = vmatpush1.msra.mxu0 0.0
    %717 = vmatprep.subr.mxu0 0.0
    %718 = vmatpush1.msra.mxu0 0.0
    %719 = vmatprep.subr.mxu0 0.0
    %720 = vmatpush1.msra.mxu0 0.0
    %721 = vmatprep.subr.mxu0 0.0
    %722 = vmatpush1.msra.mxu0 0.0
    %723 = vmatprep.subr.mxu0 0.0
    %724 = vmatpush1.msra.mxu0 0.0
    %725 = vmatprep.subr.mxu0 0.0
    %726 = vmatpush1.msra.mxu0 0.0
    %727 = vmatprep.mubr.f32.mxu0 0.0
    %728 = vmatmul.mubr.f32.gmra.mrb[0].mxu0 %v513
    %v729 = vpop.f32.mrb[0].mxu0
    %v730 = vadd.f32 0.0, %v729
    %v731 = vpop.f32.mrb[0].mxu0
    %732 = vmatprep.mubr.f32.mxu0 0.0
    %733 = vmatmul.mubr.f32.gmra.mrb[0].mxu0 %v514
    %v734 = vpop.f32.mrb[0].mxu0
    %v735 = vadd.f32 0.0, %v734
    %v736 = vpop.f32.mrb[0].mxu0
    %737 = vmatprep.mubr.f32.mxu0 0.0
    %738 = vmatmul.mubr.f32.gmra.mrb[0].mxu0 %v515
    %v739 = vpop.f32.mrb[0].mxu0
    %v740 = vadd.f32 0.0, %v739
    %v741 = vpop.f32.mrb[0].mxu0
    %742 = vmatprep.mubr.f32.mxu0 0.0
    %743 = vmatmul.mubr.f32.gmra.mrb[0].mxu0 %v516
    %v744 = vpop.f32.mrb[0].mxu0
    %v745 = vadd.f32 0.0, %v744
    %v746 = vpop.f32.mrb[0].mxu0
    %747 = vmatprep.mubr.f32.mxu0 0.0
    %748 = vmatmul.mubr.f32.gmra.mrb[0].mxu0 %v517
    %v749 = vpop.f32.mrb[0].mxu0
    %v750 = vadd.f32 0.0, %v749
    %v751 = vpop.f32.mrb[0].mxu0
    %752 = vmatprep.mubr.f32.mxu0 0.0
    %753 = vmatmul.mubr.f32.gmra.mrb[0].mxu0 %v518
    %v754 = vpop.f32.mrb[0].mxu0
    %v755 = vadd.f32 0.0, %v754
    %v756 = vpop.f32.mrb[0].mxu0
    %757 = vmatprep.mubr.f32.mxu0 0.0
    %758 = vmatmul.mubr.f32.gmra.mrb[0].mxu0 %v519
    %v759 = vpop.f32.mrb[0].mxu0
    %v760 = vadd.f32 0.0, %v759
    %v761 = vpop.f32.mrb[0].mxu0
    %762 = vmatprep.mubr.f32.mxu0 0.0
    %763 = vmatmul.mubr.f32.gmra.mrb[0].mxu0 %v520
    %v764 = vpop.f32.mrb[0].mxu0
    %v765 = vadd.f32 0.0, %v764
    %v766 = vpop.f32.mrb[0].mxu0
    %767 = vmatprep.mubr.f32.mxu0 0.0
    %768 = vmatmul.mubr.f32.gmra.mrb[0].mxu0 %v521
    %v769 = vpop.f32.mrb[0].mxu0
    %v770 = vadd.f32 0.0, %v769
    %v771 = vpop.f32.mrb[0].mxu0
    %772 = vmatprep.mubr.f32.mxu0 0.0
    %773 = vmatmul.mubr.f32.gmra.mrb[0].mxu0 %v522
    %v774 = vpop.f32.mrb[0].mxu0
    %v775 = vadd.f32 0.0, %v774
    %v776 = vpop.f32.mrb[0].mxu0
    %777 = vmatprep.mubr.f32.mxu0 0.0
    %778 = vmatmul.mubr.f32.gmra.mrb[0].mxu0 %v523
    %v779 = vpop.f32.mrb[0].mxu0
    %v780 = vadd.f32 0.0, %v779
    %v781 = vpop.f32.mrb[0].mxu0
    %782 = vmatprep.mubr.f32.mxu0 0.0
    %783 = vmatmul.mubr.f32.gmra.mrb[0].mxu0 %v524
    %v784 = vpop.f32.mrb[0].mxu0
    %v785 = vadd.f32 0.0, %v784
    %v786 = vpop.f32.mrb[0].mxu0
    %787 = vmatprep.mubr.f32.mxu0 0.0
    %788 = vmatmul.mubr.f32.gmra.mrb[0].mxu0 %v525
    %v789 = vpop.f32.mrb[0].mxu0
    %v790 = vadd.f32 0.0, %v789
    %v791 = vpop.f32.mrb[0].mxu0
    %792 = vmatprep.mubr.f32.mxu0 0.0
    %793 = vmatmul.mubr.f32.gmra.mrb[0].mxu0 %v526
    %v794 = vpop.f32.mrb[0].mxu0
    %v795 = vadd.f32 0.0, %v794
    %v796 = vpop.f32.mrb[0].mxu0
    %797 = vmatprep.mubr.f32.mxu0 0.0
    %798 = vmatmul.mubr.f32.gmra.mrb[0].mxu0 %v527
    %v799 = vpop.f32.mrb[0].mxu0
    %v800 = vadd.f32 0.0, %v799
    %v801 = vpop.f32.mrb[0].mxu0
    %802 = vmatprep.mubr.f32.mxu0 0.0
    %803 = vmatmul.mubr.f32.gmra.mrb[0].mxu0 %v528
    %v804 = vpop.f32.mrb[0].mxu0
    %v805 = vadd.f32 0.0, %v804
    %v806 = vpop.f32.mrb[0].mxu0
    %807 = vmatprep.mubr.f32.mxu0 0.0
    %808 = vmatmul.mubr.f32.gmra.mrb[0].mxu0 %v529
    %v809 = vpop.f32.mrb[0].mxu0
    %v810 = vadd.f32 0.0, %v809
    %v811 = vpop.f32.mrb[0].mxu0
    %812 = vmatprep.mubr.f32.mxu0 0.0
    %813 = vmatmul.mubr.f32.gmra.mrb[0].mxu0 %v530
    %v814 = vpop.f32.mrb[0].mxu0
    %v815 = vadd.f32 0.0, %v814
    %v816 = vpop.f32.mrb[0].mxu0
    %817 = vmatprep.mubr.f32.mxu0 0.0
    %818 = vmatmul.mubr.f32.gmra.mrb[0].mxu0 %v531
    %v819 = vpop.f32.mrb[0].mxu0
    %v820 = vadd.f32 0.0, %v819
    %v821 = vpop.f32.mrb[0].mxu0
    %822 = vmatprep.mubr.f32.mxu0 0.0
    %823 = vmatmul.mubr.f32.gmra.mrb[0].mxu0 %v532
    %v824 = vpop.f32.mrb[0].mxu0
    %v825 = vadd.f32 0.0, %v824
    %v826 = vpop.f32.mrb[0].mxu0
    %827 = vmatprep.mubr.f32.mxu0 0.0
    %828 = vmatmul.mubr.f32.gmra.mrb[0].mxu0 %v533
    %v829 = vpop.f32.mrb[0].mxu0
    %v830 = vadd.f32 0.0, %v829
    %v831 = vpop.f32.mrb[0].mxu0
    %832 = vmatprep.mubr.f32.mxu0 0.0
    %833 = vmatmul.mubr.f32.gmra.mrb[0].mxu0 %v534
    %v834 = vpop.f32.mrb[0].mxu0
    %v835 = vadd.f32 0.0, %v834
    %v836 = vpop.f32.mrb[0].mxu0
    %837 = vmatprep.mubr.f32.mxu0 0.0
    %838 = vmatmul.mubr.f32.gmra.mrb[0].mxu0 %v535
    %v839 = vpop.f32.mrb[0].mxu0
    %v840 = vadd.f32 0.0, %v839
    %v841 = vpop.f32.mrb[0].mxu0
    %842 = vmatprep.mubr.f32.mxu0 0.0
    %843 = vmatmul.mubr.f32.gmra.mrb[0].mxu0 %v536
    %v844 = vpop.f32.mrb[0].mxu0
    %v845 = vadd.f32 0.0, %v844
    %v846 = vpop.f32.mrb[0].mxu0
    %847 = vmatprep.mubr.f32.mxu0 0.0
    %848 = vmatmul.mubr.f32.gmra.mrb[0].mxu0 %v537
    %v849 = vpop.f32.mrb[0].mxu0
    %v850 = vadd.f32 0.0, %v849
    %v851 = vpop.f32.mrb[0].mxu0
    %852 = vmatprep.mubr.f32.mxu0 0.0
    %853 = vmatmul.mubr.f32.gmra.mrb[0].mxu0 %v538
    %v854 = vpop.f32.mrb[0].mxu0
    %v855 = vadd.f32 0.0, %v854
    %v856 = vpop.f32.mrb[0].mxu0
    %857 = vmatprep.mubr.f32.mxu0 0.0
    %858 = vmatmul.mubr.f32.gmra.mrb[0].mxu0 %v539
    %v859 = vpop.f32.mrb[0].mxu0
    %v860 = vadd.f32 0.0, %v859
    %v861 = vpop.f32.mrb[0].mxu0
    %862 = vmatprep.mubr.f32.mxu0 0.0
    %863 = vmatmul.mubr.f32.gmra.mrb[0].mxu0 %v540
    %v864 = vpop.f32.mrb[0].mxu0
    %v865 = vadd.f32 0.0, %v864
    %v866 = vpop.f32.mrb[0].mxu0
    %867 = vmatprep.mubr.f32.mxu0 0.0
    %868 = vmatmul.mubr.f32.gmra.mrb[0].mxu0 %v541
    %v869 = vpop.f32.mrb[0].mxu0
    %v870 = vadd.f32 0.0, %v869
    %v871 = vpop.f32.mrb[0].mxu0
    %872 = vmatprep.mubr.f32.mxu0 0.0
    %873 = vmatmul.mubr.f32.gmra.mrb[0].mxu0 %v542
    %v874 = vpop.f32.mrb[0].mxu0
    %v875 = vadd.f32 0.0, %v874
    %v876 = vpop.f32.mrb[0].mxu0
    %877 = vmatprep.mubr.f32.mxu0 0.0
    %878 = vmatmul.mubr.f32.gmra.mrb[0].mxu0 %v543
    %v879 = vpop.f32.mrb[0].mxu0
    %v880 = vadd.f32 0.0, %v879
    %v881 = vpop.f32.mrb[0].mxu0
    %882 = vmatprep.mubr.f32.mxu0 0.0
    %883 = vmatmul.mubr.f32.gmra.mrb[0].mxu0 %v544
    %v884 = vpop.f32.mrb[0].mxu0
    %v885 = vadd.f32 0.0, %v884
    %v886 = vpop.f32.mrb[0].mxu0
    %887 = vmatprep.mubr.f32.mxu0 0.0
    %888 = vmatmul.mubr.f32.gmra.mrb[0].mxu0 %v545
    %v889 = vpop.f32.mrb[0].mxu0
    %v890 = vadd.f32 0.0, %v889
    %v891 = vpop.f32.mrb[0].mxu0
    %892 = vmatprep.mubr.f32.mxu0 0.0
    %893 = vmatmul.mubr.f32.gmra.mrb[0].mxu0 %v546
    %v894 = vpop.f32.mrb[0].mxu0
    %v895 = vadd.f32 0.0, %v894
    %v896 = vpop.f32.mrb[0].mxu0
    %897 = vmatprep.mubr.f32.mxu0 0.0
    %898 = vmatmul.mubr.f32.gmra.mrb[0].mxu0 %v547
    %v899 = vpop.f32.mrb[0].mxu0
    %v900 = vadd.f32 0.0, %v899
    %v901 = vpop.f32.mrb[0].mxu0
    %902 = vmatprep.mubr.f32.mxu0 0.0
    %903 = vmatmul.mubr.f32.gmra.mrb[0].mxu0 %v548
    %v904 = vpop.f32.mrb[0].mxu0
    %v905 = vadd.f32 0.0, %v904
    %v906 = vpop.f32.mrb[0].mxu0
    %907 = vmatprep.mubr.f32.mxu0 0.0
    %908 = vmatmul.mubr.f32.gmra.mrb[0].mxu0 %v549
    %v909 = vpop.f32.mrb[0].mxu0
    %v910 = vadd.f32 0.0, %v909
    %v911 = vpop.f32.mrb[0].mxu0
    %912 = vmatprep.mubr.f32.mxu0 0.0
    %913 = vmatmul.mubr.f32.gmra.mrb[0].mxu0 %v550
    %v914 = vpop.f32.mrb[0].mxu0
    %v915 = vadd.f32 0.0, %v914
    %v916 = vpop.f32.mrb[0].mxu0
    %917 = vmatprep.mubr.f32.mxu0 0.0
    %918 = vmatmul.mubr.f32.gmra.mrb[0].mxu0 %v551
    %v919 = vpop.f32.mrb[0].mxu0
    %v920 = vadd.f32 0.0, %v919
    %v921 = vpop.f32.mrb[0].mxu0
    %922 = vmatprep.mubr.f32.mxu0 0.0
    %923 = vmatmul.mubr.f32.gmra.mrb[0].mxu0 %v552
    %v924 = vpop.f32.mrb[0].mxu0
    %v925 = vadd.f32 0.0, %v924
    %v926 = vpop.f32.mrb[0].mxu0
    %927 = vmatprep.mubr.f32.mxu0 0.0
    %928 = vmatmul.mubr.f32.gmra.mrb[0].mxu0 %v553
    %v929 = vpop.f32.mrb[0].mxu0
    %v930 = vadd.f32 0.0, %v929
    %v931 = vpop.f32.mrb[0].mxu0
    %932 = vmatprep.mubr.f32.mxu0 0.0
    %933 = vmatmul.mubr.f32.gmra.mrb[0].mxu0 %v554
    %v934 = vpop.f32.mrb[0].mxu0
    %v935 = vadd.f32 0.0, %v934
    %v936 = vpop.f32.mrb[0].mxu0
    %937 = vmatprep.mubr.f32.mxu0 0.0
    %938 = vmatmul.mubr.f32.gmra.mrb[0].mxu0 %v555
    %v939 = vpop.f32.mrb[0].mxu0
    %v940 = vadd.f32 0.0, %v939
    %v941 = vpop.f32.mrb[0].mxu0
    %942 = vmatprep.mubr.f32.mxu0 0.0
    %943 = vmatmul.mubr.f32.gmra.mrb[0].mxu0 %v556
    %v944 = vpop.f32.mrb[0].mxu0
    %v945 = vadd.f32 0.0, %v944
    %v946 = vpop.f32.mrb[0].mxu0
    %947 = vmatprep.mubr.f32.mxu0 0.0
    %948 = vmatmul.mubr.f32.gmra.mrb[0].mxu0 %v557
    %v949 = vpop.f32.mrb[0].mxu0
    %v950 = vadd.f32 0.0, %v949
    %v951 = vpop.f32.mrb[0].mxu0
    %952 = vmatprep.mubr.f32.mxu0 0.0
    %953 = vmatmul.mubr.f32.gmra.mrb[0].mxu0 %v558
    %v954 = vpop.f32.mrb[0].mxu0
    %v955 = vadd.f32 0.0, %v954
    %v956 = vpop.f32.mrb[0].mxu0
    %957 = vmatprep.mubr.f32.mxu0 0.0
    %958 = vmatmul.mubr.f32.gmra.mrb[0].mxu0 %v559
    %v959 = vpop.f32.mrb[0].mxu0
    %v960 = vadd.f32 0.0, %v959
    %v961 = vpop.f32.mrb[0].mxu0
    %962 = vmatprep.mubr.f32.mxu0 0.0
    %963 = vmatmul.mubr.f32.gmra.mrb[0].mxu0 %v560
    %v964 = vpop.f32.mrb[0].mxu0
    %v965 = vadd.f32 0.0, %v964
    %v966 = vpop.f32.mrb[0].mxu0
    %967 = vmatprep.mubr.f32.mxu0 0.0
    %968 = vmatmul.mubr.f32.gmra.mrb[0].mxu0 %v561
    %v969 = vpop.f32.mrb[0].mxu0
    %v970 = vadd.f32 0.0, %v969
    %v971 = vpop.f32.mrb[0].mxu0
    %972 = vmatprep.mubr.f32.mxu0 0.0
    %973 = vmatmul.mubr.f32.gmra.mrb[0].mxu0 %v562
    %v974 = vpop.f32.mrb[0].mxu0
    %v975 = vadd.f32 0.0, %v974
    %v976 = vpop.f32.mrb[0].mxu0
    %977 = vmatprep.mubr.f32.mxu0 0.0
    %978 = vmatmul.mubr.f32.gmra.mrb[0].mxu0 %v563
    %v979 = vpop.f32.mrb[0].mxu0
    %v980 = vadd.f32 0.0, %v979
    %v981 = vpop.f32.mrb[0].mxu0
    %982 = vmatprep.mubr.f32.mxu0 0.0
    %983 = vmatmul.mubr.f32.gmra.mrb[0].mxu0 %v564
    %v984 = vpop.f32.mrb[0].mxu0
    %v985 = vadd.f32 0.0, %v984
    %v986 = vpop.f32.mrb[0].mxu0
    %987 = vmatprep.mubr.f32.mxu0 0.0
    %988 = vmatmul.mubr.f32.gmra.mrb[0].mxu0 %v565
    %v989 = vpop.f32.mrb[0].mxu0
    %v990 = vadd.f32 0.0, %v989
    %v991 = vpop.f32.mrb[0].mxu0
    %992 = vmatprep.mubr.f32.mxu0 0.0
    %993 = vmatmul.mubr.f32.gmra.mrb[0].mxu0 %v566
    %v994 = vpop.f32.mrb[0].mxu0
    %v995 = vadd.f32 0.0, %v994
    %v996 = vpop.f32.mrb[0].mxu0
    %997 = vmatprep.mubr.f32.mxu0 0.0
    %998 = vmatmul.mubr.f32.gmra.mrb[0].mxu0 %v567
    %v999 = vpop.f32.mrb[0].mxu0
    %v1000 = vadd.f32 0.0, %v999
    %v1001 = vpop.f32.mrb[0].mxu0
    %1002 = vmatprep.mubr.f32.mxu0 0.0
    %1003 = vmatmul.mubr.f32.gmra.mrb[0].mxu0 %v568
    %v1004 = vpop.f32.mrb[0].mxu0
    %v1005 = vadd.f32 0.0, %v1004
    %v1006 = vpop.f32.mrb[0].mxu0
    %1007 = vmatprep.mubr.f32.mxu0 0.0
    %1008 = vmatmul.mubr.f32.gmra.mrb[0].mxu0 %v569
    %v1009 = vpop.f32.mrb[0].mxu0
    %v1010 = vadd.f32 0.0, %v1009
    %v1011 = vpop.f32.mrb[0].mxu0
    %1012 = vmatprep.mubr.f32.mxu0 0.0
    %1013 = vmatmul.mubr.f32.gmra.mrb[0].mxu0 %v570
    %v1014 = vpop.f32.mrb[0].mxu0
    %v1015 = vadd.f32 0.0, %v1014
    %v1016 = vpop.f32.mrb[0].mxu0
    %1017 = vmatprep.mubr.f32.mxu0 0.0
    %1018 = vmatmul.mubr.f32.gmra.mrb[0].mxu0 %v571
    %v1019 = vpop.f32.mrb[0].mxu0
    %v1020 = vadd.f32 0.0, %v1019
    %v1021 = vpop.f32.mrb[0].mxu0
    %1022 = vmatprep.mubr.f32.mxu0 0.0
    %1023 = vmatmul.mubr.f32.gmra.mrb[0].mxu0 %v572
    %v1024 = vpop.f32.mrb[0].mxu0
    %v1025 = vadd.f32 0.0, %v1024
    %v1026 = vpop.f32.mrb[0].mxu0
    %1027 = vmatprep.mubr.f32.mxu0 0.0
    %1028 = vmatmul.mubr.f32.gmra.mrb[0].mxu0 %v573
    %v1029 = vpop.f32.mrb[0].mxu0
    %v1030 = vadd.f32 0.0, %v1029
    %v1031 = vpop.f32.mrb[0].mxu0
    %1032 = vmatprep.mubr.f32.mxu0 0.0
    %1033 = vmatmul.mubr.f32.gmra.mrb[0].mxu0 %v574
    %v1034 = vpop.f32.mrb[0].mxu0
    %v1035 = vadd.f32 0.0, %v1034
    %v1036 = vpop.f32.mrb[0].mxu0
    %1037 = vmatprep.mubr.f32.mxu0 0.0
    %1038 = vmatmul.mubr.f32.gmra.mrb[0].mxu0 %v575
    %v1039 = vpop.f32.mrb[0].mxu0
    %v1040 = vadd.f32 0.0, %v1039
    %v1041 = vpop.f32.mrb[0].mxu0
    %1042 = vmatprep.mubr.f32.mxu0 0.0
    %1043 = vmatmul.mubr.f32.gmra.mrb[0].mxu0 %v576
    %v1044 = vpop.f32.mrb[0].mxu0
    %v1045 = vadd.f32 0.0, %v1044
    %v1046 = vpop.f32.mrb[0].mxu0
    %1047 = vmatprep.mubr.f32.mxu0 0.0
    %1048 = vmatmul.mubr.f32.gmra.mrb[0].mxu0 %v577
    %v1049 = vpop.f32.mrb[0].mxu0
    %v1050 = vadd.f32 0.0, %v1049
    %v1051 = vpop.f32.mrb[0].mxu0
    %1052 = vmatprep.mubr.f32.mxu0 0.0
    %1053 = vmatmul.mubr.f32.gmra.mrb[0].mxu0 %v578
    %v1054 = vpop.f32.mrb[0].mxu0
    %v1055 = vadd.f32 0.0, %v1054
    %v1056 = vpop.f32.mrb[0].mxu0
    %1057 = vmatprep.mubr.f32.mxu0 0.0
    %1058 = vmatmul.mubr.f32.gmra.mrb[0].mxu0 %v579
    %v1059 = vpop.f32.mrb[0].mxu0
    %v1060 = vadd.f32 0.0, %v1059
    %v1061 = vpop.f32.mrb[0].mxu0
    %1062 = vmatprep.mubr.f32.mxu0 0.0
    %1063 = vmatmul.mubr.f32.gmra.mrb[0].mxu0 %v580
    %v1064 = vpop.f32.mrb[0].mxu0
    %v1065 = vadd.f32 0.0, %v1064
    %v1066 = vpop.f32.mrb[0].mxu0
    %1067 = vmatprep.mubr.f32.mxu0 0.0
    %1068 = vmatmul.mubr.f32.gmra.mrb[0].mxu0 %v581
    %v1069 = vpop.f32.mrb[0].mxu0
    %v1070 = vadd.f32 0.0, %v1069
    %v1071 = vpop.f32.mrb[0].mxu0
    %1072 = vmatprep.mubr.f32.mxu0 0.0
    %1073 = vmatmul.mubr.f32.gmra.mrb[0].mxu0 %v582
    %v1074 = vpop.f32.mrb[0].mxu0
    %v1075 = vadd.f32 0.0, %v1074
    %v1076 = vpop.f32.mrb[0].mxu0
    %1077 = vmatprep.mubr.f32.mxu0 0.0
    %1078 = vmatmul.mubr.f32.gmra.mrb[0].mxu0 %v583
    %v1079 = vpop.f32.mrb[0].mxu0
    %v1080 = vadd.f32 0.0, %v1079
    %v1081 = vpop.f32.mrb[0].mxu0
    %1082 = vmatprep.mubr.f32.mxu0 0.0
    %1083 = vmatmul.mubr.f32.gmra.mrb[0].mxu0 %v584
    %v1084 = vpop.f32.mrb[0].mxu0
    %v1085 = vadd.f32 0.0, %v1084
    %v1086 = vpop.f32.mrb[0].mxu0
    %1087 = vmatprep.mubr.f32.mxu0 0.0
    %1088 = vmatmul.mubr.f32.gmra.mrb[0].mxu0 %v585
    %v1089 = vpop.f32.mrb[0].mxu0
    %v1090 = vadd.f32 0.0, %v1089
    %v1091 = vpop.f32.mrb[0].mxu0
    %1092 = vmatprep.mubr.f32.mxu0 0.0
    %1093 = vmatmul.mubr.f32.gmra.mrb[0].mxu0 %v586
    %v1094 = vpop.f32.mrb[0].mxu0
    %v1095 = vadd.f32 0.0, %v1094
    %v1096 = vpop.f32.mrb[0].mxu0
    %1097 = vmatprep.mubr.f32.mxu0 0.0
    %1098 = vmatmul.mubr.f32.gmra.mrb[0].mxu0 %v587
    %v1099 = vpop.f32.mrb[0].mxu0
    %v1100 = vadd.f32 0.0, %v1099
    %v1101 = vpop.f32.mrb[0].mxu0
    %1102 = vmatprep.mubr.f32.mxu0 0.0
    %1103 = vmatmul.mubr.f32.gmra.mrb[0].mxu0 %v588
    %v1104 = vpop.f32.mrb[0].mxu0
    %v1105 = vadd.f32 0.0, %v1104
    %v1106 = vpop.f32.mrb[0].mxu0
    %1107 = vmatprep.mubr.f32.mxu0 0.0
    %1108 = vmatmul.mubr.f32.gmra.mrb[0].mxu0 %v589
    %v1109 = vpop.f32.mrb[0].mxu0
    %v1110 = vadd.f32 0.0, %v1109
    %v1111 = vpop.f32.mrb[0].mxu0
    %1112 = vmatprep.mubr.f32.mxu0 0.0
    %1113 = vmatmul.mubr.f32.gmra.mrb[0].mxu0 %v590
    %v1114 = vpop.f32.mrb[0].mxu0
    %v1115 = vadd.f32 0.0, %v1114
    %v1116 = vpop.f32.mrb[0].mxu0
    %1117 = vmatprep.mubr.f32.mxu0 0.0
    %1118 = vmatmul.mubr.f32.gmra.mrb[0].mxu0 %v591
    %v1119 = vpop.f32.mrb[0].mxu0
    %v1120 = vadd.f32 0.0, %v1119
    %v1121 = vpop.f32.mrb[0].mxu0
    %1122 = vmatprep.mubr.f32.mxu0 0.0
    %1123 = vmatmul.mubr.f32.gmra.mrb[0].mxu0 %v592
    %v1124 = vpop.f32.mrb[0].mxu0
    %v1125 = vadd.f32 0.0, %v1124
    %v1126 = vpop.f32.mrb[0].mxu0
    %1127 = vmatprep.mubr.f32.mxu0 0.0
    %1128 = vmatmul.mubr.f32.gmra.mrb[0].mxu0 %v593
    %v1129 = vpop.f32.mrb[0].mxu0
    %v1130 = vadd.f32 0.0, %v1129
    %v1131 = vpop.f32.mrb[0].mxu0
    %1132 = vmatprep.mubr.f32.mxu0 0.0
    %1133 = vmatmul.mubr.f32.gmra.mrb[0].mxu0 %v594
    %v1134 = vpop.f32.mrb[0].mxu0
    %v1135 = vadd.f32 0.0, %v1134
    %v1136 = vpop.f32.mrb[0].mxu0
    %1137 = vmatprep.mubr.f32.mxu0 0.0
    %1138 = vmatmul.mubr.f32.gmra.mrb[0].mxu0 %v595
    %v1139 = vpop.f32.mrb[0].mxu0
    %v1140 = vadd.f32 0.0, %v1139
    %v1141 = vpop.f32.mrb[0].mxu0
    %1142 = vmatprep.mubr.f32.mxu0 0.0
    %1143 = vmatmul.mubr.f32.gmra.mrb[0].mxu0 %v596
    %v1144 = vpop.f32.mrb[0].mxu0
    %v1145 = vadd.f32 0.0, %v1144
    %v1146 = vpop.f32.mrb[0].mxu0
    %1147 = vmatprep.mubr.f32.mxu0 0.0
    %1148 = vmatmul.mubr.f32.gmra.mrb[0].mxu0 %v597
    %v1149 = vpop.f32.mrb[0].mxu0
    %v1150 = vadd.f32 0.0, %v1149
    %v1151 = vpop.f32.mrb[0].mxu0
    %1152 = vmatprep.mubr.f32.mxu0 0.0
    %1153 = vmatmul.mubr.f32.gmra.mrb[0].mxu0 %v598
    %v1154 = vpop.f32.mrb[0].mxu0
    %v1155 = vadd.f32 0.0, %v1154
    %v1156 = vpop.f32.mrb[0].mxu0
    %1157 = vmatprep.mubr.f32.mxu0 0.0
    %1158 = vmatmul.mubr.f32.gmra.mrb[0].mxu0 %v599
    %v1159 = vpop.f32.mrb[0].mxu0
    %v1160 = vadd.f32 0.0, %v1159
    %v1161 = vpop.f32.mrb[0].mxu0
    %1162 = vmatprep.mubr.f32.mxu0 0.0
    %1163 = vmatmul.mubr.f32.gmra.mrb[0].mxu0 %v600
    %v1164 = vpop.f32.mrb[0].mxu0
    %v1165 = vadd.f32 0.0, %v1164
    %v1166 = vpop.f32.mrb[0].mxu0
    %1167 = vmatprep.mubr.f32.mxu0 0.0
    %1168 = vmatmul.mubr.f32.gmra.mrb[0].mxu0 %v601
    %v1169 = vpop.f32.mrb[0].mxu0
    %v1170 = vadd.f32 0.0, %v1169
    %v1171 = vpop.f32.mrb[0].mxu0
    %1172 = vmatprep.mubr.f32.mxu0 0.0
    %1173 = vmatmul.mubr.f32.gmra.mrb[0].mxu0 %v602
    %v1174 = vpop.f32.mrb[0].mxu0
    %v1175 = vadd.f32 0.0, %v1174
    %v1176 = vpop.f32.mrb[0].mxu0
    %1177 = vmatprep.mubr.f32.mxu0 0.0
    %1178 = vmatmul.mubr.f32.gmra.mrb[0].mxu0 %v603
    %v1179 = vpop.f32.mrb[0].mxu0
    %v1180 = vadd.f32 0.0, %v1179
    %v1181 = vpop.f32.mrb[0].mxu0
    %1182 = vmatprep.mubr.f32.mxu0 0.0
    %1183 = vmatmul.mubr.f32.gmra.mrb[0].mxu0 %v604
    %v1184 = vpop.f32.mrb[0].mxu0
    %v1185 = vadd.f32 0.0, %v1184
    %v1186 = vpop.f32.mrb[0].mxu0
    %1187 = vmatprep.mubr.f32.mxu0 0.0
    %1188 = vmatmul.mubr.f32.gmra.mrb[0].mxu0 %v605
    %v1189 = vpop.f32.mrb[0].mxu0
    %v1190 = vadd.f32 0.0, %v1189
    %v1191 = vpop.f32.mrb[0].mxu0
    %1192 = vmatprep.mubr.f32.mxu0 0.0
    %1193 = vmatmul.mubr.f32.gmra.mrb[0].mxu0 %v606
    %v1194 = vpop.f32.mrb[0].mxu0
    %v1195 = vadd.f32 0.0, %v1194
    %v1196 = vpop.f32.mrb[0].mxu0
    %1197 = vmatprep.mubr.f32.mxu0 0.0
    %1198 = vmatmul.mubr.f32.gmra.mrb[0].mxu0 %v607
    %v1199 = vpop.f32.mrb[0].mxu0
    %v1200 = vadd.f32 0.0, %v1199
    %v1201 = vpop.f32.mrb[0].mxu0
    %1202 = vmatprep.mubr.f32.mxu0 0.0
    %1203 = vmatmul.mubr.f32.gmra.mrb[0].mxu0 %v608
    %v1204 = vpop.f32.mrb[0].mxu0
    %v1205 = vadd.f32 0.0, %v1204
    %v1206 = vpop.f32.mrb[0].mxu0
    %1207 = vmatprep.mubr.f32.mxu0 0.0
    %1208 = vmatmul.mubr.f32.gmra.mrb[0].mxu0 %v609
    %v1209 = vpop.f32.mrb[0].mxu0
    %v1210 = vadd.f32 0.0, %v1209
    %v1211 = vpop.f32.mrb[0].mxu0
    %1212 = vmatprep.mubr.f32.mxu0 0.0
    %1213 = vmatmul.mubr.f32.gmra.mrb[0].mxu0 %v610
    %v1214 = vpop.f32.mrb[0].mxu0
    %v1215 = vadd.f32 0.0, %v1214
    %v1216 = vpop.f32.mrb[0].mxu0
    %1217 = vmatprep.mubr.f32.mxu0 0.0
    %1218 = vmatmul.mubr.f32.gmra.mrb[0].mxu0 %v611
    %v1219 = vpop.f32.mrb[0].mxu0
    %v1220 = vadd.f32 0.0, %v1219
    %v1221 = vpop.f32.mrb[0].mxu0
    %1222 = vmatprep.mubr.f32.mxu0 0.0
    %1223 = vmatmul.mubr.f32.gmra.mrb[0].mxu0 %v612
    %v1224 = vpop.f32.mrb[0].mxu0
    %v1225 = vadd.f32 0.0, %v1224
    %v1226 = vpop.f32.mrb[0].mxu0
    %1227 = vmatprep.mubr.f32.mxu0 0.0
    %1228 = vmatmul.mubr.f32.gmra.mrb[0].mxu0 %v613
    %v1229 = vpop.f32.mrb[0].mxu0
    %v1230 = vadd.f32 0.0, %v1229
    %v1231 = vpop.f32.mrb[0].mxu0
    %1232 = vmatprep.mubr.f32.mxu0 0.0
    %1233 = vmatmul.mubr.f32.gmra.mrb[0].mxu0 %v614
    %v1234 = vpop.f32.mrb[0].mxu0
    %v1235 = vadd.f32 0.0, %v1234
    %v1236 = vpop.f32.mrb[0].mxu0
    %1237 = vmatprep.mubr.f32.mxu0 0.0
    %1238 = vmatmul.mubr.f32.gmra.mrb[0].mxu0 %v615
    %v1239 = vpop.f32.mrb[0].mxu0
    %v1240 = vadd.f32 0.0, %v1239
    %v1241 = vpop.f32.mrb[0].mxu0
    %1242 = vmatprep.mubr.f32.mxu0 0.0
    %1243 = vmatmul.mubr.f32.gmra.mrb[0].mxu0 %v616
    %v1244 = vpop.f32.mrb[0].mxu0
    %v1245 = vadd.f32 0.0, %v1244
    %v1246 = vpop.f32.mrb[0].mxu0
    %1247 = vmatprep.mubr.f32.mxu0 0.0
    %1248 = vmatmul.mubr.f32.gmra.mrb[0].mxu0 %v617
    %v1249 = vpop.f32.mrb[0].mxu0
    %v1250 = vadd.f32 0.0, %v1249
    %v1251 = vpop.f32.mrb[0].mxu0
    %1252 = vmatprep.mubr.f32.mxu0 0.0
    %1253 = vmatmul.mubr.f32.gmra.mrb[0].mxu0 %v618
    %v1254 = vpop.f32.mrb[0].mxu0
    %v1255 = vadd.f32 0.0, %v1254
    %v1256 = vpop.f32.mrb[0].mxu0
    %1257 = vmatprep.mubr.f32.mxu0 0.0
    %1258 = vmatmul.mubr.f32.gmra.mrb[0].mxu0 %v619
    %v1259 = vpop.f32.mrb[0].mxu0
    %v1260 = vadd.f32 0.0, %v1259
    %v1261 = vpop.f32.mrb[0].mxu0
    %1262 = vmatprep.mubr.f32.mxu0 0.0
    %1263 = vmatmul.mubr.f32.gmra.mrb[0].mxu0 %v620
    %v1264 = vpop.f32.mrb[0].mxu0
    %v1265 = vadd.f32 0.0, %v1264
    %v1266 = vpop.f32.mrb[0].mxu0
    %1267 = vmatprep.mubr.f32.mxu0 0.0
    %1268 = vmatmul.mubr.f32.gmra.mrb[0].mxu0 %v621
    %v1269 = vpop.f32.mrb[0].mxu0
    %v1270 = vadd.f32 0.0, %v1269
    %v1271 = vpop.f32.mrb[0].mxu0
    %1272 = vmatprep.mubr.f32.mxu0 0.0
    %1273 = vmatmul.mubr.f32.gmra.mrb[0].mxu0 %v622
    %v1274 = vpop.f32.mrb[0].mxu0
    %v1275 = vadd.f32 0.0, %v1274
    %v1276 = vpop.f32.mrb[0].mxu0
    %1277 = vmatprep.mubr.f32.mxu0 0.0
    %1278 = vmatmul.mubr.f32.gmra.mrb[0].mxu0 %v623
    %v1279 = vpop.f32.mrb[0].mxu0
    %v1280 = vadd.f32 0.0, %v1279
    %v1281 = vpop.f32.mrb[0].mxu0
    %1282 = vmatprep.mubr.f32.mxu0 0.0
    %1283 = vmatmul.mubr.f32.gmra.mrb[0].mxu0 %v624
    %v1284 = vpop.f32.mrb[0].mxu0
    %v1285 = vadd.f32 0.0, %v1284
    %v1286 = vpop.f32.mrb[0].mxu0
    %1287 = vmatprep.mubr.f32.mxu0 0.0
    %1288 = vmatmul.mubr.f32.gmra.mrb[0].mxu0 %v625
    %v1289 = vpop.f32.mrb[0].mxu0
    %v1290 = vadd.f32 0.0, %v1289
    %v1291 = vpop.f32.mrb[0].mxu0
    %1292 = vmatprep.mubr.f32.mxu0 0.0
    %1293 = vmatmul.mubr.f32.gmra.mrb[0].mxu0 %v626
    %v1294 = vpop.f32.mrb[0].mxu0
    %v1295 = vadd.f32 0.0, %v1294
    %v1296 = vpop.f32.mrb[0].mxu0
    %1297 = vmatprep.mubr.f32.mxu0 0.0
    %1298 = vmatmul.mubr.f32.gmra.mrb[0].mxu0 %v627
    %v1299 = vpop.f32.mrb[0].mxu0
    %v1300 = vadd.f32 0.0, %v1299
    %v1301 = vpop.f32.mrb[0].mxu0
    %1302 = vmatprep.mubr.f32.mxu0 0.0
    %1303 = vmatmul.mubr.f32.gmra.mrb[0].mxu0 %v628
    %v1304 = vpop.f32.mrb[0].mxu0
    %v1305 = vadd.f32 0.0, %v1304
    %v1306 = vpop.f32.mrb[0].mxu0
    %1307 = vmatprep.mubr.f32.mxu0 0.0
    %1308 = vmatmul.mubr.f32.gmra.mrb[0].mxu0 %v629
    %v1309 = vpop.f32.mrb[0].mxu0
    %v1310 = vadd.f32 0.0, %v1309
    %v1311 = vpop.f32.mrb[0].mxu0
    %1312 = vmatprep.mubr.f32.mxu0 0.0
    %1313 = vmatmul.mubr.f32.gmra.mrb[0].mxu0 %v630
    %v1314 = vpop.f32.mrb[0].mxu0
    %v1315 = vadd.f32 0.0, %v1314
    %v1316 = vpop.f32.mrb[0].mxu0
    %1317 = vmatprep.mubr.f32.mxu0 0.0
    %1318 = vmatmul.mubr.f32.gmra.mrb[0].mxu0 %v631
    %v1319 = vpop.f32.mrb[0].mxu0
    %v1320 = vadd.f32 0.0, %v1319
    %v1321 = vpop.f32.mrb[0].mxu0
    %1322 = vmatprep.mubr.f32.mxu0 0.0
    %1323 = vmatmul.mubr.f32.gmra.mrb[0].mxu0 %v632
    %v1324 = vpop.f32.mrb[0].mxu0
    %v1325 = vadd.f32 0.0, %v1324
    %v1326 = vpop.f32.mrb[0].mxu0
    %1327 = vmatprep.mubr.f32.mxu0 0.0
    %1328 = vmatmul.mubr.f32.gmra.mrb[0].mxu0 %v633
    %v1329 = vpop.f32.mrb[0].mxu0
    %v1330 = vadd.f32 0.0, %v1329
    %v1331 = vpop.f32.mrb[0].mxu0
    %1332 = vmatprep.mubr.f32.mxu0 0.0
    %1333 = vmatmul.mubr.f32.gmra.mrb[0].mxu0 %v634
    %v1334 = vpop.f32.mrb[0].mxu0
    %v1335 = vadd.f32 0.0, %v1334
    %v1336 = vpop.f32.mrb[0].mxu0
    %1337 = vmatprep.mubr.f32.mxu0 0.0
    %1338 = vmatmul.mubr.f32.gmra.mrb[0].mxu0 %v635
    %v1339 = vpop.f32.mrb[0].mxu0
    %v1340 = vadd.f32 0.0, %v1339
    %v1341 = vpop.f32.mrb[0].mxu0
    %1342 = vmatprep.mubr.f32.mxu0 0.0
    %1343 = vmatmul.mubr.f32.gmra.mrb[0].mxu0 %v636
    %v1344 = vpop.f32.mrb[0].mxu0
    %v1345 = vadd.f32 0.0, %v1344
    %v1346 = vpop.f32.mrb[0].mxu0
    %1347 = vmatprep.mubr.f32.mxu0 0.0
    %1348 = vmatmul.mubr.f32.gmra.mrb[0].mxu0 %v637
    %v1349 = vpop.f32.mrb[0].mxu0
    %v1350 = vadd.f32 0.0, %v1349
    %v1351 = vpop.f32.mrb[0].mxu0
    %1352 = vmatprep.mubr.f32.mxu0 0.0
    %1353 = vmatmul.mubr.f32.gmra.mrb[0].mxu0 %v638
    %v1354 = vpop.f32.mrb[0].mxu0
    %v1355 = vadd.f32 0.0, %v1354
    %v1356 = vpop.f32.mrb[0].mxu0
    %1357 = vmatprep.mubr.f32.mxu0 0.0
    %1358 = vmatmul.mubr.f32.gmra.mrb[0].mxu0 %v639
    %v1359 = vpop.f32.mrb[0].mxu0
    %v1360 = vadd.f32 0.0, %v1359
    %v1361 = vpop.f32.mrb[0].mxu0
    %1362 = vmatprep.mubr.f32.mxu0 0.0
    %1363 = vmatmul.mubr.f32.gmra.mrb[0].mxu0 %v640
    %v1364 = vpop.f32.mrb[0].mxu0
    %v1365 = vadd.f32 0.0, %v1364
    %v1366 = vpop.f32.mrb[0].mxu0
    %1367 = vmatprep.mubr.f32.mxu0 0.0
    %1368 = vmatmul.mubr.f32.gmra.mrb[0].mxu0 %v641
    %v1369 = vpop.f32.mrb[0].mxu0
    %v1370 = vadd.f32 0.0, %v1369
    %v1371 = vpop.f32.mrb[0].mxu0
    %1372 = vmatprep.mubr.f32.mxu0 0.0
    %1373 = vmatmul.mubr.f32.gmra.mrb[0].mxu0 %v642
    %v1374 = vpop.f32.mrb[0].mxu0
    %v1375 = vadd.f32 0.0, %v1374
    %v1376 = vpop.f32.mrb[0].mxu0
    %1377 = vmatprep.mubr.f32.mxu0 0.0
    %1378 = vmatmul.mubr.f32.gmra.mrb[0].mxu0 %v643
    %v1379 = vpop.f32.mrb[0].mxu0
    %v1380 = vadd.f32 0.0, %v1379
    %v1381 = vpop.f32.mrb[0].mxu0
    %1382 = vmatprep.mubr.f32.mxu0 0.0
    %1383 = vmatmul.mubr.f32.gmra.mrb[0].mxu0 %v644
    %v1384 = vpop.f32.mrb[0].mxu0
    %v1385 = vadd.f32 0.0, %v1384
    %v1386 = vpop.f32.mrb[0].mxu0
    %1387 = vmatprep.mubr.f32.mxu0 0.0
    %1388 = vmatmul.mubr.f32.gmra.mrb[0].mxu0 %v645
    %v1389 = vpop.f32.mrb[0].mxu0
    %v1390 = vadd.f32 0.0, %v1389
    %v1391 = vpop.f32.mrb[0].mxu0
    %1392 = vmatprep.mubr.f32.mxu0 0.0
    %1393 = vmatmul.mubr.f32.gmra.mrb[0].mxu0 %v646
    %v1394 = vpop.f32.mrb[0].mxu0
    %v1395 = vadd.f32 0.0, %v1394
    %v1396 = vpop.f32.mrb[0].mxu0
    %1397 = vmatprep.mubr.f32.mxu0 0.0
    %1398 = vmatmul.mubr.f32.gmra.mrb[0].mxu0 %v647
    %v1399 = vpop.f32.mrb[0].mxu0
    %v1400 = vadd.f32 0.0, %v1399
    %v1401 = vpop.f32.mrb[0].mxu0
    %1402 = vmatprep.mubr.f32.mxu0 0.0
    %1403 = vmatmul.mubr.f32.gmra.mrb[0].mxu0 %v648
    %v1404 = vpop.f32.mrb[0].mxu0
    %v1405 = vadd.f32 0.0, %v1404
    %v1406 = vpop.f32.mrb[0].mxu0
    %1407 = vmatprep.mubr.f32.mxu0 0.0
    %1408 = vmatmul.mubr.f32.gmra.mrb[0].mxu0 %v649
    %v1409 = vpop.f32.mrb[0].mxu0
    %v1410 = vadd.f32 0.0, %v1409
    %v1411 = vpop.f32.mrb[0].mxu0
    %1412 = vmatprep.mubr.f32.mxu0 0.0
    %1413 = vmatmul.mubr.f32.gmra.mrb[0].mxu0 %v650
    %v1414 = vpop.f32.mrb[0].mxu0
    %v1415 = vadd.f32 0.0, %v1414
    %v1416 = vpop.f32.mrb[0].mxu0
    %1417 = vmatprep.mubr.f32.mxu0 0.0
    %1418 = vmatmul.mubr.f32.gmra.mrb[0].mxu0 %v651
    %v1419 = vpop.f32.mrb[0].mxu0
    %v1420 = vadd.f32 0.0, %v1419
    %v1421 = vpop.f32.mrb[0].mxu0
    %1422 = vmatprep.mubr.f32.mxu0 0.0
    %1423 = vmatmul.mubr.f32.gmra.mrb[0].mxu0 %v652
    %v1424 = vpop.f32.mrb[0].mxu0
    %v1425 = vadd.f32 0.0, %v1424
    %v1426 = vpop.f32.mrb[0].mxu0
    %1427 = vmatprep.mubr.f32.mxu0 0.0
    %1428 = vmatmul.mubr.f32.gmra.mrb[0].mxu0 %v653
    %v1429 = vpop.f32.mrb[0].mxu0
    %v1430 = vadd.f32 0.0, %v1429
    %v1431 = vpop.f32.mrb[0].mxu0
    %1432 = vmatprep.mubr.f32.mxu0 0.0
    %1433 = vmatmul.mubr.f32.gmra.mrb[0].mxu0 %v654
    %v1434 = vpop.f32.mrb[0].mxu0
    %v1435 = vadd.f32 0.0, %v1434
    %v1436 = vpop.f32.mrb[0].mxu0
    %1437 = vmatprep.mubr.f32.mxu0 0.0
    %1438 = vmatmul.mubr.f32.gmra.mrb[0].mxu0 %v655
    %v1439 = vpop.f32.mrb[0].mxu0
    %v1440 = vadd.f32 0.0, %v1439
    %v1441 = vpop.f32.mrb[0].mxu0
    %1442 = vmatprep.mubr.f32.mxu0 0.0
    %1443 = vmatmul.mubr.f32.gmra.mrb[0].mxu0 %v656
    %v1444 = vpop.f32.mrb[0].mxu0
    %v1445 = vadd.f32 0.0, %v1444
    %v1446 = vpop.f32.mrb[0].mxu0
    %1447 = vdwg.mxu0
    %1464 = vrot.lane.b32.xlu0 %v810, 4
    %v1465 = vpop.permute.xlu0 %1464
    %1466 = vrot.lane.b32.xlu0 %v815, 4
    %v1467 = vpop.permute.xlu0 %1466
    %1468 = vrot.lane.b32.xlu0 %v820, 4
    %v1469 = vpop.permute.xlu0 %1468
    %1470 = vrot.lane.b32.xlu0 %v825, 4
    %v1471 = vpop.permute.xlu0 %1470
    %1472 = vrot.lane.b32.xlu0 %v830, 4
    %v1473 = vpop.permute.xlu0 %1472
    %1474 = vrot.lane.b32.xlu0 %v835, 4
    %v1475 = vpop.permute.xlu0 %1474
    %1476 = vrot.lane.b32.xlu0 %v840, 4
    %v1477 = vpop.permute.xlu0 %1476
    %1478 = vrot.lane.b32.xlu0 %v845, 4
    %v1479 = vpop.permute.xlu0 %1478
    %1480 = vrot.lane.b32.xlu0 %v850, 4
    %v1481 = vpop.permute.xlu0 %1480
    %1482 = vrot.lane.b32.xlu0 %v855, 4
    %v1483 = vpop.permute.xlu0 %1482
    %1484 = vrot.lane.b32.xlu0 %v860, 4
    %v1485 = vpop.permute.xlu0 %1484
    %1486 = vrot.lane.b32.xlu0 %v865, 4
    %v1487 = vpop.permute.xlu0 %1486
    %1488 = vrot.lane.b32.xlu0 %v870, 4
    %v1489 = vpop.permute.xlu0 %1488
    %1490 = vrot.lane.b32.xlu0 %v875, 4
    %v1491 = vpop.permute.xlu0 %1490
    %1492 = vrot.lane.b32.xlu0 %v880, 4
    %v1493 = vpop.permute.xlu0 %1492
    %1494 = vrot.lane.b32.xlu0 %v885, 4
    %v1495 = vpop.permute.xlu0 %1494
    %1528 = vrot.lane.b32.xlu0 %v890, 8
    %v1529 = vpop.permute.xlu0 %1528
    %1530 = vrot.lane.b32.xlu0 %v895, 8
    %v1531 = vpop.permute.xlu0 %1530
    %1532 = vrot.lane.b32.xlu0 %v900, 8
    %v1533 = vpop.permute.xlu0 %1532
    %1534 = vrot.lane.b32.xlu0 %v905, 8
    %v1535 = vpop.permute.xlu0 %1534
    %1536 = vrot.lane.b32.xlu0 %v910, 8
    %v1537 = vpop.permute.xlu0 %1536
    %1538 = vrot.lane.b32.xlu0 %v915, 8
    %v1539 = vpop.permute.xlu0 %1538
    %1540 = vrot.lane.b32.xlu0 %v920, 8
    %v1541 = vpop.permute.xlu0 %1540
    %1542 = vrot.lane.b32.xlu0 %v925, 8
    %v1543 = vpop.permute.xlu0 %1542
    %1544 = vrot.lane.b32.xlu0 %v930, 8
    %v1545 = vpop.permute.xlu0 %1544
    %1546 = vrot.lane.b32.xlu0 %v935, 8
    %v1547 = vpop.permute.xlu0 %1546
    %1548 = vrot.lane.b32.xlu0 %v940, 8
    %v1549 = vpop.permute.xlu0 %1548
    %1550 = vrot.lane.b32.xlu0 %v945, 8
    %v1551 = vpop.permute.xlu0 %1550
    %1552 = vrot.lane.b32.xlu0 %v950, 8
    %v1553 = vpop.permute.xlu0 %1552
    %1554 = vrot.lane.b32.xlu0 %v955, 8
    %v1555 = vpop.permute.xlu0 %1554
    %1556 = vrot.lane.b32.xlu0 %v960, 8
    %v1557 = vpop.permute.xlu0 %1556
    %1558 = vrot.lane.b32.xlu0 %v965, 8
    %v1559 = vpop.permute.xlu0 %1558
    %1592 = vrot.lane.b32.xlu0 %v970, 12
    %v1593 = vpop.permute.xlu0 %1592
    %1594 = vrot.lane.b32.xlu0 %v975, 12
    %v1595 = vpop.permute.xlu0 %1594
    %1596 = vrot.lane.b32.xlu0 %v980, 12
    %v1597 = vpop.permute.xlu0 %1596
    %1598 = vrot.lane.b32.xlu0 %v985, 12
    %v1599 = vpop.permute.xlu0 %1598
    %1600 = vrot.lane.b32.xlu0 %v990, 12
    %v1601 = vpop.permute.xlu0 %1600
    %1602 = vrot.lane.b32.xlu0 %v995, 12
    %v1603 = vpop.permute.xlu0 %1602
    %1604 = vrot.lane.b32.xlu0 %v1000, 12
    %v1605 = vpop.permute.xlu0 %1604
    %1606 = vrot.lane.b32.xlu0 %v1005, 12
    %v1607 = vpop.permute.xlu0 %1606
    %1608 = vrot.lane.b32.xlu0 %v1010, 12
    %v1609 = vpop.permute.xlu0 %1608
    %1610 = vrot.lane.b32.xlu0 %v1015, 12
    %v1611 = vpop.permute.xlu0 %1610
    %1612 = vrot.lane.b32.xlu0 %v1020, 12
    %v1613 = vpop.permute.xlu0 %1612
    %1614 = vrot.lane.b32.xlu0 %v1025, 12
    %v1615 = vpop.permute.xlu0 %1614
    %1616 = vrot.lane.b32.xlu0 %v1030, 12
    %v1617 = vpop.permute.xlu0 %1616
    %1618 = vrot.lane.b32.xlu0 %v1035, 12
    %v1619 = vpop.permute.xlu0 %1618
    %1620 = vrot.lane.b32.xlu0 %v1040, 12
    %v1621 = vpop.permute.xlu0 %1620
    %1622 = vrot.lane.b32.xlu0 %v1045, 12
    %v1623 = vpop.permute.xlu0 %1622
    %1656 = vrot.lane.b32.xlu0 %v1050, 16
    %v1657 = vpop.permute.xlu0 %1656
    %1658 = vrot.lane.b32.xlu0 %v1055, 16
    %v1659 = vpop.permute.xlu0 %1658
    %1660 = vrot.lane.b32.xlu0 %v1060, 16
    %v1661 = vpop.permute.xlu0 %1660
    %1662 = vrot.lane.b32.xlu0 %v1065, 16
    %v1663 = vpop.permute.xlu0 %1662
    %1664 = vrot.lane.b32.xlu0 %v1070, 16
    %v1665 = vpop.permute.xlu0 %1664
    %1666 = vrot.lane.b32.xlu0 %v1075, 16
    %v1667 = vpop.permute.xlu0 %1666
    %1668 = vrot.lane.b32.xlu0 %v1080, 16
    %v1669 = vpop.permute.xlu0 %1668
    %1670 = vrot.lane.b32.xlu0 %v1085, 16
    %v1671 = vpop.permute.xlu0 %1670
    %1672 = vrot.lane.b32.xlu0 %v1090, 16
    %v1673 = vpop.permute.xlu0 %1672
    %1674 = vrot.lane.b32.xlu0 %v1095, 16
    %v1675 = vpop.permute.xlu0 %1674
    %1676 = vrot.lane.b32.xlu0 %v1100, 16
    %v1677 = vpop.permute.xlu0 %1676
    %1678 = vrot.lane.b32.xlu0 %v1105, 16
    %v1679 = vpop.permute.xlu0 %1678
    %1680 = vrot.lane.b32.xlu0 %v1110, 16
    %v1681 = vpop.permute.xlu0 %1680
    %1682 = vrot.lane.b32.xlu0 %v1115, 16
    %v1683 = vpop.permute.xlu0 %1682
    %1684 = vrot.lane.b32.xlu0 %v1120, 16
    %v1685 = vpop.permute.xlu0 %1684
    %1686 = vrot.lane.b32.xlu0 %v1125, 16
    %v1687 = vpop.permute.xlu0 %1686
    %1720 = vrot.lane.b32.xlu0 %v1130, 20
    %v1721 = vpop.permute.xlu0 %1720
    %1722 = vrot.lane.b32.xlu0 %v1135, 20
    %v1723 = vpop.permute.xlu0 %1722
    %1724 = vrot.lane.b32.xlu0 %v1140, 20
    %v1725 = vpop.permute.xlu0 %1724
    %1726 = vrot.lane.b32.xlu0 %v1145, 20
    %v1727 = vpop.permute.xlu0 %1726
    %1728 = vrot.lane.b32.xlu0 %v1150, 20
    %v1729 = vpop.permute.xlu0 %1728
    %1730 = vrot.lane.b32.xlu0 %v1155, 20
    %v1731 = vpop.permute.xlu0 %1730
    %1732 = vrot.lane.b32.xlu0 %v1160, 20
    %v1733 = vpop.permute.xlu0 %1732
    %1734 = vrot.lane.b32.xlu0 %v1165, 20
    %v1735 = vpop.permute.xlu0 %1734
    %1736 = vrot.lane.b32.xlu0 %v1170, 20
    %v1737 = vpop.permute.xlu0 %1736
    %1738 = vrot.lane.b32.xlu0 %v1175, 20
    %v1739 = vpop.permute.xlu0 %1738
    %1740 = vrot.lane.b32.xlu0 %v1180, 20
    %v1741 = vpop.permute.xlu0 %1740
    %1742 = vrot.lane.b32.xlu0 %v1185, 20
    %v1743 = vpop.permute.xlu0 %1742
    %1744 = vrot.lane.b32.xlu0 %v1190, 20
    %v1745 = vpop.permute.xlu0 %1744
    %1746 = vrot.lane.b32.xlu0 %v1195, 20
    %v1747 = vpop.permute.xlu0 %1746
    %1748 = vrot.lane.b32.xlu0 %v1200, 20
    %v1749 = vpop.permute.xlu0 %1748
    %1750 = vrot.lane.b32.xlu0 %v1205, 20
    %v1751 = vpop.permute.xlu0 %1750
    %1784 = vrot.lane.b32.xlu0 %v1210, 24
    %v1785 = vpop.permute.xlu0 %1784
    %1786 = vrot.lane.b32.xlu0 %v1215, 24
    %v1787 = vpop.permute.xlu0 %1786
    %1788 = vrot.lane.b32.xlu0 %v1220, 24
    %v1789 = vpop.permute.xlu0 %1788
    %1790 = vrot.lane.b32.xlu0 %v1225, 24
    %v1791 = vpop.permute.xlu0 %1790
    %1792 = vrot.lane.b32.xlu0 %v1230, 24
    %v1793 = vpop.permute.xlu0 %1792
    %1794 = vrot.lane.b32.xlu0 %v1235, 24
    %v1795 = vpop.permute.xlu0 %1794
    %1796 = vrot.lane.b32.xlu0 %v1240, 24
    %v1797 = vpop.permute.xlu0 %1796
    %1798 = vrot.lane.b32.xlu0 %v1245, 24
    %v1799 = vpop.permute.xlu0 %1798
    %1800 = vrot.lane.b32.xlu0 %v1250, 24
    %v1801 = vpop.permute.xlu0 %1800
    %1802 = vrot.lane.b32.xlu0 %v1255, 24
    %v1803 = vpop.permute.xlu0 %1802
    %1804 = vrot.lane.b32.xlu0 %v1260, 24
    %v1805 = vpop.permute.xlu0 %1804
    %1806 = vrot.lane.b32.xlu0 %v1265, 24
    %v1807 = vpop.permute.xlu0 %1806
    %1808 = vrot.lane.b32.xlu0 %v1270, 24
    %v1809 = vpop.permute.xlu0 %1808
    %1810 = vrot.lane.b32.xlu0 %v1275, 24
    %v1811 = vpop.permute.xlu0 %1810
    %1812 = vrot.lane.b32.xlu0 %v1280, 24
    %v1813 = vpop.permute.xlu0 %1812
    %1814 = vrot.lane.b32.xlu0 %v1285, 24
    %v1815 = vpop.permute.xlu0 %1814
    %1848 = vrot.lane.b32.xlu0 %v1290, 28
    %v1849 = vpop.permute.xlu0 %1848
    %1850 = vrot.lane.b32.xlu0 %v1295, 28
    %v1851 = vpop.permute.xlu0 %1850
    %1852 = vrot.lane.b32.xlu0 %v1300, 28
    %v1853 = vpop.permute.xlu0 %1852
    %1854 = vrot.lane.b32.xlu0 %v1305, 28
    %v1855 = vpop.permute.xlu0 %1854
    %1856 = vrot.lane.b32.xlu0 %v1310, 28
    %v1857 = vpop.permute.xlu0 %1856
    %1858 = vrot.lane.b32.xlu0 %v1315, 28
    %v1859 = vpop.permute.xlu0 %1858
    %1860 = vrot.lane.b32.xlu0 %v1320, 28
    %v1861 = vpop.permute.xlu0 %1860
    %1862 = vrot.lane.b32.xlu0 %v1325, 28
    %v1863 = vpop.permute.xlu0 %1862
    %1864 = vrot.lane.b32.xlu0 %v1330, 28
    %v1865 = vpop.permute.xlu0 %1864
    %1866 = vrot.lane.b32.xlu0 %v1335, 28
    %v1867 = vpop.permute.xlu0 %1866
    %1868 = vrot.lane.b32.xlu0 %v1340, 28
    %v1869 = vpop.permute.xlu0 %1868
    %1870 = vrot.lane.b32.xlu0 %v1345, 28
    %v1871 = vpop.permute.xlu0 %1870
    %1872 = vrot.lane.b32.xlu0 %v1350, 28
    %v1873 = vpop.permute.xlu0 %1872
    %1874 = vrot.lane.b32.xlu0 %v1355, 28
    %v1875 = vpop.permute.xlu0 %1874
    %1876 = vrot.lane.b32.xlu0 %v1360, 28
    %v1877 = vpop.permute.xlu0 %1876
    %1878 = vrot.lane.b32.xlu0 %v1365, 28
    %v1879 = vpop.permute.xlu0 %1878
    %1912 = vrot.lane.b32.xlu0 %v1370, 32
    %v1913 = vpop.permute.xlu0 %1912
    %1914 = vrot.lane.b32.xlu0 %v1375, 32
    %v1915 = vpop.permute.xlu0 %1914
    %1916 = vrot.lane.b32.xlu0 %v1380, 32
    %v1917 = vpop.permute.xlu0 %1916
    %1918 = vrot.lane.b32.xlu0 %v1385, 32
    %v1919 = vpop.permute.xlu0 %1918
    %1920 = vrot.lane.b32.xlu0 %v1390, 32
    %v1921 = vpop.permute.xlu0 %1920
    %1922 = vrot.lane.b32.xlu0 %v1395, 32
    %v1923 = vpop.permute.xlu0 %1922
    %1924 = vrot.lane.b32.xlu0 %v1400, 32
    %v1925 = vpop.permute.xlu0 %1924
    %1926 = vrot.lane.b32.xlu0 %v1405, 32
    %v1927 = vpop.permute.xlu0 %1926
    %1928 = vrot.lane.b32.xlu0 %v1410, 32
    %v1929 = vpop.permute.xlu0 %1928
    %1930 = vrot.lane.b32.xlu0 %v1415, 32
    %v1931 = vpop.permute.xlu0 %1930
    %1932 = vrot.lane.b32.xlu0 %v1420, 32
    %v1933 = vpop.permute.xlu0 %1932
    %1934 = vrot.lane.b32.xlu0 %v1425, 32
    %v1935 = vpop.permute.xlu0 %1934
    %1936 = vrot.lane.b32.xlu0 %v1430, 32
    %v1937 = vpop.permute.xlu0 %1936
    %1938 = vrot.lane.b32.xlu0 %v1435, 32
    %v1939 = vpop.permute.xlu0 %1938
    %1940 = vrot.lane.b32.xlu0 %v1440, 32
    %v1941 = vpop.permute.xlu0 %1940
    %1942 = vrot.lane.b32.xlu0 %v1445, 32
    %v1943 = vpop.permute.xlu0 %1942
    %vm1960 = vcmask 31744
    %v1961 = vsel %vm1960, %v730, %v1465
    %v1962 = vsel %vm1960, %v735, %v1467
    %v1963 = vsel %vm1960, %v740, %v1469
    %v1964 = vsel %vm1960, %v745, %v1471
    %v1965 = vsel %vm1960, %v750, %v1473
    %v1966 = vsel %vm1960, %v755, %v1475
    %v1967 = vsel %vm1960, %v760, %v1477
    %v1968 = vsel %vm1960, %v765, %v1479
    %v1969 = vsel %vm1960, %v770, %v1481
    %v1970 = vsel %vm1960, %v775, %v1483
    %v1971 = vsel %vm1960, %v780, %v1485
    %v1972 = vsel %vm1960, %v785, %v1487
    %v1973 = vsel %vm1960, %v790, %v1489
    %v1974 = vsel %vm1960, %v795, %v1491
    %v1975 = vsel %vm1960, %v800, %v1493
    %v1976 = vsel %vm1960, %v805, %v1495
    %v1977 = vsel %vm292, %v1961, %v1529
    %v1978 = vsel %vm292, %v1962, %v1531
    %v1979 = vsel %vm292, %v1963, %v1533
    %v1980 = vsel %vm292, %v1964, %v1535
    %v1981 = vsel %vm292, %v1965, %v1537
    %v1982 = vsel %vm292, %v1966, %v1539
    %v1983 = vsel %vm292, %v1967, %v1541
    %v1984 = vsel %vm292, %v1968, %v1543
    %v1985 = vsel %vm292, %v1969, %v1545
    %v1986 = vsel %vm292, %v1970, %v1547
    %v1987 = vsel %vm292, %v1971, %v1549
    %v1988 = vsel %vm292, %v1972, %v1551
    %v1989 = vsel %vm292, %v1973, %v1553
    %v1990 = vsel %vm292, %v1974, %v1555
    %v1991 = vsel %vm292, %v1975, %v1557
    %v1992 = vsel %vm292, %v1976, %v1559
    %vm1993 = vcmask 97280
    %v1994 = vsel %vm1993, %v1977, %v1593
    %v1995 = vsel %vm1993, %v1978, %v1595
    %v1996 = vsel %vm1993, %v1979, %v1597
    %v1997 = vsel %vm1993, %v1980, %v1599
    %v1998 = vsel %vm1993, %v1981, %v1601
    %v1999 = vsel %vm1993, %v1982, %v1603
    %v2000 = vsel %vm1993, %v1983, %v1605
    %v2001 = vsel %vm1993, %v1984, %v1607
    %v2002 = vsel %vm1993, %v1985, %v1609
    %v2003 = vsel %vm1993, %v1986, %v1611
    %v2004 = vsel %vm1993, %v1987, %v1613
    %v2005 = vsel %vm1993, %v1988, %v1615
    %v2006 = vsel %vm1993, %v1989, %v1617
    %v2007 = vsel %vm1993, %v1990, %v1619
    %v2008 = vsel %vm1993, %v1991, %v1621
    %v2009 = vsel %vm1993, %v1992, %v1623
    %vm2010 = vcmask 130048
    %v2011 = vsel %vm2010, %v1994, %v1657
    %v2012 = vsel %vm2010, %v1995, %v1659
    %v2013 = vsel %vm2010, %v1996, %v1661
    %v2014 = vsel %vm2010, %v1997, %v1663
    %v2015 = vsel %vm2010, %v1998, %v1665
    %v2016 = vsel %vm2010, %v1999, %v1667
    %v2017 = vsel %vm2010, %v2000, %v1669
    %v2018 = vsel %vm2010, %v2001, %v1671
    %v2019 = vsel %vm2010, %v2002, %v1673
    %v2020 = vsel %vm2010, %v2003, %v1675
    %v2021 = vsel %vm2010, %v2004, %v1677
    %v2022 = vsel %vm2010, %v2005, %v1679
    %v2023 = vsel %vm2010, %v2006, %v1681
    %v2024 = vsel %vm2010, %v2007, %v1683
    %v2025 = vsel %vm2010, %v2008, %v1685
    %v2026 = vsel %vm2010, %v2009, %v1687
    %vm2027 = vcmask 162816
    %v2028 = vsel %vm2027, %v2011, %v1721
    %v2029 = vsel %vm2027, %v2012, %v1723
    %v2030 = vsel %vm2027, %v2013, %v1725
    %v2031 = vsel %vm2027, %v2014, %v1727
    %v2032 = vsel %vm2027, %v2015, %v1729
    %v2033 = vsel %vm2027, %v2016, %v1731
    %v2034 = vsel %vm2027, %v2017, %v1733
    %v2035 = vsel %vm2027, %v2018, %v1735
    %v2036 = vsel %vm2027, %v2019, %v1737
    %v2037 = vsel %vm2027, %v2020, %v1739
    %v2038 = vsel %vm2027, %v2021, %v1741
    %v2039 = vsel %vm2027, %v2022, %v1743
    %v2040 = vsel %vm2027, %v2023, %v1745
    %v2041 = vsel %vm2027, %v2024, %v1747
    %v2042 = vsel %vm2027, %v2025, %v1749
    %v2043 = vsel %vm2027, %v2026, %v1751
    %vm2044 = vcmask 195584
    %v2045 = vsel %vm2044, %v2028, %v1785
    %v2046 = vsel %vm2044, %v2029, %v1787
    %v2047 = vsel %vm2044, %v2030, %v1789
    %v2048 = vsel %vm2044, %v2031, %v1791
    %v2049 = vsel %vm2044, %v2032, %v1793
    %v2050 = vsel %vm2044, %v2033, %v1795
    %v2051 = vsel %vm2044, %v2034, %v1797
    %v2052 = vsel %vm2044, %v2035, %v1799
    %v2053 = vsel %vm2044, %v2036, %v1801
    %v2054 = vsel %vm2044, %v2037, %v1803
    %v2055 = vsel %vm2044, %v2038, %v1805
    %v2056 = vsel %vm2044, %v2039, %v1807
    %v2057 = vsel %vm2044, %v2040, %v1809
    %v2058 = vsel %vm2044, %v2041, %v1811
    %v2059 = vsel %vm2044, %v2042, %v1813
    %v2060 = vsel %vm2044, %v2043, %v1815
    %vm2061 = vcmask 228352
    %v2062 = vsel %vm2061, %v2045, %v1849
    %v2063 = vsel %vm2061, %v2046, %v1851
    %v2064 = vsel %vm2061, %v2047, %v1853
    %v2065 = vsel %vm2061, %v2048, %v1855
    %v2066 = vsel %vm2061, %v2049, %v1857
    %v2067 = vsel %vm2061, %v2050, %v1859
    %v2068 = vsel %vm2061, %v2051, %v1861
    %v2069 = vsel %vm2061, %v2052, %v1863
    %v2070 = vsel %vm2061, %v2053, %v1865
    %v2071 = vsel %vm2061, %v2054, %v1867
    %v2072 = vsel %vm2061, %v2055, %v1869
    %v2073 = vsel %vm2061, %v2056, %v1871
    %v2074 = vsel %vm2061, %v2057, %v1873
    %v2075 = vsel %vm2061, %v2058, %v1875
    %v2076 = vsel %vm2061, %v2059, %v1877
    %v2077 = vsel %vm2061, %v2060, %v1879
    %vm2078 = vcmask 261120
    %v2079 = vsel %vm2078, %v2062, %v1913
    %v2080 = vsel %vm2078, %v2063, %v1915
    %v2081 = vsel %vm2078, %v2064, %v1917
    %v2082 = vsel %vm2078, %v2065, %v1919
    %v2083 = vsel %vm2078, %v2066, %v1921
    %v2084 = vsel %vm2078, %v2067, %v1923
    %v2085 = vsel %vm2078, %v2068, %v1925
    %v2086 = vsel %vm2078, %v2069, %v1927
    %v2087 = vsel %vm2078, %v2070, %v1929
    %v2088 = vsel %vm2078, %v2071, %v1931
    %v2089 = vsel %vm2078, %v2072, %v1933
    %v2090 = vsel %vm2078, %v2073, %v1935
    %v2091 = vsel %vm2078, %v2074, %v1937
    %v2092 = vsel %vm2078, %v2075, %v1939
    %v2093 = vsel %vm2078, %v2076, %v1941
    %v2094 = vsel %vm2078, %v2077, %v1943
    %v2096 = vlaneseq
    %v2097 = vshrl.u32 %v2096, 7
    %v2098 = vsub.s32 0, %v2097
    %v2099 = vrot.slane %v662, %v2098
    %vm2101 = vcmask 293888
    %v2103 = vsel %vm2101, %v2079, 0
    %v2106 = vsel %vm2101, %v2080, 0
    %v2109 = vsel %vm2101, %v2081, 0
    %v2112 = vsel %vm2101, %v2082, 0
    %v2115 = vsel %vm2101, %v2083, 0
    %v2118 = vsel %vm2101, %v2084, 0
    %v2121 = vsel %vm2101, %v2085, 0
    %v2124 = vsel %vm2101, %v2086, 0
    %v2127 = vsel %vm2101, %v2087, 0
    %v2130 = vsel %vm2101, %v2088, 0
    %v2133 = vsel %vm2101, %v2089, 0
    %v2136 = vsel %vm2101, %v2090, 0
    %v2139 = vsel %vm2101, %v2091, 0
    %v2142 = vsel %vm2101, %v2092, 0
    %v2145 = vsel %vm2101, %v2093, 0
    %v2148 = vsel %vm2101, %v2094, 0
    %vm2150 = vcmask 1043456
    %v2152 = vsel %vm2150, %v661, 0
    %2154 = vmatprep.subr.mxu0 0.0
    %2155 = vmatpush1.msra.mxu0 %v657
    %2156 = vmatprep.subr.mxu0 0.0
    %2157 = vmatpush1.msra.mxu0 %v658
    %2158 = vmatprep.subr.mxu0 0.0
    %2159 = vmatpush1.msra.mxu0 %v659
    %2160 = vmatprep.subr.mxu0 0.0
    %2161 = vmatpush1.msra.mxu0 %v660
    %2162 = vmatprep.subr.mxu0 0.0
    %2163 = vmatpush1.msra.mxu0 %v2152
    %2164 = vmatprep.subr.mxu0 0.0
    %2165 = vmatpush1.msra.mxu0 0.0
    %2166 = vmatprep.subr.mxu0 0.0
    %2167 = vmatpush1.msra.mxu0 0.0
    %2168 = vmatprep.subr.mxu0 0.0
    %2169 = vmatpush1.msra.mxu0 0.0
    %2170 = vmatprep.subr.mxu0 0.0
    %2171 = vmatpush1.msra.mxu0 0.0
    %2172 = vmatprep.subr.mxu0 0.0
    %2173 = vmatpush1.msra.mxu0 0.0
    %2174 = vmatprep.subr.mxu0 0.0
    %2175 = vmatpush1.msra.mxu0 0.0
    %2176 = vmatprep.subr.mxu0 0.0
    %2177 = vmatpush1.msra.mxu0 0.0
    %2178 = vmatprep.subr.mxu0 0.0
    %2179 = vmatpush1.msra.mxu0 0.0
    %2180 = vmatprep.subr.mxu0 0.0
    %2181 = vmatpush1.msra.mxu0 0.0
    %2182 = vmatprep.subr.mxu0 0.0
    %2183 = vmatpush1.msra.mxu0 0.0
    %2184 = vmatprep.subr.mxu0 0.0
    %2185 = vmatpush1.msra.mxu0 0.0
    %2186 = vmatprep.subr.mxu0 0.0
    %2187 = vmatpush1.msra.mxu0 0.0
    %2188 = vmatprep.subr.mxu0 0.0
    %2189 = vmatpush1.msra.mxu0 0.0
    %2190 = vmatprep.subr.mxu0 0.0
    %2191 = vmatpush1.msra.mxu0 0.0
    %2192 = vmatprep.subr.mxu0 0.0
    %2193 = vmatpush1.msra.mxu0 0.0
    %2194 = vmatprep.subr.mxu0 0.0
    %2195 = vmatpush1.msra.mxu0 0.0
    %2196 = vmatprep.subr.mxu0 0.0
    %2197 = vmatpush1.msra.mxu0 0.0
    %2198 = vmatprep.subr.mxu0 0.0
    %2199 = vmatpush1.msra.mxu0 0.0
    %2200 = vmatprep.subr.mxu0 0.0
    %2201 = vmatpush1.msra.mxu0 0.0
    %2202 = vmatprep.subr.mxu0 0.0
    %2203 = vmatpush1.msra.mxu0 0.0
    %2204 = vmatprep.subr.mxu0 0.0
    %2205 = vmatpush1.msra.mxu0 0.0
    %2206 = vmatprep.subr.mxu0 0.0
    %2207 = vmatpush1.msra.mxu0 0.0
    %2208 = vmatprep.subr.mxu0 0.0
    %2209 = vmatpush1.msra.mxu0 0.0
    %2210 = vmatprep.subr.mxu0 0.0
    %2211 = vmatpush1.msra.mxu0 0.0
    %2212 = vmatprep.subr.mxu0 0.0
    %2213 = vmatpush1.msra.mxu0 0.0
    %2214 = vmatprep.subr.mxu0 0.0
    %2215 = vmatpush1.msra.mxu0 0.0
    %2216 = vmatprep.subr.mxu0 0.0
    %2217 = vmatpush1.msra.mxu0 0.0
    %2218 = vmatprep.mubr.f32.mxu0 0.0
    %2219 = vmatmul.mubr.f32.gmra.mrb[0].mxu0 %v2103
    %v2220 = vpop.f32.mrb[0].mxu0
    %v2221 = vadd.f32 %v2099, %v2220
    %v2222 = vpop.f32.mrb[0].mxu0
    %2223 = vmatprep.mubr.f32.mxu0 0.0
    %2224 = vmatmul.mubr.f32.gmra.mrb[0].mxu0 %v2106
    %v2225 = vpop.f32.mrb[0].mxu0
    %v2226 = vadd.f32 %v2099, %v2225
    %v2227 = vpop.f32.mrb[0].mxu0
    %2228 = vmatprep.mubr.f32.mxu0 0.0
    %2229 = vmatmul.mubr.f32.gmra.mrb[0].mxu0 %v2109
    %v2230 = vpop.f32.mrb[0].mxu0
    %v2231 = vadd.f32 %v2099, %v2230
    %v2232 = vpop.f32.mrb[0].mxu0
    %2233 = vmatprep.mubr.f32.mxu0 0.0
    %2234 = vmatmul.mubr.f32.gmra.mrb[0].mxu0 %v2112
    %v2235 = vpop.f32.mrb[0].mxu0
    %v2236 = vadd.f32 %v2099, %v2235
    %v2237 = vpop.f32.mrb[0].mxu0
    %2238 = vmatprep.mubr.f32.mxu0 0.0
    %2239 = vmatmul.mubr.f32.gmra.mrb[0].mxu0 %v2115
    %v2240 = vpop.f32.mrb[0].mxu0
    %v2241 = vadd.f32 %v2099, %v2240
    %v2242 = vpop.f32.mrb[0].mxu0
    %2243 = vmatprep.mubr.f32.mxu0 0.0
    %2244 = vmatmul.mubr.f32.gmra.mrb[0].mxu0 %v2118
    %v2245 = vpop.f32.mrb[0].mxu0
    %v2246 = vadd.f32 %v2099, %v2245
    %v2247 = vpop.f32.mrb[0].mxu0
    %2248 = vmatprep.mubr.f32.mxu0 0.0
    %2249 = vmatmul.mubr.f32.gmra.mrb[0].mxu0 %v2121
    %v2250 = vpop.f32.mrb[0].mxu0
    %v2251 = vadd.f32 %v2099, %v2250
    %v2252 = vpop.f32.mrb[0].mxu0
    %2253 = vmatprep.mubr.f32.mxu0 0.0
    %2254 = vmatmul.mubr.f32.gmra.mrb[0].mxu0 %v2124
    %v2255 = vpop.f32.mrb[0].mxu0
    %v2256 = vadd.f32 %v2099, %v2255
    %v2257 = vpop.f32.mrb[0].mxu0
    %2258 = vmatprep.mubr.f32.mxu0 0.0
    %2259 = vmatmul.mubr.f32.gmra.mrb[0].mxu0 %v2127
    %v2260 = vpop.f32.mrb[0].mxu0
    %v2261 = vadd.f32 %v2099, %v2260
    %v2262 = vpop.f32.mrb[0].mxu0
    %2263 = vmatprep.mubr.f32.mxu0 0.0
    %2264 = vmatmul.mubr.f32.gmra.mrb[0].mxu0 %v2130
    %v2265 = vpop.f32.mrb[0].mxu0
    %v2266 = vadd.f32 %v2099, %v2265
    %v2267 = vpop.f32.mrb[0].mxu0
    %2268 = vmatprep.mubr.f32.mxu0 0.0
    %2269 = vmatmul.mubr.f32.gmra.mrb[0].mxu0 %v2133
    %v2270 = vpop.f32.mrb[0].mxu0
    %v2271 = vadd.f32 %v2099, %v2270
    %v2272 = vpop.f32.mrb[0].mxu0
    %2273 = vmatprep.mubr.f32.mxu0 0.0
    %2274 = vmatmul.mubr.f32.gmra.mrb[0].mxu0 %v2136
    %v2275 = vpop.f32.mrb[0].mxu0
    %v2276 = vadd.f32 %v2099, %v2275
    %v2277 = vpop.f32.mrb[0].mxu0
    %2278 = vmatprep.mubr.f32.mxu0 0.0
    %2279 = vmatmul.mubr.f32.gmra.mrb[0].mxu0 %v2139
    %v2280 = vpop.f32.mrb[0].mxu0
    %v2281 = vadd.f32 %v2099, %v2280
    %v2282 = vpop.f32.mrb[0].mxu0
    %2283 = vmatprep.mubr.f32.mxu0 0.0
    %2284 = vmatmul.mubr.f32.gmra.mrb[0].mxu0 %v2142
    %v2285 = vpop.f32.mrb[0].mxu0
    %v2286 = vadd.f32 %v2099, %v2285
    %v2287 = vpop.f32.mrb[0].mxu0
    %2288 = vmatprep.mubr.f32.mxu0 0.0
    %2289 = vmatmul.mubr.f32.gmra.mrb[0].mxu0 %v2145
    %v2290 = vpop.f32.mrb[0].mxu0
    %v2291 = vadd.f32 %v2099, %v2290
    %v2292 = vpop.f32.mrb[0].mxu0
    %2293 = vmatprep.mubr.f32.mxu0 0.0
    %2294 = vmatmul.mubr.f32.gmra.mrb[0].mxu0 %v2148
    %v2295 = vpop.f32.mrb[0].mxu0
    %v2296 = vadd.f32 %v2099, %v2295
    %v2297 = vpop.f32.mrb[0].mxu0
    %2298 = vdwg.mxu0
    %v2299 = vmax.f32 %v2221, 0.0
    %v2300 = vmax.f32 %v2226, 0.0
    %v2301 = vmax.f32 %v2231, 0.0
    %v2302 = vmax.f32 %v2236, 0.0
    %v2303 = vmax.f32 %v2241, 0.0
    %v2304 = vmax.f32 %v2246, 0.0
    %v2305 = vmax.f32 %v2251, 0.0
    %v2306 = vmax.f32 %v2256, 0.0
    %v2307 = vmax.f32 %v2261, 0.0
    %v2308 = vmax.f32 %v2266, 0.0
    %v2309 = vmax.f32 %v2271, 0.0
    %v2310 = vmax.f32 %v2276, 0.0
    %v2311 = vmax.f32 %v2281, 0.0
    %v2312 = vmax.f32 %v2286, 0.0
    %v2313 = vmax.f32 %v2291, 0.0
    %v2314 = vmax.f32 %v2296, 0.0
    %v2315 = vld [vmem:[%s7] sm:$0xff]
    %v2316 = vld [vmem:[%s7 + $0x8] sm:$0xff]
    %v2317 = vld [vmem:[%s7 + $0x10] sm:$0xff]
    %v2318 = vld [vmem:[%s7 + $0x18] sm:$0xff]
    %v2319 = vld [vmem:[%s7 + $0x20] sm:$0xff]
    %v2320 = vld [vmem:[%s7 + $0x28] sm:$0xff]
    %v2321 = vld [vmem:[%s7 + $0x30] sm:$0xff]
    %v2322 = vld [vmem:[%s7 + $0x38] sm:$0xff]
    %v2323 = vld [vmem:[%s7 + $0x40] sm:$0xff]
    %v2324 = vld [vmem:[%s7 + $0x48] sm:$0xff]
    %v2325 = vld [vmem:[%s7 + $0x50] sm:$0xff]
    %v2326 = vld [vmem:[%s7 + $0x58] sm:$0xff]
    %v2327 = vld [vmem:[%s7 + $0x60] sm:$0xff]
    %v2328 = vld [vmem:[%s7 + $0x68] sm:$0xff]
    %v2329 = vld [vmem:[%s7 + $0x70] sm:$0xff]
    %v2330 = vld [vmem:[%s7 + $0x78] sm:$0xff]
    %v2331 = vld [vmem:[%s7 + $0x80] sm:$0xff]
    %v2332 = vld [vmem:[%s7 + $0x88] sm:$0xff]
    %v2333 = vld [vmem:[%s8] sm:$0x1]
    %2334 = vmatprep.subr.mxu0 0.0
    %2335 = vmatpush1.msra.mxu0 %v2299
    %2336 = vmatprep.subr.mxu0 0.0
    %2337 = vmatpush1.msra.mxu0 %v2300
    %2338 = vmatprep.subr.mxu0 0.0
    %2339 = vmatpush1.msra.mxu0 %v2301
    %2340 = vmatprep.subr.mxu0 0.0
    %2341 = vmatpush1.msra.mxu0 %v2302
    %2342 = vmatprep.subr.mxu0 0.0
    %2343 = vmatpush1.msra.mxu0 %v2303
    %2344 = vmatprep.subr.mxu0 0.0
    %2345 = vmatpush1.msra.mxu0 %v2304
    %2346 = vmatprep.subr.mxu0 0.0
    %2347 = vmatpush1.msra.mxu0 %v2305
    %2348 = vmatprep.subr.mxu0 0.0
    %2349 = vmatpush1.msra.mxu0 %v2306
    %2350 = vmatprep.subr.mxu0 0.0
    %2351 = vmatpush1.msra.mxu0 %v2307
    %2352 = vmatprep.subr.mxu0 0.0
    %2353 = vmatpush1.msra.mxu0 %v2308
    %2354 = vmatprep.subr.mxu0 0.0
    %2355 = vmatpush1.msra.mxu0 %v2309
    %2356 = vmatprep.subr.mxu0 0.0
    %2357 = vmatpush1.msra.mxu0 %v2310
    %2358 = vmatprep.subr.mxu0 0.0
    %2359 = vmatpush1.msra.mxu0 %v2311
    %2360 = vmatprep.subr.mxu0 0.0
    %2361 = vmatpush1.msra.mxu0 %v2312
    %2362 = vmatprep.subr.mxu0 0.0
    %2363 = vmatpush1.msra.mxu0 %v2313
    %2364 = vmatprep.subr.mxu0 0.0
    %2365 = vmatpush1.msra.mxu0 %v2314
    %2366 = vmatprep.subr.mxu0 0.0
    %2367 = vmatpush1.msra.mxu0 0.0
    %2368 = vmatprep.subr.mxu0 0.0
    %2369 = vmatpush1.msra.mxu0 0.0
    %2370 = vmatprep.subr.mxu0 0.0
    %2371 = vmatpush1.msra.mxu0 0.0
    %2372 = vmatprep.subr.mxu0 0.0
    %2373 = vmatpush1.msra.mxu0 0.0
    %2374 = vmatprep.subr.mxu0 0.0
    %2375 = vmatpush1.msra.mxu0 0.0
    %2376 = vmatprep.subr.mxu0 0.0
    %2377 = vmatpush1.msra.mxu0 0.0
    %2378 = vmatprep.subr.mxu0 0.0
    %2379 = vmatpush1.msra.mxu0 0.0
    %2380 = vmatprep.subr.mxu0 0.0
    %2381 = vmatpush1.msra.mxu0 0.0
    %2382 = vmatprep.subr.mxu0 0.0
    %2383 = vmatpush1.msra.mxu0 0.0
    %2384 = vmatprep.subr.mxu0 0.0
    %2385 = vmatpush1.msra.mxu0 0.0
    %2386 = vmatprep.subr.mxu0 0.0
    %2387 = vmatpush1.msra.mxu0 0.0
    %2388 = vmatprep.subr.mxu0 0.0
    %2389 = vmatpush1.msra.mxu0 0.0
    %2390 = vmatprep.subr.mxu0 0.0
    %2391 = vmatpush1.msra.mxu0 0.0
    %2392 = vmatprep.subr.mxu0 0.0
    %2393 = vmatpush1.msra.mxu0 0.0
    %2394 = vmatprep.subr.mxu0 0.0
    %2395 = vmatpush1.msra.mxu0 0.0
    %2396 = vmatprep.subr.mxu0 0.0
    %2397 = vmatpush1.msra.mxu0 0.0
    %2398 = vmatprep.mubr.f32.mxu0 0.0
    %2399 = vmatmul.mubr.f32.gmra.mrb[0].mxu0 %v513
    %v2400 = vpop.f32.mrb[0].mxu0
    %v2401 = vadd.f32 0.0, %v2400
    %v2402 = vpop.f32.mrb[0].mxu0
    %2403 = vmatprep.mubr.f32.mxu0 0.0
    %2404 = vmatmul.mubr.f32.gmra.mrb[0].mxu0 %v514
    %v2405 = vpop.f32.mrb[0].mxu0
    %v2406 = vadd.f32 0.0, %v2405
    %v2407 = vpop.f32.mrb[0].mxu0
    %2408 = vmatprep.mubr.f32.mxu0 0.0
    %2409 = vmatmul.mubr.f32.gmra.mrb[0].mxu0 %v515
    %v2410 = vpop.f32.mrb[0].mxu0
    %v2411 = vadd.f32 0.0, %v2410
    %v2412 = vpop.f32.mrb[0].mxu0
    %2413 = vmatprep.mubr.f32.mxu0 0.0
    %2414 = vmatmul.mubr.f32.gmra.mrb[0].mxu0 %v516
    %v2415 = vpop.f32.mrb[0].mxu0
    %v2416 = vadd.f32 0.0, %v2415
    %v2417 = vpop.f32.mrb[0].mxu0
    %2418 = vmatprep.mubr.f32.mxu0 0.0
    %2419 = vmatmul.mubr.f32.gmra.mrb[0].mxu0 %v517
    %v2420 = vpop.f32.mrb[0].mxu0
    %v2421 = vadd.f32 0.0, %v2420
    %v2422 = vpop.f32.mrb[0].mxu0
    %2423 = vmatprep.mubr.f32.mxu0 0.0
    %2424 = vmatmul.mubr.f32.gmra.mrb[0].mxu0 %v518
    %v2425 = vpop.f32.mrb[0].mxu0
    %v2426 = vadd.f32 0.0, %v2425
    %v2427 = vpop.f32.mrb[0].mxu0
    %2428 = vmatprep.mubr.f32.mxu0 0.0
    %2429 = vmatmul.mubr.f32.gmra.mrb[0].mxu0 %v519
    %v2430 = vpop.f32.mrb[0].mxu0
    %v2431 = vadd.f32 0.0, %v2430
    %v2432 = vpop.f32.mrb[0].mxu0
    %2433 = vmatprep.mubr.f32.mxu0 0.0
    %2434 = vmatmul.mubr.f32.gmra.mrb[0].mxu0 %v520
    %v2435 = vpop.f32.mrb[0].mxu0
    %v2436 = vadd.f32 0.0, %v2435
    %v2437 = vpop.f32.mrb[0].mxu0
    %2438 = vmatprep.mubr.f32.mxu0 0.0
    %2439 = vmatmul.mubr.f32.gmra.mrb[0].mxu0 %v521
    %v2440 = vpop.f32.mrb[0].mxu0
    %v2441 = vadd.f32 0.0, %v2440
    %v2442 = vpop.f32.mrb[0].mxu0
    %2443 = vmatprep.mubr.f32.mxu0 0.0
    %2444 = vmatmul.mubr.f32.gmra.mrb[0].mxu0 %v522
    %v2445 = vpop.f32.mrb[0].mxu0
    %v2446 = vadd.f32 0.0, %v2445
    %v2447 = vpop.f32.mrb[0].mxu0
    %2448 = vmatprep.mubr.f32.mxu0 0.0
    %2449 = vmatmul.mubr.f32.gmra.mrb[0].mxu0 %v523
    %v2450 = vpop.f32.mrb[0].mxu0
    %v2451 = vadd.f32 0.0, %v2450
    %v2452 = vpop.f32.mrb[0].mxu0
    %2453 = vmatprep.mubr.f32.mxu0 0.0
    %2454 = vmatmul.mubr.f32.gmra.mrb[0].mxu0 %v524
    %v2455 = vpop.f32.mrb[0].mxu0
    %v2456 = vadd.f32 0.0, %v2455
    %v2457 = vpop.f32.mrb[0].mxu0
    %2458 = vmatprep.mubr.f32.mxu0 0.0
    %2459 = vmatmul.mubr.f32.gmra.mrb[0].mxu0 %v525
    %v2460 = vpop.f32.mrb[0].mxu0
    %v2461 = vadd.f32 0.0, %v2460
    %v2462 = vpop.f32.mrb[0].mxu0
    %2463 = vmatprep.mubr.f32.mxu0 0.0
    %2464 = vmatmul.mubr.f32.gmra.mrb[0].mxu0 %v526
    %v2465 = vpop.f32.mrb[0].mxu0
    %v2466 = vadd.f32 0.0, %v2465
    %v2467 = vpop.f32.mrb[0].mxu0
    %2468 = vmatprep.mubr.f32.mxu0 0.0
    %2469 = vmatmul.mubr.f32.gmra.mrb[0].mxu0 %v527
    %v2470 = vpop.f32.mrb[0].mxu0
    %v2471 = vadd.f32 0.0, %v2470
    %v2472 = vpop.f32.mrb[0].mxu0
    %2473 = vmatprep.mubr.f32.mxu0 0.0
    %2474 = vmatmul.mubr.f32.gmra.mrb[0].mxu0 %v528
    %v2475 = vpop.f32.mrb[0].mxu0
    %v2476 = vadd.f32 0.0, %v2475
    %v2477 = vpop.f32.mrb[0].mxu0
    %2478 = vmatprep.mubr.f32.mxu0 0.0
    %2479 = vmatmul.mubr.f32.gmra.mrb[0].mxu0 %v529
    %v2480 = vpop.f32.mrb[0].mxu0
    %v2481 = vadd.f32 0.0, %v2480
    %v2482 = vpop.f32.mrb[0].mxu0
    %2483 = vmatprep.mubr.f32.mxu0 0.0
    %2484 = vmatmul.mubr.f32.gmra.mrb[0].mxu0 %v530
    %v2485 = vpop.f32.mrb[0].mxu0
    %v2486 = vadd.f32 0.0, %v2485
    %v2487 = vpop.f32.mrb[0].mxu0
    %2488 = vmatprep.mubr.f32.mxu0 0.0
    %2489 = vmatmul.mubr.f32.gmra.mrb[0].mxu0 %v531
    %v2490 = vpop.f32.mrb[0].mxu0
    %v2491 = vadd.f32 0.0, %v2490
    %v2492 = vpop.f32.mrb[0].mxu0
    %2493 = vmatprep.mubr.f32.mxu0 0.0
    %2494 = vmatmul.mubr.f32.gmra.mrb[0].mxu0 %v532
    %v2495 = vpop.f32.mrb[0].mxu0
    %v2496 = vadd.f32 0.0, %v2495
    %v2497 = vpop.f32.mrb[0].mxu0
    %2498 = vmatprep.mubr.f32.mxu0 0.0
    %2499 = vmatmul.mubr.f32.gmra.mrb[0].mxu0 %v533
    %v2500 = vpop.f32.mrb[0].mxu0
    %v2501 = vadd.f32 0.0, %v2500
    %v2502 = vpop.f32.mrb[0].mxu0
    %2503 = vmatprep.mubr.f32.mxu0 0.0
    %2504 = vmatmul.mubr.f32.gmra.mrb[0].mxu0 %v534
    %v2505 = vpop.f32.mrb[0].mxu0
    %v2506 = vadd.f32 0.0, %v2505
    %v2507 = vpop.f32.mrb[0].mxu0
    %2508 = vmatprep.mubr.f32.mxu0 0.0
    %2509 = vmatmul.mubr.f32.gmra.mrb[0].mxu0 %v535
    %v2510 = vpop.f32.mrb[0].mxu0
    %v2511 = vadd.f32 0.0, %v2510
    %v2512 = vpop.f32.mrb[0].mxu0
    %2513 = vmatprep.mubr.f32.mxu0 0.0
    %2514 = vmatmul.mubr.f32.gmra.mrb[0].mxu0 %v536
    %v2515 = vpop.f32.mrb[0].mxu0
    %v2516 = vadd.f32 0.0, %v2515
    %v2517 = vpop.f32.mrb[0].mxu0
    %2518 = vmatprep.mubr.f32.mxu0 0.0
    %2519 = vmatmul.mubr.f32.gmra.mrb[0].mxu0 %v537
    %v2520 = vpop.f32.mrb[0].mxu0
    %v2521 = vadd.f32 0.0, %v2520
    %v2522 = vpop.f32.mrb[0].mxu0
    %2523 = vmatprep.mubr.f32.mxu0 0.0
    %2524 = vmatmul.mubr.f32.gmra.mrb[0].mxu0 %v538
    %v2525 = vpop.f32.mrb[0].mxu0
    %v2526 = vadd.f32 0.0, %v2525
    %v2527 = vpop.f32.mrb[0].mxu0
    %2528 = vmatprep.mubr.f32.mxu0 0.0
    %2529 = vmatmul.mubr.f32.gmra.mrb[0].mxu0 %v539
    %v2530 = vpop.f32.mrb[0].mxu0
    %v2531 = vadd.f32 0.0, %v2530
    %v2532 = vpop.f32.mrb[0].mxu0
    %2533 = vmatprep.mubr.f32.mxu0 0.0
    %2534 = vmatmul.mubr.f32.gmra.mrb[0].mxu0 %v540
    %v2535 = vpop.f32.mrb[0].mxu0
    %v2536 = vadd.f32 0.0, %v2535
    %v2537 = vpop.f32.mrb[0].mxu0
    %2538 = vmatprep.mubr.f32.mxu0 0.0
    %2539 = vmatmul.mubr.f32.gmra.mrb[0].mxu0 %v541
    %v2540 = vpop.f32.mrb[0].mxu0
    %v2541 = vadd.f32 0.0, %v2540
    %v2542 = vpop.f32.mrb[0].mxu0
    %2543 = vmatprep.mubr.f32.mxu0 0.0
    %2544 = vmatmul.mubr.f32.gmra.mrb[0].mxu0 %v542
    %v2545 = vpop.f32.mrb[0].mxu0
    %v2546 = vadd.f32 0.0, %v2545
    %v2547 = vpop.f32.mrb[0].mxu0
    %2548 = vmatprep.mubr.f32.mxu0 0.0
    %2549 = vmatmul.mubr.f32.gmra.mrb[0].mxu0 %v543
    %v2550 = vpop.f32.mrb[0].mxu0
    %v2551 = vadd.f32 0.0, %v2550
    %v2552 = vpop.f32.mrb[0].mxu0
    %2553 = vmatprep.mubr.f32.mxu0 0.0
    %2554 = vmatmul.mubr.f32.gmra.mrb[0].mxu0 %v544
    %v2555 = vpop.f32.mrb[0].mxu0
    %v2556 = vadd.f32 0.0, %v2555
    %v2557 = vpop.f32.mrb[0].mxu0
    %2558 = vmatprep.mubr.f32.mxu0 0.0
    %2559 = vmatmul.mubr.f32.gmra.mrb[0].mxu0 %v545
    %v2560 = vpop.f32.mrb[0].mxu0
    %v2561 = vadd.f32 0.0, %v2560
    %v2562 = vpop.f32.mrb[0].mxu0
    %2563 = vmatprep.mubr.f32.mxu0 0.0
    %2564 = vmatmul.mubr.f32.gmra.mrb[0].mxu0 %v546
    %v2565 = vpop.f32.mrb[0].mxu0
    %v2566 = vadd.f32 0.0, %v2565
    %v2567 = vpop.f32.mrb[0].mxu0
    %2568 = vmatprep.mubr.f32.mxu0 0.0
    %2569 = vmatmul.mubr.f32.gmra.mrb[0].mxu0 %v547
    %v2570 = vpop.f32.mrb[0].mxu0
    %v2571 = vadd.f32 0.0, %v2570
    %v2572 = vpop.f32.mrb[0].mxu0
    %2573 = vmatprep.mubr.f32.mxu0 0.0
    %2574 = vmatmul.mubr.f32.gmra.mrb[0].mxu0 %v548
    %v2575 = vpop.f32.mrb[0].mxu0
    %v2576 = vadd.f32 0.0, %v2575
    %v2577 = vpop.f32.mrb[0].mxu0
    %2578 = vmatprep.mubr.f32.mxu0 0.0
    %2579 = vmatmul.mubr.f32.gmra.mrb[0].mxu0 %v549
    %v2580 = vpop.f32.mrb[0].mxu0
    %v2581 = vadd.f32 0.0, %v2580
    %v2582 = vpop.f32.mrb[0].mxu0
    %2583 = vmatprep.mubr.f32.mxu0 0.0
    %2584 = vmatmul.mubr.f32.gmra.mrb[0].mxu0 %v550
    %v2585 = vpop.f32.mrb[0].mxu0
    %v2586 = vadd.f32 0.0, %v2585
    %v2587 = vpop.f32.mrb[0].mxu0
    %2588 = vmatprep.mubr.f32.mxu0 0.0
    %2589 = vmatmul.mubr.f32.gmra.mrb[0].mxu0 %v551
    %v2590 = vpop.f32.mrb[0].mxu0
    %v2591 = vadd.f32 0.0, %v2590
    %v2592 = vpop.f32.mrb[0].mxu0
    %2593 = vmatprep.mubr.f32.mxu0 0.0
    %2594 = vmatmul.mubr.f32.gmra.mrb[0].mxu0 %v552
    %v2595 = vpop.f32.mrb[0].mxu0
    %v2596 = vadd.f32 0.0, %v2595
    %v2597 = vpop.f32.mrb[0].mxu0
    %2598 = vmatprep.mubr.f32.mxu0 0.0
    %2599 = vmatmul.mubr.f32.gmra.mrb[0].mxu0 %v553
    %v2600 = vpop.f32.mrb[0].mxu0
    %v2601 = vadd.f32 0.0, %v2600
    %v2602 = vpop.f32.mrb[0].mxu0
    %2603 = vmatprep.mubr.f32.mxu0 0.0
    %2604 = vmatmul.mubr.f32.gmra.mrb[0].mxu0 %v554
    %v2605 = vpop.f32.mrb[0].mxu0
    %v2606 = vadd.f32 0.0, %v2605
    %v2607 = vpop.f32.mrb[0].mxu0
    %2608 = vmatprep.mubr.f32.mxu0 0.0
    %2609 = vmatmul.mubr.f32.gmra.mrb[0].mxu0 %v555
    %v2610 = vpop.f32.mrb[0].mxu0
    %v2611 = vadd.f32 0.0, %v2610
    %v2612 = vpop.f32.mrb[0].mxu0
    %2613 = vmatprep.mubr.f32.mxu0 0.0
    %2614 = vmatmul.mubr.f32.gmra.mrb[0].mxu0 %v556
    %v2615 = vpop.f32.mrb[0].mxu0
    %v2616 = vadd.f32 0.0, %v2615
    %v2617 = vpop.f32.mrb[0].mxu0
    %2618 = vmatprep.mubr.f32.mxu0 0.0
    %2619 = vmatmul.mubr.f32.gmra.mrb[0].mxu0 %v557
    %v2620 = vpop.f32.mrb[0].mxu0
    %v2621 = vadd.f32 0.0, %v2620
    %v2622 = vpop.f32.mrb[0].mxu0
    %2623 = vmatprep.mubr.f32.mxu0 0.0
    %2624 = vmatmul.mubr.f32.gmra.mrb[0].mxu0 %v558
    %v2625 = vpop.f32.mrb[0].mxu0
    %v2626 = vadd.f32 0.0, %v2625
    %v2627 = vpop.f32.mrb[0].mxu0
    %2628 = vmatprep.mubr.f32.mxu0 0.0
    %2629 = vmatmul.mubr.f32.gmra.mrb[0].mxu0 %v559
    %v2630 = vpop.f32.mrb[0].mxu0
    %v2631 = vadd.f32 0.0, %v2630
    %v2632 = vpop.f32.mrb[0].mxu0
    %2633 = vmatprep.mubr.f32.mxu0 0.0
    %2634 = vmatmul.mubr.f32.gmra.mrb[0].mxu0 %v560
    %v2635 = vpop.f32.mrb[0].mxu0
    %v2636 = vadd.f32 0.0, %v2635
    %v2637 = vpop.f32.mrb[0].mxu0
    %2638 = vmatprep.mubr.f32.mxu0 0.0
    %2639 = vmatmul.mubr.f32.gmra.mrb[0].mxu0 %v561
    %v2640 = vpop.f32.mrb[0].mxu0
    %v2641 = vadd.f32 0.0, %v2640
    %v2642 = vpop.f32.mrb[0].mxu0
    %2643 = vmatprep.mubr.f32.mxu0 0.0
    %2644 = vmatmul.mubr.f32.gmra.mrb[0].mxu0 %v562
    %v2645 = vpop.f32.mrb[0].mxu0
    %v2646 = vadd.f32 0.0, %v2645
    %v2647 = vpop.f32.mrb[0].mxu0
    %2648 = vmatprep.mubr.f32.mxu0 0.0
    %2649 = vmatmul.mubr.f32.gmra.mrb[0].mxu0 %v563
    %v2650 = vpop.f32.mrb[0].mxu0
    %v2651 = vadd.f32 0.0, %v2650
    %v2652 = vpop.f32.mrb[0].mxu0
    %2653 = vmatprep.mubr.f32.mxu0 0.0
    %2654 = vmatmul.mubr.f32.gmra.mrb[0].mxu0 %v564
    %v2655 = vpop.f32.mrb[0].mxu0
    %v2656 = vadd.f32 0.0, %v2655
    %v2657 = vpop.f32.mrb[0].mxu0
    %2658 = vmatprep.mubr.f32.mxu0 0.0
    %2659 = vmatmul.mubr.f32.gmra.mrb[0].mxu0 %v565
    %v2660 = vpop.f32.mrb[0].mxu0
    %v2661 = vadd.f32 0.0, %v2660
    %v2662 = vpop.f32.mrb[0].mxu0
    %2663 = vmatprep.mubr.f32.mxu0 0.0
    %2664 = vmatmul.mubr.f32.gmra.mrb[0].mxu0 %v566
    %v2665 = vpop.f32.mrb[0].mxu0
    %v2666 = vadd.f32 0.0, %v2665
    %v2667 = vpop.f32.mrb[0].mxu0
    %2668 = vmatprep.mubr.f32.mxu0 0.0
    %2669 = vmatmul.mubr.f32.gmra.mrb[0].mxu0 %v567
    %v2670 = vpop.f32.mrb[0].mxu0
    %v2671 = vadd.f32 0.0, %v2670
    %v2672 = vpop.f32.mrb[0].mxu0
    %2673 = vmatprep.mubr.f32.mxu0 0.0
    %2674 = vmatmul.mubr.f32.gmra.mrb[0].mxu0 %v568
    %v2675 = vpop.f32.mrb[0].mxu0
    %v2676 = vadd.f32 0.0, %v2675
    %v2677 = vpop.f32.mrb[0].mxu0
    %2678 = vmatprep.mubr.f32.mxu0 0.0
    %2679 = vmatmul.mubr.f32.gmra.mrb[0].mxu0 %v569
    %v2680 = vpop.f32.mrb[0].mxu0
    %v2681 = vadd.f32 0.0, %v2680
    %v2682 = vpop.f32.mrb[0].mxu0
    %2683 = vmatprep.mubr.f32.mxu0 0.0
    %2684 = vmatmul.mubr.f32.gmra.mrb[0].mxu0 %v570
    %v2685 = vpop.f32.mrb[0].mxu0
    %v2686 = vadd.f32 0.0, %v2685
    %v2687 = vpop.f32.mrb[0].mxu0
    %2688 = vmatprep.mubr.f32.mxu0 0.0
    %2689 = vmatmul.mubr.f32.gmra.mrb[0].mxu0 %v571
    %v2690 = vpop.f32.mrb[0].mxu0
    %v2691 = vadd.f32 0.0, %v2690
    %v2692 = vpop.f32.mrb[0].mxu0
    %2693 = vmatprep.mubr.f32.mxu0 0.0
    %2694 = vmatmul.mubr.f32.gmra.mrb[0].mxu0 %v572
    %v2695 = vpop.f32.mrb[0].mxu0
    %v2696 = vadd.f32 0.0, %v2695
    %v2697 = vpop.f32.mrb[0].mxu0
    %2698 = vmatprep.mubr.f32.mxu0 0.0
    %2699 = vmatmul.mubr.f32.gmra.mrb[0].mxu0 %v573
    %v2700 = vpop.f32.mrb[0].mxu0
    %v2701 = vadd.f32 0.0, %v2700
    %v2702 = vpop.f32.mrb[0].mxu0
    %2703 = vmatprep.mubr.f32.mxu0 0.0
    %2704 = vmatmul.mubr.f32.gmra.mrb[0].mxu0 %v574
    %v2705 = vpop.f32.mrb[0].mxu0
    %v2706 = vadd.f32 0.0, %v2705
    %v2707 = vpop.f32.mrb[0].mxu0
    %2708 = vmatprep.mubr.f32.mxu0 0.0
    %2709 = vmatmul.mubr.f32.gmra.mrb[0].mxu0 %v575
    %v2710 = vpop.f32.mrb[0].mxu0
    %v2711 = vadd.f32 0.0, %v2710
    %v2712 = vpop.f32.mrb[0].mxu0
    %2713 = vmatprep.mubr.f32.mxu0 0.0
    %2714 = vmatmul.mubr.f32.gmra.mrb[0].mxu0 %v576
    %v2715 = vpop.f32.mrb[0].mxu0
    %v2716 = vadd.f32 0.0, %v2715
    %v2717 = vpop.f32.mrb[0].mxu0
    %2718 = vmatprep.mubr.f32.mxu0 0.0
    %2719 = vmatmul.mubr.f32.gmra.mrb[0].mxu0 %v577
    %v2720 = vpop.f32.mrb[0].mxu0
    %v2721 = vadd.f32 0.0, %v2720
    %v2722 = vpop.f32.mrb[0].mxu0
    %2723 = vmatprep.mubr.f32.mxu0 0.0
    %2724 = vmatmul.mubr.f32.gmra.mrb[0].mxu0 %v578
    %v2725 = vpop.f32.mrb[0].mxu0
    %v2726 = vadd.f32 0.0, %v2725
    %v2727 = vpop.f32.mrb[0].mxu0
    %2728 = vmatprep.mubr.f32.mxu0 0.0
    %2729 = vmatmul.mubr.f32.gmra.mrb[0].mxu0 %v579
    %v2730 = vpop.f32.mrb[0].mxu0
    %v2731 = vadd.f32 0.0, %v2730
    %v2732 = vpop.f32.mrb[0].mxu0
    %2733 = vmatprep.mubr.f32.mxu0 0.0
    %2734 = vmatmul.mubr.f32.gmra.mrb[0].mxu0 %v580
    %v2735 = vpop.f32.mrb[0].mxu0
    %v2736 = vadd.f32 0.0, %v2735
    %v2737 = vpop.f32.mrb[0].mxu0
    %2738 = vmatprep.mubr.f32.mxu0 0.0
    %2739 = vmatmul.mubr.f32.gmra.mrb[0].mxu0 %v581
    %v2740 = vpop.f32.mrb[0].mxu0
    %v2741 = vadd.f32 0.0, %v2740
    %v2742 = vpop.f32.mrb[0].mxu0
    %2743 = vmatprep.mubr.f32.mxu0 0.0
    %2744 = vmatmul.mubr.f32.gmra.mrb[0].mxu0 %v582
    %v2745 = vpop.f32.mrb[0].mxu0
    %v2746 = vadd.f32 0.0, %v2745
    %v2747 = vpop.f32.mrb[0].mxu0
    %2748 = vmatprep.mubr.f32.mxu0 0.0
    %2749 = vmatmul.mubr.f32.gmra.mrb[0].mxu0 %v583
    %v2750 = vpop.f32.mrb[0].mxu0
    %v2751 = vadd.f32 0.0, %v2750
    %v2752 = vpop.f32.mrb[0].mxu0
    %2753 = vmatprep.mubr.f32.mxu0 0.0
    %2754 = vmatmul.mubr.f32.gmra.mrb[0].mxu0 %v584
    %v2755 = vpop.f32.mrb[0].mxu0
    %v2756 = vadd.f32 0.0, %v2755
    %v2757 = vpop.f32.mrb[0].mxu0
    %2758 = vmatprep.mubr.f32.mxu0 0.0
    %2759 = vmatmul.mubr.f32.gmra.mrb[0].mxu0 %v585
    %v2760 = vpop.f32.mrb[0].mxu0
    %v2761 = vadd.f32 0.0, %v2760
    %v2762 = vpop.f32.mrb[0].mxu0
    %2763 = vmatprep.mubr.f32.mxu0 0.0
    %2764 = vmatmul.mubr.f32.gmra.mrb[0].mxu0 %v586
    %v2765 = vpop.f32.mrb[0].mxu0
    %v2766 = vadd.f32 0.0, %v2765
    %v2767 = vpop.f32.mrb[0].mxu0
    %2768 = vmatprep.mubr.f32.mxu0 0.0
    %2769 = vmatmul.mubr.f32.gmra.mrb[0].mxu0 %v587
    %v2770 = vpop.f32.mrb[0].mxu0
    %v2771 = vadd.f32 0.0, %v2770
    %v2772 = vpop.f32.mrb[0].mxu0
    %2773 = vmatprep.mubr.f32.mxu0 0.0
    %2774 = vmatmul.mubr.f32.gmra.mrb[0].mxu0 %v588
    %v2775 = vpop.f32.mrb[0].mxu0
    %v2776 = vadd.f32 0.0, %v2775
    %v2777 = vpop.f32.mrb[0].mxu0
    %2778 = vmatprep.mubr.f32.mxu0 0.0
    %2779 = vmatmul.mubr.f32.gmra.mrb[0].mxu0 %v589
    %v2780 = vpop.f32.mrb[0].mxu0
    %v2781 = vadd.f32 0.0, %v2780
    %v2782 = vpop.f32.mrb[0].mxu0
    %2783 = vmatprep.mubr.f32.mxu0 0.0
    %2784 = vmatmul.mubr.f32.gmra.mrb[0].mxu0 %v590
    %v2785 = vpop.f32.mrb[0].mxu0
    %v2786 = vadd.f32 0.0, %v2785
    %v2787 = vpop.f32.mrb[0].mxu0
    %2788 = vmatprep.mubr.f32.mxu0 0.0
    %2789 = vmatmul.mubr.f32.gmra.mrb[0].mxu0 %v591
    %v2790 = vpop.f32.mrb[0].mxu0
    %v2791 = vadd.f32 0.0, %v2790
    %v2792 = vpop.f32.mrb[0].mxu0
    %2793 = vmatprep.mubr.f32.mxu0 0.0
    %2794 = vmatmul.mubr.f32.gmra.mrb[0].mxu0 %v592
    %v2795 = vpop.f32.mrb[0].mxu0
    %v2796 = vadd.f32 0.0, %v2795
    %v2797 = vpop.f32.mrb[0].mxu0
    %2798 = vmatprep.mubr.f32.mxu0 0.0
    %2799 = vmatmul.mubr.f32.gmra.mrb[0].mxu0 %v593
    %v2800 = vpop.f32.mrb[0].mxu0
    %v2801 = vadd.f32 0.0, %v2800
    %v2802 = vpop.f32.mrb[0].mxu0
    %2803 = vmatprep.mubr.f32.mxu0 0.0
    %2804 = vmatmul.mubr.f32.gmra.mrb[0].mxu0 %v594
    %v2805 = vpop.f32.mrb[0].mxu0
    %v2806 = vadd.f32 0.0, %v2805
    %v2807 = vpop.f32.mrb[0].mxu0
    %2808 = vmatprep.mubr.f32.mxu0 0.0
    %2809 = vmatmul.mubr.f32.gmra.mrb[0].mxu0 %v595
    %v2810 = vpop.f32.mrb[0].mxu0
    %v2811 = vadd.f32 0.0, %v2810
    %v2812 = vpop.f32.mrb[0].mxu0
    %2813 = vmatprep.mubr.f32.mxu0 0.0
    %2814 = vmatmul.mubr.f32.gmra.mrb[0].mxu0 %v596
    %v2815 = vpop.f32.mrb[0].mxu0
    %v2816 = vadd.f32 0.0, %v2815
    %v2817 = vpop.f32.mrb[0].mxu0
    %2818 = vmatprep.mubr.f32.mxu0 0.0
    %2819 = vmatmul.mubr.f32.gmra.mrb[0].mxu0 %v597
    %v2820 = vpop.f32.mrb[0].mxu0
    %v2821 = vadd.f32 0.0, %v2820
    %v2822 = vpop.f32.mrb[0].mxu0
    %2823 = vmatprep.mubr.f32.mxu0 0.0
    %2824 = vmatmul.mubr.f32.gmra.mrb[0].mxu0 %v598
    %v2825 = vpop.f32.mrb[0].mxu0
    %v2826 = vadd.f32 0.0, %v2825
    %v2827 = vpop.f32.mrb[0].mxu0
    %2828 = vmatprep.mubr.f32.mxu0 0.0
    %2829 = vmatmul.mubr.f32.gmra.mrb[0].mxu0 %v599
    %v2830 = vpop.f32.mrb[0].mxu0
    %v2831 = vadd.f32 0.0, %v2830
    %v2832 = vpop.f32.mrb[0].mxu0
    %2833 = vmatprep.mubr.f32.mxu0 0.0
    %2834 = vmatmul.mubr.f32.gmra.mrb[0].mxu0 %v600
    %v2835 = vpop.f32.mrb[0].mxu0
    %v2836 = vadd.f32 0.0, %v2835
    %v2837 = vpop.f32.mrb[0].mxu0
    %2838 = vmatprep.mubr.f32.mxu0 0.0
    %2839 = vmatmul.mubr.f32.gmra.mrb[0].mxu0 %v601
    %v2840 = vpop.f32.mrb[0].mxu0
    %v2841 = vadd.f32 0.0, %v2840
    %v2842 = vpop.f32.mrb[0].mxu0
    %2843 = vmatprep.mubr.f32.mxu0 0.0
    %2844 = vmatmul.mubr.f32.gmra.mrb[0].mxu0 %v602
    %v2845 = vpop.f32.mrb[0].mxu0
    %v2846 = vadd.f32 0.0, %v2845
    %v2847 = vpop.f32.mrb[0].mxu0
    %2848 = vmatprep.mubr.f32.mxu0 0.0
    %2849 = vmatmul.mubr.f32.gmra.mrb[0].mxu0 %v603
    %v2850 = vpop.f32.mrb[0].mxu0
    %v2851 = vadd.f32 0.0, %v2850
    %v2852 = vpop.f32.mrb[0].mxu0
    %2853 = vmatprep.mubr.f32.mxu0 0.0
    %2854 = vmatmul.mubr.f32.gmra.mrb[0].mxu0 %v604
    %v2855 = vpop.f32.mrb[0].mxu0
    %v2856 = vadd.f32 0.0, %v2855
    %v2857 = vpop.f32.mrb[0].mxu0
    %2858 = vmatprep.mubr.f32.mxu0 0.0
    %2859 = vmatmul.mubr.f32.gmra.mrb[0].mxu0 %v605
    %v2860 = vpop.f32.mrb[0].mxu0
    %v2861 = vadd.f32 0.0, %v2860
    %v2862 = vpop.f32.mrb[0].mxu0
    %2863 = vmatprep.mubr.f32.mxu0 0.0
    %2864 = vmatmul.mubr.f32.gmra.mrb[0].mxu0 %v606
    %v2865 = vpop.f32.mrb[0].mxu0
    %v2866 = vadd.f32 0.0, %v2865
    %v2867 = vpop.f32.mrb[0].mxu0
    %2868 = vmatprep.mubr.f32.mxu0 0.0
    %2869 = vmatmul.mubr.f32.gmra.mrb[0].mxu0 %v607
    %v2870 = vpop.f32.mrb[0].mxu0
    %v2871 = vadd.f32 0.0, %v2870
    %v2872 = vpop.f32.mrb[0].mxu0
    %2873 = vmatprep.mubr.f32.mxu0 0.0
    %2874 = vmatmul.mubr.f32.gmra.mrb[0].mxu0 %v608
    %v2875 = vpop.f32.mrb[0].mxu0
    %v2876 = vadd.f32 0.0, %v2875
    %v2877 = vpop.f32.mrb[0].mxu0
    %2878 = vmatprep.mubr.f32.mxu0 0.0
    %2879 = vmatmul.mubr.f32.gmra.mrb[0].mxu0 %v609
    %v2880 = vpop.f32.mrb[0].mxu0
    %v2881 = vadd.f32 0.0, %v2880
    %v2882 = vpop.f32.mrb[0].mxu0
    %2883 = vmatprep.mubr.f32.mxu0 0.0
    %2884 = vmatmul.mubr.f32.gmra.mrb[0].mxu0 %v610
    %v2885 = vpop.f32.mrb[0].mxu0
    %v2886 = vadd.f32 0.0, %v2885
    %v2887 = vpop.f32.mrb[0].mxu0
    %2888 = vmatprep.mubr.f32.mxu0 0.0
    %2889 = vmatmul.mubr.f32.gmra.mrb[0].mxu0 %v611
    %v2890 = vpop.f32.mrb[0].mxu0
    %v2891 = vadd.f32 0.0, %v2890
    %v2892 = vpop.f32.mrb[0].mxu0
    %2893 = vmatprep.mubr.f32.mxu0 0.0
    %2894 = vmatmul.mubr.f32.gmra.mrb[0].mxu0 %v612
    %v2895 = vpop.f32.mrb[0].mxu0
    %v2896 = vadd.f32 0.0, %v2895
    %v2897 = vpop.f32.mrb[0].mxu0
    %2898 = vmatprep.mubr.f32.mxu0 0.0
    %2899 = vmatmul.mubr.f32.gmra.mrb[0].mxu0 %v613
    %v2900 = vpop.f32.mrb[0].mxu0
    %v2901 = vadd.f32 0.0, %v2900
    %v2902 = vpop.f32.mrb[0].mxu0
    %2903 = vmatprep.mubr.f32.mxu0 0.0
    %2904 = vmatmul.mubr.f32.gmra.mrb[0].mxu0 %v614
    %v2905 = vpop.f32.mrb[0].mxu0
    %v2906 = vadd.f32 0.0, %v2905
    %v2907 = vpop.f32.mrb[0].mxu0
    %2908 = vmatprep.mubr.f32.mxu0 0.0
    %2909 = vmatmul.mubr.f32.gmra.mrb[0].mxu0 %v615
    %v2910 = vpop.f32.mrb[0].mxu0
    %v2911 = vadd.f32 0.0, %v2910
    %v2912 = vpop.f32.mrb[0].mxu0
    %2913 = vmatprep.mubr.f32.mxu0 0.0
    %2914 = vmatmul.mubr.f32.gmra.mrb[0].mxu0 %v616
    %v2915 = vpop.f32.mrb[0].mxu0
    %v2916 = vadd.f32 0.0, %v2915
    %v2917 = vpop.f32.mrb[0].mxu0
    %2918 = vmatprep.mubr.f32.mxu0 0.0
    %2919 = vmatmul.mubr.f32.gmra.mrb[0].mxu0 %v617
    %v2920 = vpop.f32.mrb[0].mxu0
    %v2921 = vadd.f32 0.0, %v2920
    %v2922 = vpop.f32.mrb[0].mxu0
    %2923 = vmatprep.mubr.f32.mxu0 0.0
    %2924 = vmatmul.mubr.f32.gmra.mrb[0].mxu0 %v618
    %v2925 = vpop.f32.mrb[0].mxu0
    %v2926 = vadd.f32 0.0, %v2925
    %v2927 = vpop.f32.mrb[0].mxu0
    %2928 = vmatprep.mubr.f32.mxu0 0.0
    %2929 = vmatmul.mubr.f32.gmra.mrb[0].mxu0 %v619
    %v2930 = vpop.f32.mrb[0].mxu0
    %v2931 = vadd.f32 0.0, %v2930
    %v2932 = vpop.f32.mrb[0].mxu0
    %2933 = vmatprep.mubr.f32.mxu0 0.0
    %2934 = vmatmul.mubr.f32.gmra.mrb[0].mxu0 %v620
    %v2935 = vpop.f32.mrb[0].mxu0
    %v2936 = vadd.f32 0.0, %v2935
    %v2937 = vpop.f32.mrb[0].mxu0
    %2938 = vmatprep.mubr.f32.mxu0 0.0
    %2939 = vmatmul.mubr.f32.gmra.mrb[0].mxu0 %v621
    %v2940 = vpop.f32.mrb[0].mxu0
    %v2941 = vadd.f32 0.0, %v2940
    %v2942 = vpop.f32.mrb[0].mxu0
    %2943 = vmatprep.mubr.f32.mxu0 0.0
    %2944 = vmatmul.mubr.f32.gmra.mrb[0].mxu0 %v622
    %v2945 = vpop.f32.mrb[0].mxu0
    %v2946 = vadd.f32 0.0, %v2945
    %v2947 = vpop.f32.mrb[0].mxu0
    %2948 = vmatprep.mubr.f32.mxu0 0.0
    %2949 = vmatmul.mubr.f32.gmra.mrb[0].mxu0 %v623
    %v2950 = vpop.f32.mrb[0].mxu0
    %v2951 = vadd.f32 0.0, %v2950
    %v2952 = vpop.f32.mrb[0].mxu0
    %2953 = vmatprep.mubr.f32.mxu0 0.0
    %2954 = vmatmul.mubr.f32.gmra.mrb[0].mxu0 %v624
    %v2955 = vpop.f32.mrb[0].mxu0
    %v2956 = vadd.f32 0.0, %v2955
    %v2957 = vpop.f32.mrb[0].mxu0
    %2958 = vmatprep.mubr.f32.mxu0 0.0
    %2959 = vmatmul.mubr.f32.gmra.mrb[0].mxu0 %v625
    %v2960 = vpop.f32.mrb[0].mxu0
    %v2961 = vadd.f32 0.0, %v2960
    %v2962 = vpop.f32.mrb[0].mxu0
    %2963 = vmatprep.mubr.f32.mxu0 0.0
    %2964 = vmatmul.mubr.f32.gmra.mrb[0].mxu0 %v626
    %v2965 = vpop.f32.mrb[0].mxu0
    %v2966 = vadd.f32 0.0, %v2965
    %v2967 = vpop.f32.mrb[0].mxu0
    %2968 = vmatprep.mubr.f32.mxu0 0.0
    %2969 = vmatmul.mubr.f32.gmra.mrb[0].mxu0 %v627
    %v2970 = vpop.f32.mrb[0].mxu0
    %v2971 = vadd.f32 0.0, %v2970
    %v2972 = vpop.f32.mrb[0].mxu0
    %2973 = vmatprep.mubr.f32.mxu0 0.0
    %2974 = vmatmul.mubr.f32.gmra.mrb[0].mxu0 %v628
    %v2975 = vpop.f32.mrb[0].mxu0
    %v2976 = vadd.f32 0.0, %v2975
    %v2977 = vpop.f32.mrb[0].mxu0
    %2978 = vmatprep.mubr.f32.mxu0 0.0
    %2979 = vmatmul.mubr.f32.gmra.mrb[0].mxu0 %v629
    %v2980 = vpop.f32.mrb[0].mxu0
    %v2981 = vadd.f32 0.0, %v2980
    %v2982 = vpop.f32.mrb[0].mxu0
    %2983 = vmatprep.mubr.f32.mxu0 0.0
    %2984 = vmatmul.mubr.f32.gmra.mrb[0].mxu0 %v630
    %v2985 = vpop.f32.mrb[0].mxu0
    %v2986 = vadd.f32 0.0, %v2985
    %v2987 = vpop.f32.mrb[0].mxu0
    %2988 = vmatprep.mubr.f32.mxu0 0.0
    %2989 = vmatmul.mubr.f32.gmra.mrb[0].mxu0 %v631
    %v2990 = vpop.f32.mrb[0].mxu0
    %v2991 = vadd.f32 0.0, %v2990
    %v2992 = vpop.f32.mrb[0].mxu0
    %2993 = vmatprep.mubr.f32.mxu0 0.0
    %2994 = vmatmul.mubr.f32.gmra.mrb[0].mxu0 %v632
    %v2995 = vpop.f32.mrb[0].mxu0
    %v2996 = vadd.f32 0.0, %v2995
    %v2997 = vpop.f32.mrb[0].mxu0
    %2998 = vmatprep.mubr.f32.mxu0 0.0
    %2999 = vmatmul.mubr.f32.gmra.mrb[0].mxu0 %v633
    %v3000 = vpop.f32.mrb[0].mxu0
    %v3001 = vadd.f32 0.0, %v3000
    %v3002 = vpop.f32.mrb[0].mxu0
    %3003 = vmatprep.mubr.f32.mxu0 0.0
    %3004 = vmatmul.mubr.f32.gmra.mrb[0].mxu0 %v634
    %v3005 = vpop.f32.mrb[0].mxu0
    %v3006 = vadd.f32 0.0, %v3005
    %v3007 = vpop.f32.mrb[0].mxu0
    %3008 = vmatprep.mubr.f32.mxu0 0.0
    %3009 = vmatmul.mubr.f32.gmra.mrb[0].mxu0 %v635
    %v3010 = vpop.f32.mrb[0].mxu0
    %v3011 = vadd.f32 0.0, %v3010
    %v3012 = vpop.f32.mrb[0].mxu0
    %3013 = vmatprep.mubr.f32.mxu0 0.0
    %3014 = vmatmul.mubr.f32.gmra.mrb[0].mxu0 %v636
    %v3015 = vpop.f32.mrb[0].mxu0
    %v3016 = vadd.f32 0.0, %v3015
    %v3017 = vpop.f32.mrb[0].mxu0
    %3018 = vmatprep.mubr.f32.mxu0 0.0
    %3019 = vmatmul.mubr.f32.gmra.mrb[0].mxu0 %v637
    %v3020 = vpop.f32.mrb[0].mxu0
    %v3021 = vadd.f32 0.0, %v3020
    %v3022 = vpop.f32.mrb[0].mxu0
    %3023 = vmatprep.mubr.f32.mxu0 0.0
    %3024 = vmatmul.mubr.f32.gmra.mrb[0].mxu0 %v638
    %v3025 = vpop.f32.mrb[0].mxu0
    %v3026 = vadd.f32 0.0, %v3025
    %v3027 = vpop.f32.mrb[0].mxu0
    %3028 = vmatprep.mubr.f32.mxu0 0.0
    %3029 = vmatmul.mubr.f32.gmra.mrb[0].mxu0 %v639
    %v3030 = vpop.f32.mrb[0].mxu0
    %v3031 = vadd.f32 0.0, %v3030
    %v3032 = vpop.f32.mrb[0].mxu0
    %3033 = vmatprep.mubr.f32.mxu0 0.0
    %3034 = vmatmul.mubr.f32.gmra.mrb[0].mxu0 %v640
    %v3035 = vpop.f32.mrb[0].mxu0
    %v3036 = vadd.f32 0.0, %v3035
    %v3037 = vpop.f32.mrb[0].mxu0
    %3038 = vmatprep.mubr.f32.mxu0 0.0
    %3039 = vmatmul.mubr.f32.gmra.mrb[0].mxu0 %v641
    %v3040 = vpop.f32.mrb[0].mxu0
    %v3041 = vadd.f32 0.0, %v3040
    %v3042 = vpop.f32.mrb[0].mxu0
    %3043 = vmatprep.mubr.f32.mxu0 0.0
    %3044 = vmatmul.mubr.f32.gmra.mrb[0].mxu0 %v642
    %v3045 = vpop.f32.mrb[0].mxu0
    %v3046 = vadd.f32 0.0, %v3045
    %v3047 = vpop.f32.mrb[0].mxu0
    %3048 = vmatprep.mubr.f32.mxu0 0.0
    %3049 = vmatmul.mubr.f32.gmra.mrb[0].mxu0 %v643
    %v3050 = vpop.f32.mrb[0].mxu0
    %v3051 = vadd.f32 0.0, %v3050
    %v3052 = vpop.f32.mrb[0].mxu0
    %3053 = vmatprep.mubr.f32.mxu0 0.0
    %3054 = vmatmul.mubr.f32.gmra.mrb[0].mxu0 %v644
    %v3055 = vpop.f32.mrb[0].mxu0
    %v3056 = vadd.f32 0.0, %v3055
    %v3057 = vpop.f32.mrb[0].mxu0
    %3058 = vmatprep.mubr.f32.mxu0 0.0
    %3059 = vmatmul.mubr.f32.gmra.mrb[0].mxu0 %v645
    %v3060 = vpop.f32.mrb[0].mxu0
    %v3061 = vadd.f32 0.0, %v3060
    %v3062 = vpop.f32.mrb[0].mxu0
    %3063 = vmatprep.mubr.f32.mxu0 0.0
    %3064 = vmatmul.mubr.f32.gmra.mrb[0].mxu0 %v646
    %v3065 = vpop.f32.mrb[0].mxu0
    %v3066 = vadd.f32 0.0, %v3065
    %v3067 = vpop.f32.mrb[0].mxu0
    %3068 = vmatprep.mubr.f32.mxu0 0.0
    %3069 = vmatmul.mubr.f32.gmra.mrb[0].mxu0 %v647
    %v3070 = vpop.f32.mrb[0].mxu0
    %v3071 = vadd.f32 0.0, %v3070
    %v3072 = vpop.f32.mrb[0].mxu0
    %3073 = vmatprep.mubr.f32.mxu0 0.0
    %3074 = vmatmul.mubr.f32.gmra.mrb[0].mxu0 %v648
    %v3075 = vpop.f32.mrb[0].mxu0
    %v3076 = vadd.f32 0.0, %v3075
    %v3077 = vpop.f32.mrb[0].mxu0
    %3078 = vmatprep.mubr.f32.mxu0 0.0
    %3079 = vmatmul.mubr.f32.gmra.mrb[0].mxu0 %v649
    %v3080 = vpop.f32.mrb[0].mxu0
    %v3081 = vadd.f32 0.0, %v3080
    %v3082 = vpop.f32.mrb[0].mxu0
    %3083 = vmatprep.mubr.f32.mxu0 0.0
    %3084 = vmatmul.mubr.f32.gmra.mrb[0].mxu0 %v650
    %v3085 = vpop.f32.mrb[0].mxu0
    %v3086 = vadd.f32 0.0, %v3085
    %v3087 = vpop.f32.mrb[0].mxu0
    %3088 = vmatprep.mubr.f32.mxu0 0.0
    %3089 = vmatmul.mubr.f32.gmra.mrb[0].mxu0 %v651
    %v3090 = vpop.f32.mrb[0].mxu0
    %v3091 = vadd.f32 0.0, %v3090
    %v3092 = vpop.f32.mrb[0].mxu0
    %3093 = vmatprep.mubr.f32.mxu0 0.0
    %3094 = vmatmul.mubr.f32.gmra.mrb[0].mxu0 %v652
    %v3095 = vpop.f32.mrb[0].mxu0
    %v3096 = vadd.f32 0.0, %v3095
    %v3097 = vpop.f32.mrb[0].mxu0
    %3098 = vmatprep.mubr.f32.mxu0 0.0
    %3099 = vmatmul.mubr.f32.gmra.mrb[0].mxu0 %v653
    %v3100 = vpop.f32.mrb[0].mxu0
    %v3101 = vadd.f32 0.0, %v3100
    %v3102 = vpop.f32.mrb[0].mxu0
    %3103 = vmatprep.mubr.f32.mxu0 0.0
    %3104 = vmatmul.mubr.f32.gmra.mrb[0].mxu0 %v654
    %v3105 = vpop.f32.mrb[0].mxu0
    %v3106 = vadd.f32 0.0, %v3105
    %v3107 = vpop.f32.mrb[0].mxu0
    %3108 = vmatprep.mubr.f32.mxu0 0.0
    %3109 = vmatmul.mubr.f32.gmra.mrb[0].mxu0 %v655
    %v3110 = vpop.f32.mrb[0].mxu0
    %v3111 = vadd.f32 0.0, %v3110
    %v3112 = vpop.f32.mrb[0].mxu0
    %3113 = vmatprep.mubr.f32.mxu0 0.0
    %3114 = vmatmul.mubr.f32.gmra.mrb[0].mxu0 %v656
    %v3115 = vpop.f32.mrb[0].mxu0
    %v3116 = vadd.f32 0.0, %v3115
    %v3117 = vpop.f32.mrb[0].mxu0
    %3118 = vdwg.mxu0
    %3135 = vrot.lane.b32.xlu0 %v2481, 16
    %v3136 = vpop.permute.xlu0 %3135
    %3137 = vrot.lane.b32.xlu0 %v2486, 16
    %v3138 = vpop.permute.xlu0 %3137
    %3139 = vrot.lane.b32.xlu0 %v2491, 16
    %v3140 = vpop.permute.xlu0 %3139
    %3141 = vrot.lane.b32.xlu0 %v2496, 16
    %v3142 = vpop.permute.xlu0 %3141
    %3143 = vrot.lane.b32.xlu0 %v2501, 16
    %v3144 = vpop.permute.xlu0 %3143
    %3145 = vrot.lane.b32.xlu0 %v2506, 16
    %v3146 = vpop.permute.xlu0 %3145
    %3147 = vrot.lane.b32.xlu0 %v2511, 16
    %v3148 = vpop.permute.xlu0 %3147
    %3149 = vrot.lane.b32.xlu0 %v2516, 16
    %v3150 = vpop.permute.xlu0 %3149
    %3151 = vrot.lane.b32.xlu0 %v2521, 16
    %v3152 = vpop.permute.xlu0 %3151
    %3153 = vrot.lane.b32.xlu0 %v2526, 16
    %v3154 = vpop.permute.xlu0 %3153
    %3155 = vrot.lane.b32.xlu0 %v2531, 16
    %v3156 = vpop.permute.xlu0 %3155
    %3157 = vrot.lane.b32.xlu0 %v2536, 16
    %v3158 = vpop.permute.xlu0 %3157
    %3159 = vrot.lane.b32.xlu0 %v2541, 16
    %v3160 = vpop.permute.xlu0 %3159
    %3161 = vrot.lane.b32.xlu0 %v2546, 16
    %v3162 = vpop.permute.xlu0 %3161
    %3163 = vrot.lane.b32.xlu0 %v2551, 16
    %v3164 = vpop.permute.xlu0 %3163
    %3165 = vrot.lane.b32.xlu0 %v2556, 16
    %v3166 = vpop.permute.xlu0 %3165
    %3199 = vrot.lane.b32.xlu0 %v2561, 32
    %v3200 = vpop.permute.xlu0 %3199
    %3201 = vrot.lane.b32.xlu0 %v2566, 32
    %v3202 = vpop.permute.xlu0 %3201
    %3203 = vrot.lane.b32.xlu0 %v2571, 32
    %v3204 = vpop.permute.xlu0 %3203
    %3205 = vrot.lane.b32.xlu0 %v2576, 32
    %v3206 = vpop.permute.xlu0 %3205
    %3207 = vrot.lane.b32.xlu0 %v2581, 32
    %v3208 = vpop.permute.xlu0 %3207
    %3209 = vrot.lane.b32.xlu0 %v2586, 32
    %v3210 = vpop.permute.xlu0 %3209
    %3211 = vrot.lane.b32.xlu0 %v2591, 32
    %v3212 = vpop.permute.xlu0 %3211
    %3213 = vrot.lane.b32.xlu0 %v2596, 32
    %v3214 = vpop.permute.xlu0 %3213
    %3215 = vrot.lane.b32.xlu0 %v2601, 32
    %v3216 = vpop.permute.xlu0 %3215
    %3217 = vrot.lane.b32.xlu0 %v2606, 32
    %v3218 = vpop.permute.xlu0 %3217
    %3219 = vrot.lane.b32.xlu0 %v2611, 32
    %v3220 = vpop.permute.xlu0 %3219
    %3221 = vrot.lane.b32.xlu0 %v2616, 32
    %v3222 = vpop.permute.xlu0 %3221
    %3223 = vrot.lane.b32.xlu0 %v2621, 32
    %v3224 = vpop.permute.xlu0 %3223
    %3225 = vrot.lane.b32.xlu0 %v2626, 32
    %v3226 = vpop.permute.xlu0 %3225
    %3227 = vrot.lane.b32.xlu0 %v2631, 32
    %v3228 = vpop.permute.xlu0 %3227
    %3229 = vrot.lane.b32.xlu0 %v2636, 32
    %v3230 = vpop.permute.xlu0 %3229
    %3263 = vrot.lane.b32.xlu0 %v2641, 48
    %v3264 = vpop.permute.xlu0 %3263
    %3265 = vrot.lane.b32.xlu0 %v2646, 48
    %v3266 = vpop.permute.xlu0 %3265
    %3267 = vrot.lane.b32.xlu0 %v2651, 48
    %v3268 = vpop.permute.xlu0 %3267
    %3269 = vrot.lane.b32.xlu0 %v2656, 48
    %v3270 = vpop.permute.xlu0 %3269
    %3271 = vrot.lane.b32.xlu0 %v2661, 48
    %v3272 = vpop.permute.xlu0 %3271
    %3273 = vrot.lane.b32.xlu0 %v2666, 48
    %v3274 = vpop.permute.xlu0 %3273
    %3275 = vrot.lane.b32.xlu0 %v2671, 48
    %v3276 = vpop.permute.xlu0 %3275
    %3277 = vrot.lane.b32.xlu0 %v2676, 48
    %v3278 = vpop.permute.xlu0 %3277
    %3279 = vrot.lane.b32.xlu0 %v2681, 48
    %v3280 = vpop.permute.xlu0 %3279
    %3281 = vrot.lane.b32.xlu0 %v2686, 48
    %v3282 = vpop.permute.xlu0 %3281
    %3283 = vrot.lane.b32.xlu0 %v2691, 48
    %v3284 = vpop.permute.xlu0 %3283
    %3285 = vrot.lane.b32.xlu0 %v2696, 48
    %v3286 = vpop.permute.xlu0 %3285
    %3287 = vrot.lane.b32.xlu0 %v2701, 48
    %v3288 = vpop.permute.xlu0 %3287
    %3289 = vrot.lane.b32.xlu0 %v2706, 48
    %v3290 = vpop.permute.xlu0 %3289
    %3291 = vrot.lane.b32.xlu0 %v2711, 48
    %v3292 = vpop.permute.xlu0 %3291
    %3293 = vrot.lane.b32.xlu0 %v2716, 48
    %v3294 = vpop.permute.xlu0 %3293
    %3327 = vrot.lane.b32.xlu0 %v2721, 64
    %v3328 = vpop.permute.xlu0 %3327
    %3329 = vrot.lane.b32.xlu0 %v2726, 64
    %v3330 = vpop.permute.xlu0 %3329
    %3331 = vrot.lane.b32.xlu0 %v2731, 64
    %v3332 = vpop.permute.xlu0 %3331
    %3333 = vrot.lane.b32.xlu0 %v2736, 64
    %v3334 = vpop.permute.xlu0 %3333
    %3335 = vrot.lane.b32.xlu0 %v2741, 64
    %v3336 = vpop.permute.xlu0 %3335
    %3337 = vrot.lane.b32.xlu0 %v2746, 64
    %v3338 = vpop.permute.xlu0 %3337
    %3339 = vrot.lane.b32.xlu0 %v2751, 64
    %v3340 = vpop.permute.xlu0 %3339
    %3341 = vrot.lane.b32.xlu0 %v2756, 64
    %v3342 = vpop.permute.xlu0 %3341
    %3343 = vrot.lane.b32.xlu0 %v2761, 64
    %v3344 = vpop.permute.xlu0 %3343
    %3345 = vrot.lane.b32.xlu0 %v2766, 64
    %v3346 = vpop.permute.xlu0 %3345
    %3347 = vrot.lane.b32.xlu0 %v2771, 64
    %v3348 = vpop.permute.xlu0 %3347
    %3349 = vrot.lane.b32.xlu0 %v2776, 64
    %v3350 = vpop.permute.xlu0 %3349
    %3351 = vrot.lane.b32.xlu0 %v2781, 64
    %v3352 = vpop.permute.xlu0 %3351
    %3353 = vrot.lane.b32.xlu0 %v2786, 64
    %v3354 = vpop.permute.xlu0 %3353
    %3355 = vrot.lane.b32.xlu0 %v2791, 64
    %v3356 = vpop.permute.xlu0 %3355
    %3357 = vrot.lane.b32.xlu0 %v2796, 64
    %v3358 = vpop.permute.xlu0 %3357
    %3391 = vrot.lane.b32.xlu0 %v2801, 80
    %v3392 = vpop.permute.xlu0 %3391
    %3393 = vrot.lane.b32.xlu0 %v2806, 80
    %v3394 = vpop.permute.xlu0 %3393
    %3395 = vrot.lane.b32.xlu0 %v2811, 80
    %v3396 = vpop.permute.xlu0 %3395
    %3397 = vrot.lane.b32.xlu0 %v2816, 80
    %v3398 = vpop.permute.xlu0 %3397
    %3399 = vrot.lane.b32.xlu0 %v2821, 80
    %v3400 = vpop.permute.xlu0 %3399
    %3401 = vrot.lane.b32.xlu0 %v2826, 80
    %v3402 = vpop.permute.xlu0 %3401
    %3403 = vrot.lane.b32.xlu0 %v2831, 80
    %v3404 = vpop.permute.xlu0 %3403
    %3405 = vrot.lane.b32.xlu0 %v2836, 80
    %v3406 = vpop.permute.xlu0 %3405
    %3407 = vrot.lane.b32.xlu0 %v2841, 80
    %v3408 = vpop.permute.xlu0 %3407
    %3409 = vrot.lane.b32.xlu0 %v2846, 80
    %v3410 = vpop.permute.xlu0 %3409
    %3411 = vrot.lane.b32.xlu0 %v2851, 80
    %v3412 = vpop.permute.xlu0 %3411
    %3413 = vrot.lane.b32.xlu0 %v2856, 80
    %v3414 = vpop.permute.xlu0 %3413
    %3415 = vrot.lane.b32.xlu0 %v2861, 80
    %v3416 = vpop.permute.xlu0 %3415
    %3417 = vrot.lane.b32.xlu0 %v2866, 80
    %v3418 = vpop.permute.xlu0 %3417
    %3419 = vrot.lane.b32.xlu0 %v2871, 80
    %v3420 = vpop.permute.xlu0 %3419
    %3421 = vrot.lane.b32.xlu0 %v2876, 80
    %v3422 = vpop.permute.xlu0 %3421
    %3455 = vrot.lane.b32.xlu0 %v2881, 96
    %v3456 = vpop.permute.xlu0 %3455
    %3457 = vrot.lane.b32.xlu0 %v2886, 96
    %v3458 = vpop.permute.xlu0 %3457
    %3459 = vrot.lane.b32.xlu0 %v2891, 96
    %v3460 = vpop.permute.xlu0 %3459
    %3461 = vrot.lane.b32.xlu0 %v2896, 96
    %v3462 = vpop.permute.xlu0 %3461
    %3463 = vrot.lane.b32.xlu0 %v2901, 96
    %v3464 = vpop.permute.xlu0 %3463
    %3465 = vrot.lane.b32.xlu0 %v2906, 96
    %v3466 = vpop.permute.xlu0 %3465
    %3467 = vrot.lane.b32.xlu0 %v2911, 96
    %v3468 = vpop.permute.xlu0 %3467
    %3469 = vrot.lane.b32.xlu0 %v2916, 96
    %v3470 = vpop.permute.xlu0 %3469
    %3471 = vrot.lane.b32.xlu0 %v2921, 96
    %v3472 = vpop.permute.xlu0 %3471
    %3473 = vrot.lane.b32.xlu0 %v2926, 96
    %v3474 = vpop.permute.xlu0 %3473
    %3475 = vrot.lane.b32.xlu0 %v2931, 96
    %v3476 = vpop.permute.xlu0 %3475
    %3477 = vrot.lane.b32.xlu0 %v2936, 96
    %v3478 = vpop.permute.xlu0 %3477
    %3479 = vrot.lane.b32.xlu0 %v2941, 96
    %v3480 = vpop.permute.xlu0 %3479
    %3481 = vrot.lane.b32.xlu0 %v2946, 96
    %v3482 = vpop.permute.xlu0 %3481
    %3483 = vrot.lane.b32.xlu0 %v2951, 96
    %v3484 = vpop.permute.xlu0 %3483
    %3485 = vrot.lane.b32.xlu0 %v2956, 96
    %v3486 = vpop.permute.xlu0 %3485
    %3519 = vrot.lane.b32.xlu0 %v2961, 112
    %v3520 = vpop.permute.xlu0 %3519
    %3521 = vrot.lane.b32.xlu0 %v2966, 112
    %v3522 = vpop.permute.xlu0 %3521
    %3523 = vrot.lane.b32.xlu0 %v2971, 112
    %v3524 = vpop.permute.xlu0 %3523
    %3525 = vrot.lane.b32.xlu0 %v2976, 112
    %v3526 = vpop.permute.xlu0 %3525
    %3527 = vrot.lane.b32.xlu0 %v2981, 112
    %v3528 = vpop.permute.xlu0 %3527
    %3529 = vrot.lane.b32.xlu0 %v2986, 112
    %v3530 = vpop.permute.xlu0 %3529
    %3531 = vrot.lane.b32.xlu0 %v2991, 112
    %v3532 = vpop.permute.xlu0 %3531
    %3533 = vrot.lane.b32.xlu0 %v2996, 112
    %v3534 = vpop.permute.xlu0 %3533
    %3535 = vrot.lane.b32.xlu0 %v3001, 112
    %v3536 = vpop.permute.xlu0 %3535
    %3537 = vrot.lane.b32.xlu0 %v3006, 112
    %v3538 = vpop.permute.xlu0 %3537
    %3539 = vrot.lane.b32.xlu0 %v3011, 112
    %v3540 = vpop.permute.xlu0 %3539
    %3541 = vrot.lane.b32.xlu0 %v3016, 112
    %v3542 = vpop.permute.xlu0 %3541
    %3543 = vrot.lane.b32.xlu0 %v3021, 112
    %v3544 = vpop.permute.xlu0 %3543
    %3545 = vrot.lane.b32.xlu0 %v3026, 112
    %v3546 = vpop.permute.xlu0 %3545
    %3547 = vrot.lane.b32.xlu0 %v3031, 112
    %v3548 = vpop.permute.xlu0 %3547
    %3549 = vrot.lane.b32.xlu0 %v3036, 112
    %v3550 = vpop.permute.xlu0 %3549
    %v3567 = vsel %vm2010, %v2401, %v3136
    %v3568 = vsel %vm2010, %v2406, %v3138
    %v3569 = vsel %vm2010, %v2411, %v3140
    %v3570 = vsel %vm2010, %v2416, %v3142
    %v3571 = vsel %vm2010, %v2421, %v3144
    %v3572 = vsel %vm2010, %v2426, %v3146
    %v3573 = vsel %vm2010, %v2431, %v3148
    %v3574 = vsel %vm2010, %v2436, %v3150
    %v3575 = vsel %vm2010, %v2441, %v3152
    %v3576 = vsel %vm2010, %v2446, %v3154
    %v3577 = vsel %vm2010, %v2451, %v3156
    %v3578 = vsel %vm2010, %v2456, %v3158
    %v3579 = vsel %vm2010, %v2461, %v3160
    %v3580 = vsel %vm2010, %v2466, %v3162
    %v3581 = vsel %vm2010, %v2471, %v3164
    %v3582 = vsel %vm2010, %v2476, %v3166
    %v3583 = vsel %vm2078, %v3567, %v3200
    %v3584 = vsel %vm2078, %v3568, %v3202
    %v3585 = vsel %vm2078, %v3569, %v3204
    %v3586 = vsel %vm2078, %v3570, %v3206
    %v3587 = vsel %vm2078, %v3571, %v3208
    %v3588 = vsel %vm2078, %v3572, %v3210
    %v3589 = vsel %vm2078, %v3573, %v3212
    %v3590 = vsel %vm2078, %v3574, %v3214
    %v3591 = vsel %vm2078, %v3575, %v3216
    %v3592 = vsel %vm2078, %v3576, %v3218
    %v3593 = vsel %vm2078, %v3577, %v3220
    %v3594 = vsel %vm2078, %v3578, %v3222
    %v3595 = vsel %vm2078, %v3579, %v3224
    %v3596 = vsel %vm2078, %v3580, %v3226
    %v3597 = vsel %vm2078, %v3581, %v3228
    %v3598 = vsel %vm2078, %v3582, %v3230
    %vm3599 = vcmask 392192
    %v3600 = vsel %vm3599, %v3583, %v3264
    %v3601 = vsel %vm3599, %v3584, %v3266
    %v3602 = vsel %vm3599, %v3585, %v3268
    %v3603 = vsel %vm3599, %v3586, %v3270
    %v3604 = vsel %vm3599, %v3587, %v3272
    %v3605 = vsel %vm3599, %v3588, %v3274
    %v3606 = vsel %vm3599, %v3589, %v3276
    %v3607 = vsel %vm3599, %v3590, %v3278
    %v3608 = vsel %vm3599, %v3591, %v3280
    %v3609 = vsel %vm3599, %v3592, %v3282
    %v3610 = vsel %vm3599, %v3593, %v3284
    %v3611 = vsel %vm3599, %v3594, %v3286
    %v3612 = vsel %vm3599, %v3595, %v3288
    %v3613 = vsel %vm3599, %v3596, %v3290
    %v3614 = vsel %vm3599, %v3597, %v3292
    %v3615 = vsel %vm3599, %v3598, %v3294
    %vm3616 = vcmask 523264
    %v3617 = vsel %vm3616, %v3600, %v3328
    %v3618 = vsel %vm3616, %v3601, %v3330
    %v3619 = vsel %vm3616, %v3602, %v3332
    %v3620 = vsel %vm3616, %v3603, %v3334
    %v3621 = vsel %vm3616, %v3604, %v3336
    %v3622 = vsel %vm3616, %v3605, %v3338
    %v3623 = vsel %vm3616, %v3606, %v3340
    %v3624 = vsel %vm3616, %v3607, %v3342
    %v3625 = vsel %vm3616, %v3608, %v3344
    %v3626 = vsel %vm3616, %v3609, %v3346
    %v3627 = vsel %vm3616, %v3610, %v3348
    %v3628 = vsel %vm3616, %v3611, %v3350
    %v3629 = vsel %vm3616, %v3612, %v3352
    %v3630 = vsel %vm3616, %v3613, %v3354
    %v3631 = vsel %vm3616, %v3614, %v3356
    %v3632 = vsel %vm3616, %v3615, %v3358
    %vm3633 = vcmask 654336
    %v3634 = vsel %vm3633, %v3617, %v3392
    %v3635 = vsel %vm3633, %v3618, %v3394
    %v3636 = vsel %vm3633, %v3619, %v3396
    %v3637 = vsel %vm3633, %v3620, %v3398
    %v3638 = vsel %vm3633, %v3621, %v3400
    %v3639 = vsel %vm3633, %v3622, %v3402
    %v3640 = vsel %vm3633, %v3623, %v3404
    %v3641 = vsel %vm3633, %v3624, %v3406
    %v3642 = vsel %vm3633, %v3625, %v3408
    %v3643 = vsel %vm3633, %v3626, %v3410
    %v3644 = vsel %vm3633, %v3627, %v3412
    %v3645 = vsel %vm3633, %v3628, %v3414
    %v3646 = vsel %vm3633, %v3629, %v3416
    %v3647 = vsel %vm3633, %v3630, %v3418
    %v3648 = vsel %vm3633, %v3631, %v3420
    %v3649 = vsel %vm3633, %v3632, %v3422
    %vm3650 = vcmask 785408
    %v3651 = vsel %vm3650, %v3634, %v3456
    %v3652 = vsel %vm3650, %v3635, %v3458
    %v3653 = vsel %vm3650, %v3636, %v3460
    %v3654 = vsel %vm3650, %v3637, %v3462
    %v3655 = vsel %vm3650, %v3638, %v3464
    %v3656 = vsel %vm3650, %v3639, %v3466
    %v3657 = vsel %vm3650, %v3640, %v3468
    %v3658 = vsel %vm3650, %v3641, %v3470
    %v3659 = vsel %vm3650, %v3642, %v3472
    %v3660 = vsel %vm3650, %v3643, %v3474
    %v3661 = vsel %vm3650, %v3644, %v3476
    %v3662 = vsel %vm3650, %v3645, %v3478
    %v3663 = vsel %vm3650, %v3646, %v3480
    %v3664 = vsel %vm3650, %v3647, %v3482
    %v3665 = vsel %vm3650, %v3648, %v3484
    %v3666 = vsel %vm3650, %v3649, %v3486
    %vm3667 = vcmask 916480
    %v3668 = vsel %vm3667, %v3651, %v3520
    %v3669 = vsel %vm3667, %v3652, %v3522
    %v3670 = vsel %vm3667, %v3653, %v3524
    %v3671 = vsel %vm3667, %v3654, %v3526
    %v3672 = vsel %vm3667, %v3655, %v3528
    %v3673 = vsel %vm3667, %v3656, %v3530
    %v3674 = vsel %vm3667, %v3657, %v3532
    %v3675 = vsel %vm3667, %v3658, %v3534
    %v3676 = vsel %vm3667, %v3659, %v3536
    %v3677 = vsel %vm3667, %v3660, %v3538
    %v3678 = vsel %vm3667, %v3661, %v3540
    %v3679 = vsel %vm3667, %v3662, %v3542
    %v3680 = vsel %vm3667, %v3663, %v3544
    %v3681 = vsel %vm3667, %v3664, %v3546
    %v3682 = vsel %vm3667, %v3665, %v3548
    %v3683 = vsel %vm3667, %v3666, %v3550
    %v3685 = vlaneseq
    %v3686 = vshrl.u32 %v3685, 7
    %v3687 = vsub.s32 0, %v3686
    %v3688 = vrot.slane %v2333, %v3687
    %v3691 = vsel %vm2010, %v3041, 0
    %v3694 = vsel %vm2010, %v3046, 0
    %v3697 = vsel %vm2010, %v3051, 0
    %v3700 = vsel %vm2010, %v3056, 0
    %v3703 = vsel %vm2010, %v3061, 0
    %v3706 = vsel %vm2010, %v3066, 0
    %v3709 = vsel %vm2010, %v3071, 0
    %v3712 = vsel %vm2010, %v3076, 0
    %v3715 = vsel %vm2010, %v3081, 0
    %v3718 = vsel %vm2010, %v3086, 0
    %v3721 = vsel %vm2010, %v3091, 0
    %v3724 = vsel %vm2010, %v3096, 0
    %v3727 = vsel %vm2010, %v3101, 0
    %v3730 = vsel %vm2010, %v3106, 0
    %v3733 = vsel %vm2010, %v3111, 0
    %v3736 = vsel %vm2010, %v3116, 0
    %3738 = vmatprep.subr.mxu0 0.0
    %3739 = vmatpush1.msra.mxu0 %v2315
    %3740 = vmatprep.subr.mxu0 0.0
    %3741 = vmatpush1.msra.mxu0 %v2316
    %3742 = vmatprep.subr.mxu0 0.0
    %3743 = vmatpush1.msra.mxu0 %v2317
    %3744 = vmatprep.subr.mxu0 0.0
    %3745 = vmatpush1.msra.mxu0 %v2318
    %3746 = vmatprep.subr.mxu0 0.0
    %3747 = vmatpush1.msra.mxu0 %v2319
    %3748 = vmatprep.subr.mxu0 0.0
    %3749 = vmatpush1.msra.mxu0 %v2320
    %3750 = vmatprep.subr.mxu0 0.0
    %3751 = vmatpush1.msra.mxu0 %v2321
    %3752 = vmatprep.subr.mxu0 0.0
    %3753 = vmatpush1.msra.mxu0 %v2322
    %3754 = vmatprep.subr.mxu0 0.0
    %3755 = vmatpush1.msra.mxu0 %v2323
    %3756 = vmatprep.subr.mxu0 0.0
    %3757 = vmatpush1.msra.mxu0 %v2324
    %3758 = vmatprep.subr.mxu0 0.0
    %3759 = vmatpush1.msra.mxu0 %v2325
    %3760 = vmatprep.subr.mxu0 0.0
    %3761 = vmatpush1.msra.mxu0 %v2326
    %3762 = vmatprep.subr.mxu0 0.0
    %3763 = vmatpush1.msra.mxu0 %v2327
    %3764 = vmatprep.subr.mxu0 0.0
    %3765 = vmatpush1.msra.mxu0 %v2328
    %3766 = vmatprep.subr.mxu0 0.0
    %3767 = vmatpush1.msra.mxu0 %v2329
    %3768 = vmatprep.subr.mxu0 0.0
    %3769 = vmatpush1.msra.mxu0 %v2330
    %3770 = vmatprep.subr.mxu0 0.0
    %3771 = vmatpush1.msra.mxu0 %v2331
    %3772 = vmatprep.subr.mxu0 0.0
    %3773 = vmatpush1.msra.mxu0 %v2332
    %3774 = vmatprep.subr.mxu0 0.0
    %3775 = vmatpush1.msra.mxu0 0.0
    %3776 = vmatprep.subr.mxu0 0.0
    %3777 = vmatpush1.msra.mxu0 0.0
    %3778 = vmatprep.subr.mxu0 0.0
    %3779 = vmatpush1.msra.mxu0 0.0
    %3780 = vmatprep.subr.mxu0 0.0
    %3781 = vmatpush1.msra.mxu0 0.0
    %3782 = vmatprep.subr.mxu0 0.0
    %3783 = vmatpush1.msra.mxu0 0.0
    %3784 = vmatprep.subr.mxu0 0.0
    %3785 = vmatpush1.msra.mxu0 0.0
    %3786 = vmatprep.subr.mxu0 0.0
    %3787 = vmatpush1.msra.mxu0 0.0
    %3788 = vmatprep.subr.mxu0 0.0
    %3789 = vmatpush1.msra.mxu0 0.0
    %3790 = vmatprep.subr.mxu0 0.0
    %3791 = vmatpush1.msra.mxu0 0.0
    %3792 = vmatprep.subr.mxu0 0.0
    %3793 = vmatpush1.msra.mxu0 0.0
    %3794 = vmatprep.subr.mxu0 0.0
    %3795 = vmatpush1.msra.mxu0 0.0
    %3796 = vmatprep.subr.mxu0 0.0
    %3797 = vmatpush1.msra.mxu0 0.0
    %3798 = vmatprep.subr.mxu0 0.0
    %3799 = vmatpush1.msra.mxu0 0.0
    %3800 = vmatprep.subr.mxu0 0.0
    %3801 = vmatpush1.msra.mxu0 0.0
    %3802 = vmatprep.mubr.f32.mxu0 %v3691
    %3803 = vmatmul.mubr.f32.gmra.mrb[0].mxu0 %v3668
    %v3804 = vpop.f32.mrb[0].mxu0
    %v3805 = vadd.f32 %v3688, %v3804
    %v3806 = vpop.f32.mrb[0].mxu0
    %3807 = vmatprep.mubr.f32.mxu0 %v3694
    %3808 = vmatmul.mubr.f32.gmra.mrb[0].mxu0 %v3669
    %v3809 = vpop.f32.mrb[0].mxu0
    %v3810 = vadd.f32 %v3688, %v3809
    %v3811 = vpop.f32.mrb[0].mxu0
    %3812 = vmatprep.mubr.f32.mxu0 %v3697
    %3813 = vmatmul.mubr.f32.gmra.mrb[0].mxu0 %v3670
    %v3814 = vpop.f32.mrb[0].mxu0
    %v3815 = vadd.f32 %v3688, %v3814
    %v3816 = vpop.f32.mrb[0].mxu0
    %3817 = vmatprep.mubr.f32.mxu0 %v3700
    %3818 = vmatmul.mubr.f32.gmra.mrb[0].mxu0 %v3671
    %v3819 = vpop.f32.mrb[0].mxu0
    %v3820 = vadd.f32 %v3688, %v3819
    %v3821 = vpop.f32.mrb[0].mxu0
    %3822 = vmatprep.mubr.f32.mxu0 %v3703
    %3823 = vmatmul.mubr.f32.gmra.mrb[0].mxu0 %v3672
    %v3824 = vpop.f32.mrb[0].mxu0
    %v3825 = vadd.f32 %v3688, %v3824
    %v3826 = vpop.f32.mrb[0].mxu0
    %3827 = vmatprep.mubr.f32.mxu0 %v3706
    %3828 = vmatmul.mubr.f32.gmra.mrb[0].mxu0 %v3673
    %v3829 = vpop.f32.mrb[0].mxu0
    %v3830 = vadd.f32 %v3688, %v3829
    %v3831 = vpop.f32.mrb[0].mxu0
    %3832 = vmatprep.mubr.f32.mxu0 %v3709
    %3833 = vmatmul.mubr.f32.gmra.mrb[0].mxu0 %v3674
    %v3834 = vpop.f32.mrb[0].mxu0
    %v3835 = vadd.f32 %v3688, %v3834
    %v3836 = vpop.f32.mrb[0].mxu0
    %3837 = vmatprep.mubr.f32.mxu0 %v3712
    %3838 = vmatmul.mubr.f32.gmra.mrb[0].mxu0 %v3675
    %v3839 = vpop.f32.mrb[0].mxu0
    %v3840 = vadd.f32 %v3688, %v3839
    %v3841 = vpop.f32.mrb[0].mxu0
    %3842 = vmatprep.mubr.f32.mxu0 %v3715
    %3843 = vmatmul.mubr.f32.gmra.mrb[0].mxu0 %v3676
    %v3844 = vpop.f32.mrb[0].mxu0
    %v3845 = vadd.f32 %v3688, %v3844
    %v3846 = vpop.f32.mrb[0].mxu0
    %3847 = vmatprep.mubr.f32.mxu0 %v3718
    %3848 = vmatmul.mubr.f32.gmra.mrb[0].mxu0 %v3677
    %v3849 = vpop.f32.mrb[0].mxu0
    %v3850 = vadd.f32 %v3688, %v3849
    %v3851 = vpop.f32.mrb[0].mxu0
    %3852 = vmatprep.mubr.f32.mxu0 %v3721
    %3853 = vmatmul.mubr.f32.gmra.mrb[0].mxu0 %v3678
    %v3854 = vpop.f32.mrb[0].mxu0
    %v3855 = vadd.f32 %v3688, %v3854
    %v3856 = vpop.f32.mrb[0].mxu0
    %3857 = vmatprep.mubr.f32.mxu0 %v3724
    %3858 = vmatmul.mubr.f32.gmra.mrb[0].mxu0 %v3679
    %v3859 = vpop.f32.mrb[0].mxu0
    %v3860 = vadd.f32 %v3688, %v3859
    %v3861 = vpop.f32.mrb[0].mxu0
    %3862 = vmatprep.mubr.f32.mxu0 %v3727
    %3863 = vmatmul.mubr.f32.gmra.mrb[0].mxu0 %v3680
    %v3864 = vpop.f32.mrb[0].mxu0
    %v3865 = vadd.f32 %v3688, %v3864
    %v3866 = vpop.f32.mrb[0].mxu0
    %3867 = vmatprep.mubr.f32.mxu0 %v3730
    %3868 = vmatmul.mubr.f32.gmra.mrb[0].mxu0 %v3681
    %v3869 = vpop.f32.mrb[0].mxu0
    %v3870 = vadd.f32 %v3688, %v3869
    %v3871 = vpop.f32.mrb[0].mxu0
    %3872 = vmatprep.mubr.f32.mxu0 %v3733
    %3873 = vmatmul.mubr.f32.gmra.mrb[0].mxu0 %v3682
    %v3874 = vpop.f32.mrb[0].mxu0
    %v3875 = vadd.f32 %v3688, %v3874
    %v3876 = vpop.f32.mrb[0].mxu0
    %3877 = vmatprep.mubr.f32.mxu0 %v3736
    %3878 = vmatmul.mubr.f32.gmra.mrb[0].mxu0 %v3683
    %v3879 = vpop.f32.mrb[0].mxu0
    %v3880 = vadd.f32 %v3688, %v3879
    %v3881 = vpop.f32.mrb[0].mxu0
    %3882 = vdwg.mxu0
    %v3883 = vld [vmem:[%s9] sm:$0x1]
    %v3884 = vsub.f32 0.0, %v3883
    %v3885 = vmul.f32 %v3884, 1.442695
    %v3886 = vpow.pop %v3885
    %v3888 = vlaneseq
    %v3889 = vshrl.u32 %v3888, 7
    %v3890 = vsub.s32 0, %v3889
    %v3891 = vrot.slane %v3886, %v3890
    %v3893 = vmul.f32 %v3805, %v3891
    %v3894 = vmul.f32 %v3810, %v3891
    %v3895 = vmul.f32 %v3815, %v3891
    %v3896 = vmul.f32 %v3820, %v3891
    %v3897 = vmul.f32 %v3825, %v3891
    %v3898 = vmul.f32 %v3830, %v3891
    %v3899 = vmul.f32 %v3835, %v3891
    %v3900 = vmul.f32 %v3840, %v3891
    %v3901 = vmul.f32 %v3845, %v3891
    %v3902 = vmul.f32 %v3850, %v3891
    %v3903 = vmul.f32 %v3855, %v3891
    %v3904 = vmul.f32 %v3860, %v3891
    %v3905 = vmul.f32 %v3865, %v3891
    %v3906 = vmul.f32 %v3870, %v3891
    %v3907 = vmul.f32 %v3875, %v3891
    %v3908 = vmul.f32 %v3880, %v3891
    %v3909 = vtanh.pop %v3893
    %v3910 = vtanh.pop %v3894
    %v3911 = vtanh.pop %v3895
    %v3912 = vtanh.pop %v3896
    %v3913 = vtanh.pop %v3897
    %v3914 = vtanh.pop %v3898
    %v3915 = vtanh.pop %v3899
    %v3916 = vtanh.pop %v3900
    %v3917 = vtanh.pop %v3901
    %v3918 = vtanh.pop %v3902
    %v3919 = vtanh.pop %v3903
    %v3920 = vtanh.pop %v3904
    %v3921 = vtanh.pop %v3905
    %v3922 = vtanh.pop %v3906
    %v3923 = vtanh.pop %v3907
    %v3924 = vtanh.pop %v3908
    %v3925 = vmul.f32 %v3883, 1.442695
    %v3926 = vpow.pop %v3925
    %v3928 = vlaneseq
    %v3929 = vshrl.u32 %v3928, 7
    %v3930 = vsub.s32 0, %v3929
    %v3931 = vrot.slane %v3926, %v3930
    %v3933 = vmul.f32 %v3909, %v3931
    %v3934 = vmul.f32 %v3910, %v3931
    %v3935 = vmul.f32 %v3911, %v3931
    %v3936 = vmul.f32 %v3912, %v3931
    %v3937 = vmul.f32 %v3913, %v3931
    %v3938 = vmul.f32 %v3914, %v3931
    %v3939 = vmul.f32 %v3915, %v3931
    %v3940 = vmul.f32 %v3916, %v3931
    %v3941 = vmul.f32 %v3917, %v3931
    %v3942 = vmul.f32 %v3918, %v3931
    %v3943 = vmul.f32 %v3919, %v3931
    %v3944 = vmul.f32 %v3920, %v3931
    %v3945 = vmul.f32 %v3921, %v3931
    %v3946 = vmul.f32 %v3922, %v3931
    %v3947 = vmul.f32 %v3923, %v3931
    %v3948 = vmul.f32 %v3924, %v3931
    %v3949 = vadd.f32 %v497, %v3805
    %v3950 = vadd.f32 %v498, %v3810
    %v3951 = vadd.f32 %v499, %v3815
    %v3952 = vadd.f32 %v500, %v3820
    %v3953 = vadd.f32 %v501, %v3825
    %v3954 = vadd.f32 %v502, %v3830
    %v3955 = vadd.f32 %v503, %v3835
    %v3956 = vadd.f32 %v504, %v3840
    %v3957 = vadd.f32 %v505, %v3845
    %v3958 = vadd.f32 %v506, %v3850
    %v3959 = vadd.f32 %v507, %v3855
    %v3960 = vadd.f32 %v508, %v3860
    %v3961 = vadd.f32 %v509, %v3865
    %v3962 = vadd.f32 %v510, %v3870
    %v3963 = vadd.f32 %v511, %v3875
    %v3964 = vadd.f32 %v512, %v3880
    %v3965 = vmul.f32 %v3933, 1.442695
    %v3966 = vpow.pop %v3965
    %v3967 = vmul.f32 %v3934, 1.442695
    %v3968 = vpow.pop %v3967
    %v3969 = vmul.f32 %v3935, 1.442695
    %v3970 = vpow.pop %v3969
    %v3971 = vmul.f32 %v3936, 1.442695
    %v3972 = vpow.pop %v3971
    %v3973 = vmul.f32 %v3937, 1.442695
    %v3974 = vpow.pop %v3973
    %v3975 = vmul.f32 %v3938, 1.442695
    %v3976 = vpow.pop %v3975
    %v3977 = vmul.f32 %v3939, 1.442695
    %v3978 = vpow.pop %v3977
    %v3979 = vmul.f32 %v3940, 1.442695
    %v3980 = vpow.pop %v3979
    %v3981 = vmul.f32 %v3941, 1.442695
    %v3982 = vpow.pop %v3981
    %v3983 = vmul.f32 %v3942, 1.442695
    %v3984 = vpow.pop %v3983
    %v3985 = vmul.f32 %v3943, 1.442695
    %v3986 = vpow.pop %v3985
    %v3987 = vmul.f32 %v3944, 1.442695
    %v3988 = vpow.pop %v3987
    %v3989 = vmul.f32 %v3945, 1.442695
    %v3990 = vpow.pop %v3989
    %v3991 = vmul.f32 %v3946, 1.442695
    %v3992 = vpow.pop %v3991
    %v3993 = vmul.f32 %v3947, 1.442695
    %v3994 = vpow.pop %v3993
    %v3995 = vmul.f32 %v3948, 1.442695
    %v3996 = vpow.pop %v3995
    %4013 = vrot.lane.b32.xlu0 %v3966, 4
    %v4014 = vpop.permute.xlu0 %4013
    %4015 = vrot.lane.b32.xlu0 %v3968, 4
    %v4016 = vpop.permute.xlu0 %4015
    %4017 = vrot.lane.b32.xlu0 %v3970, 4
    %v4018 = vpop.permute.xlu0 %4017
    %4019 = vrot.lane.b32.xlu0 %v3972, 4
    %v4020 = vpop.permute.xlu0 %4019
    %4021 = vrot.lane.b32.xlu0 %v3974, 4
    %v4022 = vpop.permute.xlu0 %4021
    %4023 = vrot.lane.b32.xlu0 %v3976, 4
    %v4024 = vpop.permute.xlu0 %4023
    %4025 = vrot.lane.b32.xlu0 %v3978, 4
    %v4026 = vpop.permute.xlu0 %4025
    %4027 = vrot.lane.b32.xlu0 %v3980, 4
    %v4028 = vpop.permute.xlu0 %4027
    %4029 = vrot.lane.b32.xlu0 %v3982, 4
    %v4030 = vpop.permute.xlu0 %4029
    %4031 = vrot.lane.b32.xlu0 %v3984, 4
    %v4032 = vpop.permute.xlu0 %4031
    %4033 = vrot.lane.b32.xlu0 %v3986, 4
    %v4034 = vpop.permute.xlu0 %4033
    %4035 = vrot.lane.b32.xlu0 %v3988, 4
    %v4036 = vpop.permute.xlu0 %4035
    %4037 = vrot.lane.b32.xlu0 %v3990, 4
    %v4038 = vpop.permute.xlu0 %4037
    %4039 = vrot.lane.b32.xlu0 %v3992, 4
    %v4040 = vpop.permute.xlu0 %4039
    %4041 = vrot.lane.b32.xlu0 %v3994, 4
    %v4042 = vpop.permute.xlu0 %4041
    %4043 = vrot.lane.b32.xlu0 %v3996, 4
    %v4044 = vpop.permute.xlu0 %4043
    %v4061 = vmul.f32 %v3949, %v4014
    %v4062 = vmul.f32 %v3950, %v4016
    %v4063 = vmul.f32 %v3951, %v4018
    %v4064 = vmul.f32 %v3952, %v4020
    %v4065 = vmul.f32 %v3953, %v4022
    %v4066 = vmul.f32 %v3954, %v4024
    %v4067 = vmul.f32 %v3955, %v4026
    %v4068 = vmul.f32 %v3956, %v4028
    %v4069 = vmul.f32 %v3957, %v4030
    %v4070 = vmul.f32 %v3958, %v4032
    %v4071 = vmul.f32 %v3959, %v4034
    %v4072 = vmul.f32 %v3960, %v4036
    %v4073 = vmul.f32 %v3961, %v4038
    %v4074 = vmul.f32 %v3962, %v4040
    %v4075 = vmul.f32 %v3963, %v4042
    %v4076 = vmul.f32 %v3964, %v4044
    %v4077 = vsel %vm1960, %v3933, 0.0
    %4078 = vadd.xlane.f32.xlu0 %v4077
    %v4079 = vpop.xlane.xlu0 %4078
    %v4080 = vsel %vm1960, %v3934, 0.0
    %4081 = vadd.xlane.f32.xlu0 %v4080
    %v4082 = vpop.xlane.xlu0 %4081
    %v4083 = vsel %vm1960, %v3935, 0.0
    %4084 = vadd.xlane.f32.xlu0 %v4083
    %v4085 = vpop.xlane.xlu0 %4084
    %v4086 = vsel %vm1960, %v3936, 0.0
    %4087 = vadd.xlane.f32.xlu0 %v4086
    %v4088 = vpop.xlane.xlu0 %4087
    %v4089 = vsel %vm1960, %v3937, 0.0
    %4090 = vadd.xlane.f32.xlu0 %v4089
    %v4091 = vpop.xlane.xlu0 %4090
    %v4092 = vsel %vm1960, %v3938, 0.0
    %4093 = vadd.xlane.f32.xlu0 %v4092
    %v4094 = vpop.xlane.xlu0 %4093
    %v4095 = vsel %vm1960, %v3939, 0.0
    %4096 = vadd.xlane.f32.xlu0 %v4095
    %v4097 = vpop.xlane.xlu0 %4096
    %v4098 = vsel %vm1960, %v3940, 0.0
    %4099 = vadd.xlane.f32.xlu0 %v4098
    %v4100 = vpop.xlane.xlu0 %4099
    %v4101 = vsel %vm1960, %v3941, 0.0
    %4102 = vadd.xlane.f32.xlu0 %v4101
    %v4103 = vpop.xlane.xlu0 %4102
    %v4104 = vsel %vm1960, %v3942, 0.0
    %4105 = vadd.xlane.f32.xlu0 %v4104
    %v4106 = vpop.xlane.xlu0 %4105
    %v4107 = vsel %vm1960, %v3943, 0.0
    %4108 = vadd.xlane.f32.xlu0 %v4107
    %v4109 = vpop.xlane.xlu0 %4108
    %v4110 = vsel %vm1960, %v3944, 0.0
    %4111 = vadd.xlane.f32.xlu0 %v4110
    %v4112 = vpop.xlane.xlu0 %4111
    %v4113 = vsel %vm1960, %v3945, 0.0
    %4114 = vadd.xlane.f32.xlu0 %v4113
    %v4115 = vpop.xlane.xlu0 %4114
    %v4116 = vsel %vm1960, %v3946, 0.0
    %4117 = vadd.xlane.f32.xlu0 %v4116
    %v4118 = vpop.xlane.xlu0 %4117
    %v4119 = vsel %vm1960, %v3947, 0.0
    %4120 = vadd.xlane.f32.xlu0 %v4119
    %v4121 = vpop.xlane.xlu0 %4120
    %v4122 = vsel %vm1960, %v3948, 0.0
    %4123 = vadd.xlane.f32.xlu0 %v4122
    %v4124 = vpop.xlane.xlu0 %4123
    %v4125 = vmul.f32 %v426, %v4079
    %v4126 = vmul.f32 %v427, %v4082
    %v4127 = vmul.f32 %v428, %v4085
    %v4128 = vmul.f32 %v429, %v4088
    %v4129 = vmul.f32 %v430, %v4091
    %v4130 = vmul.f32 %v431, %v4094
    %v4131 = vmul.f32 %v432, %v4097
    %v4132 = vmul.f32 %v433, %v4100
    %v4133 = vmul.f32 %v434, %v4103
    %v4134 = vmul.f32 %v435, %v4106
    %v4135 = vmul.f32 %v436, %v4109
    %v4136 = vmul.f32 %v437, %v4112
    %v4137 = vmul.f32 %v438, %v4115
    %v4138 = vmul.f32 %v439, %v4118
    %v4139 = vmul.f32 %v440, %v4121
    %v4140 = vmul.f32 %v441, %v4124
    %v4141 = vsel %vm458, %v4125, 0.0
    %v4142 = vsel %vm458, %v4126, 0.0
    %v4143 = vadd.f32 %v4141, %v4142
    %v4144 = vsel %vm458, %v4127, 0.0
    %v4145 = vadd.f32 %v4143, %v4144
    %v4146 = vsel %vm458, %v4128, 0.0
    %v4147 = vadd.f32 %v4145, %v4146
    %v4148 = vsel %vm458, %v4129, 0.0
    %v4149 = vadd.f32 %v4147, %v4148
    %v4150 = vsel %vm458, %v4130, 0.0
    %v4151 = vadd.f32 %v4149, %v4150
    %v4152 = vsel %vm458, %v4131, 0.0
    %v4153 = vadd.f32 %v4151, %v4152
    %v4154 = vsel %vm458, %v4132, 0.0
    %v4155 = vadd.f32 %v4153, %v4154
    %v4156 = vsel %vm458, %v4133, 0.0
    %v4157 = vadd.f32 %v4155, %v4156
    %v4158 = vsel %vm458, %v4134, 0.0
    %v4159 = vadd.f32 %v4157, %v4158
    %v4160 = vsel %vm458, %v4135, 0.0
    %v4161 = vadd.f32 %v4159, %v4160
    %v4162 = vsel %vm458, %v4136, 0.0
    %v4163 = vadd.f32 %v4161, %v4162
    %v4164 = vsel %vm458, %v4137, 0.0
    %v4165 = vadd.f32 %v4163, %v4164
    %v4166 = vsel %vm458, %v4138, 0.0
    %v4167 = vadd.f32 %v4165, %v4166
    %v4168 = vsel %vm458, %v4139, 0.0
    %v4169 = vadd.f32 %v4167, %v4168
    %v4170 = vsel %vm458, %v4140, 0.0
    %v4171 = vadd.f32 %v4169, %v4170
    %v4172 = vrot.slane %v4171, 4
    %v4173 = vadd.f32 %v4171, %v4172
    %v4174 = vrot.slane %v4173, 2
    %v4175 = vadd.f32 %v4173, %v4174
    %v4176 = vrot.slane %v4175, 1
    %v4177 = vadd.f32 %v4175, %v4176
    %v4178 = vadd.f32 %v496, %v4177
    %v4179 = vld [vmem:[%s10] sm:$0xff]
    %v4180 = vld [vmem:[%s10 + $0x8] sm:$0xff]
    %v4181 = vld [vmem:[%s10 + $0x10] sm:$0xff]
    %v4182 = vld [vmem:[%s10 + $0x18] sm:$0xff]
    %v4183 = vld [vmem:[%s10 + $0x20] sm:$0xf]
    %v4184 = vld [vmem:[%s11] sm:$0x1]
    %4201 = vrot.lane.b32.xlu0 %v4061, 124
    %v4202 = vpop.permute.xlu0 %4201
    %4203 = vrot.lane.b32.xlu0 %v4062, 124
    %v4204 = vpop.permute.xlu0 %4203
    %4205 = vrot.lane.b32.xlu0 %v4063, 124
    %v4206 = vpop.permute.xlu0 %4205
    %4207 = vrot.lane.b32.xlu0 %v4064, 124
    %v4208 = vpop.permute.xlu0 %4207
    %4209 = vrot.lane.b32.xlu0 %v4065, 124
    %v4210 = vpop.permute.xlu0 %4209
    %4211 = vrot.lane.b32.xlu0 %v4066, 124
    %v4212 = vpop.permute.xlu0 %4211
    %4213 = vrot.lane.b32.xlu0 %v4067, 124
    %v4214 = vpop.permute.xlu0 %4213
    %4215 = vrot.lane.b32.xlu0 %v4068, 124
    %v4216 = vpop.permute.xlu0 %4215
    %4217 = vrot.lane.b32.xlu0 %v4069, 124
    %v4218 = vpop.permute.xlu0 %4217
    %4219 = vrot.lane.b32.xlu0 %v4070, 124
    %v4220 = vpop.permute.xlu0 %4219
    %4221 = vrot.lane.b32.xlu0 %v4071, 124
    %v4222 = vpop.permute.xlu0 %4221
    %4223 = vrot.lane.b32.xlu0 %v4072, 124
    %v4224 = vpop.permute.xlu0 %4223
    %4225 = vrot.lane.b32.xlu0 %v4073, 124
    %v4226 = vpop.permute.xlu0 %4225
    %4227 = vrot.lane.b32.xlu0 %v4074, 124
    %v4228 = vpop.permute.xlu0 %4227
    %4229 = vrot.lane.b32.xlu0 %v4075, 124
    %v4230 = vpop.permute.xlu0 %4229
    %4231 = vrot.lane.b32.xlu0 %v4076, 124
    %v4232 = vpop.permute.xlu0 %4231
    %4249 = vmatprep.subr.mxu0 0.0
    %4250 = vmatpush1.msra.mxu0 %v4202
    %4251 = vmatprep.subr.mxu0 0.0
    %4252 = vmatpush1.msra.mxu0 %v4204
    %4253 = vmatprep.subr.mxu0 0.0
    %4254 = vmatpush1.msra.mxu0 %v4206
    %4255 = vmatprep.subr.mxu0 0.0
    %4256 = vmatpush1.msra.mxu0 %v4208
    %4257 = vmatprep.subr.mxu0 0.0
    %4258 = vmatpush1.msra.mxu0 %v4210
    %4259 = vmatprep.subr.mxu0 0.0
    %4260 = vmatpush1.msra.mxu0 %v4212
    %4261 = vmatprep.subr.mxu0 0.0
    %4262 = vmatpush1.msra.mxu0 %v4214
    %4263 = vmatprep.subr.mxu0 0.0
    %4264 = vmatpush1.msra.mxu0 %v4216
    %4265 = vmatprep.subr.mxu0 0.0
    %4266 = vmatpush1.msra.mxu0 %v4218
    %4267 = vmatprep.subr.mxu0 0.0
    %4268 = vmatpush1.msra.mxu0 %v4220
    %4269 = vmatprep.subr.mxu0 0.0
    %4270 = vmatpush1.msra.mxu0 %v4222
    %4271 = vmatprep.subr.mxu0 0.0
    %4272 = vmatpush1.msra.mxu0 %v4224
    %4273 = vmatprep.subr.mxu0 0.0
    %4274 = vmatpush1.msra.mxu0 %v4226
    %4275 = vmatprep.subr.mxu0 0.0
    %4276 = vmatpush1.msra.mxu0 %v4228
    %4277 = vmatprep.subr.mxu0 0.0
    %4278 = vmatpush1.msra.mxu0 %v4230
    %4279 = vmatprep.subr.mxu0 0.0
    %4280 = vmatpush1.msra.mxu0 %v4232
    %4281 = vmatprep.subr.mxu0 0.0
    %4282 = vmatpush1.msra.mxu0 0.0
    %4283 = vmatprep.subr.mxu0 0.0
    %4284 = vmatpush1.msra.mxu0 0.0
    %4285 = vmatprep.subr.mxu0 0.0
    %4286 = vmatpush1.msra.mxu0 0.0
    %4287 = vmatprep.subr.mxu0 0.0
    %4288 = vmatpush1.msra.mxu0 0.0
    %4289 = vmatprep.subr.mxu0 0.0
    %4290 = vmatpush1.msra.mxu0 0.0
    %4291 = vmatprep.subr.mxu0 0.0
    %4292 = vmatpush1.msra.mxu0 0.0
    %4293 = vmatprep.subr.mxu0 0.0
    %4294 = vmatpush1.msra.mxu0 0.0
    %4295 = vmatprep.subr.mxu0 0.0
    %4296 = vmatpush1.msra.mxu0 0.0
    %4297 = vmatprep.subr.mxu0 0.0
    %4298 = vmatpush1.msra.mxu0 0.0
    %4299 = vmatprep.subr.mxu0 0.0
    %4300 = vmatpush1.msra.mxu0 0.0
    %4301 = vmatprep.subr.mxu0 0.0
    %4302 = vmatpush1.msra.mxu0 0.0
    %4303 = vmatprep.subr.mxu0 0.0
    %4304 = vmatpush1.msra.mxu0 0.0
    %4305 = vmatprep.subr.mxu0 0.0
    %4306 = vmatpush1.msra.mxu0 0.0
    %4307 = vmatprep.subr.mxu0 0.0
    %4308 = vmatpush1.msra.mxu0 0.0
    %4309 = vmatprep.subr.mxu0 0.0
    %4310 = vmatpush1.msra.mxu0 0.0
    %4311 = vmatprep.subr.mxu0 0.0
    %4312 = vmatpush1.msra.mxu0 0.0
    %4313 = vmatprep.mubr.f32.mxu0 0.0
    %4314 = vmatmul.mubr.f32.gmra.mrb[0].mxu0 %v513
    %v4315 = vpop.f32.mrb[0].mxu0
    %v4316 = vadd.f32 0.0, %v4315
    %v4317 = vpop.f32.mrb[0].mxu0
    %4318 = vmatprep.mubr.f32.mxu0 0.0
    %4319 = vmatmul.mubr.f32.gmra.mrb[0].mxu0 %v514
    %v4320 = vpop.f32.mrb[0].mxu0
    %v4321 = vadd.f32 0.0, %v4320
    %v4322 = vpop.f32.mrb[0].mxu0
    %4323 = vmatprep.mubr.f32.mxu0 0.0
    %4324 = vmatmul.mubr.f32.gmra.mrb[0].mxu0 %v515
    %v4325 = vpop.f32.mrb[0].mxu0
    %v4326 = vadd.f32 0.0, %v4325
    %v4327 = vpop.f32.mrb[0].mxu0
    %4328 = vmatprep.mubr.f32.mxu0 0.0
    %4329 = vmatmul.mubr.f32.gmra.mrb[0].mxu0 %v516
    %v4330 = vpop.f32.mrb[0].mxu0
    %v4331 = vadd.f32 0.0, %v4330
    %v4332 = vpop.f32.mrb[0].mxu0
    %4333 = vmatprep.mubr.f32.mxu0 0.0
    %4334 = vmatmul.mubr.f32.gmra.mrb[0].mxu0 %v517
    %v4335 = vpop.f32.mrb[0].mxu0
    %v4336 = vadd.f32 0.0, %v4335
    %v4337 = vpop.f32.mrb[0].mxu0
    %4338 = vmatprep.mubr.f32.mxu0 0.0
    %4339 = vmatmul.mubr.f32.gmra.mrb[0].mxu0 %v518
    %v4340 = vpop.f32.mrb[0].mxu0
    %v4341 = vadd.f32 0.0, %v4340
    %v4342 = vpop.f32.mrb[0].mxu0
    %4343 = vmatprep.mubr.f32.mxu0 0.0
    %4344 = vmatmul.mubr.f32.gmra.mrb[0].mxu0 %v519
    %v4345 = vpop.f32.mrb[0].mxu0
    %v4346 = vadd.f32 0.0, %v4345
    %v4347 = vpop.f32.mrb[0].mxu0
    %4348 = vmatprep.mubr.f32.mxu0 0.0
    %4349 = vmatmul.mubr.f32.gmra.mrb[0].mxu0 %v520
    %v4350 = vpop.f32.mrb[0].mxu0
    %v4351 = vadd.f32 0.0, %v4350
    %v4352 = vpop.f32.mrb[0].mxu0
    %4353 = vmatprep.mubr.f32.mxu0 0.0
    %4354 = vmatmul.mubr.f32.gmra.mrb[0].mxu0 %v521
    %v4355 = vpop.f32.mrb[0].mxu0
    %v4356 = vadd.f32 0.0, %v4355
    %v4357 = vpop.f32.mrb[0].mxu0
    %4358 = vmatprep.mubr.f32.mxu0 0.0
    %4359 = vmatmul.mubr.f32.gmra.mrb[0].mxu0 %v522
    %v4360 = vpop.f32.mrb[0].mxu0
    %v4361 = vadd.f32 0.0, %v4360
    %v4362 = vpop.f32.mrb[0].mxu0
    %4363 = vmatprep.mubr.f32.mxu0 0.0
    %4364 = vmatmul.mubr.f32.gmra.mrb[0].mxu0 %v523
    %v4365 = vpop.f32.mrb[0].mxu0
    %v4366 = vadd.f32 0.0, %v4365
    %v4367 = vpop.f32.mrb[0].mxu0
    %4368 = vmatprep.mubr.f32.mxu0 0.0
    %4369 = vmatmul.mubr.f32.gmra.mrb[0].mxu0 %v524
    %v4370 = vpop.f32.mrb[0].mxu0
    %v4371 = vadd.f32 0.0, %v4370
    %v4372 = vpop.f32.mrb[0].mxu0
    %4373 = vmatprep.mubr.f32.mxu0 0.0
    %4374 = vmatmul.mubr.f32.gmra.mrb[0].mxu0 %v525
    %v4375 = vpop.f32.mrb[0].mxu0
    %v4376 = vadd.f32 0.0, %v4375
    %v4377 = vpop.f32.mrb[0].mxu0
    %4378 = vmatprep.mubr.f32.mxu0 0.0
    %4379 = vmatmul.mubr.f32.gmra.mrb[0].mxu0 %v526
    %v4380 = vpop.f32.mrb[0].mxu0
    %v4381 = vadd.f32 0.0, %v4380
    %v4382 = vpop.f32.mrb[0].mxu0
    %4383 = vmatprep.mubr.f32.mxu0 0.0
    %4384 = vmatmul.mubr.f32.gmra.mrb[0].mxu0 %v527
    %v4385 = vpop.f32.mrb[0].mxu0
    %v4386 = vadd.f32 0.0, %v4385
    %v4387 = vpop.f32.mrb[0].mxu0
    %4388 = vmatprep.mubr.f32.mxu0 0.0
    %4389 = vmatmul.mubr.f32.gmra.mrb[0].mxu0 %v528
    %v4390 = vpop.f32.mrb[0].mxu0
    %v4391 = vadd.f32 0.0, %v4390
    %v4392 = vpop.f32.mrb[0].mxu0
    %4393 = vmatprep.mubr.f32.mxu0 0.0
    %4394 = vmatmul.mubr.f32.gmra.mrb[0].mxu0 %v529
    %v4395 = vpop.f32.mrb[0].mxu0
    %v4396 = vadd.f32 0.0, %v4395
    %v4397 = vpop.f32.mrb[0].mxu0
    %4398 = vmatprep.mubr.f32.mxu0 0.0
    %4399 = vmatmul.mubr.f32.gmra.mrb[0].mxu0 %v530
    %v4400 = vpop.f32.mrb[0].mxu0
    %v4401 = vadd.f32 0.0, %v4400
    %v4402 = vpop.f32.mrb[0].mxu0
    %4403 = vmatprep.mubr.f32.mxu0 0.0
    %4404 = vmatmul.mubr.f32.gmra.mrb[0].mxu0 %v531
    %v4405 = vpop.f32.mrb[0].mxu0
    %v4406 = vadd.f32 0.0, %v4405
    %v4407 = vpop.f32.mrb[0].mxu0
    %4408 = vmatprep.mubr.f32.mxu0 0.0
    %4409 = vmatmul.mubr.f32.gmra.mrb[0].mxu0 %v532
    %v4410 = vpop.f32.mrb[0].mxu0
    %v4411 = vadd.f32 0.0, %v4410
    %v4412 = vpop.f32.mrb[0].mxu0
    %4413 = vmatprep.mubr.f32.mxu0 0.0
    %4414 = vmatmul.mubr.f32.gmra.mrb[0].mxu0 %v533
    %v4415 = vpop.f32.mrb[0].mxu0
    %v4416 = vadd.f32 0.0, %v4415
    %v4417 = vpop.f32.mrb[0].mxu0
    %4418 = vmatprep.mubr.f32.mxu0 0.0
    %4419 = vmatmul.mubr.f32.gmra.mrb[0].mxu0 %v534
    %v4420 = vpop.f32.mrb[0].mxu0
    %v4421 = vadd.f32 0.0, %v4420
    %v4422 = vpop.f32.mrb[0].mxu0
    %4423 = vmatprep.mubr.f32.mxu0 0.0
    %4424 = vmatmul.mubr.f32.gmra.mrb[0].mxu0 %v535
    %v4425 = vpop.f32.mrb[0].mxu0
    %v4426 = vadd.f32 0.0, %v4425
    %v4427 = vpop.f32.mrb[0].mxu0
    %4428 = vmatprep.mubr.f32.mxu0 0.0
    %4429 = vmatmul.mubr.f32.gmra.mrb[0].mxu0 %v536
    %v4430 = vpop.f32.mrb[0].mxu0
    %v4431 = vadd.f32 0.0, %v4430
    %v4432 = vpop.f32.mrb[0].mxu0
    %4433 = vmatprep.mubr.f32.mxu0 0.0
    %4434 = vmatmul.mubr.f32.gmra.mrb[0].mxu0 %v537
    %v4435 = vpop.f32.mrb[0].mxu0
    %v4436 = vadd.f32 0.0, %v4435
    %v4437 = vpop.f32.mrb[0].mxu0
    %4438 = vmatprep.mubr.f32.mxu0 0.0
    %4439 = vmatmul.mubr.f32.gmra.mrb[0].mxu0 %v538
    %v4440 = vpop.f32.mrb[0].mxu0
    %v4441 = vadd.f32 0.0, %v4440
    %v4442 = vpop.f32.mrb[0].mxu0
    %4443 = vmatprep.mubr.f32.mxu0 0.0
    %4444 = vmatmul.mubr.f32.gmra.mrb[0].mxu0 %v539
    %v4445 = vpop.f32.mrb[0].mxu0
    %v4446 = vadd.f32 0.0, %v4445
    %v4447 = vpop.f32.mrb[0].mxu0
    %4448 = vmatprep.mubr.f32.mxu0 0.0
    %4449 = vmatmul.mubr.f32.gmra.mrb[0].mxu0 %v540
    %v4450 = vpop.f32.mrb[0].mxu0
    %v4451 = vadd.f32 0.0, %v4450
    %v4452 = vpop.f32.mrb[0].mxu0
    %4453 = vmatprep.mubr.f32.mxu0 0.0
    %4454 = vmatmul.mubr.f32.gmra.mrb[0].mxu0 %v541
    %v4455 = vpop.f32.mrb[0].mxu0
    %v4456 = vadd.f32 0.0, %v4455
    %v4457 = vpop.f32.mrb[0].mxu0
    %4458 = vmatprep.mubr.f32.mxu0 0.0
    %4459 = vmatmul.mubr.f32.gmra.mrb[0].mxu0 %v542
    %v4460 = vpop.f32.mrb[0].mxu0
    %v4461 = vadd.f32 0.0, %v4460
    %v4462 = vpop.f32.mrb[0].mxu0
    %4463 = vmatprep.mubr.f32.mxu0 0.0
    %4464 = vmatmul.mubr.f32.gmra.mrb[0].mxu0 %v543
    %v4465 = vpop.f32.mrb[0].mxu0
    %v4466 = vadd.f32 0.0, %v4465
    %v4467 = vpop.f32.mrb[0].mxu0
    %4468 = vmatprep.mubr.f32.mxu0 0.0
    %4469 = vmatmul.mubr.f32.gmra.mrb[0].mxu0 %v544
    %v4470 = vpop.f32.mrb[0].mxu0
    %v4471 = vadd.f32 0.0, %v4470
    %v4472 = vpop.f32.mrb[0].mxu0
    %4473 = vmatprep.mubr.f32.mxu0 0.0
    %4474 = vmatmul.mubr.f32.gmra.mrb[0].mxu0 %v545
    %v4475 = vpop.f32.mrb[0].mxu0
    %v4476 = vadd.f32 0.0, %v4475
    %v4477 = vpop.f32.mrb[0].mxu0
    %4478 = vmatprep.mubr.f32.mxu0 0.0
    %4479 = vmatmul.mubr.f32.gmra.mrb[0].mxu0 %v546
    %v4480 = vpop.f32.mrb[0].mxu0
    %v4481 = vadd.f32 0.0, %v4480
    %v4482 = vpop.f32.mrb[0].mxu0
    %4483 = vmatprep.mubr.f32.mxu0 0.0
    %4484 = vmatmul.mubr.f32.gmra.mrb[0].mxu0 %v547
    %v4485 = vpop.f32.mrb[0].mxu0
    %v4486 = vadd.f32 0.0, %v4485
    %v4487 = vpop.f32.mrb[0].mxu0
    %4488 = vmatprep.mubr.f32.mxu0 0.0
    %4489 = vmatmul.mubr.f32.gmra.mrb[0].mxu0 %v548
    %v4490 = vpop.f32.mrb[0].mxu0
    %v4491 = vadd.f32 0.0, %v4490
    %v4492 = vpop.f32.mrb[0].mxu0
    %4493 = vmatprep.mubr.f32.mxu0 0.0
    %4494 = vmatmul.mubr.f32.gmra.mrb[0].mxu0 %v549
    %v4495 = vpop.f32.mrb[0].mxu0
    %v4496 = vadd.f32 0.0, %v4495
    %v4497 = vpop.f32.mrb[0].mxu0
    %4498 = vmatprep.mubr.f32.mxu0 0.0
    %4499 = vmatmul.mubr.f32.gmra.mrb[0].mxu0 %v550
    %v4500 = vpop.f32.mrb[0].mxu0
    %v4501 = vadd.f32 0.0, %v4500
    %v4502 = vpop.f32.mrb[0].mxu0
    %4503 = vmatprep.mubr.f32.mxu0 0.0
    %4504 = vmatmul.mubr.f32.gmra.mrb[0].mxu0 %v551
    %v4505 = vpop.f32.mrb[0].mxu0
    %v4506 = vadd.f32 0.0, %v4505
    %v4507 = vpop.f32.mrb[0].mxu0
    %4508 = vmatprep.mubr.f32.mxu0 0.0
    %4509 = vmatmul.mubr.f32.gmra.mrb[0].mxu0 %v552
    %v4510 = vpop.f32.mrb[0].mxu0
    %v4511 = vadd.f32 0.0, %v4510
    %v4512 = vpop.f32.mrb[0].mxu0
    %4513 = vmatprep.mubr.f32.mxu0 0.0
    %4514 = vmatmul.mubr.f32.gmra.mrb[0].mxu0 %v553
    %v4515 = vpop.f32.mrb[0].mxu0
    %v4516 = vadd.f32 0.0, %v4515
    %v4517 = vpop.f32.mrb[0].mxu0
    %4518 = vmatprep.mubr.f32.mxu0 0.0
    %4519 = vmatmul.mubr.f32.gmra.mrb[0].mxu0 %v554
    %v4520 = vpop.f32.mrb[0].mxu0
    %v4521 = vadd.f32 0.0, %v4520
    %v4522 = vpop.f32.mrb[0].mxu0
    %4523 = vmatprep.mubr.f32.mxu0 0.0
    %4524 = vmatmul.mubr.f32.gmra.mrb[0].mxu0 %v555
    %v4525 = vpop.f32.mrb[0].mxu0
    %v4526 = vadd.f32 0.0, %v4525
    %v4527 = vpop.f32.mrb[0].mxu0
    %4528 = vmatprep.mubr.f32.mxu0 0.0
    %4529 = vmatmul.mubr.f32.gmra.mrb[0].mxu0 %v556
    %v4530 = vpop.f32.mrb[0].mxu0
    %v4531 = vadd.f32 0.0, %v4530
    %v4532 = vpop.f32.mrb[0].mxu0
    %4533 = vmatprep.mubr.f32.mxu0 0.0
    %4534 = vmatmul.mubr.f32.gmra.mrb[0].mxu0 %v557
    %v4535 = vpop.f32.mrb[0].mxu0
    %v4536 = vadd.f32 0.0, %v4535
    %v4537 = vpop.f32.mrb[0].mxu0
    %4538 = vmatprep.mubr.f32.mxu0 0.0
    %4539 = vmatmul.mubr.f32.gmra.mrb[0].mxu0 %v558
    %v4540 = vpop.f32.mrb[0].mxu0
    %v4541 = vadd.f32 0.0, %v4540
    %v4542 = vpop.f32.mrb[0].mxu0
    %4543 = vmatprep.mubr.f32.mxu0 0.0
    %4544 = vmatmul.mubr.f32.gmra.mrb[0].mxu0 %v559
    %v4545 = vpop.f32.mrb[0].mxu0
    %v4546 = vadd.f32 0.0, %v4545
    %v4547 = vpop.f32.mrb[0].mxu0
    %4548 = vmatprep.mubr.f32.mxu0 0.0
    %4549 = vmatmul.mubr.f32.gmra.mrb[0].mxu0 %v560
    %v4550 = vpop.f32.mrb[0].mxu0
    %v4551 = vadd.f32 0.0, %v4550
    %v4552 = vpop.f32.mrb[0].mxu0
    %4553 = vmatprep.mubr.f32.mxu0 0.0
    %4554 = vmatmul.mubr.f32.gmra.mrb[0].mxu0 %v561
    %v4555 = vpop.f32.mrb[0].mxu0
    %v4556 = vadd.f32 0.0, %v4555
    %v4557 = vpop.f32.mrb[0].mxu0
    %4558 = vmatprep.mubr.f32.mxu0 0.0
    %4559 = vmatmul.mubr.f32.gmra.mrb[0].mxu0 %v562
    %v4560 = vpop.f32.mrb[0].mxu0
    %v4561 = vadd.f32 0.0, %v4560
    %v4562 = vpop.f32.mrb[0].mxu0
    %4563 = vmatprep.mubr.f32.mxu0 0.0
    %4564 = vmatmul.mubr.f32.gmra.mrb[0].mxu0 %v563
    %v4565 = vpop.f32.mrb[0].mxu0
    %v4566 = vadd.f32 0.0, %v4565
    %v4567 = vpop.f32.mrb[0].mxu0
    %4568 = vmatprep.mubr.f32.mxu0 0.0
    %4569 = vmatmul.mubr.f32.gmra.mrb[0].mxu0 %v564
    %v4570 = vpop.f32.mrb[0].mxu0
    %v4571 = vadd.f32 0.0, %v4570
    %v4572 = vpop.f32.mrb[0].mxu0
    %4573 = vmatprep.mubr.f32.mxu0 0.0
    %4574 = vmatmul.mubr.f32.gmra.mrb[0].mxu0 %v565
    %v4575 = vpop.f32.mrb[0].mxu0
    %v4576 = vadd.f32 0.0, %v4575
    %v4577 = vpop.f32.mrb[0].mxu0
    %4578 = vmatprep.mubr.f32.mxu0 0.0
    %4579 = vmatmul.mubr.f32.gmra.mrb[0].mxu0 %v566
    %v4580 = vpop.f32.mrb[0].mxu0
    %v4581 = vadd.f32 0.0, %v4580
    %v4582 = vpop.f32.mrb[0].mxu0
    %4583 = vmatprep.mubr.f32.mxu0 0.0
    %4584 = vmatmul.mubr.f32.gmra.mrb[0].mxu0 %v567
    %v4585 = vpop.f32.mrb[0].mxu0
    %v4586 = vadd.f32 0.0, %v4585
    %v4587 = vpop.f32.mrb[0].mxu0
    %4588 = vmatprep.mubr.f32.mxu0 0.0
    %4589 = vmatmul.mubr.f32.gmra.mrb[0].mxu0 %v568
    %v4590 = vpop.f32.mrb[0].mxu0
    %v4591 = vadd.f32 0.0, %v4590
    %v4592 = vpop.f32.mrb[0].mxu0
    %4593 = vmatprep.mubr.f32.mxu0 0.0
    %4594 = vmatmul.mubr.f32.gmra.mrb[0].mxu0 %v569
    %v4595 = vpop.f32.mrb[0].mxu0
    %v4596 = vadd.f32 0.0, %v4595
    %v4597 = vpop.f32.mrb[0].mxu0
    %4598 = vmatprep.mubr.f32.mxu0 0.0
    %4599 = vmatmul.mubr.f32.gmra.mrb[0].mxu0 %v570
    %v4600 = vpop.f32.mrb[0].mxu0
    %v4601 = vadd.f32 0.0, %v4600
    %v4602 = vpop.f32.mrb[0].mxu0
    %4603 = vmatprep.mubr.f32.mxu0 0.0
    %4604 = vmatmul.mubr.f32.gmra.mrb[0].mxu0 %v571
    %v4605 = vpop.f32.mrb[0].mxu0
    %v4606 = vadd.f32 0.0, %v4605
    %v4607 = vpop.f32.mrb[0].mxu0
    %4608 = vmatprep.mubr.f32.mxu0 0.0
    %4609 = vmatmul.mubr.f32.gmra.mrb[0].mxu0 %v572
    %v4610 = vpop.f32.mrb[0].mxu0
    %v4611 = vadd.f32 0.0, %v4610
    %v4612 = vpop.f32.mrb[0].mxu0
    %4613 = vmatprep.mubr.f32.mxu0 0.0
    %4614 = vmatmul.mubr.f32.gmra.mrb[0].mxu0 %v573
    %v4615 = vpop.f32.mrb[0].mxu0
    %v4616 = vadd.f32 0.0, %v4615
    %v4617 = vpop.f32.mrb[0].mxu0
    %4618 = vmatprep.mubr.f32.mxu0 0.0
    %4619 = vmatmul.mubr.f32.gmra.mrb[0].mxu0 %v574
    %v4620 = vpop.f32.mrb[0].mxu0
    %v4621 = vadd.f32 0.0, %v4620
    %v4622 = vpop.f32.mrb[0].mxu0
    %4623 = vmatprep.mubr.f32.mxu0 0.0
    %4624 = vmatmul.mubr.f32.gmra.mrb[0].mxu0 %v575
    %v4625 = vpop.f32.mrb[0].mxu0
    %v4626 = vadd.f32 0.0, %v4625
    %v4627 = vpop.f32.mrb[0].mxu0
    %4628 = vmatprep.mubr.f32.mxu0 0.0
    %4629 = vmatmul.mubr.f32.gmra.mrb[0].mxu0 %v576
    %v4630 = vpop.f32.mrb[0].mxu0
    %v4631 = vadd.f32 0.0, %v4630
    %v4632 = vpop.f32.mrb[0].mxu0
    %4633 = vmatprep.mubr.f32.mxu0 0.0
    %4634 = vmatmul.mubr.f32.gmra.mrb[0].mxu0 %v577
    %v4635 = vpop.f32.mrb[0].mxu0
    %v4636 = vadd.f32 0.0, %v4635
    %v4637 = vpop.f32.mrb[0].mxu0
    %4638 = vmatprep.mubr.f32.mxu0 0.0
    %4639 = vmatmul.mubr.f32.gmra.mrb[0].mxu0 %v578
    %v4640 = vpop.f32.mrb[0].mxu0
    %v4641 = vadd.f32 0.0, %v4640
    %v4642 = vpop.f32.mrb[0].mxu0
    %4643 = vmatprep.mubr.f32.mxu0 0.0
    %4644 = vmatmul.mubr.f32.gmra.mrb[0].mxu0 %v579
    %v4645 = vpop.f32.mrb[0].mxu0
    %v4646 = vadd.f32 0.0, %v4645
    %v4647 = vpop.f32.mrb[0].mxu0
    %4648 = vmatprep.mubr.f32.mxu0 0.0
    %4649 = vmatmul.mubr.f32.gmra.mrb[0].mxu0 %v580
    %v4650 = vpop.f32.mrb[0].mxu0
    %v4651 = vadd.f32 0.0, %v4650
    %v4652 = vpop.f32.mrb[0].mxu0
    %4653 = vmatprep.mubr.f32.mxu0 0.0
    %4654 = vmatmul.mubr.f32.gmra.mrb[0].mxu0 %v581
    %v4655 = vpop.f32.mrb[0].mxu0
    %v4656 = vadd.f32 0.0, %v4655
    %v4657 = vpop.f32.mrb[0].mxu0
    %4658 = vmatprep.mubr.f32.mxu0 0.0
    %4659 = vmatmul.mubr.f32.gmra.mrb[0].mxu0 %v582
    %v4660 = vpop.f32.mrb[0].mxu0
    %v4661 = vadd.f32 0.0, %v4660
    %v4662 = vpop.f32.mrb[0].mxu0
    %4663 = vmatprep.mubr.f32.mxu0 0.0
    %4664 = vmatmul.mubr.f32.gmra.mrb[0].mxu0 %v583
    %v4665 = vpop.f32.mrb[0].mxu0
    %v4666 = vadd.f32 0.0, %v4665
    %v4667 = vpop.f32.mrb[0].mxu0
    %4668 = vmatprep.mubr.f32.mxu0 0.0
    %4669 = vmatmul.mubr.f32.gmra.mrb[0].mxu0 %v584
    %v4670 = vpop.f32.mrb[0].mxu0
    %v4671 = vadd.f32 0.0, %v4670
    %v4672 = vpop.f32.mrb[0].mxu0
    %4673 = vmatprep.mubr.f32.mxu0 0.0
    %4674 = vmatmul.mubr.f32.gmra.mrb[0].mxu0 %v585
    %v4675 = vpop.f32.mrb[0].mxu0
    %v4676 = vadd.f32 0.0, %v4675
    %v4677 = vpop.f32.mrb[0].mxu0
    %4678 = vmatprep.mubr.f32.mxu0 0.0
    %4679 = vmatmul.mubr.f32.gmra.mrb[0].mxu0 %v586
    %v4680 = vpop.f32.mrb[0].mxu0
    %v4681 = vadd.f32 0.0, %v4680
    %v4682 = vpop.f32.mrb[0].mxu0
    %4683 = vmatprep.mubr.f32.mxu0 0.0
    %4684 = vmatmul.mubr.f32.gmra.mrb[0].mxu0 %v587
    %v4685 = vpop.f32.mrb[0].mxu0
    %v4686 = vadd.f32 0.0, %v4685
    %v4687 = vpop.f32.mrb[0].mxu0
    %4688 = vmatprep.mubr.f32.mxu0 0.0
    %4689 = vmatmul.mubr.f32.gmra.mrb[0].mxu0 %v588
    %v4690 = vpop.f32.mrb[0].mxu0
    %v4691 = vadd.f32 0.0, %v4690
    %v4692 = vpop.f32.mrb[0].mxu0
    %4693 = vmatprep.mubr.f32.mxu0 0.0
    %4694 = vmatmul.mubr.f32.gmra.mrb[0].mxu0 %v589
    %v4695 = vpop.f32.mrb[0].mxu0
    %v4696 = vadd.f32 0.0, %v4695
    %v4697 = vpop.f32.mrb[0].mxu0
    %4698 = vmatprep.mubr.f32.mxu0 0.0
    %4699 = vmatmul.mubr.f32.gmra.mrb[0].mxu0 %v590
    %v4700 = vpop.f32.mrb[0].mxu0
    %v4701 = vadd.f32 0.0, %v4700
    %v4702 = vpop.f32.mrb[0].mxu0
    %4703 = vmatprep.mubr.f32.mxu0 0.0
    %4704 = vmatmul.mubr.f32.gmra.mrb[0].mxu0 %v591
    %v4705 = vpop.f32.mrb[0].mxu0
    %v4706 = vadd.f32 0.0, %v4705
    %v4707 = vpop.f32.mrb[0].mxu0
    %4708 = vmatprep.mubr.f32.mxu0 0.0
    %4709 = vmatmul.mubr.f32.gmra.mrb[0].mxu0 %v592
    %v4710 = vpop.f32.mrb[0].mxu0
    %v4711 = vadd.f32 0.0, %v4710
    %v4712 = vpop.f32.mrb[0].mxu0
    %4713 = vmatprep.mubr.f32.mxu0 0.0
    %4714 = vmatmul.mubr.f32.gmra.mrb[0].mxu0 %v593
    %v4715 = vpop.f32.mrb[0].mxu0
    %v4716 = vadd.f32 0.0, %v4715
    %v4717 = vpop.f32.mrb[0].mxu0
    %4718 = vmatprep.mubr.f32.mxu0 0.0
    %4719 = vmatmul.mubr.f32.gmra.mrb[0].mxu0 %v594
    %v4720 = vpop.f32.mrb[0].mxu0
    %v4721 = vadd.f32 0.0, %v4720
    %v4722 = vpop.f32.mrb[0].mxu0
    %4723 = vmatprep.mubr.f32.mxu0 0.0
    %4724 = vmatmul.mubr.f32.gmra.mrb[0].mxu0 %v595
    %v4725 = vpop.f32.mrb[0].mxu0
    %v4726 = vadd.f32 0.0, %v4725
    %v4727 = vpop.f32.mrb[0].mxu0
    %4728 = vmatprep.mubr.f32.mxu0 0.0
    %4729 = vmatmul.mubr.f32.gmra.mrb[0].mxu0 %v596
    %v4730 = vpop.f32.mrb[0].mxu0
    %v4731 = vadd.f32 0.0, %v4730
    %v4732 = vpop.f32.mrb[0].mxu0
    %4733 = vmatprep.mubr.f32.mxu0 0.0
    %4734 = vmatmul.mubr.f32.gmra.mrb[0].mxu0 %v597
    %v4735 = vpop.f32.mrb[0].mxu0
    %v4736 = vadd.f32 0.0, %v4735
    %v4737 = vpop.f32.mrb[0].mxu0
    %4738 = vmatprep.mubr.f32.mxu0 0.0
    %4739 = vmatmul.mubr.f32.gmra.mrb[0].mxu0 %v598
    %v4740 = vpop.f32.mrb[0].mxu0
    %v4741 = vadd.f32 0.0, %v4740
    %v4742 = vpop.f32.mrb[0].mxu0
    %4743 = vmatprep.mubr.f32.mxu0 0.0
    %4744 = vmatmul.mubr.f32.gmra.mrb[0].mxu0 %v599
    %v4745 = vpop.f32.mrb[0].mxu0
    %v4746 = vadd.f32 0.0, %v4745
    %v4747 = vpop.f32.mrb[0].mxu0
    %4748 = vmatprep.mubr.f32.mxu0 0.0
    %4749 = vmatmul.mubr.f32.gmra.mrb[0].mxu0 %v600
    %v4750 = vpop.f32.mrb[0].mxu0
    %v4751 = vadd.f32 0.0, %v4750
    %v4752 = vpop.f32.mrb[0].mxu0
    %4753 = vmatprep.mubr.f32.mxu0 0.0
    %4754 = vmatmul.mubr.f32.gmra.mrb[0].mxu0 %v601
    %v4755 = vpop.f32.mrb[0].mxu0
    %v4756 = vadd.f32 0.0, %v4755
    %v4757 = vpop.f32.mrb[0].mxu0
    %4758 = vmatprep.mubr.f32.mxu0 0.0
    %4759 = vmatmul.mubr.f32.gmra.mrb[0].mxu0 %v602
    %v4760 = vpop.f32.mrb[0].mxu0
    %v4761 = vadd.f32 0.0, %v4760
    %v4762 = vpop.f32.mrb[0].mxu0
    %4763 = vmatprep.mubr.f32.mxu0 0.0
    %4764 = vmatmul.mubr.f32.gmra.mrb[0].mxu0 %v603
    %v4765 = vpop.f32.mrb[0].mxu0
    %v4766 = vadd.f32 0.0, %v4765
    %v4767 = vpop.f32.mrb[0].mxu0
    %4768 = vmatprep.mubr.f32.mxu0 0.0
    %4769 = vmatmul.mubr.f32.gmra.mrb[0].mxu0 %v604
    %v4770 = vpop.f32.mrb[0].mxu0
    %v4771 = vadd.f32 0.0, %v4770
    %v4772 = vpop.f32.mrb[0].mxu0
    %4773 = vmatprep.mubr.f32.mxu0 0.0
    %4774 = vmatmul.mubr.f32.gmra.mrb[0].mxu0 %v605
    %v4775 = vpop.f32.mrb[0].mxu0
    %v4776 = vadd.f32 0.0, %v4775
    %v4777 = vpop.f32.mrb[0].mxu0
    %4778 = vmatprep.mubr.f32.mxu0 0.0
    %4779 = vmatmul.mubr.f32.gmra.mrb[0].mxu0 %v606
    %v4780 = vpop.f32.mrb[0].mxu0
    %v4781 = vadd.f32 0.0, %v4780
    %v4782 = vpop.f32.mrb[0].mxu0
    %4783 = vmatprep.mubr.f32.mxu0 0.0
    %4784 = vmatmul.mubr.f32.gmra.mrb[0].mxu0 %v607
    %v4785 = vpop.f32.mrb[0].mxu0
    %v4786 = vadd.f32 0.0, %v4785
    %v4787 = vpop.f32.mrb[0].mxu0
    %4788 = vmatprep.mubr.f32.mxu0 0.0
    %4789 = vmatmul.mubr.f32.gmra.mrb[0].mxu0 %v608
    %v4790 = vpop.f32.mrb[0].mxu0
    %v4791 = vadd.f32 0.0, %v4790
    %v4792 = vpop.f32.mrb[0].mxu0
    %4793 = vmatprep.mubr.f32.mxu0 0.0
    %4794 = vmatmul.mubr.f32.gmra.mrb[0].mxu0 %v609
    %v4795 = vpop.f32.mrb[0].mxu0
    %v4796 = vadd.f32 0.0, %v4795
    %v4797 = vpop.f32.mrb[0].mxu0
    %4798 = vmatprep.mubr.f32.mxu0 0.0
    %4799 = vmatmul.mubr.f32.gmra.mrb[0].mxu0 %v610
    %v4800 = vpop.f32.mrb[0].mxu0
    %v4801 = vadd.f32 0.0, %v4800
    %v4802 = vpop.f32.mrb[0].mxu0
    %4803 = vmatprep.mubr.f32.mxu0 0.0
    %4804 = vmatmul.mubr.f32.gmra.mrb[0].mxu0 %v611
    %v4805 = vpop.f32.mrb[0].mxu0
    %v4806 = vadd.f32 0.0, %v4805
    %v4807 = vpop.f32.mrb[0].mxu0
    %4808 = vmatprep.mubr.f32.mxu0 0.0
    %4809 = vmatmul.mubr.f32.gmra.mrb[0].mxu0 %v612
    %v4810 = vpop.f32.mrb[0].mxu0
    %v4811 = vadd.f32 0.0, %v4810
    %v4812 = vpop.f32.mrb[0].mxu0
    %4813 = vmatprep.mubr.f32.mxu0 0.0
    %4814 = vmatmul.mubr.f32.gmra.mrb[0].mxu0 %v613
    %v4815 = vpop.f32.mrb[0].mxu0
    %v4816 = vadd.f32 0.0, %v4815
    %v4817 = vpop.f32.mrb[0].mxu0
    %4818 = vmatprep.mubr.f32.mxu0 0.0
    %4819 = vmatmul.mubr.f32.gmra.mrb[0].mxu0 %v614
    %v4820 = vpop.f32.mrb[0].mxu0
    %v4821 = vadd.f32 0.0, %v4820
    %v4822 = vpop.f32.mrb[0].mxu0
    %4823 = vmatprep.mubr.f32.mxu0 0.0
    %4824 = vmatmul.mubr.f32.gmra.mrb[0].mxu0 %v615
    %v4825 = vpop.f32.mrb[0].mxu0
    %v4826 = vadd.f32 0.0, %v4825
    %v4827 = vpop.f32.mrb[0].mxu0
    %4828 = vmatprep.mubr.f32.mxu0 0.0
    %4829 = vmatmul.mubr.f32.gmra.mrb[0].mxu0 %v616
    %v4830 = vpop.f32.mrb[0].mxu0
    %v4831 = vadd.f32 0.0, %v4830
    %v4832 = vpop.f32.mrb[0].mxu0
    %4833 = vmatprep.mubr.f32.mxu0 0.0
    %4834 = vmatmul.mubr.f32.gmra.mrb[0].mxu0 %v617
    %v4835 = vpop.f32.mrb[0].mxu0
    %v4836 = vadd.f32 0.0, %v4835
    %v4837 = vpop.f32.mrb[0].mxu0
    %4838 = vmatprep.mubr.f32.mxu0 0.0
    %4839 = vmatmul.mubr.f32.gmra.mrb[0].mxu0 %v618
    %v4840 = vpop.f32.mrb[0].mxu0
    %v4841 = vadd.f32 0.0, %v4840
    %v4842 = vpop.f32.mrb[0].mxu0
    %4843 = vmatprep.mubr.f32.mxu0 0.0
    %4844 = vmatmul.mubr.f32.gmra.mrb[0].mxu0 %v619
    %v4845 = vpop.f32.mrb[0].mxu0
    %v4846 = vadd.f32 0.0, %v4845
    %v4847 = vpop.f32.mrb[0].mxu0
    %4848 = vmatprep.mubr.f32.mxu0 0.0
    %4849 = vmatmul.mubr.f32.gmra.mrb[0].mxu0 %v620
    %v4850 = vpop.f32.mrb[0].mxu0
    %v4851 = vadd.f32 0.0, %v4850
    %v4852 = vpop.f32.mrb[0].mxu0
    %4853 = vmatprep.mubr.f32.mxu0 0.0
    %4854 = vmatmul.mubr.f32.gmra.mrb[0].mxu0 %v621
    %v4855 = vpop.f32.mrb[0].mxu0
    %v4856 = vadd.f32 0.0, %v4855
    %v4857 = vpop.f32.mrb[0].mxu0
    %4858 = vmatprep.mubr.f32.mxu0 0.0
    %4859 = vmatmul.mubr.f32.gmra.mrb[0].mxu0 %v622
    %v4860 = vpop.f32.mrb[0].mxu0
    %v4861 = vadd.f32 0.0, %v4860
    %v4862 = vpop.f32.mrb[0].mxu0
    %4863 = vmatprep.mubr.f32.mxu0 0.0
    %4864 = vmatmul.mubr.f32.gmra.mrb[0].mxu0 %v623
    %v4865 = vpop.f32.mrb[0].mxu0
    %v4866 = vadd.f32 0.0, %v4865
    %v4867 = vpop.f32.mrb[0].mxu0
    %4868 = vmatprep.mubr.f32.mxu0 0.0
    %4869 = vmatmul.mubr.f32.gmra.mrb[0].mxu0 %v624
    %v4870 = vpop.f32.mrb[0].mxu0
    %v4871 = vadd.f32 0.0, %v4870
    %v4872 = vpop.f32.mrb[0].mxu0
    %4873 = vmatprep.mubr.f32.mxu0 0.0
    %4874 = vmatmul.mubr.f32.gmra.mrb[0].mxu0 %v625
    %v4875 = vpop.f32.mrb[0].mxu0
    %v4876 = vadd.f32 0.0, %v4875
    %v4877 = vpop.f32.mrb[0].mxu0
    %4878 = vmatprep.mubr.f32.mxu0 0.0
    %4879 = vmatmul.mubr.f32.gmra.mrb[0].mxu0 %v626
    %v4880 = vpop.f32.mrb[0].mxu0
    %v4881 = vadd.f32 0.0, %v4880
    %v4882 = vpop.f32.mrb[0].mxu0
    %4883 = vmatprep.mubr.f32.mxu0 0.0
    %4884 = vmatmul.mubr.f32.gmra.mrb[0].mxu0 %v627
    %v4885 = vpop.f32.mrb[0].mxu0
    %v4886 = vadd.f32 0.0, %v4885
    %v4887 = vpop.f32.mrb[0].mxu0
    %4888 = vmatprep.mubr.f32.mxu0 0.0
    %4889 = vmatmul.mubr.f32.gmra.mrb[0].mxu0 %v628
    %v4890 = vpop.f32.mrb[0].mxu0
    %v4891 = vadd.f32 0.0, %v4890
    %v4892 = vpop.f32.mrb[0].mxu0
    %4893 = vmatprep.mubr.f32.mxu0 0.0
    %4894 = vmatmul.mubr.f32.gmra.mrb[0].mxu0 %v629
    %v4895 = vpop.f32.mrb[0].mxu0
    %v4896 = vadd.f32 0.0, %v4895
    %v4897 = vpop.f32.mrb[0].mxu0
    %4898 = vmatprep.mubr.f32.mxu0 0.0
    %4899 = vmatmul.mubr.f32.gmra.mrb[0].mxu0 %v630
    %v4900 = vpop.f32.mrb[0].mxu0
    %v4901 = vadd.f32 0.0, %v4900
    %v4902 = vpop.f32.mrb[0].mxu0
    %4903 = vmatprep.mubr.f32.mxu0 0.0
    %4904 = vmatmul.mubr.f32.gmra.mrb[0].mxu0 %v631
    %v4905 = vpop.f32.mrb[0].mxu0
    %v4906 = vadd.f32 0.0, %v4905
    %v4907 = vpop.f32.mrb[0].mxu0
    %4908 = vmatprep.mubr.f32.mxu0 0.0
    %4909 = vmatmul.mubr.f32.gmra.mrb[0].mxu0 %v632
    %v4910 = vpop.f32.mrb[0].mxu0
    %v4911 = vadd.f32 0.0, %v4910
    %v4912 = vpop.f32.mrb[0].mxu0
    %4913 = vmatprep.mubr.f32.mxu0 0.0
    %4914 = vmatmul.mubr.f32.gmra.mrb[0].mxu0 %v633
    %v4915 = vpop.f32.mrb[0].mxu0
    %v4916 = vadd.f32 0.0, %v4915
    %v4917 = vpop.f32.mrb[0].mxu0
    %4918 = vmatprep.mubr.f32.mxu0 0.0
    %4919 = vmatmul.mubr.f32.gmra.mrb[0].mxu0 %v634
    %v4920 = vpop.f32.mrb[0].mxu0
    %v4921 = vadd.f32 0.0, %v4920
    %v4922 = vpop.f32.mrb[0].mxu0
    %4923 = vmatprep.mubr.f32.mxu0 0.0
    %4924 = vmatmul.mubr.f32.gmra.mrb[0].mxu0 %v635
    %v4925 = vpop.f32.mrb[0].mxu0
    %v4926 = vadd.f32 0.0, %v4925
    %v4927 = vpop.f32.mrb[0].mxu0
    %4928 = vmatprep.mubr.f32.mxu0 0.0
    %4929 = vmatmul.mubr.f32.gmra.mrb[0].mxu0 %v636
    %v4930 = vpop.f32.mrb[0].mxu0
    %v4931 = vadd.f32 0.0, %v4930
    %v4932 = vpop.f32.mrb[0].mxu0
    %4933 = vmatprep.mubr.f32.mxu0 0.0
    %4934 = vmatmul.mubr.f32.gmra.mrb[0].mxu0 %v637
    %v4935 = vpop.f32.mrb[0].mxu0
    %v4936 = vadd.f32 0.0, %v4935
    %v4937 = vpop.f32.mrb[0].mxu0
    %4938 = vmatprep.mubr.f32.mxu0 0.0
    %4939 = vmatmul.mubr.f32.gmra.mrb[0].mxu0 %v638
    %v4940 = vpop.f32.mrb[0].mxu0
    %v4941 = vadd.f32 0.0, %v4940
    %v4942 = vpop.f32.mrb[0].mxu0
    %4943 = vmatprep.mubr.f32.mxu0 0.0
    %4944 = vmatmul.mubr.f32.gmra.mrb[0].mxu0 %v639
    %v4945 = vpop.f32.mrb[0].mxu0
    %v4946 = vadd.f32 0.0, %v4945
    %v4947 = vpop.f32.mrb[0].mxu0
    %4948 = vmatprep.mubr.f32.mxu0 0.0
    %4949 = vmatmul.mubr.f32.gmra.mrb[0].mxu0 %v640
    %v4950 = vpop.f32.mrb[0].mxu0
    %v4951 = vadd.f32 0.0, %v4950
    %v4952 = vpop.f32.mrb[0].mxu0
    %4953 = vmatprep.mubr.f32.mxu0 0.0
    %4954 = vmatmul.mubr.f32.gmra.mrb[0].mxu0 %v641
    %v4955 = vpop.f32.mrb[0].mxu0
    %v4956 = vadd.f32 0.0, %v4955
    %v4957 = vpop.f32.mrb[0].mxu0
    %4958 = vmatprep.mubr.f32.mxu0 0.0
    %4959 = vmatmul.mubr.f32.gmra.mrb[0].mxu0 %v642
    %v4960 = vpop.f32.mrb[0].mxu0
    %v4961 = vadd.f32 0.0, %v4960
    %v4962 = vpop.f32.mrb[0].mxu0
    %4963 = vmatprep.mubr.f32.mxu0 0.0
    %4964 = vmatmul.mubr.f32.gmra.mrb[0].mxu0 %v643
    %v4965 = vpop.f32.mrb[0].mxu0
    %v4966 = vadd.f32 0.0, %v4965
    %v4967 = vpop.f32.mrb[0].mxu0
    %4968 = vmatprep.mubr.f32.mxu0 0.0
    %4969 = vmatmul.mubr.f32.gmra.mrb[0].mxu0 %v644
    %v4970 = vpop.f32.mrb[0].mxu0
    %v4971 = vadd.f32 0.0, %v4970
    %v4972 = vpop.f32.mrb[0].mxu0
    %4973 = vmatprep.mubr.f32.mxu0 0.0
    %4974 = vmatmul.mubr.f32.gmra.mrb[0].mxu0 %v645
    %v4975 = vpop.f32.mrb[0].mxu0
    %v4976 = vadd.f32 0.0, %v4975
    %v4977 = vpop.f32.mrb[0].mxu0
    %4978 = vmatprep.mubr.f32.mxu0 0.0
    %4979 = vmatmul.mubr.f32.gmra.mrb[0].mxu0 %v646
    %v4980 = vpop.f32.mrb[0].mxu0
    %v4981 = vadd.f32 0.0, %v4980
    %v4982 = vpop.f32.mrb[0].mxu0
    %4983 = vmatprep.mubr.f32.mxu0 0.0
    %4984 = vmatmul.mubr.f32.gmra.mrb[0].mxu0 %v647
    %v4985 = vpop.f32.mrb[0].mxu0
    %v4986 = vadd.f32 0.0, %v4985
    %v4987 = vpop.f32.mrb[0].mxu0
    %4988 = vmatprep.mubr.f32.mxu0 0.0
    %4989 = vmatmul.mubr.f32.gmra.mrb[0].mxu0 %v648
    %v4990 = vpop.f32.mrb[0].mxu0
    %v4991 = vadd.f32 0.0, %v4990
    %v4992 = vpop.f32.mrb[0].mxu0
    %4993 = vmatprep.mubr.f32.mxu0 0.0
    %4994 = vmatmul.mubr.f32.gmra.mrb[0].mxu0 %v649
    %v4995 = vpop.f32.mrb[0].mxu0
    %v4996 = vadd.f32 0.0, %v4995
    %v4997 = vpop.f32.mrb[0].mxu0
    %4998 = vmatprep.mubr.f32.mxu0 0.0
    %4999 = vmatmul.mubr.f32.gmra.mrb[0].mxu0 %v650
    %v5000 = vpop.f32.mrb[0].mxu0
    %v5001 = vadd.f32 0.0, %v5000
    %v5002 = vpop.f32.mrb[0].mxu0
    %5003 = vmatprep.mubr.f32.mxu0 0.0
    %5004 = vmatmul.mubr.f32.gmra.mrb[0].mxu0 %v651
    %v5005 = vpop.f32.mrb[0].mxu0
    %v5006 = vadd.f32 0.0, %v5005
    %v5007 = vpop.f32.mrb[0].mxu0
    %5008 = vmatprep.mubr.f32.mxu0 0.0
    %5009 = vmatmul.mubr.f32.gmra.mrb[0].mxu0 %v652
    %v5010 = vpop.f32.mrb[0].mxu0
    %v5011 = vadd.f32 0.0, %v5010
    %v5012 = vpop.f32.mrb[0].mxu0
    %5013 = vmatprep.mubr.f32.mxu0 0.0
    %5014 = vmatmul.mubr.f32.gmra.mrb[0].mxu0 %v653
    %v5015 = vpop.f32.mrb[0].mxu0
    %v5016 = vadd.f32 0.0, %v5015
    %v5017 = vpop.f32.mrb[0].mxu0
    %5018 = vmatprep.mubr.f32.mxu0 0.0
    %5019 = vmatmul.mubr.f32.gmra.mrb[0].mxu0 %v654
    %v5020 = vpop.f32.mrb[0].mxu0
    %v5021 = vadd.f32 0.0, %v5020
    %v5022 = vpop.f32.mrb[0].mxu0
    %5023 = vmatprep.mubr.f32.mxu0 0.0
    %5024 = vmatmul.mubr.f32.gmra.mrb[0].mxu0 %v655
    %v5025 = vpop.f32.mrb[0].mxu0
    %v5026 = vadd.f32 0.0, %v5025
    %v5027 = vpop.f32.mrb[0].mxu0
    %5028 = vmatprep.mubr.f32.mxu0 0.0
    %5029 = vmatmul.mubr.f32.gmra.mrb[0].mxu0 %v656
    %v5030 = vpop.f32.mrb[0].mxu0
    %v5031 = vadd.f32 0.0, %v5030
    %v5032 = vpop.f32.mrb[0].mxu0
    %5033 = vdwg.mxu0
    %5050 = vrot.lane.b32.xlu0 %v4396, 4
    %v5051 = vpop.permute.xlu0 %5050
    %5052 = vrot.lane.b32.xlu0 %v4401, 4
    %v5053 = vpop.permute.xlu0 %5052
    %5054 = vrot.lane.b32.xlu0 %v4406, 4
    %v5055 = vpop.permute.xlu0 %5054
    %5056 = vrot.lane.b32.xlu0 %v4411, 4
    %v5057 = vpop.permute.xlu0 %5056
    %5058 = vrot.lane.b32.xlu0 %v4416, 4
    %v5059 = vpop.permute.xlu0 %5058
    %5060 = vrot.lane.b32.xlu0 %v4421, 4
    %v5061 = vpop.permute.xlu0 %5060
    %5062 = vrot.lane.b32.xlu0 %v4426, 4
    %v5063 = vpop.permute.xlu0 %5062
    %5064 = vrot.lane.b32.xlu0 %v4431, 4
    %v5065 = vpop.permute.xlu0 %5064
    %5066 = vrot.lane.b32.xlu0 %v4436, 4
    %v5067 = vpop.permute.xlu0 %5066
    %5068 = vrot.lane.b32.xlu0 %v4441, 4
    %v5069 = vpop.permute.xlu0 %5068
    %5070 = vrot.lane.b32.xlu0 %v4446, 4
    %v5071 = vpop.permute.xlu0 %5070
    %5072 = vrot.lane.b32.xlu0 %v4451, 4
    %v5073 = vpop.permute.xlu0 %5072
    %5074 = vrot.lane.b32.xlu0 %v4456, 4
    %v5075 = vpop.permute.xlu0 %5074
    %5076 = vrot.lane.b32.xlu0 %v4461, 4
    %v5077 = vpop.permute.xlu0 %5076
    %5078 = vrot.lane.b32.xlu0 %v4466, 4
    %v5079 = vpop.permute.xlu0 %5078
    %5080 = vrot.lane.b32.xlu0 %v4471, 4
    %v5081 = vpop.permute.xlu0 %5080
    %5114 = vrot.lane.b32.xlu0 %v4476, 8
    %v5115 = vpop.permute.xlu0 %5114
    %5116 = vrot.lane.b32.xlu0 %v4481, 8
    %v5117 = vpop.permute.xlu0 %5116
    %5118 = vrot.lane.b32.xlu0 %v4486, 8
    %v5119 = vpop.permute.xlu0 %5118
    %5120 = vrot.lane.b32.xlu0 %v4491, 8
    %v5121 = vpop.permute.xlu0 %5120
    %5122 = vrot.lane.b32.xlu0 %v4496, 8
    %v5123 = vpop.permute.xlu0 %5122
    %5124 = vrot.lane.b32.xlu0 %v4501, 8
    %v5125 = vpop.permute.xlu0 %5124
    %5126 = vrot.lane.b32.xlu0 %v4506, 8
    %v5127 = vpop.permute.xlu0 %5126
    %5128 = vrot.lane.b32.xlu0 %v4511, 8
    %v5129 = vpop.permute.xlu0 %5128
    %5130 = vrot.lane.b32.xlu0 %v4516, 8
    %v5131 = vpop.permute.xlu0 %5130
    %5132 = vrot.lane.b32.xlu0 %v4521, 8
    %v5133 = vpop.permute.xlu0 %5132
    %5134 = vrot.lane.b32.xlu0 %v4526, 8
    %v5135 = vpop.permute.xlu0 %5134
    %5136 = vrot.lane.b32.xlu0 %v4531, 8
    %v5137 = vpop.permute.xlu0 %5136
    %5138 = vrot.lane.b32.xlu0 %v4536, 8
    %v5139 = vpop.permute.xlu0 %5138
    %5140 = vrot.lane.b32.xlu0 %v4541, 8
    %v5141 = vpop.permute.xlu0 %5140
    %5142 = vrot.lane.b32.xlu0 %v4546, 8
    %v5143 = vpop.permute.xlu0 %5142
    %5144 = vrot.lane.b32.xlu0 %v4551, 8
    %v5145 = vpop.permute.xlu0 %5144
    %5178 = vrot.lane.b32.xlu0 %v4556, 12
    %v5179 = vpop.permute.xlu0 %5178
    %5180 = vrot.lane.b32.xlu0 %v4561, 12
    %v5181 = vpop.permute.xlu0 %5180
    %5182 = vrot.lane.b32.xlu0 %v4566, 12
    %v5183 = vpop.permute.xlu0 %5182
    %5184 = vrot.lane.b32.xlu0 %v4571, 12
    %v5185 = vpop.permute.xlu0 %5184
    %5186 = vrot.lane.b32.xlu0 %v4576, 12
    %v5187 = vpop.permute.xlu0 %5186
    %5188 = vrot.lane.b32.xlu0 %v4581, 12
    %v5189 = vpop.permute.xlu0 %5188
    %5190 = vrot.lane.b32.xlu0 %v4586, 12
    %v5191 = vpop.permute.xlu0 %5190
    %5192 = vrot.lane.b32.xlu0 %v4591, 12
    %v5193 = vpop.permute.xlu0 %5192
    %5194 = vrot.lane.b32.xlu0 %v4596, 12
    %v5195 = vpop.permute.xlu0 %5194
    %5196 = vrot.lane.b32.xlu0 %v4601, 12
    %v5197 = vpop.permute.xlu0 %5196
    %5198 = vrot.lane.b32.xlu0 %v4606, 12
    %v5199 = vpop.permute.xlu0 %5198
    %5200 = vrot.lane.b32.xlu0 %v4611, 12
    %v5201 = vpop.permute.xlu0 %5200
    %5202 = vrot.lane.b32.xlu0 %v4616, 12
    %v5203 = vpop.permute.xlu0 %5202
    %5204 = vrot.lane.b32.xlu0 %v4621, 12
    %v5205 = vpop.permute.xlu0 %5204
    %5206 = vrot.lane.b32.xlu0 %v4626, 12
    %v5207 = vpop.permute.xlu0 %5206
    %5208 = vrot.lane.b32.xlu0 %v4631, 12
    %v5209 = vpop.permute.xlu0 %5208
    %5242 = vrot.lane.b32.xlu0 %v4636, 16
    %v5243 = vpop.permute.xlu0 %5242
    %5244 = vrot.lane.b32.xlu0 %v4641, 16
    %v5245 = vpop.permute.xlu0 %5244
    %5246 = vrot.lane.b32.xlu0 %v4646, 16
    %v5247 = vpop.permute.xlu0 %5246
    %5248 = vrot.lane.b32.xlu0 %v4651, 16
    %v5249 = vpop.permute.xlu0 %5248
    %5250 = vrot.lane.b32.xlu0 %v4656, 16
    %v5251 = vpop.permute.xlu0 %5250
    %5252 = vrot.lane.b32.xlu0 %v4661, 16
    %v5253 = vpop.permute.xlu0 %5252
    %5254 = vrot.lane.b32.xlu0 %v4666, 16
    %v5255 = vpop.permute.xlu0 %5254
    %5256 = vrot.lane.b32.xlu0 %v4671, 16
    %v5257 = vpop.permute.xlu0 %5256
    %5258 = vrot.lane.b32.xlu0 %v4676, 16
    %v5259 = vpop.permute.xlu0 %5258
    %5260 = vrot.lane.b32.xlu0 %v4681, 16
    %v5261 = vpop.permute.xlu0 %5260
    %5262 = vrot.lane.b32.xlu0 %v4686, 16
    %v5263 = vpop.permute.xlu0 %5262
    %5264 = vrot.lane.b32.xlu0 %v4691, 16
    %v5265 = vpop.permute.xlu0 %5264
    %5266 = vrot.lane.b32.xlu0 %v4696, 16
    %v5267 = vpop.permute.xlu0 %5266
    %5268 = vrot.lane.b32.xlu0 %v4701, 16
    %v5269 = vpop.permute.xlu0 %5268
    %5270 = vrot.lane.b32.xlu0 %v4706, 16
    %v5271 = vpop.permute.xlu0 %5270
    %5272 = vrot.lane.b32.xlu0 %v4711, 16
    %v5273 = vpop.permute.xlu0 %5272
    %5306 = vrot.lane.b32.xlu0 %v4716, 20
    %v5307 = vpop.permute.xlu0 %5306
    %5308 = vrot.lane.b32.xlu0 %v4721, 20
    %v5309 = vpop.permute.xlu0 %5308
    %5310 = vrot.lane.b32.xlu0 %v4726, 20
    %v5311 = vpop.permute.xlu0 %5310
    %5312 = vrot.lane.b32.xlu0 %v4731, 20
    %v5313 = vpop.permute.xlu0 %5312
    %5314 = vrot.lane.b32.xlu0 %v4736, 20
    %v5315 = vpop.permute.xlu0 %5314
    %5316 = vrot.lane.b32.xlu0 %v4741, 20
    %v5317 = vpop.permute.xlu0 %5316
    %5318 = vrot.lane.b32.xlu0 %v4746, 20
    %v5319 = vpop.permute.xlu0 %5318
    %5320 = vrot.lane.b32.xlu0 %v4751, 20
    %v5321 = vpop.permute.xlu0 %5320
    %5322 = vrot.lane.b32.xlu0 %v4756, 20
    %v5323 = vpop.permute.xlu0 %5322
    %5324 = vrot.lane.b32.xlu0 %v4761, 20
    %v5325 = vpop.permute.xlu0 %5324
    %5326 = vrot.lane.b32.xlu0 %v4766, 20
    %v5327 = vpop.permute.xlu0 %5326
    %5328 = vrot.lane.b32.xlu0 %v4771, 20
    %v5329 = vpop.permute.xlu0 %5328
    %5330 = vrot.lane.b32.xlu0 %v4776, 20
    %v5331 = vpop.permute.xlu0 %5330
    %5332 = vrot.lane.b32.xlu0 %v4781, 20
    %v5333 = vpop.permute.xlu0 %5332
    %5334 = vrot.lane.b32.xlu0 %v4786, 20
    %v5335 = vpop.permute.xlu0 %5334
    %5336 = vrot.lane.b32.xlu0 %v4791, 20
    %v5337 = vpop.permute.xlu0 %5336
    %5370 = vrot.lane.b32.xlu0 %v4796, 24
    %v5371 = vpop.permute.xlu0 %5370
    %5372 = vrot.lane.b32.xlu0 %v4801, 24
    %v5373 = vpop.permute.xlu0 %5372
    %5374 = vrot.lane.b32.xlu0 %v4806, 24
    %v5375 = vpop.permute.xlu0 %5374
    %5376 = vrot.lane.b32.xlu0 %v4811, 24
    %v5377 = vpop.permute.xlu0 %5376
    %5378 = vrot.lane.b32.xlu0 %v4816, 24
    %v5379 = vpop.permute.xlu0 %5378
    %5380 = vrot.lane.b32.xlu0 %v4821, 24
    %v5381 = vpop.permute.xlu0 %5380
    %5382 = vrot.lane.b32.xlu0 %v4826, 24
    %v5383 = vpop.permute.xlu0 %5382
    %5384 = vrot.lane.b32.xlu0 %v4831, 24
    %v5385 = vpop.permute.xlu0 %5384
    %5386 = vrot.lane.b32.xlu0 %v4836, 24
    %v5387 = vpop.permute.xlu0 %5386
    %5388 = vrot.lane.b32.xlu0 %v4841, 24
    %v5389 = vpop.permute.xlu0 %5388
    %5390 = vrot.lane.b32.xlu0 %v4846, 24
    %v5391 = vpop.permute.xlu0 %5390
    %5392 = vrot.lane.b32.xlu0 %v4851, 24
    %v5393 = vpop.permute.xlu0 %5392
    %5394 = vrot.lane.b32.xlu0 %v4856, 24
    %v5395 = vpop.permute.xlu0 %5394
    %5396 = vrot.lane.b32.xlu0 %v4861, 24
    %v5397 = vpop.permute.xlu0 %5396
    %5398 = vrot.lane.b32.xlu0 %v4866, 24
    %v5399 = vpop.permute.xlu0 %5398
    %5400 = vrot.lane.b32.xlu0 %v4871, 24
    %v5401 = vpop.permute.xlu0 %5400
    %5434 = vrot.lane.b32.xlu0 %v4876, 28
    %v5435 = vpop.permute.xlu0 %5434
    %5436 = vrot.lane.b32.xlu0 %v4881, 28
    %v5437 = vpop.permute.xlu0 %5436
    %5438 = vrot.lane.b32.xlu0 %v4886, 28
    %v5439 = vpop.permute.xlu0 %5438
    %5440 = vrot.lane.b32.xlu0 %v4891, 28
    %v5441 = vpop.permute.xlu0 %5440
    %5442 = vrot.lane.b32.xlu0 %v4896, 28
    %v5443 = vpop.permute.xlu0 %5442
    %5444 = vrot.lane.b32.xlu0 %v4901, 28
    %v5445 = vpop.permute.xlu0 %5444
    %5446 = vrot.lane.b32.xlu0 %v4906, 28
    %v5447 = vpop.permute.xlu0 %5446
    %5448 = vrot.lane.b32.xlu0 %v4911, 28
    %v5449 = vpop.permute.xlu0 %5448
    %5450 = vrot.lane.b32.xlu0 %v4916, 28
    %v5451 = vpop.permute.xlu0 %5450
    %5452 = vrot.lane.b32.xlu0 %v4921, 28
    %v5453 = vpop.permute.xlu0 %5452
    %5454 = vrot.lane.b32.xlu0 %v4926, 28
    %v5455 = vpop.permute.xlu0 %5454
    %5456 = vrot.lane.b32.xlu0 %v4931, 28
    %v5457 = vpop.permute.xlu0 %5456
    %5458 = vrot.lane.b32.xlu0 %v4936, 28
    %v5459 = vpop.permute.xlu0 %5458
    %5460 = vrot.lane.b32.xlu0 %v4941, 28
    %v5461 = vpop.permute.xlu0 %5460
    %5462 = vrot.lane.b32.xlu0 %v4946, 28
    %v5463 = vpop.permute.xlu0 %5462
    %5464 = vrot.lane.b32.xlu0 %v4951, 28
    %v5465 = vpop.permute.xlu0 %5464
    %5498 = vrot.lane.b32.xlu0 %v4956, 32
    %v5499 = vpop.permute.xlu0 %5498
    %5500 = vrot.lane.b32.xlu0 %v4961, 32
    %v5501 = vpop.permute.xlu0 %5500
    %5502 = vrot.lane.b32.xlu0 %v4966, 32
    %v5503 = vpop.permute.xlu0 %5502
    %5504 = vrot.lane.b32.xlu0 %v4971, 32
    %v5505 = vpop.permute.xlu0 %5504
    %5506 = vrot.lane.b32.xlu0 %v4976, 32
    %v5507 = vpop.permute.xlu0 %5506
    %5508 = vrot.lane.b32.xlu0 %v4981, 32
    %v5509 = vpop.permute.xlu0 %5508
    %5510 = vrot.lane.b32.xlu0 %v4986, 32
    %v5511 = vpop.permute.xlu0 %5510
    %5512 = vrot.lane.b32.xlu0 %v4991, 32
    %v5513 = vpop.permute.xlu0 %5512
    %5514 = vrot.lane.b32.xlu0 %v4996, 32
    %v5515 = vpop.permute.xlu0 %5514
    %5516 = vrot.lane.b32.xlu0 %v5001, 32
    %v5517 = vpop.permute.xlu0 %5516
    %5518 = vrot.lane.b32.xlu0 %v5006, 32
    %v5519 = vpop.permute.xlu0 %5518
    %5520 = vrot.lane.b32.xlu0 %v5011, 32
    %v5521 = vpop.permute.xlu0 %5520
    %5522 = vrot.lane.b32.xlu0 %v5016, 32
    %v5523 = vpop.permute.xlu0 %5522
    %5524 = vrot.lane.b32.xlu0 %v5021, 32
    %v5525 = vpop.permute.xlu0 %5524
    %5526 = vrot.lane.b32.xlu0 %v5026, 32
    %v5527 = vpop.permute.xlu0 %5526
    %5528 = vrot.lane.b32.xlu0 %v5031, 32
    %v5529 = vpop.permute.xlu0 %5528
    %v5546 = vsel %vm1960, %v4316, %v5051
    %v5547 = vsel %vm1960, %v4321, %v5053
    %v5548 = vsel %vm1960, %v4326, %v5055
    %v5549 = vsel %vm1960, %v4331, %v5057
    %v5550 = vsel %vm1960, %v4336, %v5059
    %v5551 = vsel %vm1960, %v4341, %v5061
    %v5552 = vsel %vm1960, %v4346, %v5063
    %v5553 = vsel %vm1960, %v4351, %v5065
    %v5554 = vsel %vm1960, %v4356, %v5067
    %v5555 = vsel %vm1960, %v4361, %v5069
    %v5556 = vsel %vm1960, %v4366, %v5071
    %v5557 = vsel %vm1960, %v4371, %v5073
    %v5558 = vsel %vm1960, %v4376, %v5075
    %v5559 = vsel %vm1960, %v4381, %v5077
    %v5560 = vsel %vm1960, %v4386, %v5079
    %v5561 = vsel %vm1960, %v4391, %v5081
    %v5562 = vsel %vm292, %v5546, %v5115
    %v5563 = vsel %vm292, %v5547, %v5117
    %v5564 = vsel %vm292, %v5548, %v5119
    %v5565 = vsel %vm292, %v5549, %v5121
    %v5566 = vsel %vm292, %v5550, %v5123
    %v5567 = vsel %vm292, %v5551, %v5125
    %v5568 = vsel %vm292, %v5552, %v5127
    %v5569 = vsel %vm292, %v5553, %v5129
    %v5570 = vsel %vm292, %v5554, %v5131
    %v5571 = vsel %vm292, %v5555, %v5133
    %v5572 = vsel %vm292, %v5556, %v5135
    %v5573 = vsel %vm292, %v5557, %v5137
    %v5574 = vsel %vm292, %v5558, %v5139
    %v5575 = vsel %vm292, %v5559, %v5141
    %v5576 = vsel %vm292, %v5560, %v5143
    %v5577 = vsel %vm292, %v5561, %v5145
    %v5578 = vsel %vm1993, %v5562, %v5179
    %v5579 = vsel %vm1993, %v5563, %v5181
    %v5580 = vsel %vm1993, %v5564, %v5183
    %v5581 = vsel %vm1993, %v5565, %v5185
    %v5582 = vsel %vm1993, %v5566, %v5187
    %v5583 = vsel %vm1993, %v5567, %v5189
    %v5584 = vsel %vm1993, %v5568, %v5191
    %v5585 = vsel %vm1993, %v5569, %v5193
    %v5586 = vsel %vm1993, %v5570, %v5195
    %v5587 = vsel %vm1993, %v5571, %v5197
    %v5588 = vsel %vm1993, %v5572, %v5199
    %v5589 = vsel %vm1993, %v5573, %v5201
    %v5590 = vsel %vm1993, %v5574, %v5203
    %v5591 = vsel %vm1993, %v5575, %v5205
    %v5592 = vsel %vm1993, %v5576, %v5207
    %v5593 = vsel %vm1993, %v5577, %v5209
    %v5594 = vsel %vm2010, %v5578, %v5243
    %v5595 = vsel %vm2010, %v5579, %v5245
    %v5596 = vsel %vm2010, %v5580, %v5247
    %v5597 = vsel %vm2010, %v5581, %v5249
    %v5598 = vsel %vm2010, %v5582, %v5251
    %v5599 = vsel %vm2010, %v5583, %v5253
    %v5600 = vsel %vm2010, %v5584, %v5255
    %v5601 = vsel %vm2010, %v5585, %v5257
    %v5602 = vsel %vm2010, %v5586, %v5259
    %v5603 = vsel %vm2010, %v5587, %v5261
    %v5604 = vsel %vm2010, %v5588, %v5263
    %v5605 = vsel %vm2010, %v5589, %v5265
    %v5606 = vsel %vm2010, %v5590, %v5267
    %v5607 = vsel %vm2010, %v5591, %v5269
    %v5608 = vsel %vm2010, %v5592, %v5271
    %v5609 = vsel %vm2010, %v5593, %v5273
    %v5610 = vsel %vm2027, %v5594, %v5307
    %v5611 = vsel %vm2027, %v5595, %v5309
    %v5612 = vsel %vm2027, %v5596, %v5311
    %v5613 = vsel %vm2027, %v5597, %v5313
    %v5614 = vsel %vm2027, %v5598, %v5315
    %v5615 = vsel %vm2027, %v5599, %v5317
    %v5616 = vsel %vm2027, %v5600, %v5319
    %v5617 = vsel %vm2027, %v5601, %v5321
    %v5618 = vsel %vm2027, %v5602, %v5323
    %v5619 = vsel %vm2027, %v5603, %v5325
    %v5620 = vsel %vm2027, %v5604, %v5327
    %v5621 = vsel %vm2027, %v5605, %v5329
    %v5622 = vsel %vm2027, %v5606, %v5331
    %v5623 = vsel %vm2027, %v5607, %v5333
    %v5624 = vsel %vm2027, %v5608, %v5335
    %v5625 = vsel %vm2027, %v5609, %v5337
    %v5626 = vsel %vm2044, %v5610, %v5371
    %v5627 = vsel %vm2044, %v5611, %v5373
    %v5628 = vsel %vm2044, %v5612, %v5375
    %v5629 = vsel %vm2044, %v5613, %v5377
    %v5630 = vsel %vm2044, %v5614, %v5379
    %v5631 = vsel %vm2044, %v5615, %v5381
    %v5632 = vsel %vm2044, %v5616, %v5383
    %v5633 = vsel %vm2044, %v5617, %v5385
    %v5634 = vsel %vm2044, %v5618, %v5387
    %v5635 = vsel %vm2044, %v5619, %v5389
    %v5636 = vsel %vm2044, %v5620, %v5391
    %v5637 = vsel %vm2044, %v5621, %v5393
    %v5638 = vsel %vm2044, %v5622, %v5395
    %v5639 = vsel %vm2044, %v5623, %v5397
    %v5640 = vsel %vm2044, %v5624, %v5399
    %v5641 = vsel %vm2044, %v5625, %v5401
    %v5642 = vsel %vm2061, %v5626, %v5435
    %v5643 = vsel %vm2061, %v5627, %v5437
    %v5644 = vsel %vm2061, %v5628, %v5439
    %v5645 = vsel %vm2061, %v5629, %v5441
    %v5646 = vsel %vm2061, %v5630, %v5443
    %v5647 = vsel %vm2061, %v5631, %v5445
    %v5648 = vsel %vm2061, %v5632, %v5447
    %v5649 = vsel %vm2061, %v5633, %v5449
    %v5650 = vsel %vm2061, %v5634, %v5451
    %v5651 = vsel %vm2061, %v5635, %v5453
    %v5652 = vsel %vm2061, %v5636, %v5455
    %v5653 = vsel %vm2061, %v5637, %v5457
    %v5654 = vsel %vm2061, %v5638, %v5459
    %v5655 = vsel %vm2061, %v5639, %v5461
    %v5656 = vsel %vm2061, %v5640, %v5463
    %v5657 = vsel %vm2061, %v5641, %v5465
    %v5658 = vsel %vm2078, %v5642, %v5499
    %v5659 = vsel %vm2078, %v5643, %v5501
    %v5660 = vsel %vm2078, %v5644, %v5503
    %v5661 = vsel %vm2078, %v5645, %v5505
    %v5662 = vsel %vm2078, %v5646, %v5507
    %v5663 = vsel %vm2078, %v5647, %v5509
    %v5664 = vsel %vm2078, %v5648, %v5511
    %v5665 = vsel %vm2078, %v5649, %v5513
    %v5666 = vsel %vm2078, %v5650, %v5515
    %v5667 = vsel %vm2078, %v5651, %v5517
    %v5668 = vsel %vm2078, %v5652, %v5519
    %v5669 = vsel %vm2078, %v5653, %v5521
    %v5670 = vsel %vm2078, %v5654, %v5523
    %v5671 = vsel %vm2078, %v5655, %v5525
    %v5672 = vsel %vm2078, %v5656, %v5527
    %v5673 = vsel %vm2078, %v5657, %v5529
    %v5675 = vlaneseq
    %v5676 = vshrl.u32 %v5675, 7
    %v5677 = vsub.s32 0, %v5676
    %v5678 = vrot.slane %v4184, %v5677
    %v5681 = vsel %vm2101, %v5658, 0
    %v5684 = vsel %vm2101, %v5659, 0
    %v5687 = vsel %vm2101, %v5660, 0
    %v5690 = vsel %vm2101, %v5661, 0
    %v5693 = vsel %vm2101, %v5662, 0
    %v5696 = vsel %vm2101, %v5663, 0
    %v5699 = vsel %vm2101, %v5664, 0
    %v5702 = vsel %vm2101, %v5665, 0
    %v5705 = vsel %vm2101, %v5666, 0
    %v5708 = vsel %vm2101, %v5667, 0
    %v5711 = vsel %vm2101, %v5668, 0
    %v5714 = vsel %vm2101, %v5669, 0
    %v5717 = vsel %vm2101, %v5670, 0
    %v5720 = vsel %vm2101, %v5671, 0
    %v5723 = vsel %vm2101, %v5672, 0
    %v5726 = vsel %vm2101, %v5673, 0
    %v5729 = vsel %vm2150, %v4183, 0
    %5731 = vmatprep.subr.mxu0 0.0
    %5732 = vmatpush1.msra.mxu0 %v4179
    %5733 = vmatprep.subr.mxu0 0.0
    %5734 = vmatpush1.msra.mxu0 %v4180
    %5735 = vmatprep.subr.mxu0 0.0
    %5736 = vmatpush1.msra.mxu0 %v4181
    %5737 = vmatprep.subr.mxu0 0.0
    %5738 = vmatpush1.msra.mxu0 %v4182
    %5739 = vmatprep.subr.mxu0 0.0
    %5740 = vmatpush1.msra.mxu0 %v5729
    %5741 = vmatprep.subr.mxu0 0.0
    %5742 = vmatpush1.msra.mxu0 0.0
    %5743 = vmatprep.subr.mxu0 0.0
    %5744 = vmatpush1.msra.mxu0 0.0
    %5745 = vmatprep.subr.mxu0 0.0
    %5746 = vmatpush1.msra.mxu0 0.0
    %5747 = vmatprep.subr.mxu0 0.0
    %5748 = vmatpush1.msra.mxu0 0.0
    %5749 = vmatprep.subr.mxu0 0.0
    %5750 = vmatpush1.msra.mxu0 0.0
    %5751 = vmatprep.subr.mxu0 0.0
    %5752 = vmatpush1.msra.mxu0 0.0
    %5753 = vmatprep.subr.mxu0 0.0
    %5754 = vmatpush1.msra.mxu0 0.0
    %5755 = vmatprep.subr.mxu0 0.0
    %5756 = vmatpush1.msra.mxu0 0.0
    %5757 = vmatprep.subr.mxu0 0.0
    %5758 = vmatpush1.msra.mxu0 0.0
    %5759 = vmatprep.subr.mxu0 0.0
    %5760 = vmatpush1.msra.mxu0 0.0
    %5761 = vmatprep.subr.mxu0 0.0
    %5762 = vmatpush1.msra.mxu0 0.0
    %5763 = vmatprep.subr.mxu0 0.0
    %5764 = vmatpush1.msra.mxu0 0.0
    %5765 = vmatprep.subr.mxu0 0.0
    %5766 = vmatpush1.msra.mxu0 0.0
    %5767 = vmatprep.subr.mxu0 0.0
    %5768 = vmatpush1.msra.mxu0 0.0
    %5769 = vmatprep.subr.mxu0 0.0
    %5770 = vmatpush1.msra.mxu0 0.0
    %5771 = vmatprep.subr.mxu0 0.0
    %5772 = vmatpush1.msra.mxu0 0.0
    %5773 = vmatprep.subr.mxu0 0.0
    %5774 = vmatpush1.msra.mxu0 0.0
    %5775 = vmatprep.subr.mxu0 0.0
    %5776 = vmatpush1.msra.mxu0 0.0
    %5777 = vmatprep.subr.mxu0 0.0
    %5778 = vmatpush1.msra.mxu0 0.0
    %5779 = vmatprep.subr.mxu0 0.0
    %5780 = vmatpush1.msra.mxu0 0.0
    %5781 = vmatprep.subr.mxu0 0.0
    %5782 = vmatpush1.msra.mxu0 0.0
    %5783 = vmatprep.subr.mxu0 0.0
    %5784 = vmatpush1.msra.mxu0 0.0
    %5785 = vmatprep.subr.mxu0 0.0
    %5786 = vmatpush1.msra.mxu0 0.0
    %5787 = vmatprep.subr.mxu0 0.0
    %5788 = vmatpush1.msra.mxu0 0.0
    %5789 = vmatprep.subr.mxu0 0.0
    %5790 = vmatpush1.msra.mxu0 0.0
    %5791 = vmatprep.subr.mxu0 0.0
    %5792 = vmatpush1.msra.mxu0 0.0
    %5793 = vmatprep.subr.mxu0 0.0
    %5794 = vmatpush1.msra.mxu0 0.0
    %5795 = vmatprep.mubr.f32.mxu0 0.0
    %5796 = vmatmul.mubr.f32.gmra.mrb[0].mxu0 %v5681
    %v5797 = vpop.f32.mrb[0].mxu0
    %v5798 = vadd.f32 %v5678, %v5797
    %v5799 = vpop.f32.mrb[0].mxu0
    %5800 = vmatprep.mubr.f32.mxu0 0.0
    %5801 = vmatmul.mubr.f32.gmra.mrb[0].mxu0 %v5684
    %v5802 = vpop.f32.mrb[0].mxu0
    %v5803 = vadd.f32 %v5678, %v5802
    %v5804 = vpop.f32.mrb[0].mxu0
    %5805 = vmatprep.mubr.f32.mxu0 0.0
    %5806 = vmatmul.mubr.f32.gmra.mrb[0].mxu0 %v5687
    %v5807 = vpop.f32.mrb[0].mxu0
    %v5808 = vadd.f32 %v5678, %v5807
    %v5809 = vpop.f32.mrb[0].mxu0
    %5810 = vmatprep.mubr.f32.mxu0 0.0
    %5811 = vmatmul.mubr.f32.gmra.mrb[0].mxu0 %v5690
    %v5812 = vpop.f32.mrb[0].mxu0
    %v5813 = vadd.f32 %v5678, %v5812
    %v5814 = vpop.f32.mrb[0].mxu0
    %5815 = vmatprep.mubr.f32.mxu0 0.0
    %5816 = vmatmul.mubr.f32.gmra.mrb[0].mxu0 %v5693
    %v5817 = vpop.f32.mrb[0].mxu0
    %v5818 = vadd.f32 %v5678, %v5817
    %v5819 = vpop.f32.mrb[0].mxu0
    %5820 = vmatprep.mubr.f32.mxu0 0.0
    %5821 = vmatmul.mubr.f32.gmra.mrb[0].mxu0 %v5696
    %v5822 = vpop.f32.mrb[0].mxu0
    %v5823 = vadd.f32 %v5678, %v5822
    %v5824 = vpop.f32.mrb[0].mxu0
    %5825 = vmatprep.mubr.f32.mxu0 0.0
    %5826 = vmatmul.mubr.f32.gmra.mrb[0].mxu0 %v5699
    %v5827 = vpop.f32.mrb[0].mxu0
    %v5828 = vadd.f32 %v5678, %v5827
    %v5829 = vpop.f32.mrb[0].mxu0
    %5830 = vmatprep.mubr.f32.mxu0 0.0
    %5831 = vmatmul.mubr.f32.gmra.mrb[0].mxu0 %v5702
    %v5832 = vpop.f32.mrb[0].mxu0
    %v5833 = vadd.f32 %v5678, %v5832
    %v5834 = vpop.f32.mrb[0].mxu0
    %5835 = vmatprep.mubr.f32.mxu0 0.0
    %5836 = vmatmul.mubr.f32.gmra.mrb[0].mxu0 %v5705
    %v5837 = vpop.f32.mrb[0].mxu0
    %v5838 = vadd.f32 %v5678, %v5837
    %v5839 = vpop.f32.mrb[0].mxu0
    %5840 = vmatprep.mubr.f32.mxu0 0.0
    %5841 = vmatmul.mubr.f32.gmra.mrb[0].mxu0 %v5708
    %v5842 = vpop.f32.mrb[0].mxu0
    %v5843 = vadd.f32 %v5678, %v5842
    %v5844 = vpop.f32.mrb[0].mxu0
    %5845 = vmatprep.mubr.f32.mxu0 0.0
    %5846 = vmatmul.mubr.f32.gmra.mrb[0].mxu0 %v5711
    %v5847 = vpop.f32.mrb[0].mxu0
    %v5848 = vadd.f32 %v5678, %v5847
    %v5849 = vpop.f32.mrb[0].mxu0
    %5850 = vmatprep.mubr.f32.mxu0 0.0
    %5851 = vmatmul.mubr.f32.gmra.mrb[0].mxu0 %v5714
    %v5852 = vpop.f32.mrb[0].mxu0
    %v5853 = vadd.f32 %v5678, %v5852
    %v5854 = vpop.f32.mrb[0].mxu0
    %5855 = vmatprep.mubr.f32.mxu0 0.0
    %5856 = vmatmul.mubr.f32.gmra.mrb[0].mxu0 %v5717
    %v5857 = vpop.f32.mrb[0].mxu0
    %v5858 = vadd.f32 %v5678, %v5857
    %v5859 = vpop.f32.mrb[0].mxu0
    %5860 = vmatprep.mubr.f32.mxu0 0.0
    %5861 = vmatmul.mubr.f32.gmra.mrb[0].mxu0 %v5720
    %v5862 = vpop.f32.mrb[0].mxu0
    %v5863 = vadd.f32 %v5678, %v5862
    %v5864 = vpop.f32.mrb[0].mxu0
    %5865 = vmatprep.mubr.f32.mxu0 0.0
    %5866 = vmatmul.mubr.f32.gmra.mrb[0].mxu0 %v5723
    %v5867 = vpop.f32.mrb[0].mxu0
    %v5868 = vadd.f32 %v5678, %v5867
    %v5869 = vpop.f32.mrb[0].mxu0
    %5870 = vmatprep.mubr.f32.mxu0 0.0
    %5871 = vmatmul.mubr.f32.gmra.mrb[0].mxu0 %v5726
    %v5872 = vpop.f32.mrb[0].mxu0
    %v5873 = vadd.f32 %v5678, %v5872
    %v5874 = vpop.f32.mrb[0].mxu0
    %5875 = vdwg.mxu0
    %v5876 = vmax.f32 %v5798, 0.0
    %v5877 = vmax.f32 %v5803, 0.0
    %v5878 = vmax.f32 %v5808, 0.0
    %v5879 = vmax.f32 %v5813, 0.0
    %v5880 = vmax.f32 %v5818, 0.0
    %v5881 = vmax.f32 %v5823, 0.0
    %v5882 = vmax.f32 %v5828, 0.0
    %v5883 = vmax.f32 %v5833, 0.0
    %v5884 = vmax.f32 %v5838, 0.0
    %v5885 = vmax.f32 %v5843, 0.0
    %v5886 = vmax.f32 %v5848, 0.0
    %v5887 = vmax.f32 %v5853, 0.0
    %v5888 = vmax.f32 %v5858, 0.0
    %v5889 = vmax.f32 %v5863, 0.0
    %v5890 = vmax.f32 %v5868, 0.0
    %v5891 = vmax.f32 %v5873, 0.0
    %v5892 = vld [vmem:[%s12] sm:$0xff]
    %v5893 = vld [vmem:[%s12 + $0x8] sm:$0xff]
    %v5894 = vld [vmem:[%s12 + $0x10] sm:$0xff]
    %v5895 = vld [vmem:[%s12 + $0x18] sm:$0xff]
    %v5896 = vld [vmem:[%s12 + $0x20] sm:$0xff]
    %v5897 = vld [vmem:[%s12 + $0x28] sm:$0xff]
    %v5898 = vld [vmem:[%s12 + $0x30] sm:$0xff]
    %v5899 = vld [vmem:[%s12 + $0x38] sm:$0xff]
    %v5900 = vld [vmem:[%s12 + $0x40] sm:$0xff]
    %v5901 = vld [vmem:[%s12 + $0x48] sm:$0xff]
    %v5902 = vld [vmem:[%s12 + $0x50] sm:$0xff]
    %v5903 = vld [vmem:[%s12 + $0x58] sm:$0xff]
    %v5904 = vld [vmem:[%s12 + $0x60] sm:$0xff]
    %v5905 = vld [vmem:[%s12 + $0x68] sm:$0xff]
    %v5906 = vld [vmem:[%s12 + $0x70] sm:$0xff]
    %v5907 = vld [vmem:[%s12 + $0x78] sm:$0xff]
    %v5908 = vld [vmem:[%s12 + $0x80] sm:$0xff]
    %v5909 = vld [vmem:[%s12 + $0x88] sm:$0xff]
    %v5910 = vld [vmem:[%s13] sm:$0x1]
    %5911 = vmatprep.subr.mxu0 0.0
    %5912 = vmatpush1.msra.mxu0 %v5876
    %5913 = vmatprep.subr.mxu0 0.0
    %5914 = vmatpush1.msra.mxu0 %v5877
    %5915 = vmatprep.subr.mxu0 0.0
    %5916 = vmatpush1.msra.mxu0 %v5878
    %5917 = vmatprep.subr.mxu0 0.0
    %5918 = vmatpush1.msra.mxu0 %v5879
    %5919 = vmatprep.subr.mxu0 0.0
    %5920 = vmatpush1.msra.mxu0 %v5880
    %5921 = vmatprep.subr.mxu0 0.0
    %5922 = vmatpush1.msra.mxu0 %v5881
    %5923 = vmatprep.subr.mxu0 0.0
    %5924 = vmatpush1.msra.mxu0 %v5882
    %5925 = vmatprep.subr.mxu0 0.0
    %5926 = vmatpush1.msra.mxu0 %v5883
    %5927 = vmatprep.subr.mxu0 0.0
    %5928 = vmatpush1.msra.mxu0 %v5884
    %5929 = vmatprep.subr.mxu0 0.0
    %5930 = vmatpush1.msra.mxu0 %v5885
    %5931 = vmatprep.subr.mxu0 0.0
    %5932 = vmatpush1.msra.mxu0 %v5886
    %5933 = vmatprep.subr.mxu0 0.0
    %5934 = vmatpush1.msra.mxu0 %v5887
    %5935 = vmatprep.subr.mxu0 0.0
    %5936 = vmatpush1.msra.mxu0 %v5888
    %5937 = vmatprep.subr.mxu0 0.0
    %5938 = vmatpush1.msra.mxu0 %v5889
    %5939 = vmatprep.subr.mxu0 0.0
    %5940 = vmatpush1.msra.mxu0 %v5890
    %5941 = vmatprep.subr.mxu0 0.0
    %5942 = vmatpush1.msra.mxu0 %v5891
    %5943 = vmatprep.subr.mxu0 0.0
    %5944 = vmatpush1.msra.mxu0 0.0
    %5945 = vmatprep.subr.mxu0 0.0
    %5946 = vmatpush1.msra.mxu0 0.0
    %5947 = vmatprep.subr.mxu0 0.0
    %5948 = vmatpush1.msra.mxu0 0.0
    %5949 = vmatprep.subr.mxu0 0.0
    %5950 = vmatpush1.msra.mxu0 0.0
    %5951 = vmatprep.subr.mxu0 0.0
    %5952 = vmatpush1.msra.mxu0 0.0
    %5953 = vmatprep.subr.mxu0 0.0
    %5954 = vmatpush1.msra.mxu0 0.0
    %5955 = vmatprep.subr.mxu0 0.0
    %5956 = vmatpush1.msra.mxu0 0.0
    %5957 = vmatprep.subr.mxu0 0.0
    %5958 = vmatpush1.msra.mxu0 0.0
    %5959 = vmatprep.subr.mxu0 0.0
    %5960 = vmatpush1.msra.mxu0 0.0
    %5961 = vmatprep.subr.mxu0 0.0
    %5962 = vmatpush1.msra.mxu0 0.0
    %5963 = vmatprep.subr.mxu0 0.0
    %5964 = vmatpush1.msra.mxu0 0.0
    %5965 = vmatprep.subr.mxu0 0.0
    %5966 = vmatpush1.msra.mxu0 0.0
    %5967 = vmatprep.subr.mxu0 0.0
    %5968 = vmatpush1.msra.mxu0 0.0
    %5969 = vmatprep.subr.mxu0 0.0
    %5970 = vmatpush1.msra.mxu0 0.0
    %5971 = vmatprep.subr.mxu0 0.0
    %5972 = vmatpush1.msra.mxu0 0.0
    %5973 = vmatprep.subr.mxu0 0.0
    %5974 = vmatpush1.msra.mxu0 0.0
    %5975 = vmatprep.mubr.f32.mxu0 0.0
    %5976 = vmatmul.mubr.f32.gmra.mrb[0].mxu0 %v513
    %v5977 = vpop.f32.mrb[0].mxu0
    %v5978 = vadd.f32 0.0, %v5977
    %v5979 = vpop.f32.mrb[0].mxu0
    %5980 = vmatprep.mubr.f32.mxu0 0.0
    %5981 = vmatmul.mubr.f32.gmra.mrb[0].mxu0 %v514
    %v5982 = vpop.f32.mrb[0].mxu0
    %v5983 = vadd.f32 0.0, %v5982
    %v5984 = vpop.f32.mrb[0].mxu0
    %5985 = vmatprep.mubr.f32.mxu0 0.0
    %5986 = vmatmul.mubr.f32.gmra.mrb[0].mxu0 %v515
    %v5987 = vpop.f32.mrb[0].mxu0
    %v5988 = vadd.f32 0.0, %v5987
    %v5989 = vpop.f32.mrb[0].mxu0
    %5990 = vmatprep.mubr.f32.mxu0 0.0
    %5991 = vmatmul.mubr.f32.gmra.mrb[0].mxu0 %v516
    %v5992 = vpop.f32.mrb[0].mxu0
    %v5993 = vadd.f32 0.0, %v5992
    %v5994 = vpop.f32.mrb[0].mxu0
    %5995 = vmatprep.mubr.f32.mxu0 0.0
    %5996 = vmatmul.mubr.f32.gmra.mrb[0].mxu0 %v517
    %v5997 = vpop.f32.mrb[0].mxu0
    %v5998 = vadd.f32 0.0, %v5997
    %v5999 = vpop.f32.mrb[0].mxu0
    %6000 = vmatprep.mubr.f32.mxu0 0.0
    %6001 = vmatmul.mubr.f32.gmra.mrb[0].mxu0 %v518
    %v6002 = vpop.f32.mrb[0].mxu0
    %v6003 = vadd.f32 0.0, %v6002
    %v6004 = vpop.f32.mrb[0].mxu0
    %6005 = vmatprep.mubr.f32.mxu0 0.0
    %6006 = vmatmul.mubr.f32.gmra.mrb[0].mxu0 %v519
    %v6007 = vpop.f32.mrb[0].mxu0
    %v6008 = vadd.f32 0.0, %v6007
    %v6009 = vpop.f32.mrb[0].mxu0
    %6010 = vmatprep.mubr.f32.mxu0 0.0
    %6011 = vmatmul.mubr.f32.gmra.mrb[0].mxu0 %v520
    %v6012 = vpop.f32.mrb[0].mxu0
    %v6013 = vadd.f32 0.0, %v6012
    %v6014 = vpop.f32.mrb[0].mxu0
    %6015 = vmatprep.mubr.f32.mxu0 0.0
    %6016 = vmatmul.mubr.f32.gmra.mrb[0].mxu0 %v521
    %v6017 = vpop.f32.mrb[0].mxu0
    %v6018 = vadd.f32 0.0, %v6017
    %v6019 = vpop.f32.mrb[0].mxu0
    %6020 = vmatprep.mubr.f32.mxu0 0.0
    %6021 = vmatmul.mubr.f32.gmra.mrb[0].mxu0 %v522
    %v6022 = vpop.f32.mrb[0].mxu0
    %v6023 = vadd.f32 0.0, %v6022
    %v6024 = vpop.f32.mrb[0].mxu0
    %6025 = vmatprep.mubr.f32.mxu0 0.0
    %6026 = vmatmul.mubr.f32.gmra.mrb[0].mxu0 %v523
    %v6027 = vpop.f32.mrb[0].mxu0
    %v6028 = vadd.f32 0.0, %v6027
    %v6029 = vpop.f32.mrb[0].mxu0
    %6030 = vmatprep.mubr.f32.mxu0 0.0
    %6031 = vmatmul.mubr.f32.gmra.mrb[0].mxu0 %v524
    %v6032 = vpop.f32.mrb[0].mxu0
    %v6033 = vadd.f32 0.0, %v6032
    %v6034 = vpop.f32.mrb[0].mxu0
    %6035 = vmatprep.mubr.f32.mxu0 0.0
    %6036 = vmatmul.mubr.f32.gmra.mrb[0].mxu0 %v525
    %v6037 = vpop.f32.mrb[0].mxu0
    %v6038 = vadd.f32 0.0, %v6037
    %v6039 = vpop.f32.mrb[0].mxu0
    %6040 = vmatprep.mubr.f32.mxu0 0.0
    %6041 = vmatmul.mubr.f32.gmra.mrb[0].mxu0 %v526
    %v6042 = vpop.f32.mrb[0].mxu0
    %v6043 = vadd.f32 0.0, %v6042
    %v6044 = vpop.f32.mrb[0].mxu0
    %6045 = vmatprep.mubr.f32.mxu0 0.0
    %6046 = vmatmul.mubr.f32.gmra.mrb[0].mxu0 %v527
    %v6047 = vpop.f32.mrb[0].mxu0
    %v6048 = vadd.f32 0.0, %v6047
    %v6049 = vpop.f32.mrb[0].mxu0
    %6050 = vmatprep.mubr.f32.mxu0 0.0
    %6051 = vmatmul.mubr.f32.gmra.mrb[0].mxu0 %v528
    %v6052 = vpop.f32.mrb[0].mxu0
    %v6053 = vadd.f32 0.0, %v6052
    %v6054 = vpop.f32.mrb[0].mxu0
    %6055 = vmatprep.mubr.f32.mxu0 0.0
    %6056 = vmatmul.mubr.f32.gmra.mrb[0].mxu0 %v529
    %v6057 = vpop.f32.mrb[0].mxu0
    %v6058 = vadd.f32 0.0, %v6057
    %v6059 = vpop.f32.mrb[0].mxu0
    %6060 = vmatprep.mubr.f32.mxu0 0.0
    %6061 = vmatmul.mubr.f32.gmra.mrb[0].mxu0 %v530
    %v6062 = vpop.f32.mrb[0].mxu0
    %v6063 = vadd.f32 0.0, %v6062
    %v6064 = vpop.f32.mrb[0].mxu0
    %6065 = vmatprep.mubr.f32.mxu0 0.0
    %6066 = vmatmul.mubr.f32.gmra.mrb[0].mxu0 %v531
    %v6067 = vpop.f32.mrb[0].mxu0
    %v6068 = vadd.f32 0.0, %v6067
    %v6069 = vpop.f32.mrb[0].mxu0
    %6070 = vmatprep.mubr.f32.mxu0 0.0
    %6071 = vmatmul.mubr.f32.gmra.mrb[0].mxu0 %v532
    %v6072 = vpop.f32.mrb[0].mxu0
    %v6073 = vadd.f32 0.0, %v6072
    %v6074 = vpop.f32.mrb[0].mxu0
    %6075 = vmatprep.mubr.f32.mxu0 0.0
    %6076 = vmatmul.mubr.f32.gmra.mrb[0].mxu0 %v533
    %v6077 = vpop.f32.mrb[0].mxu0
    %v6078 = vadd.f32 0.0, %v6077
    %v6079 = vpop.f32.mrb[0].mxu0
    %6080 = vmatprep.mubr.f32.mxu0 0.0
    %6081 = vmatmul.mubr.f32.gmra.mrb[0].mxu0 %v534
    %v6082 = vpop.f32.mrb[0].mxu0
    %v6083 = vadd.f32 0.0, %v6082
    %v6084 = vpop.f32.mrb[0].mxu0
    %6085 = vmatprep.mubr.f32.mxu0 0.0
    %6086 = vmatmul.mubr.f32.gmra.mrb[0].mxu0 %v535
    %v6087 = vpop.f32.mrb[0].mxu0
    %v6088 = vadd.f32 0.0, %v6087
    %v6089 = vpop.f32.mrb[0].mxu0
    %6090 = vmatprep.mubr.f32.mxu0 0.0
    %6091 = vmatmul.mubr.f32.gmra.mrb[0].mxu0 %v536
    %v6092 = vpop.f32.mrb[0].mxu0
    %v6093 = vadd.f32 0.0, %v6092
    %v6094 = vpop.f32.mrb[0].mxu0
    %6095 = vmatprep.mubr.f32.mxu0 0.0
    %6096 = vmatmul.mubr.f32.gmra.mrb[0].mxu0 %v537
    %v6097 = vpop.f32.mrb[0].mxu0
    %v6098 = vadd.f32 0.0, %v6097
    %v6099 = vpop.f32.mrb[0].mxu0
    %6100 = vmatprep.mubr.f32.mxu0 0.0
    %6101 = vmatmul.mubr.f32.gmra.mrb[0].mxu0 %v538
    %v6102 = vpop.f32.mrb[0].mxu0
    %v6103 = vadd.f32 0.0, %v6102
    %v6104 = vpop.f32.mrb[0].mxu0
    %6105 = vmatprep.mubr.f32.mxu0 0.0
    %6106 = vmatmul.mubr.f32.gmra.mrb[0].mxu0 %v539
    %v6107 = vpop.f32.mrb[0].mxu0
    %v6108 = vadd.f32 0.0, %v6107
    %v6109 = vpop.f32.mrb[0].mxu0
    %6110 = vmatprep.mubr.f32.mxu0 0.0
    %6111 = vmatmul.mubr.f32.gmra.mrb[0].mxu0 %v540
    %v6112 = vpop.f32.mrb[0].mxu0
    %v6113 = vadd.f32 0.0, %v6112
    %v6114 = vpop.f32.mrb[0].mxu0
    %6115 = vmatprep.mubr.f32.mxu0 0.0
    %6116 = vmatmul.mubr.f32.gmra.mrb[0].mxu0 %v541
    %v6117 = vpop.f32.mrb[0].mxu0
    %v6118 = vadd.f32 0.0, %v6117
    %v6119 = vpop.f32.mrb[0].mxu0
    %6120 = vmatprep.mubr.f32.mxu0 0.0
    %6121 = vmatmul.mubr.f32.gmra.mrb[0].mxu0 %v542
    %v6122 = vpop.f32.mrb[0].mxu0
    %v6123 = vadd.f32 0.0, %v6122
    %v6124 = vpop.f32.mrb[0].mxu0
    %6125 = vmatprep.mubr.f32.mxu0 0.0
    %6126 = vmatmul.mubr.f32.gmra.mrb[0].mxu0 %v543
    %v6127 = vpop.f32.mrb[0].mxu0
    %v6128 = vadd.f32 0.0, %v6127
    %v6129 = vpop.f32.mrb[0].mxu0
    %6130 = vmatprep.mubr.f32.mxu0 0.0
    %6131 = vmatmul.mubr.f32.gmra.mrb[0].mxu0 %v544
    %v6132 = vpop.f32.mrb[0].mxu0
    %v6133 = vadd.f32 0.0, %v6132
    %v6134 = vpop.f32.mrb[0].mxu0
    %6135 = vmatprep.mubr.f32.mxu0 0.0
    %6136 = vmatmul.mubr.f32.gmra.mrb[0].mxu0 %v545
    %v6137 = vpop.f32.mrb[0].mxu0
    %v6138 = vadd.f32 0.0, %v6137
    %v6139 = vpop.f32.mrb[0].mxu0
    %6140 = vmatprep.mubr.f32.mxu0 0.0
    %6141 = vmatmul.mubr.f32.gmra.mrb[0].mxu0 %v546
    %v6142 = vpop.f32.mrb[0].mxu0
    %v6143 = vadd.f32 0.0, %v6142
    %v6144 = vpop.f32.mrb[0].mxu0
    %6145 = vmatprep.mubr.f32.mxu0 0.0
    %6146 = vmatmul.mubr.f32.gmra.mrb[0].mxu0 %v547
    %v6147 = vpop.f32.mrb[0].mxu0
    %v6148 = vadd.f32 0.0, %v6147
    %v6149 = vpop.f32.mrb[0].mxu0
    %6150 = vmatprep.mubr.f32.mxu0 0.0
    %6151 = vmatmul.mubr.f32.gmra.mrb[0].mxu0 %v548
    %v6152 = vpop.f32.mrb[0].mxu0
    %v6153 = vadd.f32 0.0, %v6152
    %v6154 = vpop.f32.mrb[0].mxu0
    %6155 = vmatprep.mubr.f32.mxu0 0.0
    %6156 = vmatmul.mubr.f32.gmra.mrb[0].mxu0 %v549
    %v6157 = vpop.f32.mrb[0].mxu0
    %v6158 = vadd.f32 0.0, %v6157
    %v6159 = vpop.f32.mrb[0].mxu0
    %6160 = vmatprep.mubr.f32.mxu0 0.0
    %6161 = vmatmul.mubr.f32.gmra.mrb[0].mxu0 %v550
    %v6162 = vpop.f32.mrb[0].mxu0
    %v6163 = vadd.f32 0.0, %v6162
    %v6164 = vpop.f32.mrb[0].mxu0
    %6165 = vmatprep.mubr.f32.mxu0 0.0
    %6166 = vmatmul.mubr.f32.gmra.mrb[0].mxu0 %v551
    %v6167 = vpop.f32.mrb[0].mxu0
    %v6168 = vadd.f32 0.0, %v6167
    %v6169 = vpop.f32.mrb[0].mxu0
    %6170 = vmatprep.mubr.f32.mxu0 0.0
    %6171 = vmatmul.mubr.f32.gmra.mrb[0].mxu0 %v552
    %v6172 = vpop.f32.mrb[0].mxu0
    %v6173 = vadd.f32 0.0, %v6172
    %v6174 = vpop.f32.mrb[0].mxu0
    %6175 = vmatprep.mubr.f32.mxu0 0.0
    %6176 = vmatmul.mubr.f32.gmra.mrb[0].mxu0 %v553
    %v6177 = vpop.f32.mrb[0].mxu0
    %v6178 = vadd.f32 0.0, %v6177
    %v6179 = vpop.f32.mrb[0].mxu0
    %6180 = vmatprep.mubr.f32.mxu0 0.0
    %6181 = vmatmul.mubr.f32.gmra.mrb[0].mxu0 %v554
    %v6182 = vpop.f32.mrb[0].mxu0
    %v6183 = vadd.f32 0.0, %v6182
    %v6184 = vpop.f32.mrb[0].mxu0
    %6185 = vmatprep.mubr.f32.mxu0 0.0
    %6186 = vmatmul.mubr.f32.gmra.mrb[0].mxu0 %v555
    %v6187 = vpop.f32.mrb[0].mxu0
    %v6188 = vadd.f32 0.0, %v6187
    %v6189 = vpop.f32.mrb[0].mxu0
    %6190 = vmatprep.mubr.f32.mxu0 0.0
    %6191 = vmatmul.mubr.f32.gmra.mrb[0].mxu0 %v556
    %v6192 = vpop.f32.mrb[0].mxu0
    %v6193 = vadd.f32 0.0, %v6192
    %v6194 = vpop.f32.mrb[0].mxu0
    %6195 = vmatprep.mubr.f32.mxu0 0.0
    %6196 = vmatmul.mubr.f32.gmra.mrb[0].mxu0 %v557
    %v6197 = vpop.f32.mrb[0].mxu0
    %v6198 = vadd.f32 0.0, %v6197
    %v6199 = vpop.f32.mrb[0].mxu0
    %6200 = vmatprep.mubr.f32.mxu0 0.0
    %6201 = vmatmul.mubr.f32.gmra.mrb[0].mxu0 %v558
    %v6202 = vpop.f32.mrb[0].mxu0
    %v6203 = vadd.f32 0.0, %v6202
    %v6204 = vpop.f32.mrb[0].mxu0
    %6205 = vmatprep.mubr.f32.mxu0 0.0
    %6206 = vmatmul.mubr.f32.gmra.mrb[0].mxu0 %v559
    %v6207 = vpop.f32.mrb[0].mxu0
    %v6208 = vadd.f32 0.0, %v6207
    %v6209 = vpop.f32.mrb[0].mxu0
    %6210 = vmatprep.mubr.f32.mxu0 0.0
    %6211 = vmatmul.mubr.f32.gmra.mrb[0].mxu0 %v560
    %v6212 = vpop.f32.mrb[0].mxu0
    %v6213 = vadd.f32 0.0, %v6212
    %v6214 = vpop.f32.mrb[0].mxu0
    %6215 = vmatprep.mubr.f32.mxu0 0.0
    %6216 = vmatmul.mubr.f32.gmra.mrb[0].mxu0 %v561
    %v6217 = vpop.f32.mrb[0].mxu0
    %v6218 = vadd.f32 0.0, %v6217
    %v6219 = vpop.f32.mrb[0].mxu0
    %6220 = vmatprep.mubr.f32.mxu0 0.0
    %6221 = vmatmul.mubr.f32.gmra.mrb[0].mxu0 %v562
    %v6222 = vpop.f32.mrb[0].mxu0
    %v6223 = vadd.f32 0.0, %v6222
    %v6224 = vpop.f32.mrb[0].mxu0
    %6225 = vmatprep.mubr.f32.mxu0 0.0
    %6226 = vmatmul.mubr.f32.gmra.mrb[0].mxu0 %v563
    %v6227 = vpop.f32.mrb[0].mxu0
    %v6228 = vadd.f32 0.0, %v6227
    %v6229 = vpop.f32.mrb[0].mxu0
    %6230 = vmatprep.mubr.f32.mxu0 0.0
    %6231 = vmatmul.mubr.f32.gmra.mrb[0].mxu0 %v564
    %v6232 = vpop.f32.mrb[0].mxu0
    %v6233 = vadd.f32 0.0, %v6232
    %v6234 = vpop.f32.mrb[0].mxu0
    %6235 = vmatprep.mubr.f32.mxu0 0.0
    %6236 = vmatmul.mubr.f32.gmra.mrb[0].mxu0 %v565
    %v6237 = vpop.f32.mrb[0].mxu0
    %v6238 = vadd.f32 0.0, %v6237
    %v6239 = vpop.f32.mrb[0].mxu0
    %6240 = vmatprep.mubr.f32.mxu0 0.0
    %6241 = vmatmul.mubr.f32.gmra.mrb[0].mxu0 %v566
    %v6242 = vpop.f32.mrb[0].mxu0
    %v6243 = vadd.f32 0.0, %v6242
    %v6244 = vpop.f32.mrb[0].mxu0
    %6245 = vmatprep.mubr.f32.mxu0 0.0
    %6246 = vmatmul.mubr.f32.gmra.mrb[0].mxu0 %v567
    %v6247 = vpop.f32.mrb[0].mxu0
    %v6248 = vadd.f32 0.0, %v6247
    %v6249 = vpop.f32.mrb[0].mxu0
    %6250 = vmatprep.mubr.f32.mxu0 0.0
    %6251 = vmatmul.mubr.f32.gmra.mrb[0].mxu0 %v568
    %v6252 = vpop.f32.mrb[0].mxu0
    %v6253 = vadd.f32 0.0, %v6252
    %v6254 = vpop.f32.mrb[0].mxu0
    %6255 = vmatprep.mubr.f32.mxu0 0.0
    %6256 = vmatmul.mubr.f32.gmra.mrb[0].mxu0 %v569
    %v6257 = vpop.f32.mrb[0].mxu0
    %v6258 = vadd.f32 0.0, %v6257
    %v6259 = vpop.f32.mrb[0].mxu0
    %6260 = vmatprep.mubr.f32.mxu0 0.0
    %6261 = vmatmul.mubr.f32.gmra.mrb[0].mxu0 %v570
    %v6262 = vpop.f32.mrb[0].mxu0
    %v6263 = vadd.f32 0.0, %v6262
    %v6264 = vpop.f32.mrb[0].mxu0
    %6265 = vmatprep.mubr.f32.mxu0 0.0
    %6266 = vmatmul.mubr.f32.gmra.mrb[0].mxu0 %v571
    %v6267 = vpop.f32.mrb[0].mxu0
    %v6268 = vadd.f32 0.0, %v6267
    %v6269 = vpop.f32.mrb[0].mxu0
    %6270 = vmatprep.mubr.f32.mxu0 0.0
    %6271 = vmatmul.mubr.f32.gmra.mrb[0].mxu0 %v572
    %v6272 = vpop.f32.mrb[0].mxu0
    %v6273 = vadd.f32 0.0, %v6272
    %v6274 = vpop.f32.mrb[0].mxu0
    %6275 = vmatprep.mubr.f32.mxu0 0.0
    %6276 = vmatmul.mubr.f32.gmra.mrb[0].mxu0 %v573
    %v6277 = vpop.f32.mrb[0].mxu0
    %v6278 = vadd.f32 0.0, %v6277
    %v6279 = vpop.f32.mrb[0].mxu0
    %6280 = vmatprep.mubr.f32.mxu0 0.0
    %6281 = vmatmul.mubr.f32.gmra.mrb[0].mxu0 %v574
    %v6282 = vpop.f32.mrb[0].mxu0
    %v6283 = vadd.f32 0.0, %v6282
    %v6284 = vpop.f32.mrb[0].mxu0
    %6285 = vmatprep.mubr.f32.mxu0 0.0
    %6286 = vmatmul.mubr.f32.gmra.mrb[0].mxu0 %v575
    %v6287 = vpop.f32.mrb[0].mxu0
    %v6288 = vadd.f32 0.0, %v6287
    %v6289 = vpop.f32.mrb[0].mxu0
    %6290 = vmatprep.mubr.f32.mxu0 0.0
    %6291 = vmatmul.mubr.f32.gmra.mrb[0].mxu0 %v576
    %v6292 = vpop.f32.mrb[0].mxu0
    %v6293 = vadd.f32 0.0, %v6292
    %v6294 = vpop.f32.mrb[0].mxu0
    %6295 = vmatprep.mubr.f32.mxu0 0.0
    %6296 = vmatmul.mubr.f32.gmra.mrb[0].mxu0 %v577
    %v6297 = vpop.f32.mrb[0].mxu0
    %v6298 = vadd.f32 0.0, %v6297
    %v6299 = vpop.f32.mrb[0].mxu0
    %6300 = vmatprep.mubr.f32.mxu0 0.0
    %6301 = vmatmul.mubr.f32.gmra.mrb[0].mxu0 %v578
    %v6302 = vpop.f32.mrb[0].mxu0
    %v6303 = vadd.f32 0.0, %v6302
    %v6304 = vpop.f32.mrb[0].mxu0
    %6305 = vmatprep.mubr.f32.mxu0 0.0
    %6306 = vmatmul.mubr.f32.gmra.mrb[0].mxu0 %v579
    %v6307 = vpop.f32.mrb[0].mxu0
    %v6308 = vadd.f32 0.0, %v6307
    %v6309 = vpop.f32.mrb[0].mxu0
    %6310 = vmatprep.mubr.f32.mxu0 0.0
    %6311 = vmatmul.mubr.f32.gmra.mrb[0].mxu0 %v580
    %v6312 = vpop.f32.mrb[0].mxu0
    %v6313 = vadd.f32 0.0, %v6312
    %v6314 = vpop.f32.mrb[0].mxu0
    %6315 = vmatprep.mubr.f32.mxu0 0.0
    %6316 = vmatmul.mubr.f32.gmra.mrb[0].mxu0 %v581
    %v6317 = vpop.f32.mrb[0].mxu0
    %v6318 = vadd.f32 0.0, %v6317
    %v6319 = vpop.f32.mrb[0].mxu0
    %6320 = vmatprep.mubr.f32.mxu0 0.0
    %6321 = vmatmul.mubr.f32.gmra.mrb[0].mxu0 %v582
    %v6322 = vpop.f32.mrb[0].mxu0
    %v6323 = vadd.f32 0.0, %v6322
    %v6324 = vpop.f32.mrb[0].mxu0
    %6325 = vmatprep.mubr.f32.mxu0 0.0
    %6326 = vmatmul.mubr.f32.gmra.mrb[0].mxu0 %v583
    %v6327 = vpop.f32.mrb[0].mxu0
    %v6328 = vadd.f32 0.0, %v6327
    %v6329 = vpop.f32.mrb[0].mxu0
    %6330 = vmatprep.mubr.f32.mxu0 0.0
    %6331 = vmatmul.mubr.f32.gmra.mrb[0].mxu0 %v584
    %v6332 = vpop.f32.mrb[0].mxu0
    %v6333 = vadd.f32 0.0, %v6332
    %v6334 = vpop.f32.mrb[0].mxu0
    %6335 = vmatprep.mubr.f32.mxu0 0.0
    %6336 = vmatmul.mubr.f32.gmra.mrb[0].mxu0 %v585
    %v6337 = vpop.f32.mrb[0].mxu0
    %v6338 = vadd.f32 0.0, %v6337
    %v6339 = vpop.f32.mrb[0].mxu0
    %6340 = vmatprep.mubr.f32.mxu0 0.0
    %6341 = vmatmul.mubr.f32.gmra.mrb[0].mxu0 %v586
    %v6342 = vpop.f32.mrb[0].mxu0
    %v6343 = vadd.f32 0.0, %v6342
    %v6344 = vpop.f32.mrb[0].mxu0
    %6345 = vmatprep.mubr.f32.mxu0 0.0
    %6346 = vmatmul.mubr.f32.gmra.mrb[0].mxu0 %v587
    %v6347 = vpop.f32.mrb[0].mxu0
    %v6348 = vadd.f32 0.0, %v6347
    %v6349 = vpop.f32.mrb[0].mxu0
    %6350 = vmatprep.mubr.f32.mxu0 0.0
    %6351 = vmatmul.mubr.f32.gmra.mrb[0].mxu0 %v588
    %v6352 = vpop.f32.mrb[0].mxu0
    %v6353 = vadd.f32 0.0, %v6352
    %v6354 = vpop.f32.mrb[0].mxu0
    %6355 = vmatprep.mubr.f32.mxu0 0.0
    %6356 = vmatmul.mubr.f32.gmra.mrb[0].mxu0 %v589
    %v6357 = vpop.f32.mrb[0].mxu0
    %v6358 = vadd.f32 0.0, %v6357
    %v6359 = vpop.f32.mrb[0].mxu0
    %6360 = vmatprep.mubr.f32.mxu0 0.0
    %6361 = vmatmul.mubr.f32.gmra.mrb[0].mxu0 %v590
    %v6362 = vpop.f32.mrb[0].mxu0
    %v6363 = vadd.f32 0.0, %v6362
    %v6364 = vpop.f32.mrb[0].mxu0
    %6365 = vmatprep.mubr.f32.mxu0 0.0
    %6366 = vmatmul.mubr.f32.gmra.mrb[0].mxu0 %v591
    %v6367 = vpop.f32.mrb[0].mxu0
    %v6368 = vadd.f32 0.0, %v6367
    %v6369 = vpop.f32.mrb[0].mxu0
    %6370 = vmatprep.mubr.f32.mxu0 0.0
    %6371 = vmatmul.mubr.f32.gmra.mrb[0].mxu0 %v592
    %v6372 = vpop.f32.mrb[0].mxu0
    %v6373 = vadd.f32 0.0, %v6372
    %v6374 = vpop.f32.mrb[0].mxu0
    %6375 = vmatprep.mubr.f32.mxu0 0.0
    %6376 = vmatmul.mubr.f32.gmra.mrb[0].mxu0 %v593
    %v6377 = vpop.f32.mrb[0].mxu0
    %v6378 = vadd.f32 0.0, %v6377
    %v6379 = vpop.f32.mrb[0].mxu0
    %6380 = vmatprep.mubr.f32.mxu0 0.0
    %6381 = vmatmul.mubr.f32.gmra.mrb[0].mxu0 %v594
    %v6382 = vpop.f32.mrb[0].mxu0
    %v6383 = vadd.f32 0.0, %v6382
    %v6384 = vpop.f32.mrb[0].mxu0
    %6385 = vmatprep.mubr.f32.mxu0 0.0
    %6386 = vmatmul.mubr.f32.gmra.mrb[0].mxu0 %v595
    %v6387 = vpop.f32.mrb[0].mxu0
    %v6388 = vadd.f32 0.0, %v6387
    %v6389 = vpop.f32.mrb[0].mxu0
    %6390 = vmatprep.mubr.f32.mxu0 0.0
    %6391 = vmatmul.mubr.f32.gmra.mrb[0].mxu0 %v596
    %v6392 = vpop.f32.mrb[0].mxu0
    %v6393 = vadd.f32 0.0, %v6392
    %v6394 = vpop.f32.mrb[0].mxu0
    %6395 = vmatprep.mubr.f32.mxu0 0.0
    %6396 = vmatmul.mubr.f32.gmra.mrb[0].mxu0 %v597
    %v6397 = vpop.f32.mrb[0].mxu0
    %v6398 = vadd.f32 0.0, %v6397
    %v6399 = vpop.f32.mrb[0].mxu0
    %6400 = vmatprep.mubr.f32.mxu0 0.0
    %6401 = vmatmul.mubr.f32.gmra.mrb[0].mxu0 %v598
    %v6402 = vpop.f32.mrb[0].mxu0
    %v6403 = vadd.f32 0.0, %v6402
    %v6404 = vpop.f32.mrb[0].mxu0
    %6405 = vmatprep.mubr.f32.mxu0 0.0
    %6406 = vmatmul.mubr.f32.gmra.mrb[0].mxu0 %v599
    %v6407 = vpop.f32.mrb[0].mxu0
    %v6408 = vadd.f32 0.0, %v6407
    %v6409 = vpop.f32.mrb[0].mxu0
    %6410 = vmatprep.mubr.f32.mxu0 0.0
    %6411 = vmatmul.mubr.f32.gmra.mrb[0].mxu0 %v600
    %v6412 = vpop.f32.mrb[0].mxu0
    %v6413 = vadd.f32 0.0, %v6412
    %v6414 = vpop.f32.mrb[0].mxu0
    %6415 = vmatprep.mubr.f32.mxu0 0.0
    %6416 = vmatmul.mubr.f32.gmra.mrb[0].mxu0 %v601
    %v6417 = vpop.f32.mrb[0].mxu0
    %v6418 = vadd.f32 0.0, %v6417
    %v6419 = vpop.f32.mrb[0].mxu0
    %6420 = vmatprep.mubr.f32.mxu0 0.0
    %6421 = vmatmul.mubr.f32.gmra.mrb[0].mxu0 %v602
    %v6422 = vpop.f32.mrb[0].mxu0
    %v6423 = vadd.f32 0.0, %v6422
    %v6424 = vpop.f32.mrb[0].mxu0
    %6425 = vmatprep.mubr.f32.mxu0 0.0
    %6426 = vmatmul.mubr.f32.gmra.mrb[0].mxu0 %v603
    %v6427 = vpop.f32.mrb[0].mxu0
    %v6428 = vadd.f32 0.0, %v6427
    %v6429 = vpop.f32.mrb[0].mxu0
    %6430 = vmatprep.mubr.f32.mxu0 0.0
    %6431 = vmatmul.mubr.f32.gmra.mrb[0].mxu0 %v604
    %v6432 = vpop.f32.mrb[0].mxu0
    %v6433 = vadd.f32 0.0, %v6432
    %v6434 = vpop.f32.mrb[0].mxu0
    %6435 = vmatprep.mubr.f32.mxu0 0.0
    %6436 = vmatmul.mubr.f32.gmra.mrb[0].mxu0 %v605
    %v6437 = vpop.f32.mrb[0].mxu0
    %v6438 = vadd.f32 0.0, %v6437
    %v6439 = vpop.f32.mrb[0].mxu0
    %6440 = vmatprep.mubr.f32.mxu0 0.0
    %6441 = vmatmul.mubr.f32.gmra.mrb[0].mxu0 %v606
    %v6442 = vpop.f32.mrb[0].mxu0
    %v6443 = vadd.f32 0.0, %v6442
    %v6444 = vpop.f32.mrb[0].mxu0
    %6445 = vmatprep.mubr.f32.mxu0 0.0
    %6446 = vmatmul.mubr.f32.gmra.mrb[0].mxu0 %v607
    %v6447 = vpop.f32.mrb[0].mxu0
    %v6448 = vadd.f32 0.0, %v6447
    %v6449 = vpop.f32.mrb[0].mxu0
    %6450 = vmatprep.mubr.f32.mxu0 0.0
    %6451 = vmatmul.mubr.f32.gmra.mrb[0].mxu0 %v608
    %v6452 = vpop.f32.mrb[0].mxu0
    %v6453 = vadd.f32 0.0, %v6452
    %v6454 = vpop.f32.mrb[0].mxu0
    %6455 = vmatprep.mubr.f32.mxu0 0.0
    %6456 = vmatmul.mubr.f32.gmra.mrb[0].mxu0 %v609
    %v6457 = vpop.f32.mrb[0].mxu0
    %v6458 = vadd.f32 0.0, %v6457
    %v6459 = vpop.f32.mrb[0].mxu0
    %6460 = vmatprep.mubr.f32.mxu0 0.0
    %6461 = vmatmul.mubr.f32.gmra.mrb[0].mxu0 %v610
    %v6462 = vpop.f32.mrb[0].mxu0
    %v6463 = vadd.f32 0.0, %v6462
    %v6464 = vpop.f32.mrb[0].mxu0
    %6465 = vmatprep.mubr.f32.mxu0 0.0
    %6466 = vmatmul.mubr.f32.gmra.mrb[0].mxu0 %v611
    %v6467 = vpop.f32.mrb[0].mxu0
    %v6468 = vadd.f32 0.0, %v6467
    %v6469 = vpop.f32.mrb[0].mxu0
    %6470 = vmatprep.mubr.f32.mxu0 0.0
    %6471 = vmatmul.mubr.f32.gmra.mrb[0].mxu0 %v612
    %v6472 = vpop.f32.mrb[0].mxu0
    %v6473 = vadd.f32 0.0, %v6472
    %v6474 = vpop.f32.mrb[0].mxu0
    %6475 = vmatprep.mubr.f32.mxu0 0.0
    %6476 = vmatmul.mubr.f32.gmra.mrb[0].mxu0 %v613
    %v6477 = vpop.f32.mrb[0].mxu0
    %v6478 = vadd.f32 0.0, %v6477
    %v6479 = vpop.f32.mrb[0].mxu0
    %6480 = vmatprep.mubr.f32.mxu0 0.0
    %6481 = vmatmul.mubr.f32.gmra.mrb[0].mxu0 %v614
    %v6482 = vpop.f32.mrb[0].mxu0
    %v6483 = vadd.f32 0.0, %v6482
    %v6484 = vpop.f32.mrb[0].mxu0
    %6485 = vmatprep.mubr.f32.mxu0 0.0
    %6486 = vmatmul.mubr.f32.gmra.mrb[0].mxu0 %v615
    %v6487 = vpop.f32.mrb[0].mxu0
    %v6488 = vadd.f32 0.0, %v6487
    %v6489 = vpop.f32.mrb[0].mxu0
    %6490 = vmatprep.mubr.f32.mxu0 0.0
    %6491 = vmatmul.mubr.f32.gmra.mrb[0].mxu0 %v616
    %v6492 = vpop.f32.mrb[0].mxu0
    %v6493 = vadd.f32 0.0, %v6492
    %v6494 = vpop.f32.mrb[0].mxu0
    %6495 = vmatprep.mubr.f32.mxu0 0.0
    %6496 = vmatmul.mubr.f32.gmra.mrb[0].mxu0 %v617
    %v6497 = vpop.f32.mrb[0].mxu0
    %v6498 = vadd.f32 0.0, %v6497
    %v6499 = vpop.f32.mrb[0].mxu0
    %6500 = vmatprep.mubr.f32.mxu0 0.0
    %6501 = vmatmul.mubr.f32.gmra.mrb[0].mxu0 %v618
    %v6502 = vpop.f32.mrb[0].mxu0
    %v6503 = vadd.f32 0.0, %v6502
    %v6504 = vpop.f32.mrb[0].mxu0
    %6505 = vmatprep.mubr.f32.mxu0 0.0
    %6506 = vmatmul.mubr.f32.gmra.mrb[0].mxu0 %v619
    %v6507 = vpop.f32.mrb[0].mxu0
    %v6508 = vadd.f32 0.0, %v6507
    %v6509 = vpop.f32.mrb[0].mxu0
    %6510 = vmatprep.mubr.f32.mxu0 0.0
    %6511 = vmatmul.mubr.f32.gmra.mrb[0].mxu0 %v620
    %v6512 = vpop.f32.mrb[0].mxu0
    %v6513 = vadd.f32 0.0, %v6512
    %v6514 = vpop.f32.mrb[0].mxu0
    %6515 = vmatprep.mubr.f32.mxu0 0.0
    %6516 = vmatmul.mubr.f32.gmra.mrb[0].mxu0 %v621
    %v6517 = vpop.f32.mrb[0].mxu0
    %v6518 = vadd.f32 0.0, %v6517
    %v6519 = vpop.f32.mrb[0].mxu0
    %6520 = vmatprep.mubr.f32.mxu0 0.0
    %6521 = vmatmul.mubr.f32.gmra.mrb[0].mxu0 %v622
    %v6522 = vpop.f32.mrb[0].mxu0
    %v6523 = vadd.f32 0.0, %v6522
    %v6524 = vpop.f32.mrb[0].mxu0
    %6525 = vmatprep.mubr.f32.mxu0 0.0
    %6526 = vmatmul.mubr.f32.gmra.mrb[0].mxu0 %v623
    %v6527 = vpop.f32.mrb[0].mxu0
    %v6528 = vadd.f32 0.0, %v6527
    %v6529 = vpop.f32.mrb[0].mxu0
    %6530 = vmatprep.mubr.f32.mxu0 0.0
    %6531 = vmatmul.mubr.f32.gmra.mrb[0].mxu0 %v624
    %v6532 = vpop.f32.mrb[0].mxu0
    %v6533 = vadd.f32 0.0, %v6532
    %v6534 = vpop.f32.mrb[0].mxu0
    %6535 = vmatprep.mubr.f32.mxu0 0.0
    %6536 = vmatmul.mubr.f32.gmra.mrb[0].mxu0 %v625
    %v6537 = vpop.f32.mrb[0].mxu0
    %v6538 = vadd.f32 0.0, %v6537
    %v6539 = vpop.f32.mrb[0].mxu0
    %6540 = vmatprep.mubr.f32.mxu0 0.0
    %6541 = vmatmul.mubr.f32.gmra.mrb[0].mxu0 %v626
    %v6542 = vpop.f32.mrb[0].mxu0
    %v6543 = vadd.f32 0.0, %v6542
    %v6544 = vpop.f32.mrb[0].mxu0
    %6545 = vmatprep.mubr.f32.mxu0 0.0
    %6546 = vmatmul.mubr.f32.gmra.mrb[0].mxu0 %v627
    %v6547 = vpop.f32.mrb[0].mxu0
    %v6548 = vadd.f32 0.0, %v6547
    %v6549 = vpop.f32.mrb[0].mxu0
    %6550 = vmatprep.mubr.f32.mxu0 0.0
    %6551 = vmatmul.mubr.f32.gmra.mrb[0].mxu0 %v628
    %v6552 = vpop.f32.mrb[0].mxu0
    %v6553 = vadd.f32 0.0, %v6552
    %v6554 = vpop.f32.mrb[0].mxu0
    %6555 = vmatprep.mubr.f32.mxu0 0.0
    %6556 = vmatmul.mubr.f32.gmra.mrb[0].mxu0 %v629
    %v6557 = vpop.f32.mrb[0].mxu0
    %v6558 = vadd.f32 0.0, %v6557
    %v6559 = vpop.f32.mrb[0].mxu0
    %6560 = vmatprep.mubr.f32.mxu0 0.0
    %6561 = vmatmul.mubr.f32.gmra.mrb[0].mxu0 %v630
    %v6562 = vpop.f32.mrb[0].mxu0
    %v6563 = vadd.f32 0.0, %v6562
    %v6564 = vpop.f32.mrb[0].mxu0
    %6565 = vmatprep.mubr.f32.mxu0 0.0
    %6566 = vmatmul.mubr.f32.gmra.mrb[0].mxu0 %v631
    %v6567 = vpop.f32.mrb[0].mxu0
    %v6568 = vadd.f32 0.0, %v6567
    %v6569 = vpop.f32.mrb[0].mxu0
    %6570 = vmatprep.mubr.f32.mxu0 0.0
    %6571 = vmatmul.mubr.f32.gmra.mrb[0].mxu0 %v632
    %v6572 = vpop.f32.mrb[0].mxu0
    %v6573 = vadd.f32 0.0, %v6572
    %v6574 = vpop.f32.mrb[0].mxu0
    %6575 = vmatprep.mubr.f32.mxu0 0.0
    %6576 = vmatmul.mubr.f32.gmra.mrb[0].mxu0 %v633
    %v6577 = vpop.f32.mrb[0].mxu0
    %v6578 = vadd.f32 0.0, %v6577
    %v6579 = vpop.f32.mrb[0].mxu0
    %6580 = vmatprep.mubr.f32.mxu0 0.0
    %6581 = vmatmul.mubr.f32.gmra.mrb[0].mxu0 %v634
    %v6582 = vpop.f32.mrb[0].mxu0
    %v6583 = vadd.f32 0.0, %v6582
    %v6584 = vpop.f32.mrb[0].mxu0
    %6585 = vmatprep.mubr.f32.mxu0 0.0
    %6586 = vmatmul.mubr.f32.gmra.mrb[0].mxu0 %v635
    %v6587 = vpop.f32.mrb[0].mxu0
    %v6588 = vadd.f32 0.0, %v6587
    %v6589 = vpop.f32.mrb[0].mxu0
    %6590 = vmatprep.mubr.f32.mxu0 0.0
    %6591 = vmatmul.mubr.f32.gmra.mrb[0].mxu0 %v636
    %v6592 = vpop.f32.mrb[0].mxu0
    %v6593 = vadd.f32 0.0, %v6592
    %v6594 = vpop.f32.mrb[0].mxu0
    %6595 = vmatprep.mubr.f32.mxu0 0.0
    %6596 = vmatmul.mubr.f32.gmra.mrb[0].mxu0 %v637
    %v6597 = vpop.f32.mrb[0].mxu0
    %v6598 = vadd.f32 0.0, %v6597
    %v6599 = vpop.f32.mrb[0].mxu0
    %6600 = vmatprep.mubr.f32.mxu0 0.0
    %6601 = vmatmul.mubr.f32.gmra.mrb[0].mxu0 %v638
    %v6602 = vpop.f32.mrb[0].mxu0
    %v6603 = vadd.f32 0.0, %v6602
    %v6604 = vpop.f32.mrb[0].mxu0
    %6605 = vmatprep.mubr.f32.mxu0 0.0
    %6606 = vmatmul.mubr.f32.gmra.mrb[0].mxu0 %v639
    %v6607 = vpop.f32.mrb[0].mxu0
    %v6608 = vadd.f32 0.0, %v6607
    %v6609 = vpop.f32.mrb[0].mxu0
    %6610 = vmatprep.mubr.f32.mxu0 0.0
    %6611 = vmatmul.mubr.f32.gmra.mrb[0].mxu0 %v640
    %v6612 = vpop.f32.mrb[0].mxu0
    %v6613 = vadd.f32 0.0, %v6612
    %v6614 = vpop.f32.mrb[0].mxu0
    %6615 = vmatprep.mubr.f32.mxu0 0.0
    %6616 = vmatmul.mubr.f32.gmra.mrb[0].mxu0 %v641
    %v6617 = vpop.f32.mrb[0].mxu0
    %v6618 = vadd.f32 0.0, %v6617
    %v6619 = vpop.f32.mrb[0].mxu0
    %6620 = vmatprep.mubr.f32.mxu0 0.0
    %6621 = vmatmul.mubr.f32.gmra.mrb[0].mxu0 %v642
    %v6622 = vpop.f32.mrb[0].mxu0
    %v6623 = vadd.f32 0.0, %v6622
    %v6624 = vpop.f32.mrb[0].mxu0
    %6625 = vmatprep.mubr.f32.mxu0 0.0
    %6626 = vmatmul.mubr.f32.gmra.mrb[0].mxu0 %v643
    %v6627 = vpop.f32.mrb[0].mxu0
    %v6628 = vadd.f32 0.0, %v6627
    %v6629 = vpop.f32.mrb[0].mxu0
    %6630 = vmatprep.mubr.f32.mxu0 0.0
    %6631 = vmatmul.mubr.f32.gmra.mrb[0].mxu0 %v644
    %v6632 = vpop.f32.mrb[0].mxu0
    %v6633 = vadd.f32 0.0, %v6632
    %v6634 = vpop.f32.mrb[0].mxu0
    %6635 = vmatprep.mubr.f32.mxu0 0.0
    %6636 = vmatmul.mubr.f32.gmra.mrb[0].mxu0 %v645
    %v6637 = vpop.f32.mrb[0].mxu0
    %v6638 = vadd.f32 0.0, %v6637
    %v6639 = vpop.f32.mrb[0].mxu0
    %6640 = vmatprep.mubr.f32.mxu0 0.0
    %6641 = vmatmul.mubr.f32.gmra.mrb[0].mxu0 %v646
    %v6642 = vpop.f32.mrb[0].mxu0
    %v6643 = vadd.f32 0.0, %v6642
    %v6644 = vpop.f32.mrb[0].mxu0
    %6645 = vmatprep.mubr.f32.mxu0 0.0
    %6646 = vmatmul.mubr.f32.gmra.mrb[0].mxu0 %v647
    %v6647 = vpop.f32.mrb[0].mxu0
    %v6648 = vadd.f32 0.0, %v6647
    %v6649 = vpop.f32.mrb[0].mxu0
    %6650 = vmatprep.mubr.f32.mxu0 0.0
    %6651 = vmatmul.mubr.f32.gmra.mrb[0].mxu0 %v648
    %v6652 = vpop.f32.mrb[0].mxu0
    %v6653 = vadd.f32 0.0, %v6652
    %v6654 = vpop.f32.mrb[0].mxu0
    %6655 = vmatprep.mubr.f32.mxu0 0.0
    %6656 = vmatmul.mubr.f32.gmra.mrb[0].mxu0 %v649
    %v6657 = vpop.f32.mrb[0].mxu0
    %v6658 = vadd.f32 0.0, %v6657
    %v6659 = vpop.f32.mrb[0].mxu0
    %6660 = vmatprep.mubr.f32.mxu0 0.0
    %6661 = vmatmul.mubr.f32.gmra.mrb[0].mxu0 %v650
    %v6662 = vpop.f32.mrb[0].mxu0
    %v6663 = vadd.f32 0.0, %v6662
    %v6664 = vpop.f32.mrb[0].mxu0
    %6665 = vmatprep.mubr.f32.mxu0 0.0
    %6666 = vmatmul.mubr.f32.gmra.mrb[0].mxu0 %v651
    %v6667 = vpop.f32.mrb[0].mxu0
    %v6668 = vadd.f32 0.0, %v6667
    %v6669 = vpop.f32.mrb[0].mxu0
    %6670 = vmatprep.mubr.f32.mxu0 0.0
    %6671 = vmatmul.mubr.f32.gmra.mrb[0].mxu0 %v652
    %v6672 = vpop.f32.mrb[0].mxu0
    %v6673 = vadd.f32 0.0, %v6672
    %v6674 = vpop.f32.mrb[0].mxu0
    %6675 = vmatprep.mubr.f32.mxu0 0.0
    %6676 = vmatmul.mubr.f32.gmra.mrb[0].mxu0 %v653
    %v6677 = vpop.f32.mrb[0].mxu0
    %v6678 = vadd.f32 0.0, %v6677
    %v6679 = vpop.f32.mrb[0].mxu0
    %6680 = vmatprep.mubr.f32.mxu0 0.0
    %6681 = vmatmul.mubr.f32.gmra.mrb[0].mxu0 %v654
    %v6682 = vpop.f32.mrb[0].mxu0
    %v6683 = vadd.f32 0.0, %v6682
    %v6684 = vpop.f32.mrb[0].mxu0
    %6685 = vmatprep.mubr.f32.mxu0 0.0
    %6686 = vmatmul.mubr.f32.gmra.mrb[0].mxu0 %v655
    %v6687 = vpop.f32.mrb[0].mxu0
    %v6688 = vadd.f32 0.0, %v6687
    %v6689 = vpop.f32.mrb[0].mxu0
    %6690 = vmatprep.mubr.f32.mxu0 0.0
    %6691 = vmatmul.mubr.f32.gmra.mrb[0].mxu0 %v656
    %v6692 = vpop.f32.mrb[0].mxu0
    %v6693 = vadd.f32 0.0, %v6692
    %v6694 = vpop.f32.mrb[0].mxu0
    %6695 = vdwg.mxu0
    %6712 = vrot.lane.b32.xlu0 %v6058, 16
    %v6713 = vpop.permute.xlu0 %6712
    %6714 = vrot.lane.b32.xlu0 %v6063, 16
    %v6715 = vpop.permute.xlu0 %6714
    %6716 = vrot.lane.b32.xlu0 %v6068, 16
    %v6717 = vpop.permute.xlu0 %6716
    %6718 = vrot.lane.b32.xlu0 %v6073, 16
    %v6719 = vpop.permute.xlu0 %6718
    %6720 = vrot.lane.b32.xlu0 %v6078, 16
    %v6721 = vpop.permute.xlu0 %6720
    %6722 = vrot.lane.b32.xlu0 %v6083, 16
    %v6723 = vpop.permute.xlu0 %6722
    %6724 = vrot.lane.b32.xlu0 %v6088, 16
    %v6725 = vpop.permute.xlu0 %6724
    %6726 = vrot.lane.b32.xlu0 %v6093, 16
    %v6727 = vpop.permute.xlu0 %6726
    %6728 = vrot.lane.b32.xlu0 %v6098, 16
    %v6729 = vpop.permute.xlu0 %6728
    %6730 = vrot.lane.b32.xlu0 %v6103, 16
    %v6731 = vpop.permute.xlu0 %6730
    %6732 = vrot.lane.b32.xlu0 %v6108, 16
    %v6733 = vpop.permute.xlu0 %6732
    %6734 = vrot.lane.b32.xlu0 %v6113, 16
    %v6735 = vpop.permute.xlu0 %6734
    %6736 = vrot.lane.b32.xlu0 %v6118, 16
    %v6737 = vpop.permute.xlu0 %6736
    %6738 = vrot.lane.b32.xlu0 %v6123, 16
    %v6739 = vpop.permute.xlu0 %6738
    %6740 = vrot.lane.b32.xlu0 %v6128, 16
    %v6741 = vpop.permute.xlu0 %6740
    %6742 = vrot.lane.b32.xlu0 %v6133, 16
    %v6743 = vpop.permute.xlu0 %6742
    %6776 = vrot.lane.b32.xlu0 %v6138, 32
    %v6777 = vpop.permute.xlu0 %6776
    %6778 = vrot.lane.b32.xlu0 %v6143, 32
    %v6779 = vpop.permute.xlu0 %6778
    %6780 = vrot.lane.b32.xlu0 %v6148, 32
    %v6781 = vpop.permute.xlu0 %6780
    %6782 = vrot.lane.b32.xlu0 %v6153, 32
    %v6783 = vpop.permute.xlu0 %6782
    %6784 = vrot.lane.b32.xlu0 %v6158, 32
    %v6785 = vpop.permute.xlu0 %6784
    %6786 = vrot.lane.b32.xlu0 %v6163, 32
    %v6787 = vpop.permute.xlu0 %6786
    %6788 = vrot.lane.b32.xlu0 %v6168, 32
    %v6789 = vpop.permute.xlu0 %6788
    %6790 = vrot.lane.b32.xlu0 %v6173, 32
    %v6791 = vpop.permute.xlu0 %6790
    %6792 = vrot.lane.b32.xlu0 %v6178, 32
    %v6793 = vpop.permute.xlu0 %6792
    %6794 = vrot.lane.b32.xlu0 %v6183, 32
    %v6795 = vpop.permute.xlu0 %6794
    %6796 = vrot.lane.b32.xlu0 %v6188, 32
    %v6797 = vpop.permute.xlu0 %6796
    %6798 = vrot.lane.b32.xlu0 %v6193, 32
    %v6799 = vpop.permute.xlu0 %6798
    %6800 = vrot.lane.b32.xlu0 %v6198, 32
    %v6801 = vpop.permute.xlu0 %6800
    %6802 = vrot.lane.b32.xlu0 %v6203, 32
    %v6803 = vpop.permute.xlu0 %6802
    %6804 = vrot.lane.b32.xlu0 %v6208, 32
    %v6805 = vpop.permute.xlu0 %6804
    %6806 = vrot.lane.b32.xlu0 %v6213, 32
    %v6807 = vpop.permute.xlu0 %6806
    %6840 = vrot.lane.b32.xlu0 %v6218, 48
    %v6841 = vpop.permute.xlu0 %6840
    %6842 = vrot.lane.b32.xlu0 %v6223, 48
    %v6843 = vpop.permute.xlu0 %6842
    %6844 = vrot.lane.b32.xlu0 %v6228, 48
    %v6845 = vpop.permute.xlu0 %6844
    %6846 = vrot.lane.b32.xlu0 %v6233, 48
    %v6847 = vpop.permute.xlu0 %6846
    %6848 = vrot.lane.b32.xlu0 %v6238, 48
    %v6849 = vpop.permute.xlu0 %6848
    %6850 = vrot.lane.b32.xlu0 %v6243, 48
    %v6851 = vpop.permute.xlu0 %6850
    %6852 = vrot.lane.b32.xlu0 %v6248, 48
    %v6853 = vpop.permute.xlu0 %6852
    %6854 = vrot.lane.b32.xlu0 %v6253, 48
    %v6855 = vpop.permute.xlu0 %6854
    %6856 = vrot.lane.b32.xlu0 %v6258, 48
    %v6857 = vpop.permute.xlu0 %6856
    %6858 = vrot.lane.b32.xlu0 %v6263, 48
    %v6859 = vpop.permute.xlu0 %6858
    %6860 = vrot.lane.b32.xlu0 %v6268, 48
    %v6861 = vpop.permute.xlu0 %6860
    %6862 = vrot.lane.b32.xlu0 %v6273, 48
    %v6863 = vpop.permute.xlu0 %6862
    %6864 = vrot.lane.b32.xlu0 %v6278, 48
    %v6865 = vpop.permute.xlu0 %6864
    %6866 = vrot.lane.b32.xlu0 %v6283, 48
    %v6867 = vpop.permute.xlu0 %6866
    %6868 = vrot.lane.b32.xlu0 %v6288, 48
    %v6869 = vpop.permute.xlu0 %6868
    %6870 = vrot.lane.b32.xlu0 %v6293, 48
    %v6871 = vpop.permute.xlu0 %6870
    %6904 = vrot.lane.b32.xlu0 %v6298, 64
    %v6905 = vpop.permute.xlu0 %6904
    %6906 = vrot.lane.b32.xlu0 %v6303, 64
    %v6907 = vpop.permute.xlu0 %6906
    %6908 = vrot.lane.b32.xlu0 %v6308, 64
    %v6909 = vpop.permute.xlu0 %6908
    %6910 = vrot.lane.b32.xlu0 %v6313, 64
    %v6911 = vpop.permute.xlu0 %6910
    %6912 = vrot.lane.b32.xlu0 %v6318, 64
    %v6913 = vpop.permute.xlu0 %6912
    %6914 = vrot.lane.b32.xlu0 %v6323, 64
    %v6915 = vpop.permute.xlu0 %6914
    %6916 = vrot.lane.b32.xlu0 %v6328, 64
    %v6917 = vpop.permute.xlu0 %6916
    %6918 = vrot.lane.b32.xlu0 %v6333, 64
    %v6919 = vpop.permute.xlu0 %6918
    %6920 = vrot.lane.b32.xlu0 %v6338, 64
    %v6921 = vpop.permute.xlu0 %6920
    %6922 = vrot.lane.b32.xlu0 %v6343, 64
    %v6923 = vpop.permute.xlu0 %6922
    %6924 = vrot.lane.b32.xlu0 %v6348, 64
    %v6925 = vpop.permute.xlu0 %6924
    %6926 = vrot.lane.b32.xlu0 %v6353, 64
    %v6927 = vpop.permute.xlu0 %6926
    %6928 = vrot.lane.b32.xlu0 %v6358, 64
    %v6929 = vpop.permute.xlu0 %6928
    %6930 = vrot.lane.b32.xlu0 %v6363, 64
    %v6931 = vpop.permute.xlu0 %6930
    %6932 = vrot.lane.b32.xlu0 %v6368, 64
    %v6933 = vpop.permute.xlu0 %6932
    %6934 = vrot.lane.b32.xlu0 %v6373, 64
    %v6935 = vpop.permute.xlu0 %6934
    %6968 = vrot.lane.b32.xlu0 %v6378, 80
    %v6969 = vpop.permute.xlu0 %6968
    %6970 = vrot.lane.b32.xlu0 %v6383, 80
    %v6971 = vpop.permute.xlu0 %6970
    %6972 = vrot.lane.b32.xlu0 %v6388, 80
    %v6973 = vpop.permute.xlu0 %6972
    %6974 = vrot.lane.b32.xlu0 %v6393, 80
    %v6975 = vpop.permute.xlu0 %6974
    %6976 = vrot.lane.b32.xlu0 %v6398, 80
    %v6977 = vpop.permute.xlu0 %6976
    %6978 = vrot.lane.b32.xlu0 %v6403, 80
    %v6979 = vpop.permute.xlu0 %6978
    %6980 = vrot.lane.b32.xlu0 %v6408, 80
    %v6981 = vpop.permute.xlu0 %6980
    %6982 = vrot.lane.b32.xlu0 %v6413, 80
    %v6983 = vpop.permute.xlu0 %6982
    %6984 = vrot.lane.b32.xlu0 %v6418, 80
    %v6985 = vpop.permute.xlu0 %6984
    %6986 = vrot.lane.b32.xlu0 %v6423, 80
    %v6987 = vpop.permute.xlu0 %6986
    %6988 = vrot.lane.b32.xlu0 %v6428, 80
    %v6989 = vpop.permute.xlu0 %6988
    %6990 = vrot.lane.b32.xlu0 %v6433, 80
    %v6991 = vpop.permute.xlu0 %6990
    %6992 = vrot.lane.b32.xlu0 %v6438, 80
    %v6993 = vpop.permute.xlu0 %6992
    %6994 = vrot.lane.b32.xlu0 %v6443, 80
    %v6995 = vpop.permute.xlu0 %6994
    %6996 = vrot.lane.b32.xlu0 %v6448, 80
    %v6997 = vpop.permute.xlu0 %6996
    %6998 = vrot.lane.b32.xlu0 %v6453, 80
    %v6999 = vpop.permute.xlu0 %6998
    %7032 = vrot.lane.b32.xlu0 %v6458, 96
    %v7033 = vpop.permute.xlu0 %7032
    %7034 = vrot.lane.b32.xlu0 %v6463, 96
    %v7035 = vpop.permute.xlu0 %7034
    %7036 = vrot.lane.b32.xlu0 %v6468, 96
    %v7037 = vpop.permute.xlu0 %7036
    %7038 = vrot.lane.b32.xlu0 %v6473, 96
    %v7039 = vpop.permute.xlu0 %7038
    %7040 = vrot.lane.b32.xlu0 %v6478, 96
    %v7041 = vpop.permute.xlu0 %7040
    %7042 = vrot.lane.b32.xlu0 %v6483, 96
    %v7043 = vpop.permute.xlu0 %7042
    %7044 = vrot.lane.b32.xlu0 %v6488, 96
    %v7045 = vpop.permute.xlu0 %7044
    %7046 = vrot.lane.b32.xlu0 %v6493, 96
    %v7047 = vpop.permute.xlu0 %7046
    %7048 = vrot.lane.b32.xlu0 %v6498, 96
    %v7049 = vpop.permute.xlu0 %7048
    %7050 = vrot.lane.b32.xlu0 %v6503, 96
    %v7051 = vpop.permute.xlu0 %7050
    %7052 = vrot.lane.b32.xlu0 %v6508, 96
    %v7053 = vpop.permute.xlu0 %7052
    %7054 = vrot.lane.b32.xlu0 %v6513, 96
    %v7055 = vpop.permute.xlu0 %7054
    %7056 = vrot.lane.b32.xlu0 %v6518, 96
    %v7057 = vpop.permute.xlu0 %7056
    %7058 = vrot.lane.b32.xlu0 %v6523, 96
    %v7059 = vpop.permute.xlu0 %7058
    %7060 = vrot.lane.b32.xlu0 %v6528, 96
    %v7061 = vpop.permute.xlu0 %7060
    %7062 = vrot.lane.b32.xlu0 %v6533, 96
    %v7063 = vpop.permute.xlu0 %7062
    %7096 = vrot.lane.b32.xlu0 %v6538, 112
    %v7097 = vpop.permute.xlu0 %7096
    %7098 = vrot.lane.b32.xlu0 %v6543, 112
    %v7099 = vpop.permute.xlu0 %7098
    %7100 = vrot.lane.b32.xlu0 %v6548, 112
    %v7101 = vpop.permute.xlu0 %7100
    %7102 = vrot.lane.b32.xlu0 %v6553, 112
    %v7103 = vpop.permute.xlu0 %7102
    %7104 = vrot.lane.b32.xlu0 %v6558, 112
    %v7105 = vpop.permute.xlu0 %7104
    %7106 = vrot.lane.b32.xlu0 %v6563, 112
    %v7107 = vpop.permute.xlu0 %7106
    %7108 = vrot.lane.b32.xlu0 %v6568, 112
    %v7109 = vpop.permute.xlu0 %7108
    %7110 = vrot.lane.b32.xlu0 %v6573, 112
    %v7111 = vpop.permute.xlu0 %7110
    %7112 = vrot.lane.b32.xlu0 %v6578, 112
    %v7113 = vpop.permute.xlu0 %7112
    %7114 = vrot.lane.b32.xlu0 %v6583, 112
    %v7115 = vpop.permute.xlu0 %7114
    %7116 = vrot.lane.b32.xlu0 %v6588, 112
    %v7117 = vpop.permute.xlu0 %7116
    %7118 = vrot.lane.b32.xlu0 %v6593, 112
    %v7119 = vpop.permute.xlu0 %7118
    %7120 = vrot.lane.b32.xlu0 %v6598, 112
    %v7121 = vpop.permute.xlu0 %7120
    %7122 = vrot.lane.b32.xlu0 %v6603, 112
    %v7123 = vpop.permute.xlu0 %7122
    %7124 = vrot.lane.b32.xlu0 %v6608, 112
    %v7125 = vpop.permute.xlu0 %7124
    %7126 = vrot.lane.b32.xlu0 %v6613, 112
    %v7127 = vpop.permute.xlu0 %7126
    %v7144 = vsel %vm2010, %v5978, %v6713
    %v7145 = vsel %vm2010, %v5983, %v6715
    %v7146 = vsel %vm2010, %v5988, %v6717
    %v7147 = vsel %vm2010, %v5993, %v6719
    %v7148 = vsel %vm2010, %v5998, %v6721
    %v7149 = vsel %vm2010, %v6003, %v6723
    %v7150 = vsel %vm2010, %v6008, %v6725
    %v7151 = vsel %vm2010, %v6013, %v6727
    %v7152 = vsel %vm2010, %v6018, %v6729
    %v7153 = vsel %vm2010, %v6023, %v6731
    %v7154 = vsel %vm2010, %v6028, %v6733
    %v7155 = vsel %vm2010, %v6033, %v6735
    %v7156 = vsel %vm2010, %v6038, %v6737
    %v7157 = vsel %vm2010, %v6043, %v6739
    %v7158 = vsel %vm2010, %v6048, %v6741
    %v7159 = vsel %vm2010, %v6053, %v6743
    %v7160 = vsel %vm2078, %v7144, %v6777
    %v7161 = vsel %vm2078, %v7145, %v6779
    %v7162 = vsel %vm2078, %v7146, %v6781
    %v7163 = vsel %vm2078, %v7147, %v6783
    %v7164 = vsel %vm2078, %v7148, %v6785
    %v7165 = vsel %vm2078, %v7149, %v6787
    %v7166 = vsel %vm2078, %v7150, %v6789
    %v7167 = vsel %vm2078, %v7151, %v6791
    %v7168 = vsel %vm2078, %v7152, %v6793
    %v7169 = vsel %vm2078, %v7153, %v6795
    %v7170 = vsel %vm2078, %v7154, %v6797
    %v7171 = vsel %vm2078, %v7155, %v6799
    %v7172 = vsel %vm2078, %v7156, %v6801
    %v7173 = vsel %vm2078, %v7157, %v6803
    %v7174 = vsel %vm2078, %v7158, %v6805
    %v7175 = vsel %vm2078, %v7159, %v6807
    %v7176 = vsel %vm3599, %v7160, %v6841
    %v7177 = vsel %vm3599, %v7161, %v6843
    %v7178 = vsel %vm3599, %v7162, %v6845
    %v7179 = vsel %vm3599, %v7163, %v6847
    %v7180 = vsel %vm3599, %v7164, %v6849
    %v7181 = vsel %vm3599, %v7165, %v6851
    %v7182 = vsel %vm3599, %v7166, %v6853
    %v7183 = vsel %vm3599, %v7167, %v6855
    %v7184 = vsel %vm3599, %v7168, %v6857
    %v7185 = vsel %vm3599, %v7169, %v6859
    %v7186 = vsel %vm3599, %v7170, %v6861
    %v7187 = vsel %vm3599, %v7171, %v6863
    %v7188 = vsel %vm3599, %v7172, %v6865
    %v7189 = vsel %vm3599, %v7173, %v6867
    %v7190 = vsel %vm3599, %v7174, %v6869
    %v7191 = vsel %vm3599, %v7175, %v6871
    %v7192 = vsel %vm3616, %v7176, %v6905
    %v7193 = vsel %vm3616, %v7177, %v6907
    %v7194 = vsel %vm3616, %v7178, %v6909
    %v7195 = vsel %vm3616, %v7179, %v6911
    %v7196 = vsel %vm3616, %v7180, %v6913
    %v7197 = vsel %vm3616, %v7181, %v6915
    %v7198 = vsel %vm3616, %v7182, %v6917
    %v7199 = vsel %vm3616, %v7183, %v6919
    %v7200 = vsel %vm3616, %v7184, %v6921
    %v7201 = vsel %vm3616, %v7185, %v6923
    %v7202 = vsel %vm3616, %v7186, %v6925
    %v7203 = vsel %vm3616, %v7187, %v6927
    %v7204 = vsel %vm3616, %v7188, %v6929
    %v7205 = vsel %vm3616, %v7189, %v6931
    %v7206 = vsel %vm3616, %v7190, %v6933
    %v7207 = vsel %vm3616, %v7191, %v6935
    %v7208 = vsel %vm3633, %v7192, %v6969
    %v7209 = vsel %vm3633, %v7193, %v6971
    %v7210 = vsel %vm3633, %v7194, %v6973
    %v7211 = vsel %vm3633, %v7195, %v6975
    %v7212 = vsel %vm3633, %v7196, %v6977
    %v7213 = vsel %vm3633, %v7197, %v6979
    %v7214 = vsel %vm3633, %v7198, %v6981
    %v7215 = vsel %vm3633, %v7199, %v6983
    %v7216 = vsel %vm3633, %v7200, %v6985
    %v7217 = vsel %vm3633, %v7201, %v6987
    %v7218 = vsel %vm3633, %v7202, %v6989
    %v7219 = vsel %vm3633, %v7203, %v6991
    %v7220 = vsel %vm3633, %v7204, %v6993
    %v7221 = vsel %vm3633, %v7205, %v6995
    %v7222 = vsel %vm3633, %v7206, %v6997
    %v7223 = vsel %vm3633, %v7207, %v6999
    %v7224 = vsel %vm3650, %v7208, %v7033
    %v7225 = vsel %vm3650, %v7209, %v7035
    %v7226 = vsel %vm3650, %v7210, %v7037
    %v7227 = vsel %vm3650, %v7211, %v7039
    %v7228 = vsel %vm3650, %v7212, %v7041
    %v7229 = vsel %vm3650, %v7213, %v7043
    %v7230 = vsel %vm3650, %v7214, %v7045
    %v7231 = vsel %vm3650, %v7215, %v7047
    %v7232 = vsel %vm3650, %v7216, %v7049
    %v7233 = vsel %vm3650, %v7217, %v7051
    %v7234 = vsel %vm3650, %v7218, %v7053
    %v7235 = vsel %vm3650, %v7219, %v7055
    %v7236 = vsel %vm3650, %v7220, %v7057
    %v7237 = vsel %vm3650, %v7221, %v7059
    %v7238 = vsel %vm3650, %v7222, %v7061
    %v7239 = vsel %vm3650, %v7223, %v7063
    %v7240 = vsel %vm3667, %v7224, %v7097
    %v7241 = vsel %vm3667, %v7225, %v7099
    %v7242 = vsel %vm3667, %v7226, %v7101
    %v7243 = vsel %vm3667, %v7227, %v7103
    %v7244 = vsel %vm3667, %v7228, %v7105
    %v7245 = vsel %vm3667, %v7229, %v7107
    %v7246 = vsel %vm3667, %v7230, %v7109
    %v7247 = vsel %vm3667, %v7231, %v7111
    %v7248 = vsel %vm3667, %v7232, %v7113
    %v7249 = vsel %vm3667, %v7233, %v7115
    %v7250 = vsel %vm3667, %v7234, %v7117
    %v7251 = vsel %vm3667, %v7235, %v7119
    %v7252 = vsel %vm3667, %v7236, %v7121
    %v7253 = vsel %vm3667, %v7237, %v7123
    %v7254 = vsel %vm3667, %v7238, %v7125
    %v7255 = vsel %vm3667, %v7239, %v7127
    %v7257 = vlaneseq
    %v7258 = vshrl.u32 %v7257, 7
    %v7259 = vsub.s32 0, %v7258
    %v7260 = vrot.slane %v5910, %v7259
    %v7263 = vsel %vm2010, %v6618, 0
    %v7266 = vsel %vm2010, %v6623, 0
    %v7269 = vsel %vm2010, %v6628, 0
    %v7272 = vsel %vm2010, %v6633, 0
    %v7275 = vsel %vm2010, %v6638, 0
    %v7278 = vsel %vm2010, %v6643, 0
    %v7281 = vsel %vm2010, %v6648, 0
    %v7284 = vsel %vm2010, %v6653, 0
    %v7287 = vsel %vm2010, %v6658, 0
    %v7290 = vsel %vm2010, %v6663, 0
    %v7293 = vsel %vm2010, %v6668, 0
    %v7296 = vsel %vm2010, %v6673, 0
    %v7299 = vsel %vm2010, %v6678, 0
    %v7302 = vsel %vm2010, %v6683, 0
    %v7305 = vsel %vm2010, %v6688, 0
    %v7308 = vsel %vm2010, %v6693, 0
    %7310 = vmatprep.subr.mxu0 0.0
    %7311 = vmatpush1.msra.mxu0 %v5892
    %7312 = vmatprep.subr.mxu0 0.0
    %7313 = vmatpush1.msra.mxu0 %v5893
    %7314 = vmatprep.subr.mxu0 0.0
    %7315 = vmatpush1.msra.mxu0 %v5894
    %7316 = vmatprep.subr.mxu0 0.0
    %7317 = vmatpush1.msra.mxu0 %v5895
    %7318 = vmatprep.subr.mxu0 0.0
    %7319 = vmatpush1.msra.mxu0 %v5896
    %7320 = vmatprep.subr.mxu0 0.0
    %7321 = vmatpush1.msra.mxu0 %v5897
    %7322 = vmatprep.subr.mxu0 0.0
    %7323 = vmatpush1.msra.mxu0 %v5898
    %7324 = vmatprep.subr.mxu0 0.0
    %7325 = vmatpush1.msra.mxu0 %v5899
    %7326 = vmatprep.subr.mxu0 0.0
    %7327 = vmatpush1.msra.mxu0 %v5900
    %7328 = vmatprep.subr.mxu0 0.0
    %7329 = vmatpush1.msra.mxu0 %v5901
    %7330 = vmatprep.subr.mxu0 0.0
    %7331 = vmatpush1.msra.mxu0 %v5902
    %7332 = vmatprep.subr.mxu0 0.0
    %7333 = vmatpush1.msra.mxu0 %v5903
    %7334 = vmatprep.subr.mxu0 0.0
    %7335 = vmatpush1.msra.mxu0 %v5904
    %7336 = vmatprep.subr.mxu0 0.0
    %7337 = vmatpush1.msra.mxu0 %v5905
    %7338 = vmatprep.subr.mxu0 0.0
    %7339 = vmatpush1.msra.mxu0 %v5906
    %7340 = vmatprep.subr.mxu0 0.0
    %7341 = vmatpush1.msra.mxu0 %v5907
    %7342 = vmatprep.subr.mxu0 0.0
    %7343 = vmatpush1.msra.mxu0 %v5908
    %7344 = vmatprep.subr.mxu0 0.0
    %7345 = vmatpush1.msra.mxu0 %v5909
    %7346 = vmatprep.subr.mxu0 0.0
    %7347 = vmatpush1.msra.mxu0 0.0
    %7348 = vmatprep.subr.mxu0 0.0
    %7349 = vmatpush1.msra.mxu0 0.0
    %7350 = vmatprep.subr.mxu0 0.0
    %7351 = vmatpush1.msra.mxu0 0.0
    %7352 = vmatprep.subr.mxu0 0.0
    %7353 = vmatpush1.msra.mxu0 0.0
    %7354 = vmatprep.subr.mxu0 0.0
    %7355 = vmatpush1.msra.mxu0 0.0
    %7356 = vmatprep.subr.mxu0 0.0
    %7357 = vmatpush1.msra.mxu0 0.0
    %7358 = vmatprep.subr.mxu0 0.0
    %7359 = vmatpush1.msra.mxu0 0.0
    %7360 = vmatprep.subr.mxu0 0.0
    %7361 = vmatpush1.msra.mxu0 0.0
    %7362 = vmatprep.subr.mxu0 0.0
    %7363 = vmatpush1.msra.mxu0 0.0
    %7364 = vmatprep.subr.mxu0 0.0
    %7365 = vmatpush1.msra.mxu0 0.0
    %7366 = vmatprep.subr.mxu0 0.0
    %7367 = vmatpush1.msra.mxu0 0.0
    %7368 = vmatprep.subr.mxu0 0.0
    %7369 = vmatpush1.msra.mxu0 0.0
    %7370 = vmatprep.subr.mxu0 0.0
    %7371 = vmatpush1.msra.mxu0 0.0
    %7372 = vmatprep.subr.mxu0 0.0
    %7373 = vmatpush1.msra.mxu0 0.0
    %7374 = vmatprep.mubr.f32.mxu0 %v7263
    %7375 = vmatmul.mubr.f32.gmra.mrb[0].mxu0 %v7240
    %v7376 = vpop.f32.mrb[0].mxu0
    %v7377 = vadd.f32 %v7260, %v7376
    %v7378 = vpop.f32.mrb[0].mxu0
    %7379 = vmatprep.mubr.f32.mxu0 %v7266
    %7380 = vmatmul.mubr.f32.gmra.mrb[0].mxu0 %v7241
    %v7381 = vpop.f32.mrb[0].mxu0
    %v7382 = vadd.f32 %v7260, %v7381
    %v7383 = vpop.f32.mrb[0].mxu0
    %7384 = vmatprep.mubr.f32.mxu0 %v7269
    %7385 = vmatmul.mubr.f32.gmra.mrb[0].mxu0 %v7242
    %v7386 = vpop.f32.mrb[0].mxu0
    %v7387 = vadd.f32 %v7260, %v7386
    %v7388 = vpop.f32.mrb[0].mxu0
    %7389 = vmatprep.mubr.f32.mxu0 %v7272
    %7390 = vmatmul.mubr.f32.gmra.mrb[0].mxu0 %v7243
    %v7391 = vpop.f32.mrb[0].mxu0
    %v7392 = vadd.f32 %v7260, %v7391
    %v7393 = vpop.f32.mrb[0].mxu0
    %7394 = vmatprep.mubr.f32.mxu0 %v7275
    %7395 = vmatmul.mubr.f32.gmra.mrb[0].mxu0 %v7244
    %v7396 = vpop.f32.mrb[0].mxu0
    %v7397 = vadd.f32 %v7260, %v7396
    %v7398 = vpop.f32.mrb[0].mxu0
    %7399 = vmatprep.mubr.f32.mxu0 %v7278
    %7400 = vmatmul.mubr.f32.gmra.mrb[0].mxu0 %v7245
    %v7401 = vpop.f32.mrb[0].mxu0
    %v7402 = vadd.f32 %v7260, %v7401
    %v7403 = vpop.f32.mrb[0].mxu0
    %7404 = vmatprep.mubr.f32.mxu0 %v7281
    %7405 = vmatmul.mubr.f32.gmra.mrb[0].mxu0 %v7246
    %v7406 = vpop.f32.mrb[0].mxu0
    %v7407 = vadd.f32 %v7260, %v7406
    %v7408 = vpop.f32.mrb[0].mxu0
    %7409 = vmatprep.mubr.f32.mxu0 %v7284
    %7410 = vmatmul.mubr.f32.gmra.mrb[0].mxu0 %v7247
    %v7411 = vpop.f32.mrb[0].mxu0
    %v7412 = vadd.f32 %v7260, %v7411
    %v7413 = vpop.f32.mrb[0].mxu0
    %7414 = vmatprep.mubr.f32.mxu0 %v7287
    %7415 = vmatmul.mubr.f32.gmra.mrb[0].mxu0 %v7248
    %v7416 = vpop.f32.mrb[0].mxu0
    %v7417 = vadd.f32 %v7260, %v7416
    %v7418 = vpop.f32.mrb[0].mxu0
    %7419 = vmatprep.mubr.f32.mxu0 %v7290
    %7420 = vmatmul.mubr.f32.gmra.mrb[0].mxu0 %v7249
    %v7421 = vpop.f32.mrb[0].mxu0
    %v7422 = vadd.f32 %v7260, %v7421
    %v7423 = vpop.f32.mrb[0].mxu0
    %7424 = vmatprep.mubr.f32.mxu0 %v7293
    %7425 = vmatmul.mubr.f32.gmra.mrb[0].mxu0 %v7250
    %v7426 = vpop.f32.mrb[0].mxu0
    %v7427 = vadd.f32 %v7260, %v7426
    %v7428 = vpop.f32.mrb[0].mxu0
    %7429 = vmatprep.mubr.f32.mxu0 %v7296
    %7430 = vmatmul.mubr.f32.gmra.mrb[0].mxu0 %v7251
    %v7431 = vpop.f32.mrb[0].mxu0
    %v7432 = vadd.f32 %v7260, %v7431
    %v7433 = vpop.f32.mrb[0].mxu0
    %7434 = vmatprep.mubr.f32.mxu0 %v7299
    %7435 = vmatmul.mubr.f32.gmra.mrb[0].mxu0 %v7252
    %v7436 = vpop.f32.mrb[0].mxu0
    %v7437 = vadd.f32 %v7260, %v7436
    %v7438 = vpop.f32.mrb[0].mxu0
    %7439 = vmatprep.mubr.f32.mxu0 %v7302
    %7440 = vmatmul.mubr.f32.gmra.mrb[0].mxu0 %v7253
    %v7441 = vpop.f32.mrb[0].mxu0
    %v7442 = vadd.f32 %v7260, %v7441
    %v7443 = vpop.f32.mrb[0].mxu0
    %7444 = vmatprep.mubr.f32.mxu0 %v7305
    %7445 = vmatmul.mubr.f32.gmra.mrb[0].mxu0 %v7254
    %v7446 = vpop.f32.mrb[0].mxu0
    %v7447 = vadd.f32 %v7260, %v7446
    %v7448 = vpop.f32.mrb[0].mxu0
    %7449 = vmatprep.mubr.f32.mxu0 %v7308
    %7450 = vmatmul.mubr.f32.gmra.mrb[0].mxu0 %v7255
    %v7451 = vpop.f32.mrb[0].mxu0
    %v7452 = vadd.f32 %v7260, %v7451
    %v7453 = vpop.f32.mrb[0].mxu0
    %7454 = vdwg.mxu0
    %v7455 = vld [vmem:[%s14] sm:$0x1]
    %v7456 = vsub.f32 0.0, %v7455
    %v7457 = vmul.f32 %v7456, 1.442695
    %v7458 = vpow.pop %v7457
    %v7460 = vlaneseq
    %v7461 = vshrl.u32 %v7460, 7
    %v7462 = vsub.s32 0, %v7461
    %v7463 = vrot.slane %v7458, %v7462
    %v7465 = vmul.f32 %v7377, %v7463
    %v7466 = vmul.f32 %v7382, %v7463
    %v7467 = vmul.f32 %v7387, %v7463
    %v7468 = vmul.f32 %v7392, %v7463
    %v7469 = vmul.f32 %v7397, %v7463
    %v7470 = vmul.f32 %v7402, %v7463
    %v7471 = vmul.f32 %v7407, %v7463
    %v7472 = vmul.f32 %v7412, %v7463
    %v7473 = vmul.f32 %v7417, %v7463
    %v7474 = vmul.f32 %v7422, %v7463
    %v7475 = vmul.f32 %v7427, %v7463
    %v7476 = vmul.f32 %v7432, %v7463
    %v7477 = vmul.f32 %v7437, %v7463
    %v7478 = vmul.f32 %v7442, %v7463
    %v7479 = vmul.f32 %v7447, %v7463
    %v7480 = vmul.f32 %v7452, %v7463
    %v7481 = vtanh.pop %v7465
    %v7482 = vtanh.pop %v7466
    %v7483 = vtanh.pop %v7467
    %v7484 = vtanh.pop %v7468
    %v7485 = vtanh.pop %v7469
    %v7486 = vtanh.pop %v7470
    %v7487 = vtanh.pop %v7471
    %v7488 = vtanh.pop %v7472
    %v7489 = vtanh.pop %v7473
    %v7490 = vtanh.pop %v7474
    %v7491 = vtanh.pop %v7475
    %v7492 = vtanh.pop %v7476
    %v7493 = vtanh.pop %v7477
    %v7494 = vtanh.pop %v7478
    %v7495 = vtanh.pop %v7479
    %v7496 = vtanh.pop %v7480
    %v7497 = vmul.f32 %v7455, 1.442695
    %v7498 = vpow.pop %v7497
    %v7500 = vlaneseq
    %v7501 = vshrl.u32 %v7500, 7
    %v7502 = vsub.s32 0, %v7501
    %v7503 = vrot.slane %v7498, %v7502
    %v7505 = vmul.f32 %v7481, %v7503
    %v7506 = vmul.f32 %v7482, %v7503
    %v7507 = vmul.f32 %v7483, %v7503
    %v7508 = vmul.f32 %v7484, %v7503
    %v7509 = vmul.f32 %v7485, %v7503
    %v7510 = vmul.f32 %v7486, %v7503
    %v7511 = vmul.f32 %v7487, %v7503
    %v7512 = vmul.f32 %v7488, %v7503
    %v7513 = vmul.f32 %v7489, %v7503
    %v7514 = vmul.f32 %v7490, %v7503
    %v7515 = vmul.f32 %v7491, %v7503
    %v7516 = vmul.f32 %v7492, %v7503
    %v7517 = vmul.f32 %v7493, %v7503
    %v7518 = vmul.f32 %v7494, %v7503
    %v7519 = vmul.f32 %v7495, %v7503
    %v7520 = vmul.f32 %v7496, %v7503
    %7537 = vrot.lane.b32.xlu0 %v7377, 124
    %v7538 = vpop.permute.xlu0 %7537
    %7539 = vrot.lane.b32.xlu0 %v7382, 124
    %v7540 = vpop.permute.xlu0 %7539
    %7541 = vrot.lane.b32.xlu0 %v7387, 124
    %v7542 = vpop.permute.xlu0 %7541
    %7543 = vrot.lane.b32.xlu0 %v7392, 124
    %v7544 = vpop.permute.xlu0 %7543
    %7545 = vrot.lane.b32.xlu0 %v7397, 124
    %v7546 = vpop.permute.xlu0 %7545
    %7547 = vrot.lane.b32.xlu0 %v7402, 124
    %v7548 = vpop.permute.xlu0 %7547
    %7549 = vrot.lane.b32.xlu0 %v7407, 124
    %v7550 = vpop.permute.xlu0 %7549
    %7551 = vrot.lane.b32.xlu0 %v7412, 124
    %v7552 = vpop.permute.xlu0 %7551
    %7553 = vrot.lane.b32.xlu0 %v7417, 124
    %v7554 = vpop.permute.xlu0 %7553
    %7555 = vrot.lane.b32.xlu0 %v7422, 124
    %v7556 = vpop.permute.xlu0 %7555
    %7557 = vrot.lane.b32.xlu0 %v7427, 124
    %v7558 = vpop.permute.xlu0 %7557
    %7559 = vrot.lane.b32.xlu0 %v7432, 124
    %v7560 = vpop.permute.xlu0 %7559
    %7561 = vrot.lane.b32.xlu0 %v7437, 124
    %v7562 = vpop.permute.xlu0 %7561
    %7563 = vrot.lane.b32.xlu0 %v7442, 124
    %v7564 = vpop.permute.xlu0 %7563
    %7565 = vrot.lane.b32.xlu0 %v7447, 124
    %v7566 = vpop.permute.xlu0 %7565
    %7567 = vrot.lane.b32.xlu0 %v7452, 124
    %v7568 = vpop.permute.xlu0 %7567
    %v7585 = vadd.f32 %v497, %v7538
    %v7586 = vadd.f32 %v498, %v7540
    %v7587 = vadd.f32 %v499, %v7542
    %v7588 = vadd.f32 %v500, %v7544
    %v7589 = vadd.f32 %v501, %v7546
    %v7590 = vadd.f32 %v502, %v7548
    %v7591 = vadd.f32 %v503, %v7550
    %v7592 = vadd.f32 %v504, %v7552
    %v7593 = vadd.f32 %v505, %v7554
    %v7594 = vadd.f32 %v506, %v7556
    %v7595 = vadd.f32 %v507, %v7558
    %v7596 = vadd.f32 %v508, %v7560
    %v7597 = vadd.f32 %v509, %v7562
    %v7598 = vadd.f32 %v510, %v7564
    %v7599 = vadd.f32 %v511, %v7566
    %v7600 = vadd.f32 %v512, %v7568
    %v7601 = vmul.f32 %v7505, 1.442695
    %v7602 = vpow.pop %v7601
    %v7603 = vmul.f32 %v7506, 1.442695
    %v7604 = vpow.pop %v7603
    %v7605 = vmul.f32 %v7507, 1.442695
    %v7606 = vpow.pop %v7605
    %v7607 = vmul.f32 %v7508, 1.442695
    %v7608 = vpow.pop %v7607
    %v7609 = vmul.f32 %v7509, 1.442695
    %v7610 = vpow.pop %v7609
    %v7611 = vmul.f32 %v7510, 1.442695
    %v7612 = vpow.pop %v7611
    %v7613 = vmul.f32 %v7511, 1.442695
    %v7614 = vpow.pop %v7613
    %v7615 = vmul.f32 %v7512, 1.442695
    %v7616 = vpow.pop %v7615
    %v7617 = vmul.f32 %v7513, 1.442695
    %v7618 = vpow.pop %v7617
    %v7619 = vmul.f32 %v7514, 1.442695
    %v7620 = vpow.pop %v7619
    %v7621 = vmul.f32 %v7515, 1.442695
    %v7622 = vpow.pop %v7621
    %v7623 = vmul.f32 %v7516, 1.442695
    %v7624 = vpow.pop %v7623
    %v7625 = vmul.f32 %v7517, 1.442695
    %v7626 = vpow.pop %v7625
    %v7627 = vmul.f32 %v7518, 1.442695
    %v7628 = vpow.pop %v7627
    %v7629 = vmul.f32 %v7519, 1.442695
    %v7630 = vpow.pop %v7629
    %v7631 = vmul.f32 %v7520, 1.442695
    %v7632 = vpow.pop %v7631
    %v7633 = vmul.f32 %v7585, %v7602
    %v7634 = vmul.f32 %v7586, %v7604
    %v7635 = vmul.f32 %v7587, %v7606
    %v7636 = vmul.f32 %v7588, %v7608
    %v7637 = vmul.f32 %v7589, %v7610
    %v7638 = vmul.f32 %v7590, %v7612
    %v7639 = vmul.f32 %v7591, %v7614
    %v7640 = vmul.f32 %v7592, %v7616
    %v7641 = vmul.f32 %v7593, %v7618
    %v7642 = vmul.f32 %v7594, %v7620
    %v7643 = vmul.f32 %v7595, %v7622
    %v7644 = vmul.f32 %v7596, %v7624
    %v7645 = vmul.f32 %v7597, %v7626
    %v7646 = vmul.f32 %v7598, %v7628
    %v7647 = vmul.f32 %v7599, %v7630
    %v7648 = vmul.f32 %v7600, %v7632
    %v7649 = vsel %vm1960, %v7505, 0.0
    %7650 = vadd.xlane.f32.xlu0 %v7649
    %v7651 = vpop.xlane.xlu0 %7650
    %v7652 = vsel %vm1960, %v7506, 0.0
    %7653 = vadd.xlane.f32.xlu0 %v7652
    %v7654 = vpop.xlane.xlu0 %7653
    %v7655 = vsel %vm1960, %v7507, 0.0
    %7656 = vadd.xlane.f32.xlu0 %v7655
    %v7657 = vpop.xlane.xlu0 %7656
    %v7658 = vsel %vm1960, %v7508, 0.0
    %7659 = vadd.xlane.f32.xlu0 %v7658
    %v7660 = vpop.xlane.xlu0 %7659
    %v7661 = vsel %vm1960, %v7509, 0.0
    %7662 = vadd.xlane.f32.xlu0 %v7661
    %v7663 = vpop.xlane.xlu0 %7662
    %v7664 = vsel %vm1960, %v7510, 0.0
    %7665 = vadd.xlane.f32.xlu0 %v7664
    %v7666 = vpop.xlane.xlu0 %7665
    %v7667 = vsel %vm1960, %v7511, 0.0
    %7668 = vadd.xlane.f32.xlu0 %v7667
    %v7669 = vpop.xlane.xlu0 %7668
    %v7670 = vsel %vm1960, %v7512, 0.0
    %7671 = vadd.xlane.f32.xlu0 %v7670
    %v7672 = vpop.xlane.xlu0 %7671
    %v7673 = vsel %vm1960, %v7513, 0.0
    %7674 = vadd.xlane.f32.xlu0 %v7673
    %v7675 = vpop.xlane.xlu0 %7674
    %v7676 = vsel %vm1960, %v7514, 0.0
    %7677 = vadd.xlane.f32.xlu0 %v7676
    %v7678 = vpop.xlane.xlu0 %7677
    %v7679 = vsel %vm1960, %v7515, 0.0
    %7680 = vadd.xlane.f32.xlu0 %v7679
    %v7681 = vpop.xlane.xlu0 %7680
    %v7682 = vsel %vm1960, %v7516, 0.0
    %7683 = vadd.xlane.f32.xlu0 %v7682
    %v7684 = vpop.xlane.xlu0 %7683
    %v7685 = vsel %vm1960, %v7517, 0.0
    %7686 = vadd.xlane.f32.xlu0 %v7685
    %v7687 = vpop.xlane.xlu0 %7686
    %v7688 = vsel %vm1960, %v7518, 0.0
    %7689 = vadd.xlane.f32.xlu0 %v7688
    %v7690 = vpop.xlane.xlu0 %7689
    %v7691 = vsel %vm1960, %v7519, 0.0
    %7692 = vadd.xlane.f32.xlu0 %v7691
    %v7693 = vpop.xlane.xlu0 %7692
    %v7694 = vsel %vm1960, %v7520, 0.0
    %7695 = vadd.xlane.f32.xlu0 %v7694
    %v7696 = vpop.xlane.xlu0 %7695
    %v7697 = vmul.f32 %v426, %v7651
    %v7698 = vmul.f32 %v427, %v7654
    %v7699 = vmul.f32 %v428, %v7657
    %v7700 = vmul.f32 %v429, %v7660
    %v7701 = vmul.f32 %v430, %v7663
    %v7702 = vmul.f32 %v431, %v7666
    %v7703 = vmul.f32 %v432, %v7669
    %v7704 = vmul.f32 %v433, %v7672
    %v7705 = vmul.f32 %v434, %v7675
    %v7706 = vmul.f32 %v435, %v7678
    %v7707 = vmul.f32 %v436, %v7681
    %v7708 = vmul.f32 %v437, %v7684
    %v7709 = vmul.f32 %v438, %v7687
    %v7710 = vmul.f32 %v439, %v7690
    %v7711 = vmul.f32 %v440, %v7693
    %v7712 = vmul.f32 %v441, %v7696
    %v7713 = vsel %vm458, %v7697, 0.0
    %v7714 = vsel %vm458, %v7698, 0.0
    %v7715 = vadd.f32 %v7713, %v7714
    %v7716 = vsel %vm458, %v7699, 0.0
    %v7717 = vadd.f32 %v7715, %v7716
    %v7718 = vsel %vm458, %v7700, 0.0
    %v7719 = vadd.f32 %v7717, %v7718
    %v7720 = vsel %vm458, %v7701, 0.0
    %v7721 = vadd.f32 %v7719, %v7720
    %v7722 = vsel %vm458, %v7702, 0.0
    %v7723 = vadd.f32 %v7721, %v7722
    %v7724 = vsel %vm458, %v7703, 0.0
    %v7725 = vadd.f32 %v7723, %v7724
    %v7726 = vsel %vm458, %v7704, 0.0
    %v7727 = vadd.f32 %v7725, %v7726
    %v7728 = vsel %vm458, %v7705, 0.0
    %v7729 = vadd.f32 %v7727, %v7728
    %v7730 = vsel %vm458, %v7706, 0.0
    %v7731 = vadd.f32 %v7729, %v7730
    %v7732 = vsel %vm458, %v7707, 0.0
    %v7733 = vadd.f32 %v7731, %v7732
    %v7734 = vsel %vm458, %v7708, 0.0
    %v7735 = vadd.f32 %v7733, %v7734
    %v7736 = vsel %vm458, %v7709, 0.0
    %v7737 = vadd.f32 %v7735, %v7736
    %v7738 = vsel %vm458, %v7710, 0.0
    %v7739 = vadd.f32 %v7737, %v7738
    %v7740 = vsel %vm458, %v7711, 0.0
    %v7741 = vadd.f32 %v7739, %v7740
    %v7742 = vsel %vm458, %v7712, 0.0
    %v7743 = vadd.f32 %v7741, %v7742
    %v7744 = vrot.slane %v7743, 4
    %v7745 = vadd.f32 %v7743, %v7744
    %v7746 = vrot.slane %v7745, 2
    %v7747 = vadd.f32 %v7745, %v7746
    %v7748 = vrot.slane %v7747, 1
    %v7749 = vadd.f32 %v7747, %v7748
    %v7750 = vadd.f32 %v4178, %v7749
    %v7751 = vmul.f32 %v7633, -0.5
    %v7752 = vmul.f32 %v7634, -0.5
    %v7753 = vmul.f32 %v7635, -0.5
    %v7754 = vmul.f32 %v7636, -0.5
    %v7755 = vmul.f32 %v7637, -0.5
    %v7756 = vmul.f32 %v7638, -0.5
    %v7757 = vmul.f32 %v7639, -0.5
    %v7758 = vmul.f32 %v7640, -0.5
    %v7759 = vmul.f32 %v7641, -0.5
    %v7760 = vmul.f32 %v7642, -0.5
    %v7761 = vmul.f32 %v7643, -0.5
    %v7762 = vmul.f32 %v7644, -0.5
    %v7763 = vmul.f32 %v7645, -0.5
    %v7764 = vmul.f32 %v7646, -0.5
    %v7765 = vmul.f32 %v7647, -0.5
    %v7766 = vmul.f32 %v7648, -0.5
    %v7767 = vmul.f32 %v7751, %v7633
    %v7768 = vmul.f32 %v7752, %v7634
    %v7769 = vmul.f32 %v7753, %v7635
    %v7770 = vmul.f32 %v7754, %v7636
    %v7771 = vmul.f32 %v7755, %v7637
    %v7772 = vmul.f32 %v7756, %v7638
    %v7773 = vmul.f32 %v7757, %v7639
    %v7774 = vmul.f32 %v7758, %v7640
    %v7775 = vmul.f32 %v7759, %v7641
    %v7776 = vmul.f32 %v7760, %v7642
    %v7777 = vmul.f32 %v7761, %v7643
    %v7778 = vmul.f32 %v7762, %v7644
    %v7779 = vmul.f32 %v7763, %v7645
    %v7780 = vmul.f32 %v7764, %v7646
    %v7781 = vmul.f32 %v7765, %v7647
    %v7782 = vmul.f32 %v7766, %v7648
    %v7783 = vsub.f32 %v7767, 0.9189385
    %v7784 = vsub.f32 %v7768, 0.9189385
    %v7785 = vsub.f32 %v7769, 0.9189385
    %v7786 = vsub.f32 %v7770, 0.9189385
    %v7787 = vsub.f32 %v7771, 0.9189385
    %v7788 = vsub.f32 %v7772, 0.9189385
    %v7789 = vsub.f32 %v7773, 0.9189385
    %v7790 = vsub.f32 %v7774, 0.9189385
    %v7791 = vsub.f32 %v7775, 0.9189385
    %v7792 = vsub.f32 %v7776, 0.9189385
    %v7793 = vsub.f32 %v7777, 0.9189385
    %v7794 = vsub.f32 %v7778, 0.9189385
    %v7795 = vsub.f32 %v7779, 0.9189385
    %v7796 = vsub.f32 %v7780, 0.9189385
    %v7797 = vsub.f32 %v7781, 0.9189385
    %v7798 = vsub.f32 %v7782, 0.9189385
    %v7799 = vsel %vm1960, %v7783, 0.0
    %7800 = vadd.xlane.f32.xlu0 %v7799
    %v7801 = vpop.xlane.xlu0 %7800
    %v7802 = vsel %vm1960, %v7784, 0.0
    %7803 = vadd.xlane.f32.xlu0 %v7802
    %v7804 = vpop.xlane.xlu0 %7803
    %v7805 = vsel %vm1960, %v7785, 0.0
    %7806 = vadd.xlane.f32.xlu0 %v7805
    %v7807 = vpop.xlane.xlu0 %7806
    %v7808 = vsel %vm1960, %v7786, 0.0
    %7809 = vadd.xlane.f32.xlu0 %v7808
    %v7810 = vpop.xlane.xlu0 %7809
    %v7811 = vsel %vm1960, %v7787, 0.0
    %7812 = vadd.xlane.f32.xlu0 %v7811
    %v7813 = vpop.xlane.xlu0 %7812
    %v7814 = vsel %vm1960, %v7788, 0.0
    %7815 = vadd.xlane.f32.xlu0 %v7814
    %v7816 = vpop.xlane.xlu0 %7815
    %v7817 = vsel %vm1960, %v7789, 0.0
    %7818 = vadd.xlane.f32.xlu0 %v7817
    %v7819 = vpop.xlane.xlu0 %7818
    %v7820 = vsel %vm1960, %v7790, 0.0
    %7821 = vadd.xlane.f32.xlu0 %v7820
    %v7822 = vpop.xlane.xlu0 %7821
    %v7823 = vsel %vm1960, %v7791, 0.0
    %7824 = vadd.xlane.f32.xlu0 %v7823
    %v7825 = vpop.xlane.xlu0 %7824
    %v7826 = vsel %vm1960, %v7792, 0.0
    %7827 = vadd.xlane.f32.xlu0 %v7826
    %v7828 = vpop.xlane.xlu0 %7827
    %v7829 = vsel %vm1960, %v7793, 0.0
    %7830 = vadd.xlane.f32.xlu0 %v7829
    %v7831 = vpop.xlane.xlu0 %7830
    %v7832 = vsel %vm1960, %v7794, 0.0
    %7833 = vadd.xlane.f32.xlu0 %v7832
    %v7834 = vpop.xlane.xlu0 %7833
    %v7835 = vsel %vm1960, %v7795, 0.0
    %7836 = vadd.xlane.f32.xlu0 %v7835
    %v7837 = vpop.xlane.xlu0 %7836
    %v7838 = vsel %vm1960, %v7796, 0.0
    %7839 = vadd.xlane.f32.xlu0 %v7838
    %v7840 = vpop.xlane.xlu0 %7839
    %v7841 = vsel %vm1960, %v7797, 0.0
    %7842 = vadd.xlane.f32.xlu0 %v7841
    %v7843 = vpop.xlane.xlu0 %7842
    %v7844 = vsel %vm1960, %v7798, 0.0
    %7845 = vadd.xlane.f32.xlu0 %v7844
    %v7846 = vpop.xlane.xlu0 %7845
    %v7847 = vmul.f32 %v426, %v7801
    %v7848 = vmul.f32 %v427, %v7804
    %v7849 = vmul.f32 %v428, %v7807
    %v7850 = vmul.f32 %v429, %v7810
    %v7851 = vmul.f32 %v430, %v7813
    %v7852 = vmul.f32 %v431, %v7816
    %v7853 = vmul.f32 %v432, %v7819
    %v7854 = vmul.f32 %v433, %v7822
    %v7855 = vmul.f32 %v434, %v7825
    %v7856 = vmul.f32 %v435, %v7828
    %v7857 = vmul.f32 %v436, %v7831
    %v7858 = vmul.f32 %v437, %v7834
    %v7859 = vmul.f32 %v438, %v7837
    %v7860 = vmul.f32 %v439, %v7840
    %v7861 = vmul.f32 %v440, %v7843
    %v7862 = vmul.f32 %v441, %v7846
    %v7863 = vsel %vm458, %v7847, 0.0
    %v7864 = vsel %vm458, %v7848, 0.0
    %v7865 = vadd.f32 %v7863, %v7864
    %v7866 = vsel %vm458, %v7849, 0.0
    %v7867 = vadd.f32 %v7865, %v7866
    %v7868 = vsel %vm458, %v7850, 0.0
    %v7869 = vadd.f32 %v7867, %v7868
    %v7870 = vsel %vm458, %v7851, 0.0
    %v7871 = vadd.f32 %v7869, %v7870
    %v7872 = vsel %vm458, %v7852, 0.0
    %v7873 = vadd.f32 %v7871, %v7872
    %v7874 = vsel %vm458, %v7853, 0.0
    %v7875 = vadd.f32 %v7873, %v7874
    %v7876 = vsel %vm458, %v7854, 0.0
    %v7877 = vadd.f32 %v7875, %v7876
    %v7878 = vsel %vm458, %v7855, 0.0
    %v7879 = vadd.f32 %v7877, %v7878
    %v7880 = vsel %vm458, %v7856, 0.0
    %v7881 = vadd.f32 %v7879, %v7880
    %v7882 = vsel %vm458, %v7857, 0.0
    %v7883 = vadd.f32 %v7881, %v7882
    %v7884 = vsel %vm458, %v7858, 0.0
    %v7885 = vadd.f32 %v7883, %v7884
    %v7886 = vsel %vm458, %v7859, 0.0
    %v7887 = vadd.f32 %v7885, %v7886
    %v7888 = vsel %vm458, %v7860, 0.0
    %v7889 = vadd.f32 %v7887, %v7888
    %v7890 = vsel %vm458, %v7861, 0.0
    %v7891 = vadd.f32 %v7889, %v7890
    %v7892 = vsel %vm458, %v7862, 0.0
    %v7893 = vadd.f32 %v7891, %v7892
    %v7894 = vrot.slane %v7893, 4
    %v7895 = vadd.f32 %v7893, %v7894
    %v7896 = vrot.slane %v7895, 2
    %v7897 = vadd.f32 %v7895, %v7896
    %v7898 = vrot.slane %v7897, 1
    %v7899 = vadd.f32 %v7897, %v7898
    %v7900 = vadd.f32 %v7899, 0.0
    %7901 = vst.msk [vmem:[%s25] sm:$0xff] %vm1960, %v7633
    %7902 = vst.msk [vmem:[%s25 + $0x8] sm:$0xff] %vm1960, %v7634
    %7903 = vst.msk [vmem:[%s25 + $0x10] sm:$0xff] %vm1960, %v7635
    %7904 = vst.msk [vmem:[%s25 + $0x18] sm:$0xff] %vm1960, %v7636
    %7905 = vst.msk [vmem:[%s25 + $0x20] sm:$0xff] %vm1960, %v7637
    %7906 = vst.msk [vmem:[%s25 + $0x28] sm:$0xff] %vm1960, %v7638
    %7907 = vst.msk [vmem:[%s25 + $0x30] sm:$0xff] %vm1960, %v7639
    %7908 = vst.msk [vmem:[%s25 + $0x38] sm:$0xff] %vm1960, %v7640
    %7909 = vst.msk [vmem:[%s25 + $0x40] sm:$0xff] %vm1960, %v7641
    %7910 = vst.msk [vmem:[%s25 + $0x48] sm:$0xff] %vm1960, %v7642
    %7911 = vst.msk [vmem:[%s25 + $0x50] sm:$0xff] %vm1960, %v7643
    %7912 = vst.msk [vmem:[%s25 + $0x58] sm:$0xff] %vm1960, %v7644
    %7913 = vst.msk [vmem:[%s25 + $0x60] sm:$0xff] %vm1960, %v7645
    %7914 = vst.msk [vmem:[%s25 + $0x68] sm:$0xff] %vm1960, %v7646
    %7915 = vst.msk [vmem:[%s25 + $0x70] sm:$0xff] %vm1960, %v7647
    %7916 = vst.msk [vmem:[%s25 + $0x78] sm:$0xff] %vm1960, %v7648
    %v7917 = vld [vmem:[%s4] sm:$0xff]
    %v7918 = vld [vmem:[%s4 + $0x8] sm:$0xff]
    %v7919 = vld [vmem:[%s4 + $0x10] sm:$0xff]
    %v7920 = vld [vmem:[%s4 + $0x18] sm:$0xff]
    %v7921 = vld [vmem:[%s4 + $0x20] sm:$0xff]
    %v7922 = vld [vmem:[%s4 + $0x28] sm:$0xff]
    %v7923 = vld [vmem:[%s4 + $0x30] sm:$0xff]
    %v7924 = vld [vmem:[%s4 + $0x38] sm:$0xff]
    %v7925 = vld [vmem:[%s4 + $0x40] sm:$0xff]
    %v7926 = vld [vmem:[%s4 + $0x48] sm:$0xff]
    %v7927 = vld [vmem:[%s4 + $0x50] sm:$0xff]
    %v7928 = vld [vmem:[%s4 + $0x58] sm:$0xff]
    %v7929 = vld [vmem:[%s4 + $0x60] sm:$0xff]
    %v7930 = vld [vmem:[%s4 + $0x68] sm:$0xff]
    %v7931 = vld [vmem:[%s4 + $0x70] sm:$0xff]
    %v7932 = vld [vmem:[%s4 + $0x78] sm:$0xff]
    %7933 = vmatprep.subr.mxu0 0.0
    %7934 = vmatpush1.msra.mxu0 %v4202
    %7935 = vmatprep.subr.mxu0 0.0
    %7936 = vmatpush1.msra.mxu0 %v4204
    %7937 = vmatprep.subr.mxu0 0.0
    %7938 = vmatpush1.msra.mxu0 %v4206
    %7939 = vmatprep.subr.mxu0 0.0
    %7940 = vmatpush1.msra.mxu0 %v4208
    %7941 = vmatprep.subr.mxu0 0.0
    %7942 = vmatpush1.msra.mxu0 %v4210
    %7943 = vmatprep.subr.mxu0 0.0
    %7944 = vmatpush1.msra.mxu0 %v4212
    %7945 = vmatprep.subr.mxu0 0.0
    %7946 = vmatpush1.msra.mxu0 %v4214
    %7947 = vmatprep.subr.mxu0 0.0
    %7948 = vmatpush1.msra.mxu0 %v4216
    %7949 = vmatprep.subr.mxu0 0.0
    %7950 = vmatpush1.msra.mxu0 %v4218
    %7951 = vmatprep.subr.mxu0 0.0
    %7952 = vmatpush1.msra.mxu0 %v4220
    %7953 = vmatprep.subr.mxu0 0.0
    %7954 = vmatpush1.msra.mxu0 %v4222
    %7955 = vmatprep.subr.mxu0 0.0
    %7956 = vmatpush1.msra.mxu0 %v4224
    %7957 = vmatprep.subr.mxu0 0.0
    %7958 = vmatpush1.msra.mxu0 %v4226
    %7959 = vmatprep.subr.mxu0 0.0
    %7960 = vmatpush1.msra.mxu0 %v4228
    %7961 = vmatprep.subr.mxu0 0.0
    %7962 = vmatpush1.msra.mxu0 %v4230
    %7963 = vmatprep.subr.mxu0 0.0
    %7964 = vmatpush1.msra.mxu0 %v4232
    %7965 = vmatprep.subr.mxu0 0.0
    %7966 = vmatpush1.msra.mxu0 0.0
    %7967 = vmatprep.subr.mxu0 0.0
    %7968 = vmatpush1.msra.mxu0 0.0
    %7969 = vmatprep.subr.mxu0 0.0
    %7970 = vmatpush1.msra.mxu0 0.0
    %7971 = vmatprep.subr.mxu0 0.0
    %7972 = vmatpush1.msra.mxu0 0.0
    %7973 = vmatprep.subr.mxu0 0.0
    %7974 = vmatpush1.msra.mxu0 0.0
    %7975 = vmatprep.subr.mxu0 0.0
    %7976 = vmatpush1.msra.mxu0 0.0
    %7977 = vmatprep.subr.mxu0 0.0
    %7978 = vmatpush1.msra.mxu0 0.0
    %7979 = vmatprep.subr.mxu0 0.0
    %7980 = vmatpush1.msra.mxu0 0.0
    %7981 = vmatprep.subr.mxu0 0.0
    %7982 = vmatpush1.msra.mxu0 0.0
    %7983 = vmatprep.subr.mxu0 0.0
    %7984 = vmatpush1.msra.mxu0 0.0
    %7985 = vmatprep.subr.mxu0 0.0
    %7986 = vmatpush1.msra.mxu0 0.0
    %7987 = vmatprep.subr.mxu0 0.0
    %7988 = vmatpush1.msra.mxu0 0.0
    %7989 = vmatprep.subr.mxu0 0.0
    %7990 = vmatpush1.msra.mxu0 0.0
    %7991 = vmatprep.subr.mxu0 0.0
    %7992 = vmatpush1.msra.mxu0 0.0
    %7993 = vmatprep.subr.mxu0 0.0
    %7994 = vmatpush1.msra.mxu0 0.0
    %7995 = vmatprep.subr.mxu0 0.0
    %7996 = vmatpush1.msra.mxu0 0.0
    %7997 = vmatprep.mubr.f32.mxu0 0.0
    %7998 = vmatmul.mubr.f32.gmra.mrb[0].mxu0 %v7917
    %v7999 = vpop.f32.mrb[0].mxu0
    %v8000 = vadd.f32 0.0, %v7999
    %v8001 = vpop.f32.mrb[0].mxu0
    %8002 = vmatprep.mubr.f32.mxu0 0.0
    %8003 = vmatmul.mubr.f32.gmra.mrb[0].mxu0 %v7918
    %v8004 = vpop.f32.mrb[0].mxu0
    %v8005 = vadd.f32 0.0, %v8004
    %v8006 = vpop.f32.mrb[0].mxu0
    %8007 = vmatprep.mubr.f32.mxu0 0.0
    %8008 = vmatmul.mubr.f32.gmra.mrb[0].mxu0 %v7919
    %v8009 = vpop.f32.mrb[0].mxu0
    %v8010 = vadd.f32 0.0, %v8009
    %v8011 = vpop.f32.mrb[0].mxu0
    %8012 = vmatprep.mubr.f32.mxu0 0.0
    %8013 = vmatmul.mubr.f32.gmra.mrb[0].mxu0 %v7920
    %v8014 = vpop.f32.mrb[0].mxu0
    %v8015 = vadd.f32 0.0, %v8014
    %v8016 = vpop.f32.mrb[0].mxu0
    %8017 = vmatprep.mubr.f32.mxu0 0.0
    %8018 = vmatmul.mubr.f32.gmra.mrb[0].mxu0 %v7921
    %v8019 = vpop.f32.mrb[0].mxu0
    %v8020 = vadd.f32 0.0, %v8019
    %v8021 = vpop.f32.mrb[0].mxu0
    %8022 = vmatprep.mubr.f32.mxu0 0.0
    %8023 = vmatmul.mubr.f32.gmra.mrb[0].mxu0 %v7922
    %v8024 = vpop.f32.mrb[0].mxu0
    %v8025 = vadd.f32 0.0, %v8024
    %v8026 = vpop.f32.mrb[0].mxu0
    %8027 = vmatprep.mubr.f32.mxu0 0.0
    %8028 = vmatmul.mubr.f32.gmra.mrb[0].mxu0 %v7923
    %v8029 = vpop.f32.mrb[0].mxu0
    %v8030 = vadd.f32 0.0, %v8029
    %v8031 = vpop.f32.mrb[0].mxu0
    %8032 = vmatprep.mubr.f32.mxu0 0.0
    %8033 = vmatmul.mubr.f32.gmra.mrb[0].mxu0 %v7924
    %v8034 = vpop.f32.mrb[0].mxu0
    %v8035 = vadd.f32 0.0, %v8034
    %v8036 = vpop.f32.mrb[0].mxu0
    %8037 = vmatprep.mubr.f32.mxu0 0.0
    %8038 = vmatmul.mubr.f32.gmra.mrb[0].mxu0 %v7925
    %v8039 = vpop.f32.mrb[0].mxu0
    %v8040 = vadd.f32 0.0, %v8039
    %v8041 = vpop.f32.mrb[0].mxu0
    %8042 = vmatprep.mubr.f32.mxu0 0.0
    %8043 = vmatmul.mubr.f32.gmra.mrb[0].mxu0 %v7926
    %v8044 = vpop.f32.mrb[0].mxu0
    %v8045 = vadd.f32 0.0, %v8044
    %v8046 = vpop.f32.mrb[0].mxu0
    %8047 = vmatprep.mubr.f32.mxu0 0.0
    %8048 = vmatmul.mubr.f32.gmra.mrb[0].mxu0 %v7927
    %v8049 = vpop.f32.mrb[0].mxu0
    %v8050 = vadd.f32 0.0, %v8049
    %v8051 = vpop.f32.mrb[0].mxu0
    %8052 = vmatprep.mubr.f32.mxu0 0.0
    %8053 = vmatmul.mubr.f32.gmra.mrb[0].mxu0 %v7928
    %v8054 = vpop.f32.mrb[0].mxu0
    %v8055 = vadd.f32 0.0, %v8054
    %v8056 = vpop.f32.mrb[0].mxu0
    %8057 = vmatprep.mubr.f32.mxu0 0.0
    %8058 = vmatmul.mubr.f32.gmra.mrb[0].mxu0 %v7929
    %v8059 = vpop.f32.mrb[0].mxu0
    %v8060 = vadd.f32 0.0, %v8059
    %v8061 = vpop.f32.mrb[0].mxu0
    %8062 = vmatprep.mubr.f32.mxu0 0.0
    %8063 = vmatmul.mubr.f32.gmra.mrb[0].mxu0 %v7930
    %v8064 = vpop.f32.mrb[0].mxu0
    %v8065 = vadd.f32 0.0, %v8064
    %v8066 = vpop.f32.mrb[0].mxu0
    %8067 = vmatprep.mubr.f32.mxu0 0.0
    %8068 = vmatmul.mubr.f32.gmra.mrb[0].mxu0 %v7931
    %v8069 = vpop.f32.mrb[0].mxu0
    %v8070 = vadd.f32 0.0, %v8069
    %v8071 = vpop.f32.mrb[0].mxu0
    %8072 = vmatprep.mubr.f32.mxu0 0.0
    %8073 = vmatmul.mubr.f32.gmra.mrb[0].mxu0 %v7932
    %v8074 = vpop.f32.mrb[0].mxu0
    %v8075 = vadd.f32 0.0, %v8074
    %v8076 = vpop.f32.mrb[0].mxu0
    %8077 = vdwg.mxu0
    %8082 = vrot.lane.b32.xlu0 %v8020, 4
    %v8083 = vpop.permute.xlu0 %8082
    %8084 = vrot.lane.b32.xlu0 %v8025, 4
    %v8085 = vpop.permute.xlu0 %8084
    %8086 = vrot.lane.b32.xlu0 %v8030, 4
    %v8087 = vpop.permute.xlu0 %8086
    %8088 = vrot.lane.b32.xlu0 %v8035, 4
    %v8089 = vpop.permute.xlu0 %8088
    %8098 = vrot.lane.b32.xlu0 %v8040, 8
    %v8099 = vpop.permute.xlu0 %8098
    %8100 = vrot.lane.b32.xlu0 %v8045, 8
    %v8101 = vpop.permute.xlu0 %8100
    %8102 = vrot.lane.b32.xlu0 %v8050, 8
    %v8103 = vpop.permute.xlu0 %8102
    %8104 = vrot.lane.b32.xlu0 %v8055, 8
    %v8105 = vpop.permute.xlu0 %8104
    %8114 = vrot.lane.b32.xlu0 %v8060, 12
    %v8115 = vpop.permute.xlu0 %8114
    %8116 = vrot.lane.b32.xlu0 %v8065, 12
    %v8117 = vpop.permute.xlu0 %8116
    %8118 = vrot.lane.b32.xlu0 %v8070, 12
    %v8119 = vpop.permute.xlu0 %8118
    %8120 = vrot.lane.b32.xlu0 %v8075, 12
    %v8121 = vpop.permute.xlu0 %8120
    %v8126 = vsel %vm1960, %v8000, %v8083
    %v8127 = vsel %vm1960, %v8005, %v8085
    %v8128 = vsel %vm1960, %v8010, %v8087
    %v8129 = vsel %vm1960, %v8015, %v8089
    %v8130 = vsel %vm292, %v8126, %v8099
    %v8131 = vsel %vm292, %v8127, %v8101
    %v8132 = vsel %vm292, %v8128, %v8103
    %v8133 = vsel %vm292, %v8129, %v8105
    %v8134 = vsel %vm1993, %v8130, %v8115
    %v8135 = vsel %vm1993, %v8131, %v8117
    %v8136 = vsel %vm1993, %v8132, %v8119
    %v8137 = vsel %vm1993, %v8133, %v8121
    %v8138 = vld [vmem:[%s3] sm:$0xff]
    %v8139 = vld [vmem:[%s3 + $0x8] sm:$0xff]
    %v8140 = vld [vmem:[%s3 + $0x10] sm:$0xff]
    %v8141 = vld [vmem:[%s3 + $0x18] sm:$0xff]
    %v8142 = vld [vmem:[%s3 + $0x20] sm:$0xff]
    %v8143 = vld [vmem:[%s3 + $0x28] sm:$0xff]
    %v8144 = vld [vmem:[%s3 + $0x30] sm:$0xff]
    %v8145 = vld [vmem:[%s3 + $0x38] sm:$0xff]
    %v8146 = vld [vmem:[%s3 + $0x40] sm:$0xff]
    %v8147 = vld [vmem:[%s3 + $0x48] sm:$0xff]
    %v8148 = vld [vmem:[%s3 + $0x50] sm:$0xff]
    %v8149 = vld [vmem:[%s3 + $0x58] sm:$0xff]
    %v8150 = vld [vmem:[%s3 + $0x60] sm:$0xff]
    %v8151 = vld [vmem:[%s3 + $0x68] sm:$0xff]
    %v8152 = vld [vmem:[%s3 + $0x70] sm:$0xff]
    %v8153 = vld [vmem:[%s3 + $0x78] sm:$0xff]
    %v8154 = vld [vmem:[%s3 + $0x80] sm:$0xff]
    %v8155 = vld [vmem:[%s3 + $0x88] sm:$0xff]
    %v8156 = vld [vmem:[%s3 + $0x90] sm:$0xff]
    %v8157 = vld [vmem:[%s3 + $0x98] sm:$0xff]
    %v8158 = vld [vmem:[%s3 + $0xa0] sm:$0xff]
    %v8159 = vld [vmem:[%s3 + $0xa8] sm:$0xff]
    %v8160 = vld [vmem:[%s3 + $0xb0] sm:$0xff]
    %v8161 = vld [vmem:[%s3 + $0xb8] sm:$0xff]
    %v8162 = vld [vmem:[%s3 + $0xc0] sm:$0xff]
    %v8163 = vld [vmem:[%s3 + $0xc8] sm:$0xff]
    %v8164 = vld [vmem:[%s3 + $0xd0] sm:$0xff]
    %v8165 = vld [vmem:[%s3 + $0xd8] sm:$0xff]
    %v8166 = vld [vmem:[%s3 + $0xe0] sm:$0xff]
    %v8167 = vld [vmem:[%s3 + $0xe8] sm:$0xff]
    %v8168 = vld [vmem:[%s3 + $0xf0] sm:$0xff]
    %v8169 = vld [vmem:[%s3 + $0xf8] sm:$0xff]
    %v8170 = vld [vmem:[%s3 + $0x100] sm:$0xff]
    %v8171 = vld [vmem:[%s3 + $0x108] sm:$0xff]
    %v8172 = vld [vmem:[%s3 + $0x110] sm:$0xff]
    %v8173 = vld [vmem:[%s3 + $0x118] sm:$0xff]
    %v8174 = vld [vmem:[%s15] sm:$0xff]
    %v8175 = vld [vmem:[%s15 + $0x8] sm:$0xff]
    %v8176 = vld [vmem:[%s15 + $0x10] sm:$0xff]
    %v8177 = vld [vmem:[%s15 + $0x18] sm:$0xff]
    %v8178 = vld [vmem:[%s15 + $0x20] sm:$0xff]
    %v8179 = vld [vmem:[%s15 + $0x28] sm:$0xff]
    %v8180 = vld [vmem:[%s15 + $0x30] sm:$0xff]
    %v8181 = vld [vmem:[%s15 + $0x38] sm:$0xff]
    %v8182 = vld [vmem:[%s15 + $0x40] sm:$0xff]
    %v8183 = vld [vmem:[%s16] sm:$0x1]
    %v8185 = vsel %vm2078, %v8138, 0
    %v8188 = vsel %vm2078, %v8139, 0
    %v8191 = vsel %vm2078, %v8140, 0
    %v8194 = vsel %vm2078, %v8141, 0
    %v8197 = vsel %vm2078, %v8142, 0
    %v8200 = vsel %vm2078, %v8143, 0
    %v8203 = vsel %vm2078, %v8144, 0
    %v8206 = vsel %vm2078, %v8145, 0
    %v8209 = vsel %vm2078, %v8146, 0
    %v8212 = vsel %vm2078, %v8147, 0
    %v8215 = vsel %vm2078, %v8148, 0
    %v8218 = vsel %vm2078, %v8149, 0
    %v8221 = vsel %vm2078, %v8150, 0
    %v8224 = vsel %vm2078, %v8151, 0
    %v8227 = vsel %vm2078, %v8152, 0
    %v8230 = vsel %vm2078, %v8153, 0
    %v8233 = vsel %vm2078, %v8154, 0
    %v8236 = vsel %vm2078, %v8155, 0
    %v8239 = vsel %vm2078, %v8156, 0
    %v8242 = vsel %vm2078, %v8157, 0
    %v8245 = vsel %vm2078, %v8158, 0
    %v8248 = vsel %vm2078, %v8159, 0
    %v8251 = vsel %vm2078, %v8160, 0
    %v8254 = vsel %vm2078, %v8161, 0
    %v8257 = vsel %vm2078, %v8162, 0
    %v8260 = vsel %vm2078, %v8163, 0
    %v8263 = vsel %vm2078, %v8164, 0
    %v8266 = vsel %vm2078, %v8165, 0
    %v8269 = vsel %vm2078, %v8166, 0
    %v8272 = vsel %vm2078, %v8167, 0
    %v8275 = vsel %vm2078, %v8168, 0
    %v8278 = vsel %vm2078, %v8169, 0
    %v8281 = vsel %vm2078, %v8170, 0
    %v8284 = vsel %vm2078, %v8171, 0
    %v8287 = vsel %vm2078, %v8172, 0
    %v8290 = vsel %vm2078, %v8173, 0
    %8292 = vmatprep.subr.mxu0 0.0
    %8293 = vmatpush1.msra.mxu0 %v8134
    %8294 = vmatprep.subr.mxu0 0.0
    %8295 = vmatpush1.msra.mxu0 %v8135
    %8296 = vmatprep.subr.mxu0 0.0
    %8297 = vmatpush1.msra.mxu0 %v8136
    %8298 = vmatprep.subr.mxu0 0.0
    %8299 = vmatpush1.msra.mxu0 %v8137
    %8300 = vmatprep.subr.mxu0 0.0
    %8301 = vmatpush1.msra.mxu0 0.0
    %8302 = vmatprep.subr.mxu0 0.0
    %8303 = vmatpush1.msra.mxu0 0.0
    %8304 = vmatprep.subr.mxu0 0.0
    %8305 = vmatpush1.msra.mxu0 0.0
    %8306 = vmatprep.subr.mxu0 0.0
    %8307 = vmatpush1.msra.mxu0 0.0
    %8308 = vmatprep.subr.mxu0 0.0
    %8309 = vmatpush1.msra.mxu0 0.0
    %8310 = vmatprep.subr.mxu0 0.0
    %8311 = vmatpush1.msra.mxu0 0.0
    %8312 = vmatprep.subr.mxu0 0.0
    %8313 = vmatpush1.msra.mxu0 0.0
    %8314 = vmatprep.subr.mxu0 0.0
    %8315 = vmatpush1.msra.mxu0 0.0
    %8316 = vmatprep.subr.mxu0 0.0
    %8317 = vmatpush1.msra.mxu0 0.0
    %8318 = vmatprep.subr.mxu0 0.0
    %8319 = vmatpush1.msra.mxu0 0.0
    %8320 = vmatprep.subr.mxu0 0.0
    %8321 = vmatpush1.msra.mxu0 0.0
    %8322 = vmatprep.subr.mxu0 0.0
    %8323 = vmatpush1.msra.mxu0 0.0
    %8324 = vmatprep.subr.mxu0 0.0
    %8325 = vmatpush1.msra.mxu0 0.0
    %8326 = vmatprep.subr.mxu0 0.0
    %8327 = vmatpush1.msra.mxu0 0.0
    %8328 = vmatprep.subr.mxu0 0.0
    %8329 = vmatpush1.msra.mxu0 0.0
    %8330 = vmatprep.subr.mxu0 0.0
    %8331 = vmatpush1.msra.mxu0 0.0
    %8332 = vmatprep.subr.mxu0 0.0
    %8333 = vmatpush1.msra.mxu0 0.0
    %8334 = vmatprep.subr.mxu0 0.0
    %8335 = vmatpush1.msra.mxu0 0.0
    %8336 = vmatprep.subr.mxu0 0.0
    %8337 = vmatpush1.msra.mxu0 0.0
    %8338 = vmatprep.subr.mxu0 0.0
    %8339 = vmatpush1.msra.mxu0 0.0
    %8340 = vmatprep.subr.mxu0 0.0
    %8341 = vmatpush1.msra.mxu0 0.0
    %8342 = vmatprep.subr.mxu0 0.0
    %8343 = vmatpush1.msra.mxu0 0.0
    %8344 = vmatprep.subr.mxu0 0.0
    %8345 = vmatpush1.msra.mxu0 0.0
    %8346 = vmatprep.subr.mxu0 0.0
    %8347 = vmatpush1.msra.mxu0 0.0
    %8348 = vmatprep.subr.mxu0 0.0
    %8349 = vmatpush1.msra.mxu0 0.0
    %8350 = vmatprep.subr.mxu0 0.0
    %8351 = vmatpush1.msra.mxu0 0.0
    %8352 = vmatprep.subr.mxu0 0.0
    %8353 = vmatpush1.msra.mxu0 0.0
    %8354 = vmatprep.subr.mxu0 0.0
    %8355 = vmatpush1.msra.mxu0 0.0
    %8356 = vmatprep.mubr.f32.mxu0 0.0
    %8357 = vmatmul.mubr.f32.gmra.mrb[0].mxu0 %v8185
    %v8358 = vpop.f32.mrb[0].mxu0
    %v8359 = vadd.f32 0.0, %v8358
    %v8360 = vpop.f32.mrb[0].mxu0
    %8361 = vmatprep.mubr.f32.mxu0 0.0
    %8362 = vmatmul.mubr.f32.gmra.mrb[0].mxu0 %v8188
    %v8363 = vpop.f32.mrb[0].mxu0
    %v8364 = vadd.f32 0.0, %v8363
    %v8365 = vpop.f32.mrb[0].mxu0
    %8366 = vmatprep.mubr.f32.mxu0 0.0
    %8367 = vmatmul.mubr.f32.gmra.mrb[0].mxu0 %v8191
    %v8368 = vpop.f32.mrb[0].mxu0
    %v8369 = vadd.f32 0.0, %v8368
    %v8370 = vpop.f32.mrb[0].mxu0
    %8371 = vmatprep.mubr.f32.mxu0 0.0
    %8372 = vmatmul.mubr.f32.gmra.mrb[0].mxu0 %v8194
    %v8373 = vpop.f32.mrb[0].mxu0
    %v8374 = vadd.f32 0.0, %v8373
    %v8375 = vpop.f32.mrb[0].mxu0
    %8376 = vmatprep.mubr.f32.mxu0 0.0
    %8377 = vmatmul.mubr.f32.gmra.mrb[0].mxu0 %v8197
    %v8378 = vpop.f32.mrb[0].mxu0
    %v8379 = vadd.f32 0.0, %v8378
    %v8380 = vpop.f32.mrb[0].mxu0
    %8381 = vmatprep.mubr.f32.mxu0 0.0
    %8382 = vmatmul.mubr.f32.gmra.mrb[0].mxu0 %v8200
    %v8383 = vpop.f32.mrb[0].mxu0
    %v8384 = vadd.f32 0.0, %v8383
    %v8385 = vpop.f32.mrb[0].mxu0
    %8386 = vmatprep.mubr.f32.mxu0 0.0
    %8387 = vmatmul.mubr.f32.gmra.mrb[0].mxu0 %v8203
    %v8388 = vpop.f32.mrb[0].mxu0
    %v8389 = vadd.f32 0.0, %v8388
    %v8390 = vpop.f32.mrb[0].mxu0
    %8391 = vmatprep.mubr.f32.mxu0 0.0
    %8392 = vmatmul.mubr.f32.gmra.mrb[0].mxu0 %v8206
    %v8393 = vpop.f32.mrb[0].mxu0
    %v8394 = vadd.f32 0.0, %v8393
    %v8395 = vpop.f32.mrb[0].mxu0
    %8396 = vmatprep.mubr.f32.mxu0 0.0
    %8397 = vmatmul.mubr.f32.gmra.mrb[0].mxu0 %v8209
    %v8398 = vpop.f32.mrb[0].mxu0
    %v8399 = vadd.f32 0.0, %v8398
    %v8400 = vpop.f32.mrb[0].mxu0
    %8401 = vmatprep.mubr.f32.mxu0 0.0
    %8402 = vmatmul.mubr.f32.gmra.mrb[0].mxu0 %v8212
    %v8403 = vpop.f32.mrb[0].mxu0
    %v8404 = vadd.f32 0.0, %v8403
    %v8405 = vpop.f32.mrb[0].mxu0
    %8406 = vmatprep.mubr.f32.mxu0 0.0
    %8407 = vmatmul.mubr.f32.gmra.mrb[0].mxu0 %v8215
    %v8408 = vpop.f32.mrb[0].mxu0
    %v8409 = vadd.f32 0.0, %v8408
    %v8410 = vpop.f32.mrb[0].mxu0
    %8411 = vmatprep.mubr.f32.mxu0 0.0
    %8412 = vmatmul.mubr.f32.gmra.mrb[0].mxu0 %v8218
    %v8413 = vpop.f32.mrb[0].mxu0
    %v8414 = vadd.f32 0.0, %v8413
    %v8415 = vpop.f32.mrb[0].mxu0
    %8416 = vmatprep.mubr.f32.mxu0 0.0
    %8417 = vmatmul.mubr.f32.gmra.mrb[0].mxu0 %v8221
    %v8418 = vpop.f32.mrb[0].mxu0
    %v8419 = vadd.f32 0.0, %v8418
    %v8420 = vpop.f32.mrb[0].mxu0
    %8421 = vmatprep.mubr.f32.mxu0 0.0
    %8422 = vmatmul.mubr.f32.gmra.mrb[0].mxu0 %v8224
    %v8423 = vpop.f32.mrb[0].mxu0
    %v8424 = vadd.f32 0.0, %v8423
    %v8425 = vpop.f32.mrb[0].mxu0
    %8426 = vmatprep.mubr.f32.mxu0 0.0
    %8427 = vmatmul.mubr.f32.gmra.mrb[0].mxu0 %v8227
    %v8428 = vpop.f32.mrb[0].mxu0
    %v8429 = vadd.f32 0.0, %v8428
    %v8430 = vpop.f32.mrb[0].mxu0
    %8431 = vmatprep.mubr.f32.mxu0 0.0
    %8432 = vmatmul.mubr.f32.gmra.mrb[0].mxu0 %v8230
    %v8433 = vpop.f32.mrb[0].mxu0
    %v8434 = vadd.f32 0.0, %v8433
    %v8435 = vpop.f32.mrb[0].mxu0
    %8436 = vmatprep.mubr.f32.mxu0 0.0
    %8437 = vmatmul.mubr.f32.gmra.mrb[0].mxu0 %v8233
    %v8438 = vpop.f32.mrb[0].mxu0
    %v8439 = vadd.f32 0.0, %v8438
    %v8440 = vpop.f32.mrb[0].mxu0
    %8441 = vmatprep.mubr.f32.mxu0 0.0
    %8442 = vmatmul.mubr.f32.gmra.mrb[0].mxu0 %v8236
    %v8443 = vpop.f32.mrb[0].mxu0
    %v8444 = vadd.f32 0.0, %v8443
    %v8445 = vpop.f32.mrb[0].mxu0
    %8446 = vmatprep.mubr.f32.mxu0 0.0
    %8447 = vmatmul.mubr.f32.gmra.mrb[0].mxu0 %v8239
    %v8448 = vpop.f32.mrb[0].mxu0
    %v8449 = vadd.f32 0.0, %v8448
    %v8450 = vpop.f32.mrb[0].mxu0
    %8451 = vmatprep.mubr.f32.mxu0 0.0
    %8452 = vmatmul.mubr.f32.gmra.mrb[0].mxu0 %v8242
    %v8453 = vpop.f32.mrb[0].mxu0
    %v8454 = vadd.f32 0.0, %v8453
    %v8455 = vpop.f32.mrb[0].mxu0
    %8456 = vmatprep.mubr.f32.mxu0 0.0
    %8457 = vmatmul.mubr.f32.gmra.mrb[0].mxu0 %v8245
    %v8458 = vpop.f32.mrb[0].mxu0
    %v8459 = vadd.f32 0.0, %v8458
    %v8460 = vpop.f32.mrb[0].mxu0
    %8461 = vmatprep.mubr.f32.mxu0 0.0
    %8462 = vmatmul.mubr.f32.gmra.mrb[0].mxu0 %v8248
    %v8463 = vpop.f32.mrb[0].mxu0
    %v8464 = vadd.f32 0.0, %v8463
    %v8465 = vpop.f32.mrb[0].mxu0
    %8466 = vmatprep.mubr.f32.mxu0 0.0
    %8467 = vmatmul.mubr.f32.gmra.mrb[0].mxu0 %v8251
    %v8468 = vpop.f32.mrb[0].mxu0
    %v8469 = vadd.f32 0.0, %v8468
    %v8470 = vpop.f32.mrb[0].mxu0
    %8471 = vmatprep.mubr.f32.mxu0 0.0
    %8472 = vmatmul.mubr.f32.gmra.mrb[0].mxu0 %v8254
    %v8473 = vpop.f32.mrb[0].mxu0
    %v8474 = vadd.f32 0.0, %v8473
    %v8475 = vpop.f32.mrb[0].mxu0
    %8476 = vmatprep.mubr.f32.mxu0 0.0
    %8477 = vmatmul.mubr.f32.gmra.mrb[0].mxu0 %v8257
    %v8478 = vpop.f32.mrb[0].mxu0
    %v8479 = vadd.f32 0.0, %v8478
    %v8480 = vpop.f32.mrb[0].mxu0
    %8481 = vmatprep.mubr.f32.mxu0 0.0
    %8482 = vmatmul.mubr.f32.gmra.mrb[0].mxu0 %v8260
    %v8483 = vpop.f32.mrb[0].mxu0
    %v8484 = vadd.f32 0.0, %v8483
    %v8485 = vpop.f32.mrb[0].mxu0
    %8486 = vmatprep.mubr.f32.mxu0 0.0
    %8487 = vmatmul.mubr.f32.gmra.mrb[0].mxu0 %v8263
    %v8488 = vpop.f32.mrb[0].mxu0
    %v8489 = vadd.f32 0.0, %v8488
    %v8490 = vpop.f32.mrb[0].mxu0
    %8491 = vmatprep.mubr.f32.mxu0 0.0
    %8492 = vmatmul.mubr.f32.gmra.mrb[0].mxu0 %v8266
    %v8493 = vpop.f32.mrb[0].mxu0
    %v8494 = vadd.f32 0.0, %v8493
    %v8495 = vpop.f32.mrb[0].mxu0
    %8496 = vmatprep.mubr.f32.mxu0 0.0
    %8497 = vmatmul.mubr.f32.gmra.mrb[0].mxu0 %v8269
    %v8498 = vpop.f32.mrb[0].mxu0
    %v8499 = vadd.f32 0.0, %v8498
    %v8500 = vpop.f32.mrb[0].mxu0
    %8501 = vmatprep.mubr.f32.mxu0 0.0
    %8502 = vmatmul.mubr.f32.gmra.mrb[0].mxu0 %v8272
    %v8503 = vpop.f32.mrb[0].mxu0
    %v8504 = vadd.f32 0.0, %v8503
    %v8505 = vpop.f32.mrb[0].mxu0
    %8506 = vmatprep.mubr.f32.mxu0 0.0
    %8507 = vmatmul.mubr.f32.gmra.mrb[0].mxu0 %v8275
    %v8508 = vpop.f32.mrb[0].mxu0
    %v8509 = vadd.f32 0.0, %v8508
    %v8510 = vpop.f32.mrb[0].mxu0
    %8511 = vmatprep.mubr.f32.mxu0 0.0
    %8512 = vmatmul.mubr.f32.gmra.mrb[0].mxu0 %v8278
    %v8513 = vpop.f32.mrb[0].mxu0
    %v8514 = vadd.f32 0.0, %v8513
    %v8515 = vpop.f32.mrb[0].mxu0
    %8516 = vmatprep.mubr.f32.mxu0 0.0
    %8517 = vmatmul.mubr.f32.gmra.mrb[0].mxu0 %v8281
    %v8518 = vpop.f32.mrb[0].mxu0
    %v8519 = vadd.f32 0.0, %v8518
    %v8520 = vpop.f32.mrb[0].mxu0
    %8521 = vmatprep.mubr.f32.mxu0 0.0
    %8522 = vmatmul.mubr.f32.gmra.mrb[0].mxu0 %v8284
    %v8523 = vpop.f32.mrb[0].mxu0
    %v8524 = vadd.f32 0.0, %v8523
    %v8525 = vpop.f32.mrb[0].mxu0
    %8526 = vmatprep.mubr.f32.mxu0 0.0
    %8527 = vmatmul.mubr.f32.gmra.mrb[0].mxu0 %v8287
    %v8528 = vpop.f32.mrb[0].mxu0
    %v8529 = vadd.f32 0.0, %v8528
    %v8530 = vpop.f32.mrb[0].mxu0
    %8531 = vmatprep.mubr.f32.mxu0 0.0
    %8532 = vmatmul.mubr.f32.gmra.mrb[0].mxu0 %v8290
    %v8533 = vpop.f32.mrb[0].mxu0
    %v8534 = vadd.f32 0.0, %v8533
    %v8535 = vpop.f32.mrb[0].mxu0
    %8536 = vdwg.mxu0
    %8541 = vrot.lane.b32.xlu0 %v8379, 8
    %v8542 = vpop.permute.xlu0 %8541
    %8543 = vrot.lane.b32.xlu0 %v8384, 8
    %v8544 = vpop.permute.xlu0 %8543
    %8545 = vrot.lane.b32.xlu0 %v8389, 8
    %v8546 = vpop.permute.xlu0 %8545
    %8547 = vrot.lane.b32.xlu0 %v8394, 8
    %v8548 = vpop.permute.xlu0 %8547
    %8557 = vrot.lane.b32.xlu0 %v8399, 16
    %v8558 = vpop.permute.xlu0 %8557
    %8559 = vrot.lane.b32.xlu0 %v8404, 16
    %v8560 = vpop.permute.xlu0 %8559
    %8561 = vrot.lane.b32.xlu0 %v8409, 16
    %v8562 = vpop.permute.xlu0 %8561
    %8563 = vrot.lane.b32.xlu0 %v8414, 16
    %v8564 = vpop.permute.xlu0 %8563
    %8573 = vrot.lane.b32.xlu0 %v8419, 24
    %v8574 = vpop.permute.xlu0 %8573
    %8575 = vrot.lane.b32.xlu0 %v8424, 24
    %v8576 = vpop.permute.xlu0 %8575
    %8577 = vrot.lane.b32.xlu0 %v8429, 24
    %v8578 = vpop.permute.xlu0 %8577
    %8579 = vrot.lane.b32.xlu0 %v8434, 24
    %v8580 = vpop.permute.xlu0 %8579
    %8589 = vrot.lane.b32.xlu0 %v8439, 32
    %v8590 = vpop.permute.xlu0 %8589
    %8591 = vrot.lane.b32.xlu0 %v8444, 32
    %v8592 = vpop.permute.xlu0 %8591
    %8593 = vrot.lane.b32.xlu0 %v8449, 32
    %v8594 = vpop.permute.xlu0 %8593
    %8595 = vrot.lane.b32.xlu0 %v8454, 32
    %v8596 = vpop.permute.xlu0 %8595
    %8605 = vrot.lane.b32.xlu0 %v8459, 40
    %v8606 = vpop.permute.xlu0 %8605
    %8607 = vrot.lane.b32.xlu0 %v8464, 40
    %v8608 = vpop.permute.xlu0 %8607
    %8609 = vrot.lane.b32.xlu0 %v8469, 40
    %v8610 = vpop.permute.xlu0 %8609
    %8611 = vrot.lane.b32.xlu0 %v8474, 40
    %v8612 = vpop.permute.xlu0 %8611
    %8621 = vrot.lane.b32.xlu0 %v8479, 48
    %v8622 = vpop.permute.xlu0 %8621
    %8623 = vrot.lane.b32.xlu0 %v8484, 48
    %v8624 = vpop.permute.xlu0 %8623
    %8625 = vrot.lane.b32.xlu0 %v8489, 48
    %v8626 = vpop.permute.xlu0 %8625
    %8627 = vrot.lane.b32.xlu0 %v8494, 48
    %v8628 = vpop.permute.xlu0 %8627
    %8637 = vrot.lane.b32.xlu0 %v8499, 56
    %v8638 = vpop.permute.xlu0 %8637
    %8639 = vrot.lane.b32.xlu0 %v8504, 56
    %v8640 = vpop.permute.xlu0 %8639
    %8641 = vrot.lane.b32.xlu0 %v8509, 56
    %v8642 = vpop.permute.xlu0 %8641
    %8643 = vrot.lane.b32.xlu0 %v8514, 56
    %v8644 = vpop.permute.xlu0 %8643
    %8653 = vrot.lane.b32.xlu0 %v8519, 64
    %v8654 = vpop.permute.xlu0 %8653
    %8655 = vrot.lane.b32.xlu0 %v8524, 64
    %v8656 = vpop.permute.xlu0 %8655
    %8657 = vrot.lane.b32.xlu0 %v8529, 64
    %v8658 = vpop.permute.xlu0 %8657
    %8659 = vrot.lane.b32.xlu0 %v8534, 64
    %v8660 = vpop.permute.xlu0 %8659
    %v8665 = vsel %vm292, %v8359, %v8542
    %v8666 = vsel %vm292, %v8364, %v8544
    %v8667 = vsel %vm292, %v8369, %v8546
    %v8668 = vsel %vm292, %v8374, %v8548
    %v8669 = vsel %vm2010, %v8665, %v8558
    %v8670 = vsel %vm2010, %v8666, %v8560
    %v8671 = vsel %vm2010, %v8667, %v8562
    %v8672 = vsel %vm2010, %v8668, %v8564
    %v8673 = vsel %vm2044, %v8669, %v8574
    %v8674 = vsel %vm2044, %v8670, %v8576
    %v8675 = vsel %vm2044, %v8671, %v8578
    %v8676 = vsel %vm2044, %v8672, %v8580
    %v8677 = vsel %vm2078, %v8673, %v8590
    %v8678 = vsel %vm2078, %v8674, %v8592
    %v8679 = vsel %vm2078, %v8675, %v8594
    %v8680 = vsel %vm2078, %v8676, %v8596
    %vm8681 = vcmask 326656
    %v8682 = vsel %vm8681, %v8677, %v8606
    %v8683 = vsel %vm8681, %v8678, %v8608
    %v8684 = vsel %vm8681, %v8679, %v8610
    %v8685 = vsel %vm8681, %v8680, %v8612
    %v8686 = vsel %vm3599, %v8682, %v8622
    %v8687 = vsel %vm3599, %v8683, %v8624
    %v8688 = vsel %vm3599, %v8684, %v8626
    %v8689 = vsel %vm3599, %v8685, %v8628
    %vm8690 = vcmask 457728
    %v8691 = vsel %vm8690, %v8686, %v8638
    %v8692 = vsel %vm8690, %v8687, %v8640
    %v8693 = vsel %vm8690, %v8688, %v8642
    %v8694 = vsel %vm8690, %v8689, %v8644
    %v8695 = vsel %vm3616, %v8691, %v8654
    %v8696 = vsel %vm3616, %v8692, %v8656
    %v8697 = vsel %vm3616, %v8693, %v8658
    %v8698 = vsel %vm3616, %v8694, %v8660
    %v8700 = vlaneseq
    %v8701 = vshrl.u32 %v8700, 7
    %v8702 = vsub.s32 0, %v8701
    %v8703 = vrot.slane %v8183, %v8702
    %vm8705 = vcmask 588800
    %v8707 = vsel %vm8705, %v8695, 0
    %v8710 = vsel %vm8705, %v8696, 0
    %v8713 = vsel %vm8705, %v8697, 0
    %v8716 = vsel %vm8705, %v8698, 0
    %8718 = vmatprep.subr.mxu0 0.0
    %8719 = vmatpush1.msra.mxu0 %v8174
    %8720 = vmatprep.subr.mxu0 0.0
    %8721 = vmatpush1.msra.mxu0 %v8175
    %8722 = vmatprep.subr.mxu0 0.0
    %8723 = vmatpush1.msra.mxu0 %v8176
    %8724 = vmatprep.subr.mxu0 0.0
    %8725 = vmatpush1.msra.mxu0 %v8177
    %8726 = vmatprep.subr.mxu0 0.0
    %8727 = vmatpush1.msra.mxu0 %v8178
    %8728 = vmatprep.subr.mxu0 0.0
    %8729 = vmatpush1.msra.mxu0 %v8179
    %8730 = vmatprep.subr.mxu0 0.0
    %8731 = vmatpush1.msra.mxu0 %v8180
    %8732 = vmatprep.subr.mxu0 0.0
    %8733 = vmatpush1.msra.mxu0 %v8181
    %8734 = vmatprep.subr.mxu0 0.0
    %8735 = vmatpush1.msra.mxu0 %v8182
    %8736 = vmatprep.subr.mxu0 0.0
    %8737 = vmatpush1.msra.mxu0 0.0
    %8738 = vmatprep.subr.mxu0 0.0
    %8739 = vmatpush1.msra.mxu0 0.0
    %8740 = vmatprep.subr.mxu0 0.0
    %8741 = vmatpush1.msra.mxu0 0.0
    %8742 = vmatprep.subr.mxu0 0.0
    %8743 = vmatpush1.msra.mxu0 0.0
    %8744 = vmatprep.subr.mxu0 0.0
    %8745 = vmatpush1.msra.mxu0 0.0
    %8746 = vmatprep.subr.mxu0 0.0
    %8747 = vmatpush1.msra.mxu0 0.0
    %8748 = vmatprep.subr.mxu0 0.0
    %8749 = vmatpush1.msra.mxu0 0.0
    %8750 = vmatprep.subr.mxu0 0.0
    %8751 = vmatpush1.msra.mxu0 0.0
    %8752 = vmatprep.subr.mxu0 0.0
    %8753 = vmatpush1.msra.mxu0 0.0
    %8754 = vmatprep.subr.mxu0 0.0
    %8755 = vmatpush1.msra.mxu0 0.0
    %8756 = vmatprep.subr.mxu0 0.0
    %8757 = vmatpush1.msra.mxu0 0.0
    %8758 = vmatprep.subr.mxu0 0.0
    %8759 = vmatpush1.msra.mxu0 0.0
    %8760 = vmatprep.subr.mxu0 0.0
    %8761 = vmatpush1.msra.mxu0 0.0
    %8762 = vmatprep.subr.mxu0 0.0
    %8763 = vmatpush1.msra.mxu0 0.0
    %8764 = vmatprep.subr.mxu0 0.0
    %8765 = vmatpush1.msra.mxu0 0.0
    %8766 = vmatprep.subr.mxu0 0.0
    %8767 = vmatpush1.msra.mxu0 0.0
    %8768 = vmatprep.subr.mxu0 0.0
    %8769 = vmatpush1.msra.mxu0 0.0
    %8770 = vmatprep.subr.mxu0 0.0
    %8771 = vmatpush1.msra.mxu0 0.0
    %8772 = vmatprep.subr.mxu0 0.0
    %8773 = vmatpush1.msra.mxu0 0.0
    %8774 = vmatprep.subr.mxu0 0.0
    %8775 = vmatpush1.msra.mxu0 0.0
    %8776 = vmatprep.subr.mxu0 0.0
    %8777 = vmatpush1.msra.mxu0 0.0
    %8778 = vmatprep.subr.mxu0 0.0
    %8779 = vmatpush1.msra.mxu0 0.0
    %8780 = vmatprep.subr.mxu0 0.0
    %8781 = vmatpush1.msra.mxu0 0.0
    %8782 = vmatprep.mubr.f32.mxu0 0.0
    %8783 = vmatmul.mubr.f32.gmra.mrb[0].mxu0 %v8707
    %v8784 = vpop.f32.mrb[0].mxu0
    %v8785 = vadd.f32 %v8703, %v8784
    %v8786 = vpop.f32.mrb[0].mxu0
    %8787 = vmatprep.mubr.f32.mxu0 0.0
    %8788 = vmatmul.mubr.f32.gmra.mrb[0].mxu0 %v8710
    %v8789 = vpop.f32.mrb[0].mxu0
    %v8790 = vadd.f32 %v8703, %v8789
    %v8791 = vpop.f32.mrb[0].mxu0
    %8792 = vmatprep.mubr.f32.mxu0 0.0
    %8793 = vmatmul.mubr.f32.gmra.mrb[0].mxu0 %v8713
    %v8794 = vpop.f32.mrb[0].mxu0
    %v8795 = vadd.f32 %v8703, %v8794
    %v8796 = vpop.f32.mrb[0].mxu0
    %8797 = vmatprep.mubr.f32.mxu0 0.0
    %8798 = vmatmul.mubr.f32.gmra.mrb[0].mxu0 %v8716
    %v8799 = vpop.f32.mrb[0].mxu0
    %v8800 = vadd.f32 %v8703, %v8799
    %v8801 = vpop.f32.mrb[0].mxu0
    %8802 = vdwg.mxu0
    %v8803 = vmax.f32 %v8785, 0.0
    %v8804 = vmax.f32 %v8790, 0.0
    %v8805 = vmax.f32 %v8795, 0.0
    %v8806 = vmax.f32 %v8800, 0.0
    %v8807 = vld [vmem:[%s17] sm:$0xff]
    %v8808 = vld [vmem:[%s17 + $0x8] sm:$0xff]
    %v8809 = vld [vmem:[%s17 + $0x10] sm:$0xff]
    %v8810 = vld [vmem:[%s17 + $0x18] sm:$0xff]
    %v8811 = vld [vmem:[%s17 + $0x20] sm:$0xff]
    %v8812 = vld [vmem:[%s17 + $0x28] sm:$0xff]
    %v8813 = vld [vmem:[%s17 + $0x30] sm:$0xff]
    %v8814 = vld [vmem:[%s17 + $0x38] sm:$0xff]
    %v8815 = vld [vmem:[%s17 + $0x40] sm:$0xff]
    %v8816 = vld [vmem:[%s17 + $0x48] sm:$0xff]
    %v8817 = vld [vmem:[%s17 + $0x50] sm:$0xff]
    %v8818 = vld [vmem:[%s17 + $0x58] sm:$0xff]
    %v8819 = vld [vmem:[%s17 + $0x60] sm:$0xff]
    %v8820 = vld [vmem:[%s17 + $0x68] sm:$0xff]
    %v8821 = vld [vmem:[%s17 + $0x70] sm:$0xff]
    %v8822 = vld [vmem:[%s17 + $0x78] sm:$0xff]
    %v8823 = vld [vmem:[%s17 + $0x80] sm:$0xff]
    %v8824 = vld [vmem:[%s17 + $0x88] sm:$0xff]
    %v8825 = vld [vmem:[%s18] sm:$0x1]
    %8826 = vmatprep.subr.mxu0 0.0
    %8827 = vmatpush1.msra.mxu0 %v8803
    %8828 = vmatprep.subr.mxu0 0.0
    %8829 = vmatpush1.msra.mxu0 %v8804
    %8830 = vmatprep.subr.mxu0 0.0
    %8831 = vmatpush1.msra.mxu0 %v8805
    %8832 = vmatprep.subr.mxu0 0.0
    %8833 = vmatpush1.msra.mxu0 %v8806
    %8834 = vmatprep.subr.mxu0 0.0
    %8835 = vmatpush1.msra.mxu0 0.0
    %8836 = vmatprep.subr.mxu0 0.0
    %8837 = vmatpush1.msra.mxu0 0.0
    %8838 = vmatprep.subr.mxu0 0.0
    %8839 = vmatpush1.msra.mxu0 0.0
    %8840 = vmatprep.subr.mxu0 0.0
    %8841 = vmatpush1.msra.mxu0 0.0
    %8842 = vmatprep.subr.mxu0 0.0
    %8843 = vmatpush1.msra.mxu0 0.0
    %8844 = vmatprep.subr.mxu0 0.0
    %8845 = vmatpush1.msra.mxu0 0.0
    %8846 = vmatprep.subr.mxu0 0.0
    %8847 = vmatpush1.msra.mxu0 0.0
    %8848 = vmatprep.subr.mxu0 0.0
    %8849 = vmatpush1.msra.mxu0 0.0
    %8850 = vmatprep.subr.mxu0 0.0
    %8851 = vmatpush1.msra.mxu0 0.0
    %8852 = vmatprep.subr.mxu0 0.0
    %8853 = vmatpush1.msra.mxu0 0.0
    %8854 = vmatprep.subr.mxu0 0.0
    %8855 = vmatpush1.msra.mxu0 0.0
    %8856 = vmatprep.subr.mxu0 0.0
    %8857 = vmatpush1.msra.mxu0 0.0
    %8858 = vmatprep.subr.mxu0 0.0
    %8859 = vmatpush1.msra.mxu0 0.0
    %8860 = vmatprep.subr.mxu0 0.0
    %8861 = vmatpush1.msra.mxu0 0.0
    %8862 = vmatprep.subr.mxu0 0.0
    %8863 = vmatpush1.msra.mxu0 0.0
    %8864 = vmatprep.subr.mxu0 0.0
    %8865 = vmatpush1.msra.mxu0 0.0
    %8866 = vmatprep.subr.mxu0 0.0
    %8867 = vmatpush1.msra.mxu0 0.0
    %8868 = vmatprep.subr.mxu0 0.0
    %8869 = vmatpush1.msra.mxu0 0.0
    %8870 = vmatprep.subr.mxu0 0.0
    %8871 = vmatpush1.msra.mxu0 0.0
    %8872 = vmatprep.subr.mxu0 0.0
    %8873 = vmatpush1.msra.mxu0 0.0
    %8874 = vmatprep.subr.mxu0 0.0
    %8875 = vmatpush1.msra.mxu0 0.0
    %8876 = vmatprep.subr.mxu0 0.0
    %8877 = vmatpush1.msra.mxu0 0.0
    %8878 = vmatprep.subr.mxu0 0.0
    %8879 = vmatpush1.msra.mxu0 0.0
    %8880 = vmatprep.subr.mxu0 0.0
    %8881 = vmatpush1.msra.mxu0 0.0
    %8882 = vmatprep.subr.mxu0 0.0
    %8883 = vmatpush1.msra.mxu0 0.0
    %8884 = vmatprep.subr.mxu0 0.0
    %8885 = vmatpush1.msra.mxu0 0.0
    %8886 = vmatprep.subr.mxu0 0.0
    %8887 = vmatpush1.msra.mxu0 0.0
    %8888 = vmatprep.subr.mxu0 0.0
    %8889 = vmatpush1.msra.mxu0 0.0
    %8890 = vmatprep.mubr.f32.mxu0 0.0
    %8891 = vmatmul.mubr.f32.gmra.mrb[0].mxu0 %v8185
    %v8892 = vpop.f32.mrb[0].mxu0
    %v8893 = vadd.f32 0.0, %v8892
    %v8894 = vpop.f32.mrb[0].mxu0
    %8895 = vmatprep.mubr.f32.mxu0 0.0
    %8896 = vmatmul.mubr.f32.gmra.mrb[0].mxu0 %v8188
    %v8897 = vpop.f32.mrb[0].mxu0
    %v8898 = vadd.f32 0.0, %v8897
    %v8899 = vpop.f32.mrb[0].mxu0
    %8900 = vmatprep.mubr.f32.mxu0 0.0
    %8901 = vmatmul.mubr.f32.gmra.mrb[0].mxu0 %v8191
    %v8902 = vpop.f32.mrb[0].mxu0
    %v8903 = vadd.f32 0.0, %v8902
    %v8904 = vpop.f32.mrb[0].mxu0
    %8905 = vmatprep.mubr.f32.mxu0 0.0
    %8906 = vmatmul.mubr.f32.gmra.mrb[0].mxu0 %v8194
    %v8907 = vpop.f32.mrb[0].mxu0
    %v8908 = vadd.f32 0.0, %v8907
    %v8909 = vpop.f32.mrb[0].mxu0
    %8910 = vmatprep.mubr.f32.mxu0 0.0
    %8911 = vmatmul.mubr.f32.gmra.mrb[0].mxu0 %v8197
    %v8912 = vpop.f32.mrb[0].mxu0
    %v8913 = vadd.f32 0.0, %v8912
    %v8914 = vpop.f32.mrb[0].mxu0
    %8915 = vmatprep.mubr.f32.mxu0 0.0
    %8916 = vmatmul.mubr.f32.gmra.mrb[0].mxu0 %v8200
    %v8917 = vpop.f32.mrb[0].mxu0
    %v8918 = vadd.f32 0.0, %v8917
    %v8919 = vpop.f32.mrb[0].mxu0
    %8920 = vmatprep.mubr.f32.mxu0 0.0
    %8921 = vmatmul.mubr.f32.gmra.mrb[0].mxu0 %v8203
    %v8922 = vpop.f32.mrb[0].mxu0
    %v8923 = vadd.f32 0.0, %v8922
    %v8924 = vpop.f32.mrb[0].mxu0
    %8925 = vmatprep.mubr.f32.mxu0 0.0
    %8926 = vmatmul.mubr.f32.gmra.mrb[0].mxu0 %v8206
    %v8927 = vpop.f32.mrb[0].mxu0
    %v8928 = vadd.f32 0.0, %v8927
    %v8929 = vpop.f32.mrb[0].mxu0
    %8930 = vmatprep.mubr.f32.mxu0 0.0
    %8931 = vmatmul.mubr.f32.gmra.mrb[0].mxu0 %v8209
    %v8932 = vpop.f32.mrb[0].mxu0
    %v8933 = vadd.f32 0.0, %v8932
    %v8934 = vpop.f32.mrb[0].mxu0
    %8935 = vmatprep.mubr.f32.mxu0 0.0
    %8936 = vmatmul.mubr.f32.gmra.mrb[0].mxu0 %v8212
    %v8937 = vpop.f32.mrb[0].mxu0
    %v8938 = vadd.f32 0.0, %v8937
    %v8939 = vpop.f32.mrb[0].mxu0
    %8940 = vmatprep.mubr.f32.mxu0 0.0
    %8941 = vmatmul.mubr.f32.gmra.mrb[0].mxu0 %v8215
    %v8942 = vpop.f32.mrb[0].mxu0
    %v8943 = vadd.f32 0.0, %v8942
    %v8944 = vpop.f32.mrb[0].mxu0
    %8945 = vmatprep.mubr.f32.mxu0 0.0
    %8946 = vmatmul.mubr.f32.gmra.mrb[0].mxu0 %v8218
    %v8947 = vpop.f32.mrb[0].mxu0
    %v8948 = vadd.f32 0.0, %v8947
    %v8949 = vpop.f32.mrb[0].mxu0
    %8950 = vmatprep.mubr.f32.mxu0 0.0
    %8951 = vmatmul.mubr.f32.gmra.mrb[0].mxu0 %v8221
    %v8952 = vpop.f32.mrb[0].mxu0
    %v8953 = vadd.f32 0.0, %v8952
    %v8954 = vpop.f32.mrb[0].mxu0
    %8955 = vmatprep.mubr.f32.mxu0 0.0
    %8956 = vmatmul.mubr.f32.gmra.mrb[0].mxu0 %v8224
    %v8957 = vpop.f32.mrb[0].mxu0
    %v8958 = vadd.f32 0.0, %v8957
    %v8959 = vpop.f32.mrb[0].mxu0
    %8960 = vmatprep.mubr.f32.mxu0 0.0
    %8961 = vmatmul.mubr.f32.gmra.mrb[0].mxu0 %v8227
    %v8962 = vpop.f32.mrb[0].mxu0
    %v8963 = vadd.f32 0.0, %v8962
    %v8964 = vpop.f32.mrb[0].mxu0
    %8965 = vmatprep.mubr.f32.mxu0 0.0
    %8966 = vmatmul.mubr.f32.gmra.mrb[0].mxu0 %v8230
    %v8967 = vpop.f32.mrb[0].mxu0
    %v8968 = vadd.f32 0.0, %v8967
    %v8969 = vpop.f32.mrb[0].mxu0
    %8970 = vmatprep.mubr.f32.mxu0 0.0
    %8971 = vmatmul.mubr.f32.gmra.mrb[0].mxu0 %v8233
    %v8972 = vpop.f32.mrb[0].mxu0
    %v8973 = vadd.f32 0.0, %v8972
    %v8974 = vpop.f32.mrb[0].mxu0
    %8975 = vmatprep.mubr.f32.mxu0 0.0
    %8976 = vmatmul.mubr.f32.gmra.mrb[0].mxu0 %v8236
    %v8977 = vpop.f32.mrb[0].mxu0
    %v8978 = vadd.f32 0.0, %v8977
    %v8979 = vpop.f32.mrb[0].mxu0
    %8980 = vmatprep.mubr.f32.mxu0 0.0
    %8981 = vmatmul.mubr.f32.gmra.mrb[0].mxu0 %v8239
    %v8982 = vpop.f32.mrb[0].mxu0
    %v8983 = vadd.f32 0.0, %v8982
    %v8984 = vpop.f32.mrb[0].mxu0
    %8985 = vmatprep.mubr.f32.mxu0 0.0
    %8986 = vmatmul.mubr.f32.gmra.mrb[0].mxu0 %v8242
    %v8987 = vpop.f32.mrb[0].mxu0
    %v8988 = vadd.f32 0.0, %v8987
    %v8989 = vpop.f32.mrb[0].mxu0
    %8990 = vmatprep.mubr.f32.mxu0 0.0
    %8991 = vmatmul.mubr.f32.gmra.mrb[0].mxu0 %v8245
    %v8992 = vpop.f32.mrb[0].mxu0
    %v8993 = vadd.f32 0.0, %v8992
    %v8994 = vpop.f32.mrb[0].mxu0
    %8995 = vmatprep.mubr.f32.mxu0 0.0
    %8996 = vmatmul.mubr.f32.gmra.mrb[0].mxu0 %v8248
    %v8997 = vpop.f32.mrb[0].mxu0
    %v8998 = vadd.f32 0.0, %v8997
    %v8999 = vpop.f32.mrb[0].mxu0
    %9000 = vmatprep.mubr.f32.mxu0 0.0
    %9001 = vmatmul.mubr.f32.gmra.mrb[0].mxu0 %v8251
    %v9002 = vpop.f32.mrb[0].mxu0
    %v9003 = vadd.f32 0.0, %v9002
    %v9004 = vpop.f32.mrb[0].mxu0
    %9005 = vmatprep.mubr.f32.mxu0 0.0
    %9006 = vmatmul.mubr.f32.gmra.mrb[0].mxu0 %v8254
    %v9007 = vpop.f32.mrb[0].mxu0
    %v9008 = vadd.f32 0.0, %v9007
    %v9009 = vpop.f32.mrb[0].mxu0
    %9010 = vmatprep.mubr.f32.mxu0 0.0
    %9011 = vmatmul.mubr.f32.gmra.mrb[0].mxu0 %v8257
    %v9012 = vpop.f32.mrb[0].mxu0
    %v9013 = vadd.f32 0.0, %v9012
    %v9014 = vpop.f32.mrb[0].mxu0
    %9015 = vmatprep.mubr.f32.mxu0 0.0
    %9016 = vmatmul.mubr.f32.gmra.mrb[0].mxu0 %v8260
    %v9017 = vpop.f32.mrb[0].mxu0
    %v9018 = vadd.f32 0.0, %v9017
    %v9019 = vpop.f32.mrb[0].mxu0
    %9020 = vmatprep.mubr.f32.mxu0 0.0
    %9021 = vmatmul.mubr.f32.gmra.mrb[0].mxu0 %v8263
    %v9022 = vpop.f32.mrb[0].mxu0
    %v9023 = vadd.f32 0.0, %v9022
    %v9024 = vpop.f32.mrb[0].mxu0
    %9025 = vmatprep.mubr.f32.mxu0 0.0
    %9026 = vmatmul.mubr.f32.gmra.mrb[0].mxu0 %v8266
    %v9027 = vpop.f32.mrb[0].mxu0
    %v9028 = vadd.f32 0.0, %v9027
    %v9029 = vpop.f32.mrb[0].mxu0
    %9030 = vmatprep.mubr.f32.mxu0 0.0
    %9031 = vmatmul.mubr.f32.gmra.mrb[0].mxu0 %v8269
    %v9032 = vpop.f32.mrb[0].mxu0
    %v9033 = vadd.f32 0.0, %v9032
    %v9034 = vpop.f32.mrb[0].mxu0
    %9035 = vmatprep.mubr.f32.mxu0 0.0
    %9036 = vmatmul.mubr.f32.gmra.mrb[0].mxu0 %v8272
    %v9037 = vpop.f32.mrb[0].mxu0
    %v9038 = vadd.f32 0.0, %v9037
    %v9039 = vpop.f32.mrb[0].mxu0
    %9040 = vmatprep.mubr.f32.mxu0 0.0
    %9041 = vmatmul.mubr.f32.gmra.mrb[0].mxu0 %v8275
    %v9042 = vpop.f32.mrb[0].mxu0
    %v9043 = vadd.f32 0.0, %v9042
    %v9044 = vpop.f32.mrb[0].mxu0
    %9045 = vmatprep.mubr.f32.mxu0 0.0
    %9046 = vmatmul.mubr.f32.gmra.mrb[0].mxu0 %v8278
    %v9047 = vpop.f32.mrb[0].mxu0
    %v9048 = vadd.f32 0.0, %v9047
    %v9049 = vpop.f32.mrb[0].mxu0
    %9050 = vmatprep.mubr.f32.mxu0 0.0
    %9051 = vmatmul.mubr.f32.gmra.mrb[0].mxu0 %v8281
    %v9052 = vpop.f32.mrb[0].mxu0
    %v9053 = vadd.f32 0.0, %v9052
    %v9054 = vpop.f32.mrb[0].mxu0
    %9055 = vmatprep.mubr.f32.mxu0 0.0
    %9056 = vmatmul.mubr.f32.gmra.mrb[0].mxu0 %v8284
    %v9057 = vpop.f32.mrb[0].mxu0
    %v9058 = vadd.f32 0.0, %v9057
    %v9059 = vpop.f32.mrb[0].mxu0
    %9060 = vmatprep.mubr.f32.mxu0 0.0
    %9061 = vmatmul.mubr.f32.gmra.mrb[0].mxu0 %v8287
    %v9062 = vpop.f32.mrb[0].mxu0
    %v9063 = vadd.f32 0.0, %v9062
    %v9064 = vpop.f32.mrb[0].mxu0
    %9065 = vmatprep.mubr.f32.mxu0 0.0
    %9066 = vmatmul.mubr.f32.gmra.mrb[0].mxu0 %v8290
    %v9067 = vpop.f32.mrb[0].mxu0
    %v9068 = vadd.f32 0.0, %v9067
    %v9069 = vpop.f32.mrb[0].mxu0
    %9070 = vdwg.mxu0
    %9075 = vrot.lane.b32.xlu0 %v8913, 16
    %v9076 = vpop.permute.xlu0 %9075
    %9077 = vrot.lane.b32.xlu0 %v8918, 16
    %v9078 = vpop.permute.xlu0 %9077
    %9079 = vrot.lane.b32.xlu0 %v8923, 16
    %v9080 = vpop.permute.xlu0 %9079
    %9081 = vrot.lane.b32.xlu0 %v8928, 16
    %v9082 = vpop.permute.xlu0 %9081
    %9091 = vrot.lane.b32.xlu0 %v8933, 32
    %v9092 = vpop.permute.xlu0 %9091
    %9093 = vrot.lane.b32.xlu0 %v8938, 32
    %v9094 = vpop.permute.xlu0 %9093
    %9095 = vrot.lane.b32.xlu0 %v8943, 32
    %v9096 = vpop.permute.xlu0 %9095
    %9097 = vrot.lane.b32.xlu0 %v8948, 32
    %v9098 = vpop.permute.xlu0 %9097
    %9107 = vrot.lane.b32.xlu0 %v8953, 48
    %v9108 = vpop.permute.xlu0 %9107
    %9109 = vrot.lane.b32.xlu0 %v8958, 48
    %v9110 = vpop.permute.xlu0 %9109
    %9111 = vrot.lane.b32.xlu0 %v8963, 48
    %v9112 = vpop.permute.xlu0 %9111
    %9113 = vrot.lane.b32.xlu0 %v8968, 48
    %v9114 = vpop.permute.xlu0 %9113
    %9123 = vrot.lane.b32.xlu0 %v8973, 64
    %v9124 = vpop.permute.xlu0 %9123
    %9125 = vrot.lane.b32.xlu0 %v8978, 64
    %v9126 = vpop.permute.xlu0 %9125
    %9127 = vrot.lane.b32.xlu0 %v8983, 64
    %v9128 = vpop.permute.xlu0 %9127
    %9129 = vrot.lane.b32.xlu0 %v8988, 64
    %v9130 = vpop.permute.xlu0 %9129
    %9139 = vrot.lane.b32.xlu0 %v8993, 80
    %v9140 = vpop.permute.xlu0 %9139
    %9141 = vrot.lane.b32.xlu0 %v8998, 80
    %v9142 = vpop.permute.xlu0 %9141
    %9143 = vrot.lane.b32.xlu0 %v9003, 80
    %v9144 = vpop.permute.xlu0 %9143
    %9145 = vrot.lane.b32.xlu0 %v9008, 80
    %v9146 = vpop.permute.xlu0 %9145
    %9155 = vrot.lane.b32.xlu0 %v9013, 96
    %v9156 = vpop.permute.xlu0 %9155
    %9157 = vrot.lane.b32.xlu0 %v9018, 96
    %v9158 = vpop.permute.xlu0 %9157
    %9159 = vrot.lane.b32.xlu0 %v9023, 96
    %v9160 = vpop.permute.xlu0 %9159
    %9161 = vrot.lane.b32.xlu0 %v9028, 96
    %v9162 = vpop.permute.xlu0 %9161
    %9171 = vrot.lane.b32.xlu0 %v9033, 112
    %v9172 = vpop.permute.xlu0 %9171
    %9173 = vrot.lane.b32.xlu0 %v9038, 112
    %v9174 = vpop.permute.xlu0 %9173
    %9175 = vrot.lane.b32.xlu0 %v9043, 112
    %v9176 = vpop.permute.xlu0 %9175
    %9177 = vrot.lane.b32.xlu0 %v9048, 112
    %v9178 = vpop.permute.xlu0 %9177
    %v9183 = vsel %vm2010, %v8893, %v9076
    %v9184 = vsel %vm2010, %v8898, %v9078
    %v9185 = vsel %vm2010, %v8903, %v9080
    %v9186 = vsel %vm2010, %v8908, %v9082
    %v9187 = vsel %vm2078, %v9183, %v9092
    %v9188 = vsel %vm2078, %v9184, %v9094
    %v9189 = vsel %vm2078, %v9185, %v9096
    %v9190 = vsel %vm2078, %v9186, %v9098
    %v9191 = vsel %vm3599, %v9187, %v9108
    %v9192 = vsel %vm3599, %v9188, %v9110
    %v9193 = vsel %vm3599, %v9189, %v9112
    %v9194 = vsel %vm3599, %v9190, %v9114
    %v9195 = vsel %vm3616, %v9191, %v9124
    %v9196 = vsel %vm3616, %v9192, %v9126
    %v9197 = vsel %vm3616, %v9193, %v9128
    %v9198 = vsel %vm3616, %v9194, %v9130
    %v9199 = vsel %vm3633, %v9195, %v9140
    %v9200 = vsel %vm3633, %v9196, %v9142
    %v9201 = vsel %vm3633, %v9197, %v9144
    %v9202 = vsel %vm3633, %v9198, %v9146
    %v9203 = vsel %vm3650, %v9199, %v9156
    %v9204 = vsel %vm3650, %v9200, %v9158
    %v9205 = vsel %vm3650, %v9201, %v9160
    %v9206 = vsel %vm3650, %v9202, %v9162
    %v9207 = vsel %vm3667, %v9203, %v9172
    %v9208 = vsel %vm3667, %v9204, %v9174
    %v9209 = vsel %vm3667, %v9205, %v9176
    %v9210 = vsel %vm3667, %v9206, %v9178
    %v9212 = vlaneseq
    %v9213 = vshrl.u32 %v9212, 7
    %v9214 = vsub.s32 0, %v9213
    %v9215 = vrot.slane %v8825, %v9214
    %v9218 = vsel %vm2010, %v9053, 0
    %v9221 = vsel %vm2010, %v9058, 0
    %v9224 = vsel %vm2010, %v9063, 0
    %v9227 = vsel %vm2010, %v9068, 0
    %9229 = vmatprep.subr.mxu0 0.0
    %9230 = vmatpush1.msra.mxu0 %v8807
    %9231 = vmatprep.subr.mxu0 0.0
    %9232 = vmatpush1.msra.mxu0 %v8808
    %9233 = vmatprep.subr.mxu0 0.0
    %9234 = vmatpush1.msra.mxu0 %v8809
    %9235 = vmatprep.subr.mxu0 0.0
    %9236 = vmatpush1.msra.mxu0 %v8810
    %9237 = vmatprep.subr.mxu0 0.0
    %9238 = vmatpush1.msra.mxu0 %v8811
    %9239 = vmatprep.subr.mxu0 0.0
    %9240 = vmatpush1.msra.mxu0 %v8812
    %9241 = vmatprep.subr.mxu0 0.0
    %9242 = vmatpush1.msra.mxu0 %v8813
    %9243 = vmatprep.subr.mxu0 0.0
    %9244 = vmatpush1.msra.mxu0 %v8814
    %9245 = vmatprep.subr.mxu0 0.0
    %9246 = vmatpush1.msra.mxu0 %v8815
    %9247 = vmatprep.subr.mxu0 0.0
    %9248 = vmatpush1.msra.mxu0 %v8816
    %9249 = vmatprep.subr.mxu0 0.0
    %9250 = vmatpush1.msra.mxu0 %v8817
    %9251 = vmatprep.subr.mxu0 0.0
    %9252 = vmatpush1.msra.mxu0 %v8818
    %9253 = vmatprep.subr.mxu0 0.0
    %9254 = vmatpush1.msra.mxu0 %v8819
    %9255 = vmatprep.subr.mxu0 0.0
    %9256 = vmatpush1.msra.mxu0 %v8820
    %9257 = vmatprep.subr.mxu0 0.0
    %9258 = vmatpush1.msra.mxu0 %v8821
    %9259 = vmatprep.subr.mxu0 0.0
    %9260 = vmatpush1.msra.mxu0 %v8822
    %9261 = vmatprep.subr.mxu0 0.0
    %9262 = vmatpush1.msra.mxu0 %v8823
    %9263 = vmatprep.subr.mxu0 0.0
    %9264 = vmatpush1.msra.mxu0 %v8824
    %9265 = vmatprep.subr.mxu0 0.0
    %9266 = vmatpush1.msra.mxu0 0.0
    %9267 = vmatprep.subr.mxu0 0.0
    %9268 = vmatpush1.msra.mxu0 0.0
    %9269 = vmatprep.subr.mxu0 0.0
    %9270 = vmatpush1.msra.mxu0 0.0
    %9271 = vmatprep.subr.mxu0 0.0
    %9272 = vmatpush1.msra.mxu0 0.0
    %9273 = vmatprep.subr.mxu0 0.0
    %9274 = vmatpush1.msra.mxu0 0.0
    %9275 = vmatprep.subr.mxu0 0.0
    %9276 = vmatpush1.msra.mxu0 0.0
    %9277 = vmatprep.subr.mxu0 0.0
    %9278 = vmatpush1.msra.mxu0 0.0
    %9279 = vmatprep.subr.mxu0 0.0
    %9280 = vmatpush1.msra.mxu0 0.0
    %9281 = vmatprep.subr.mxu0 0.0
    %9282 = vmatpush1.msra.mxu0 0.0
    %9283 = vmatprep.subr.mxu0 0.0
    %9284 = vmatpush1.msra.mxu0 0.0
    %9285 = vmatprep.subr.mxu0 0.0
    %9286 = vmatpush1.msra.mxu0 0.0
    %9287 = vmatprep.subr.mxu0 0.0
    %9288 = vmatpush1.msra.mxu0 0.0
    %9289 = vmatprep.subr.mxu0 0.0
    %9290 = vmatpush1.msra.mxu0 0.0
    %9291 = vmatprep.subr.mxu0 0.0
    %9292 = vmatpush1.msra.mxu0 0.0
    %9293 = vmatprep.mubr.f32.mxu0 %v9218
    %9294 = vmatmul.mubr.f32.gmra.mrb[0].mxu0 %v9207
    %v9295 = vpop.f32.mrb[0].mxu0
    %v9296 = vadd.f32 %v9215, %v9295
    %v9297 = vpop.f32.mrb[0].mxu0
    %9298 = vmatprep.mubr.f32.mxu0 %v9221
    %9299 = vmatmul.mubr.f32.gmra.mrb[0].mxu0 %v9208
    %v9300 = vpop.f32.mrb[0].mxu0
    %v9301 = vadd.f32 %v9215, %v9300
    %v9302 = vpop.f32.mrb[0].mxu0
    %9303 = vmatprep.mubr.f32.mxu0 %v9224
    %9304 = vmatmul.mubr.f32.gmra.mrb[0].mxu0 %v9209
    %v9305 = vpop.f32.mrb[0].mxu0
    %v9306 = vadd.f32 %v9215, %v9305
    %v9307 = vpop.f32.mrb[0].mxu0
    %9308 = vmatprep.mubr.f32.mxu0 %v9227
    %9309 = vmatmul.mubr.f32.gmra.mrb[0].mxu0 %v9210
    %v9310 = vpop.f32.mrb[0].mxu0
    %v9311 = vadd.f32 %v9215, %v9310
    %v9312 = vpop.f32.mrb[0].mxu0
    %9313 = vdwg.mxu0
    %v9314 = vld [vmem:[%s19] sm:$0x1]
    %v9315 = vsub.f32 0.0, %v9314
    %v9316 = vmul.f32 %v9315, 1.442695
    %v9317 = vpow.pop %v9316
    %v9319 = vlaneseq
    %v9320 = vshrl.u32 %v9319, 7
    %v9321 = vsub.s32 0, %v9320
    %v9322 = vrot.slane %v9317, %v9321
    %v9324 = vmul.f32 %v9296, %v9322
    %v9325 = vmul.f32 %v9301, %v9322
    %v9326 = vmul.f32 %v9306, %v9322
    %v9327 = vmul.f32 %v9311, %v9322
    %v9328 = vtanh.pop %v9324
    %v9329 = vtanh.pop %v9325
    %v9330 = vtanh.pop %v9326
    %v9331 = vtanh.pop %v9327
    %v9332 = vmul.f32 %v9314, 1.442695
    %v9333 = vpow.pop %v9332
    %v9335 = vlaneseq
    %v9336 = vshrl.u32 %v9335, 7
    %v9337 = vsub.s32 0, %v9336
    %v9338 = vrot.slane %v9333, %v9337
    %v9340 = vmul.f32 %v9328, %v9338
    %v9341 = vmul.f32 %v9329, %v9338
    %v9342 = vmul.f32 %v9330, %v9338
    %v9343 = vmul.f32 %v9331, %v9338
    %v9344 = vadd.f32 %v8134, %v9296
    %v9345 = vadd.f32 %v8135, %v9301
    %v9346 = vadd.f32 %v8136, %v9306
    %v9347 = vadd.f32 %v8137, %v9311
    %v9348 = vmul.f32 %v9340, 1.442695
    %v9349 = vpow.pop %v9348
    %v9350 = vmul.f32 %v9341, 1.442695
    %v9351 = vpow.pop %v9350
    %v9352 = vmul.f32 %v9342, 1.442695
    %v9353 = vpow.pop %v9352
    %v9354 = vmul.f32 %v9343, 1.442695
    %v9355 = vpow.pop %v9354
    %9360 = vrot.lane.b32.xlu0 %v9349, 8
    %v9361 = vpop.permute.xlu0 %9360
    %9362 = vrot.lane.b32.xlu0 %v9351, 8
    %v9363 = vpop.permute.xlu0 %9362
    %9364 = vrot.lane.b32.xlu0 %v9353, 8
    %v9365 = vpop.permute.xlu0 %9364
    %9366 = vrot.lane.b32.xlu0 %v9355, 8
    %v9367 = vpop.permute.xlu0 %9366
    %v9372 = vmul.f32 %v9344, %v9361
    %v9373 = vmul.f32 %v9345, %v9363
    %v9374 = vmul.f32 %v9346, %v9365
    %v9375 = vmul.f32 %v9347, %v9367
    %v9376 = vsel %vm292, %v9340, 0.0
    %9377 = vadd.xlane.f32.xlu0 %v9376
    %v9378 = vpop.xlane.xlu0 %9377
    %v9379 = vsel %vm292, %v9341, 0.0
    %9380 = vadd.xlane.f32.xlu0 %v9379
    %v9381 = vpop.xlane.xlu0 %9380
    %v9382 = vsel %vm292, %v9342, 0.0
    %9383 = vadd.xlane.f32.xlu0 %v9382
    %v9384 = vpop.xlane.xlu0 %9383
    %v9385 = vsel %vm292, %v9343, 0.0
    %9386 = vadd.xlane.f32.xlu0 %v9385
    %v9387 = vpop.xlane.xlu0 %9386
    %v9388 = vmul.u32 %v359, 16
    %vm9389 = vcmp.ge.s32.totalorder %v342, %v9388
    %vm9390 = vcmp.ge.s32.totalorder %v343, %v9388
    %vm9391 = vcmp.ge.s32.totalorder %v344, %v9388
    %vm9392 = vcmp.ge.s32.totalorder %v345, %v9388
    %v9393 = vadd.s32 %v9388, 16
    %vm9394 = vcmp.lt.s32.totalorder %v342, %v9393
    %vm9395 = vcmp.lt.s32.totalorder %v343, %v9393
    %vm9396 = vcmp.lt.s32.totalorder %v344, %v9393
    %vm9397 = vcmp.lt.s32.totalorder %v345, %v9393
    %vm9398 = vmand %vm9389, %vm9394
    %vm9399 = vmand %vm9390, %vm9395
    %vm9400 = vmand %vm9391, %vm9396
    %vm9401 = vmand %vm9392, %vm9397
    %v9402 = vsel %vm9398, 1, 0
    %v9403 = vsel %vm9399, 1, 0
    %v9404 = vsel %vm9400, 1, 0
    %v9405 = vsel %vm9401, 1, 0
    %v9406 = vcvt.s32.f32 %v9402
    %v9407 = vcvt.s32.f32 %v9403
    %v9408 = vcvt.s32.f32 %v9404
    %v9409 = vcvt.s32.f32 %v9405
    %v9410 = vmul.f32 %v9406, %v9378
    %v9411 = vmul.f32 %v9407, %v9381
    %v9412 = vmul.f32 %v9408, %v9384
    %v9413 = vmul.f32 %v9409, %v9387
    %v9414 = vsel %vm458, %v9410, 0.0
    %v9415 = vsel %vm458, %v9411, 0.0
    %v9416 = vadd.f32 %v9414, %v9415
    %v9417 = vsel %vm458, %v9412, 0.0
    %v9418 = vadd.f32 %v9416, %v9417
    %v9419 = vsel %vm458, %v9413, 0.0
    %v9420 = vadd.f32 %v9418, %v9419
    %v9421 = vrot.slane %v9420, 4
    %v9422 = vadd.f32 %v9420, %v9421
    %v9423 = vrot.slane %v9422, 2
    %v9424 = vadd.f32 %v9422, %v9423
    %v9425 = vrot.slane %v9424, 1
    %v9426 = vadd.f32 %v9424, %v9425
    %v9427 = vadd.f32 %v7750, %v9426
    %v9428 = vld [vmem:[%s20] sm:$0xff]
    %v9429 = vld [vmem:[%s20 + $0x8] sm:$0xff]
    %v9430 = vld [vmem:[%s20 + $0x10] sm:$0xff]
    %v9431 = vld [vmem:[%s20 + $0x18] sm:$0xff]
    %v9432 = vld [vmem:[%s20 + $0x20] sm:$0xff]
    %v9433 = vld [vmem:[%s20 + $0x28] sm:$0xff]
    %v9434 = vld [vmem:[%s20 + $0x30] sm:$0xff]
    %v9435 = vld [vmem:[%s20 + $0x38] sm:$0xff]
    %v9436 = vld [vmem:[%s20 + $0x40] sm:$0xff]
    %v9437 = vld [vmem:[%s21] sm:$0x1]
    %9442 = vrot.lane.b32.xlu0 %v9372, 120
    %v9443 = vpop.permute.xlu0 %9442
    %9444 = vrot.lane.b32.xlu0 %v9373, 120
    %v9445 = vpop.permute.xlu0 %9444
    %9446 = vrot.lane.b32.xlu0 %v9374, 120
    %v9447 = vpop.permute.xlu0 %9446
    %9448 = vrot.lane.b32.xlu0 %v9375, 120
    %v9449 = vpop.permute.xlu0 %9448
    %9454 = vmatprep.subr.mxu0 0.0
    %9455 = vmatpush1.msra.mxu0 %v9443
    %9456 = vmatprep.subr.mxu0 0.0
    %9457 = vmatpush1.msra.mxu0 %v9445
    %9458 = vmatprep.subr.mxu0 0.0
    %9459 = vmatpush1.msra.mxu0 %v9447
    %9460 = vmatprep.subr.mxu0 0.0
    %9461 = vmatpush1.msra.mxu0 %v9449
    %9462 = vmatprep.subr.mxu0 0.0
    %9463 = vmatpush1.msra.mxu0 0.0
    %9464 = vmatprep.subr.mxu0 0.0
    %9465 = vmatpush1.msra.mxu0 0.0
    %9466 = vmatprep.subr.mxu0 0.0
    %9467 = vmatpush1.msra.mxu0 0.0
    %9468 = vmatprep.subr.mxu0 0.0
    %9469 = vmatpush1.msra.mxu0 0.0
    %9470 = vmatprep.subr.mxu0 0.0
    %9471 = vmatpush1.msra.mxu0 0.0
    %9472 = vmatprep.subr.mxu0 0.0
    %9473 = vmatpush1.msra.mxu0 0.0
    %9474 = vmatprep.subr.mxu0 0.0
    %9475 = vmatpush1.msra.mxu0 0.0
    %9476 = vmatprep.subr.mxu0 0.0
    %9477 = vmatpush1.msra.mxu0 0.0
    %9478 = vmatprep.subr.mxu0 0.0
    %9479 = vmatpush1.msra.mxu0 0.0
    %9480 = vmatprep.subr.mxu0 0.0
    %9481 = vmatpush1.msra.mxu0 0.0
    %9482 = vmatprep.subr.mxu0 0.0
    %9483 = vmatpush1.msra.mxu0 0.0
    %9484 = vmatprep.subr.mxu0 0.0
    %9485 = vmatpush1.msra.mxu0 0.0
    %9486 = vmatprep.subr.mxu0 0.0
    %9487 = vmatpush1.msra.mxu0 0.0
    %9488 = vmatprep.subr.mxu0 0.0
    %9489 = vmatpush1.msra.mxu0 0.0
    %9490 = vmatprep.subr.mxu0 0.0
    %9491 = vmatpush1.msra.mxu0 0.0
    %9492 = vmatprep.subr.mxu0 0.0
    %9493 = vmatpush1.msra.mxu0 0.0
    %9494 = vmatprep.subr.mxu0 0.0
    %9495 = vmatpush1.msra.mxu0 0.0
    %9496 = vmatprep.subr.mxu0 0.0
    %9497 = vmatpush1.msra.mxu0 0.0
    %9498 = vmatprep.subr.mxu0 0.0
    %9499 = vmatpush1.msra.mxu0 0.0
    %9500 = vmatprep.subr.mxu0 0.0
    %9501 = vmatpush1.msra.mxu0 0.0
    %9502 = vmatprep.subr.mxu0 0.0
    %9503 = vmatpush1.msra.mxu0 0.0
    %9504 = vmatprep.subr.mxu0 0.0
    %9505 = vmatpush1.msra.mxu0 0.0
    %9506 = vmatprep.subr.mxu0 0.0
    %9507 = vmatpush1.msra.mxu0 0.0
    %9508 = vmatprep.subr.mxu0 0.0
    %9509 = vmatpush1.msra.mxu0 0.0
    %9510 = vmatprep.subr.mxu0 0.0
    %9511 = vmatpush1.msra.mxu0 0.0
    %9512 = vmatprep.subr.mxu0 0.0
    %9513 = vmatpush1.msra.mxu0 0.0
    %9514 = vmatprep.subr.mxu0 0.0
    %9515 = vmatpush1.msra.mxu0 0.0
    %9516 = vmatprep.subr.mxu0 0.0
    %9517 = vmatpush1.msra.mxu0 0.0
    %9518 = vmatprep.mubr.f32.mxu0 0.0
    %9519 = vmatmul.mubr.f32.gmra.mrb[0].mxu0 %v8185
    %v9520 = vpop.f32.mrb[0].mxu0
    %v9521 = vadd.f32 0.0, %v9520
    %v9522 = vpop.f32.mrb[0].mxu0
    %9523 = vmatprep.mubr.f32.mxu0 0.0
    %9524 = vmatmul.mubr.f32.gmra.mrb[0].mxu0 %v8188
    %v9525 = vpop.f32.mrb[0].mxu0
    %v9526 = vadd.f32 0.0, %v9525
    %v9527 = vpop.f32.mrb[0].mxu0
    %9528 = vmatprep.mubr.f32.mxu0 0.0
    %9529 = vmatmul.mubr.f32.gmra.mrb[0].mxu0 %v8191
    %v9530 = vpop.f32.mrb[0].mxu0
    %v9531 = vadd.f32 0.0, %v9530
    %v9532 = vpop.f32.mrb[0].mxu0
    %9533 = vmatprep.mubr.f32.mxu0 0.0
    %9534 = vmatmul.mubr.f32.gmra.mrb[0].mxu0 %v8194
    %v9535 = vpop.f32.mrb[0].mxu0
    %v9536 = vadd.f32 0.0, %v9535
    %v9537 = vpop.f32.mrb[0].mxu0
    %9538 = vmatprep.mubr.f32.mxu0 0.0
    %9539 = vmatmul.mubr.f32.gmra.mrb[0].mxu0 %v8197
    %v9540 = vpop.f32.mrb[0].mxu0
    %v9541 = vadd.f32 0.0, %v9540
    %v9542 = vpop.f32.mrb[0].mxu0
    %9543 = vmatprep.mubr.f32.mxu0 0.0
    %9544 = vmatmul.mubr.f32.gmra.mrb[0].mxu0 %v8200
    %v9545 = vpop.f32.mrb[0].mxu0
    %v9546 = vadd.f32 0.0, %v9545
    %v9547 = vpop.f32.mrb[0].mxu0
    %9548 = vmatprep.mubr.f32.mxu0 0.0
    %9549 = vmatmul.mubr.f32.gmra.mrb[0].mxu0 %v8203
    %v9550 = vpop.f32.mrb[0].mxu0
    %v9551 = vadd.f32 0.0, %v9550
    %v9552 = vpop.f32.mrb[0].mxu0
    %9553 = vmatprep.mubr.f32.mxu0 0.0
    %9554 = vmatmul.mubr.f32.gmra.mrb[0].mxu0 %v8206
    %v9555 = vpop.f32.mrb[0].mxu0
    %v9556 = vadd.f32 0.0, %v9555
    %v9557 = vpop.f32.mrb[0].mxu0
    %9558 = vmatprep.mubr.f32.mxu0 0.0
    %9559 = vmatmul.mubr.f32.gmra.mrb[0].mxu0 %v8209
    %v9560 = vpop.f32.mrb[0].mxu0
    %v9561 = vadd.f32 0.0, %v9560
    %v9562 = vpop.f32.mrb[0].mxu0
    %9563 = vmatprep.mubr.f32.mxu0 0.0
    %9564 = vmatmul.mubr.f32.gmra.mrb[0].mxu0 %v8212
    %v9565 = vpop.f32.mrb[0].mxu0
    %v9566 = vadd.f32 0.0, %v9565
    %v9567 = vpop.f32.mrb[0].mxu0
    %9568 = vmatprep.mubr.f32.mxu0 0.0
    %9569 = vmatmul.mubr.f32.gmra.mrb[0].mxu0 %v8215
    %v9570 = vpop.f32.mrb[0].mxu0
    %v9571 = vadd.f32 0.0, %v9570
    %v9572 = vpop.f32.mrb[0].mxu0
    %9573 = vmatprep.mubr.f32.mxu0 0.0
    %9574 = vmatmul.mubr.f32.gmra.mrb[0].mxu0 %v8218
    %v9575 = vpop.f32.mrb[0].mxu0
    %v9576 = vadd.f32 0.0, %v9575
    %v9577 = vpop.f32.mrb[0].mxu0
    %9578 = vmatprep.mubr.f32.mxu0 0.0
    %9579 = vmatmul.mubr.f32.gmra.mrb[0].mxu0 %v8221
    %v9580 = vpop.f32.mrb[0].mxu0
    %v9581 = vadd.f32 0.0, %v9580
    %v9582 = vpop.f32.mrb[0].mxu0
    %9583 = vmatprep.mubr.f32.mxu0 0.0
    %9584 = vmatmul.mubr.f32.gmra.mrb[0].mxu0 %v8224
    %v9585 = vpop.f32.mrb[0].mxu0
    %v9586 = vadd.f32 0.0, %v9585
    %v9587 = vpop.f32.mrb[0].mxu0
    %9588 = vmatprep.mubr.f32.mxu0 0.0
    %9589 = vmatmul.mubr.f32.gmra.mrb[0].mxu0 %v8227
    %v9590 = vpop.f32.mrb[0].mxu0
    %v9591 = vadd.f32 0.0, %v9590
    %v9592 = vpop.f32.mrb[0].mxu0
    %9593 = vmatprep.mubr.f32.mxu0 0.0
    %9594 = vmatmul.mubr.f32.gmra.mrb[0].mxu0 %v8230
    %v9595 = vpop.f32.mrb[0].mxu0
    %v9596 = vadd.f32 0.0, %v9595
    %v9597 = vpop.f32.mrb[0].mxu0
    %9598 = vmatprep.mubr.f32.mxu0 0.0
    %9599 = vmatmul.mubr.f32.gmra.mrb[0].mxu0 %v8233
    %v9600 = vpop.f32.mrb[0].mxu0
    %v9601 = vadd.f32 0.0, %v9600
    %v9602 = vpop.f32.mrb[0].mxu0
    %9603 = vmatprep.mubr.f32.mxu0 0.0
    %9604 = vmatmul.mubr.f32.gmra.mrb[0].mxu0 %v8236
    %v9605 = vpop.f32.mrb[0].mxu0
    %v9606 = vadd.f32 0.0, %v9605
    %v9607 = vpop.f32.mrb[0].mxu0
    %9608 = vmatprep.mubr.f32.mxu0 0.0
    %9609 = vmatmul.mubr.f32.gmra.mrb[0].mxu0 %v8239
    %v9610 = vpop.f32.mrb[0].mxu0
    %v9611 = vadd.f32 0.0, %v9610
    %v9612 = vpop.f32.mrb[0].mxu0
    %9613 = vmatprep.mubr.f32.mxu0 0.0
    %9614 = vmatmul.mubr.f32.gmra.mrb[0].mxu0 %v8242
    %v9615 = vpop.f32.mrb[0].mxu0
    %v9616 = vadd.f32 0.0, %v9615
    %v9617 = vpop.f32.mrb[0].mxu0
    %9618 = vmatprep.mubr.f32.mxu0 0.0
    %9619 = vmatmul.mubr.f32.gmra.mrb[0].mxu0 %v8245
    %v9620 = vpop.f32.mrb[0].mxu0
    %v9621 = vadd.f32 0.0, %v9620
    %v9622 = vpop.f32.mrb[0].mxu0
    %9623 = vmatprep.mubr.f32.mxu0 0.0
    %9624 = vmatmul.mubr.f32.gmra.mrb[0].mxu0 %v8248
    %v9625 = vpop.f32.mrb[0].mxu0
    %v9626 = vadd.f32 0.0, %v9625
    %v9627 = vpop.f32.mrb[0].mxu0
    %9628 = vmatprep.mubr.f32.mxu0 0.0
    %9629 = vmatmul.mubr.f32.gmra.mrb[0].mxu0 %v8251
    %v9630 = vpop.f32.mrb[0].mxu0
    %v9631 = vadd.f32 0.0, %v9630
    %v9632 = vpop.f32.mrb[0].mxu0
    %9633 = vmatprep.mubr.f32.mxu0 0.0
    %9634 = vmatmul.mubr.f32.gmra.mrb[0].mxu0 %v8254
    %v9635 = vpop.f32.mrb[0].mxu0
    %v9636 = vadd.f32 0.0, %v9635
    %v9637 = vpop.f32.mrb[0].mxu0
    %9638 = vmatprep.mubr.f32.mxu0 0.0
    %9639 = vmatmul.mubr.f32.gmra.mrb[0].mxu0 %v8257
    %v9640 = vpop.f32.mrb[0].mxu0
    %v9641 = vadd.f32 0.0, %v9640
    %v9642 = vpop.f32.mrb[0].mxu0
    %9643 = vmatprep.mubr.f32.mxu0 0.0
    %9644 = vmatmul.mubr.f32.gmra.mrb[0].mxu0 %v8260
    %v9645 = vpop.f32.mrb[0].mxu0
    %v9646 = vadd.f32 0.0, %v9645
    %v9647 = vpop.f32.mrb[0].mxu0
    %9648 = vmatprep.mubr.f32.mxu0 0.0
    %9649 = vmatmul.mubr.f32.gmra.mrb[0].mxu0 %v8263
    %v9650 = vpop.f32.mrb[0].mxu0
    %v9651 = vadd.f32 0.0, %v9650
    %v9652 = vpop.f32.mrb[0].mxu0
    %9653 = vmatprep.mubr.f32.mxu0 0.0
    %9654 = vmatmul.mubr.f32.gmra.mrb[0].mxu0 %v8266
    %v9655 = vpop.f32.mrb[0].mxu0
    %v9656 = vadd.f32 0.0, %v9655
    %v9657 = vpop.f32.mrb[0].mxu0
    %9658 = vmatprep.mubr.f32.mxu0 0.0
    %9659 = vmatmul.mubr.f32.gmra.mrb[0].mxu0 %v8269
    %v9660 = vpop.f32.mrb[0].mxu0
    %v9661 = vadd.f32 0.0, %v9660
    %v9662 = vpop.f32.mrb[0].mxu0
    %9663 = vmatprep.mubr.f32.mxu0 0.0
    %9664 = vmatmul.mubr.f32.gmra.mrb[0].mxu0 %v8272
    %v9665 = vpop.f32.mrb[0].mxu0
    %v9666 = vadd.f32 0.0, %v9665
    %v9667 = vpop.f32.mrb[0].mxu0
    %9668 = vmatprep.mubr.f32.mxu0 0.0
    %9669 = vmatmul.mubr.f32.gmra.mrb[0].mxu0 %v8275
    %v9670 = vpop.f32.mrb[0].mxu0
    %v9671 = vadd.f32 0.0, %v9670
    %v9672 = vpop.f32.mrb[0].mxu0
    %9673 = vmatprep.mubr.f32.mxu0 0.0
    %9674 = vmatmul.mubr.f32.gmra.mrb[0].mxu0 %v8278
    %v9675 = vpop.f32.mrb[0].mxu0
    %v9676 = vadd.f32 0.0, %v9675
    %v9677 = vpop.f32.mrb[0].mxu0
    %9678 = vmatprep.mubr.f32.mxu0 0.0
    %9679 = vmatmul.mubr.f32.gmra.mrb[0].mxu0 %v8281
    %v9680 = vpop.f32.mrb[0].mxu0
    %v9681 = vadd.f32 0.0, %v9680
    %v9682 = vpop.f32.mrb[0].mxu0
    %9683 = vmatprep.mubr.f32.mxu0 0.0
    %9684 = vmatmul.mubr.f32.gmra.mrb[0].mxu0 %v8284
    %v9685 = vpop.f32.mrb[0].mxu0
    %v9686 = vadd.f32 0.0, %v9685
    %v9687 = vpop.f32.mrb[0].mxu0
    %9688 = vmatprep.mubr.f32.mxu0 0.0
    %9689 = vmatmul.mubr.f32.gmra.mrb[0].mxu0 %v8287
    %v9690 = vpop.f32.mrb[0].mxu0
    %v9691 = vadd.f32 0.0, %v9690
    %v9692 = vpop.f32.mrb[0].mxu0
    %9693 = vmatprep.mubr.f32.mxu0 0.0
    %9694 = vmatmul.mubr.f32.gmra.mrb[0].mxu0 %v8290
    %v9695 = vpop.f32.mrb[0].mxu0
    %v9696 = vadd.f32 0.0, %v9695
    %v9697 = vpop.f32.mrb[0].mxu0
    %9698 = vdwg.mxu0
    %9703 = vrot.lane.b32.xlu0 %v9541, 8
    %v9704 = vpop.permute.xlu0 %9703
    %9705 = vrot.lane.b32.xlu0 %v9546, 8
    %v9706 = vpop.permute.xlu0 %9705
    %9707 = vrot.lane.b32.xlu0 %v9551, 8
    %v9708 = vpop.permute.xlu0 %9707
    %9709 = vrot.lane.b32.xlu0 %v9556, 8
    %v9710 = vpop.permute.xlu0 %9709
    %9719 = vrot.lane.b32.xlu0 %v9561, 16
    %v9720 = vpop.permute.xlu0 %9719
    %9721 = vrot.lane.b32.xlu0 %v9566, 16
    %v9722 = vpop.permute.xlu0 %9721
    %9723 = vrot.lane.b32.xlu0 %v9571, 16
    %v9724 = vpop.permute.xlu0 %9723
    %9725 = vrot.lane.b32.xlu0 %v9576, 16
    %v9726 = vpop.permute.xlu0 %9725
    %9735 = vrot.lane.b32.xlu0 %v9581, 24
    %v9736 = vpop.permute.xlu0 %9735
    %9737 = vrot.lane.b32.xlu0 %v9586, 24
    %v9738 = vpop.permute.xlu0 %9737
    %9739 = vrot.lane.b32.xlu0 %v9591, 24
    %v9740 = vpop.permute.xlu0 %9739
    %9741 = vrot.lane.b32.xlu0 %v9596, 24
    %v9742 = vpop.permute.xlu0 %9741
    %9751 = vrot.lane.b32.xlu0 %v9601, 32
    %v9752 = vpop.permute.xlu0 %9751
    %9753 = vrot.lane.b32.xlu0 %v9606, 32
    %v9754 = vpop.permute.xlu0 %9753
    %9755 = vrot.lane.b32.xlu0 %v9611, 32
    %v9756 = vpop.permute.xlu0 %9755
    %9757 = vrot.lane.b32.xlu0 %v9616, 32
    %v9758 = vpop.permute.xlu0 %9757
    %9767 = vrot.lane.b32.xlu0 %v9621, 40
    %v9768 = vpop.permute.xlu0 %9767
    %9769 = vrot.lane.b32.xlu0 %v9626, 40
    %v9770 = vpop.permute.xlu0 %9769
    %9771 = vrot.lane.b32.xlu0 %v9631, 40
    %v9772 = vpop.permute.xlu0 %9771
    %9773 = vrot.lane.b32.xlu0 %v9636, 40
    %v9774 = vpop.permute.xlu0 %9773
    %9783 = vrot.lane.b32.xlu0 %v9641, 48
    %v9784 = vpop.permute.xlu0 %9783
    %9785 = vrot.lane.b32.xlu0 %v9646, 48
    %v9786 = vpop.permute.xlu0 %9785
    %9787 = vrot.lane.b32.xlu0 %v9651, 48
    %v9788 = vpop.permute.xlu0 %9787
    %9789 = vrot.lane.b32.xlu0 %v9656, 48
    %v9790 = vpop.permute.xlu0 %9789
    %9799 = vrot.lane.b32.xlu0 %v9661, 56
    %v9800 = vpop.permute.xlu0 %9799
    %9801 = vrot.lane.b32.xlu0 %v9666, 56
    %v9802 = vpop.permute.xlu0 %9801
    %9803 = vrot.lane.b32.xlu0 %v9671, 56
    %v9804 = vpop.permute.xlu0 %9803
    %9805 = vrot.lane.b32.xlu0 %v9676, 56
    %v9806 = vpop.permute.xlu0 %9805
    %9815 = vrot.lane.b32.xlu0 %v9681, 64
    %v9816 = vpop.permute.xlu0 %9815
    %9817 = vrot.lane.b32.xlu0 %v9686, 64
    %v9818 = vpop.permute.xlu0 %9817
    %9819 = vrot.lane.b32.xlu0 %v9691, 64
    %v9820 = vpop.permute.xlu0 %9819
    %9821 = vrot.lane.b32.xlu0 %v9696, 64
    %v9822 = vpop.permute.xlu0 %9821
    %v9827 = vsel %vm292, %v9521, %v9704
    %v9828 = vsel %vm292, %v9526, %v9706
    %v9829 = vsel %vm292, %v9531, %v9708
    %v9830 = vsel %vm292, %v9536, %v9710
    %v9831 = vsel %vm2010, %v9827, %v9720
    %v9832 = vsel %vm2010, %v9828, %v9722
    %v9833 = vsel %vm2010, %v9829, %v9724
    %v9834 = vsel %vm2010, %v9830, %v9726
    %v9835 = vsel %vm2044, %v9831, %v9736
    %v9836 = vsel %vm2044, %v9832, %v9738
    %v9837 = vsel %vm2044, %v9833, %v9740
    %v9838 = vsel %vm2044, %v9834, %v9742
    %v9839 = vsel %vm2078, %v9835, %v9752
    %v9840 = vsel %vm2078, %v9836, %v9754
    %v9841 = vsel %vm2078, %v9837, %v9756
    %v9842 = vsel %vm2078, %v9838, %v9758
    %v9843 = vsel %vm8681, %v9839, %v9768
    %v9844 = vsel %vm8681, %v9840, %v9770
    %v9845 = vsel %vm8681, %v9841, %v9772
    %v9846 = vsel %vm8681, %v9842, %v9774
    %v9847 = vsel %vm3599, %v9843, %v9784
    %v9848 = vsel %vm3599, %v9844, %v9786
    %v9849 = vsel %vm3599, %v9845, %v9788
    %v9850 = vsel %vm3599, %v9846, %v9790
    %v9851 = vsel %vm8690, %v9847, %v9800
    %v9852 = vsel %vm8690, %v9848, %v9802
    %v9853 = vsel %vm8690, %v9849, %v9804
    %v9854 = vsel %vm8690, %v9850, %v9806
    %v9855 = vsel %vm3616, %v9851, %v9816
    %v9856 = vsel %vm3616, %v9852, %v9818
    %v9857 = vsel %vm3616, %v9853, %v9820
    %v9858 = vsel %vm3616, %v9854, %v9822
    %v9860 = vlaneseq
    %v9861 = vshrl.u32 %v9860, 7
    %v9862 = vsub.s32 0, %v9861
    %v9863 = vrot.slane %v9437, %v9862
    %v9866 = vsel %vm8705, %v9855, 0
    %v9869 = vsel %vm8705, %v9856, 0
    %v9872 = vsel %vm8705, %v9857, 0
    %v9875 = vsel %vm8705, %v9858, 0
    %9877 = vmatprep.subr.mxu0 0.0
    %9878 = vmatpush1.msra.mxu0 %v9428
    %9879 = vmatprep.subr.mxu0 0.0
    %9880 = vmatpush1.msra.mxu0 %v9429
    %9881 = vmatprep.subr.mxu0 0.0
    %9882 = vmatpush1.msra.mxu0 %v9430
    %9883 = vmatprep.subr.mxu0 0.0
    %9884 = vmatpush1.msra.mxu0 %v9431
    %9885 = vmatprep.subr.mxu0 0.0
    %9886 = vmatpush1.msra.mxu0 %v9432
    %9887 = vmatprep.subr.mxu0 0.0
    %9888 = vmatpush1.msra.mxu0 %v9433
    %9889 = vmatprep.subr.mxu0 0.0
    %9890 = vmatpush1.msra.mxu0 %v9434
    %9891 = vmatprep.subr.mxu0 0.0
    %9892 = vmatpush1.msra.mxu0 %v9435
    %9893 = vmatprep.subr.mxu0 0.0
    %9894 = vmatpush1.msra.mxu0 %v9436
    %9895 = vmatprep.subr.mxu0 0.0
    %9896 = vmatpush1.msra.mxu0 0.0
    %9897 = vmatprep.subr.mxu0 0.0
    %9898 = vmatpush1.msra.mxu0 0.0
    %9899 = vmatprep.subr.mxu0 0.0
    %9900 = vmatpush1.msra.mxu0 0.0
    %9901 = vmatprep.subr.mxu0 0.0
    %9902 = vmatpush1.msra.mxu0 0.0
    %9903 = vmatprep.subr.mxu0 0.0
    %9904 = vmatpush1.msra.mxu0 0.0
    %9905 = vmatprep.subr.mxu0 0.0
    %9906 = vmatpush1.msra.mxu0 0.0
    %9907 = vmatprep.subr.mxu0 0.0
    %9908 = vmatpush1.msra.mxu0 0.0
    %9909 = vmatprep.subr.mxu0 0.0
    %9910 = vmatpush1.msra.mxu0 0.0
    %9911 = vmatprep.subr.mxu0 0.0
    %9912 = vmatpush1.msra.mxu0 0.0
    %9913 = vmatprep.subr.mxu0 0.0
    %9914 = vmatpush1.msra.mxu0 0.0
    %9915 = vmatprep.subr.mxu0 0.0
    %9916 = vmatpush1.msra.mxu0 0.0
    %9917 = vmatprep.subr.mxu0 0.0
    %9918 = vmatpush1.msra.mxu0 0.0
    %9919 = vmatprep.subr.mxu0 0.0
    %9920 = vmatpush1.msra.mxu0 0.0
    %9921 = vmatprep.subr.mxu0 0.0
    %9922 = vmatpush1.msra.mxu0 0.0
    %9923 = vmatprep.subr.mxu0 0.0
    %9924 = vmatpush1.msra.mxu0 0.0
    %9925 = vmatprep.subr.mxu0 0.0
    %9926 = vmatpush1.msra.mxu0 0.0
    %9927 = vmatprep.subr.mxu0 0.0
    %9928 = vmatpush1.msra.mxu0 0.0
    %9929 = vmatprep.subr.mxu0 0.0
    %9930 = vmatpush1.msra.mxu0 0.0
    %9931 = vmatprep.subr.mxu0 0.0
    %9932 = vmatpush1.msra.mxu0 0.0
    %9933 = vmatprep.subr.mxu0 0.0
    %9934 = vmatpush1.msra.mxu0 0.0
    %9935 = vmatprep.subr.mxu0 0.0
    %9936 = vmatpush1.msra.mxu0 0.0
    %9937 = vmatprep.subr.mxu0 0.0
    %9938 = vmatpush1.msra.mxu0 0.0
    %9939 = vmatprep.subr.mxu0 0.0
    %9940 = vmatpush1.msra.mxu0 0.0
    %9941 = vmatprep.mubr.f32.mxu0 0.0
    %9942 = vmatmul.mubr.f32.gmra.mrb[0].mxu0 %v9866
    %v9943 = vpop.f32.mrb[0].mxu0
    %v9944 = vadd.f32 %v9863, %v9943
    %v9945 = vpop.f32.mrb[0].mxu0
    %9946 = vmatprep.mubr.f32.mxu0 0.0
    %9947 = vmatmul.mubr.f32.gmra.mrb[0].mxu0 %v9869
    %v9948 = vpop.f32.mrb[0].mxu0
    %v9949 = vadd.f32 %v9863, %v9948
    %v9950 = vpop.f32.mrb[0].mxu0
    %9951 = vmatprep.mubr.f32.mxu0 0.0
    %9952 = vmatmul.mubr.f32.gmra.mrb[0].mxu0 %v9872
    %v9953 = vpop.f32.mrb[0].mxu0
    %v9954 = vadd.f32 %v9863, %v9953
    %v9955 = vpop.f32.mrb[0].mxu0
    %9956 = vmatprep.mubr.f32.mxu0 0.0
    %9957 = vmatmul.mubr.f32.gmra.mrb[0].mxu0 %v9875
    %v9958 = vpop.f32.mrb[0].mxu0
    %v9959 = vadd.f32 %v9863, %v9958
    %v9960 = vpop.f32.mrb[0].mxu0
    %9961 = vdwg.mxu0
    %v9962 = vmax.f32 %v9944, 0.0
    %v9963 = vmax.f32 %v9949, 0.0
    %v9964 = vmax.f32 %v9954, 0.0
    %v9965 = vmax.f32 %v9959, 0.0
    %v9966 = vld [vmem:[%s22] sm:$0xff]
    %v9967 = vld [vmem:[%s22 + $0x8] sm:$0xff]
    %v9968 = vld [vmem:[%s22 + $0x10] sm:$0xff]
    %v9969 = vld [vmem:[%s22 + $0x18] sm:$0xff]
    %v9970 = vld [vmem:[%s22 + $0x20] sm:$0xff]
    %v9971 = vld [vmem:[%s22 + $0x28] sm:$0xff]
    %v9972 = vld [vmem:[%s22 + $0x30] sm:$0xff]
    %v9973 = vld [vmem:[%s22 + $0x38] sm:$0xff]
    %v9974 = vld [vmem:[%s22 + $0x40] sm:$0xff]
    %v9975 = vld [vmem:[%s22 + $0x48] sm:$0xff]
    %v9976 = vld [vmem:[%s22 + $0x50] sm:$0xff]
    %v9977 = vld [vmem:[%s22 + $0x58] sm:$0xff]
    %v9978 = vld [vmem:[%s22 + $0x60] sm:$0xff]
    %v9979 = vld [vmem:[%s22 + $0x68] sm:$0xff]
    %v9980 = vld [vmem:[%s22 + $0x70] sm:$0xff]
    %v9981 = vld [vmem:[%s22 + $0x78] sm:$0xff]
    %v9982 = vld [vmem:[%s22 + $0x80] sm:$0xff]
    %v9983 = vld [vmem:[%s22 + $0x88] sm:$0xff]
    %v9984 = vld [vmem:[%s23] sm:$0x1]
    %9985 = vmatprep.subr.mxu0 0.0
    %9986 = vmatpush1.msra.mxu0 %v9962
    %9987 = vmatprep.subr.mxu0 0.0
    %9988 = vmatpush1.msra.mxu0 %v9963
    %9989 = vmatprep.subr.mxu0 0.0
    %9990 = vmatpush1.msra.mxu0 %v9964
    %9991 = vmatprep.subr.mxu0 0.0
    %9992 = vmatpush1.msra.mxu0 %v9965
    %9993 = vmatprep.subr.mxu0 0.0
    %9994 = vmatpush1.msra.mxu0 0.0
    %9995 = vmatprep.subr.mxu0 0.0
    %9996 = vmatpush1.msra.mxu0 0.0
    %9997 = vmatprep.subr.mxu0 0.0
    %9998 = vmatpush1.msra.mxu0 0.0
    %9999 = vmatprep.subr.mxu0 0.0
    %10000 = vmatpush1.msra.mxu0 0.0
    %10001 = vmatprep.subr.mxu0 0.0
    %10002 = vmatpush1.msra.mxu0 0.0
    %10003 = vmatprep.subr.mxu0 0.0
    %10004 = vmatpush1.msra.mxu0 0.0
    %10005 = vmatprep.subr.mxu0 0.0
    %10006 = vmatpush1.msra.mxu0 0.0
    %10007 = vmatprep.subr.mxu0 0.0
    %10008 = vmatpush1.msra.mxu0 0.0
    %10009 = vmatprep.subr.mxu0 0.0
    %10010 = vmatpush1.msra.mxu0 0.0
    %10011 = vmatprep.subr.mxu0 0.0
    %10012 = vmatpush1.msra.mxu0 0.0
    %10013 = vmatprep.subr.mxu0 0.0
    %10014 = vmatpush1.msra.mxu0 0.0
    %10015 = vmatprep.subr.mxu0 0.0
    %10016 = vmatpush1.msra.mxu0 0.0
    %10017 = vmatprep.subr.mxu0 0.0
    %10018 = vmatpush1.msra.mxu0 0.0
    %10019 = vmatprep.subr.mxu0 0.0
    %10020 = vmatpush1.msra.mxu0 0.0
    %10021 = vmatprep.subr.mxu0 0.0
    %10022 = vmatpush1.msra.mxu0 0.0
    %10023 = vmatprep.subr.mxu0 0.0
    %10024 = vmatpush1.msra.mxu0 0.0
    %10025 = vmatprep.subr.mxu0 0.0
    %10026 = vmatpush1.msra.mxu0 0.0
    %10027 = vmatprep.subr.mxu0 0.0
    %10028 = vmatpush1.msra.mxu0 0.0
    %10029 = vmatprep.subr.mxu0 0.0
    %10030 = vmatpush1.msra.mxu0 0.0
    %10031 = vmatprep.subr.mxu0 0.0
    %10032 = vmatpush1.msra.mxu0 0.0
    %10033 = vmatprep.subr.mxu0 0.0
    %10034 = vmatpush1.msra.mxu0 0.0
    %10035 = vmatprep.subr.mxu0 0.0
    %10036 = vmatpush1.msra.mxu0 0.0
    %10037 = vmatprep.subr.mxu0 0.0
    %10038 = vmatpush1.msra.mxu0 0.0
    %10039 = vmatprep.subr.mxu0 0.0
    %10040 = vmatpush1.msra.mxu0 0.0
    %10041 = vmatprep.subr.mxu0 0.0
    %10042 = vmatpush1.msra.mxu0 0.0
    %10043 = vmatprep.subr.mxu0 0.0
    %10044 = vmatpush1.msra.mxu0 0.0
    %10045 = vmatprep.subr.mxu0 0.0
    %10046 = vmatpush1.msra.mxu0 0.0
    %10047 = vmatprep.subr.mxu0 0.0
    %10048 = vmatpush1.msra.mxu0 0.0
    %10049 = vmatprep.mubr.f32.mxu0 0.0
    %10050 = vmatmul.mubr.f32.gmra.mrb[0].mxu0 %v8185
    %v10051 = vpop.f32.mrb[0].mxu0
    %v10052 = vadd.f32 0.0, %v10051
    %v10053 = vpop.f32.mrb[0].mxu0
    %10054 = vmatprep.mubr.f32.mxu0 0.0
    %10055 = vmatmul.mubr.f32.gmra.mrb[0].mxu0 %v8188
    %v10056 = vpop.f32.mrb[0].mxu0
    %v10057 = vadd.f32 0.0, %v10056
    %v10058 = vpop.f32.mrb[0].mxu0
    %10059 = vmatprep.mubr.f32.mxu0 0.0
    %10060 = vmatmul.mubr.f32.gmra.mrb[0].mxu0 %v8191
    %v10061 = vpop.f32.mrb[0].mxu0
    %v10062 = vadd.f32 0.0, %v10061
    %v10063 = vpop.f32.mrb[0].mxu0
    %10064 = vmatprep.mubr.f32.mxu0 0.0
    %10065 = vmatmul.mubr.f32.gmra.mrb[0].mxu0 %v8194
    %v10066 = vpop.f32.mrb[0].mxu0
    %v10067 = vadd.f32 0.0, %v10066
    %v10068 = vpop.f32.mrb[0].mxu0
    %10069 = vmatprep.mubr.f32.mxu0 0.0
    %10070 = vmatmul.mubr.f32.gmra.mrb[0].mxu0 %v8197
    %v10071 = vpop.f32.mrb[0].mxu0
    %v10072 = vadd.f32 0.0, %v10071
    %v10073 = vpop.f32.mrb[0].mxu0
    %10074 = vmatprep.mubr.f32.mxu0 0.0
    %10075 = vmatmul.mubr.f32.gmra.mrb[0].mxu0 %v8200
    %v10076 = vpop.f32.mrb[0].mxu0
    %v10077 = vadd.f32 0.0, %v10076
    %v10078 = vpop.f32.mrb[0].mxu0
    %10079 = vmatprep.mubr.f32.mxu0 0.0
    %10080 = vmatmul.mubr.f32.gmra.mrb[0].mxu0 %v8203
    %v10081 = vpop.f32.mrb[0].mxu0
    %v10082 = vadd.f32 0.0, %v10081
    %v10083 = vpop.f32.mrb[0].mxu0
    %10084 = vmatprep.mubr.f32.mxu0 0.0
    %10085 = vmatmul.mubr.f32.gmra.mrb[0].mxu0 %v8206
    %v10086 = vpop.f32.mrb[0].mxu0
    %v10087 = vadd.f32 0.0, %v10086
    %v10088 = vpop.f32.mrb[0].mxu0
    %10089 = vmatprep.mubr.f32.mxu0 0.0
    %10090 = vmatmul.mubr.f32.gmra.mrb[0].mxu0 %v8209
    %v10091 = vpop.f32.mrb[0].mxu0
    %v10092 = vadd.f32 0.0, %v10091
    %v10093 = vpop.f32.mrb[0].mxu0
    %10094 = vmatprep.mubr.f32.mxu0 0.0
    %10095 = vmatmul.mubr.f32.gmra.mrb[0].mxu0 %v8212
    %v10096 = vpop.f32.mrb[0].mxu0
    %v10097 = vadd.f32 0.0, %v10096
    %v10098 = vpop.f32.mrb[0].mxu0
    %10099 = vmatprep.mubr.f32.mxu0 0.0
    %10100 = vmatmul.mubr.f32.gmra.mrb[0].mxu0 %v8215
    %v10101 = vpop.f32.mrb[0].mxu0
    %v10102 = vadd.f32 0.0, %v10101
    %v10103 = vpop.f32.mrb[0].mxu0
    %10104 = vmatprep.mubr.f32.mxu0 0.0
    %10105 = vmatmul.mubr.f32.gmra.mrb[0].mxu0 %v8218
    %v10106 = vpop.f32.mrb[0].mxu0
    %v10107 = vadd.f32 0.0, %v10106
    %v10108 = vpop.f32.mrb[0].mxu0
    %10109 = vmatprep.mubr.f32.mxu0 0.0
    %10110 = vmatmul.mubr.f32.gmra.mrb[0].mxu0 %v8221
    %v10111 = vpop.f32.mrb[0].mxu0
    %v10112 = vadd.f32 0.0, %v10111
    %v10113 = vpop.f32.mrb[0].mxu0
    %10114 = vmatprep.mubr.f32.mxu0 0.0
    %10115 = vmatmul.mubr.f32.gmra.mrb[0].mxu0 %v8224
    %v10116 = vpop.f32.mrb[0].mxu0
    %v10117 = vadd.f32 0.0, %v10116
    %v10118 = vpop.f32.mrb[0].mxu0
    %10119 = vmatprep.mubr.f32.mxu0 0.0
    %10120 = vmatmul.mubr.f32.gmra.mrb[0].mxu0 %v8227
    %v10121 = vpop.f32.mrb[0].mxu0
    %v10122 = vadd.f32 0.0, %v10121
    %v10123 = vpop.f32.mrb[0].mxu0
    %10124 = vmatprep.mubr.f32.mxu0 0.0
    %10125 = vmatmul.mubr.f32.gmra.mrb[0].mxu0 %v8230
    %v10126 = vpop.f32.mrb[0].mxu0
    %v10127 = vadd.f32 0.0, %v10126
    %v10128 = vpop.f32.mrb[0].mxu0
    %10129 = vmatprep.mubr.f32.mxu0 0.0
    %10130 = vmatmul.mubr.f32.gmra.mrb[0].mxu0 %v8233
    %v10131 = vpop.f32.mrb[0].mxu0
    %v10132 = vadd.f32 0.0, %v10131
    %v10133 = vpop.f32.mrb[0].mxu0
    %10134 = vmatprep.mubr.f32.mxu0 0.0
    %10135 = vmatmul.mubr.f32.gmra.mrb[0].mxu0 %v8236
    %v10136 = vpop.f32.mrb[0].mxu0
    %v10137 = vadd.f32 0.0, %v10136
    %v10138 = vpop.f32.mrb[0].mxu0
    %10139 = vmatprep.mubr.f32.mxu0 0.0
    %10140 = vmatmul.mubr.f32.gmra.mrb[0].mxu0 %v8239
    %v10141 = vpop.f32.mrb[0].mxu0
    %v10142 = vadd.f32 0.0, %v10141
    %v10143 = vpop.f32.mrb[0].mxu0
    %10144 = vmatprep.mubr.f32.mxu0 0.0
    %10145 = vmatmul.mubr.f32.gmra.mrb[0].mxu0 %v8242
    %v10146 = vpop.f32.mrb[0].mxu0
    %v10147 = vadd.f32 0.0, %v10146
    %v10148 = vpop.f32.mrb[0].mxu0
    %10149 = vmatprep.mubr.f32.mxu0 0.0
    %10150 = vmatmul.mubr.f32.gmra.mrb[0].mxu0 %v8245
    %v10151 = vpop.f32.mrb[0].mxu0
    %v10152 = vadd.f32 0.0, %v10151
    %v10153 = vpop.f32.mrb[0].mxu0
    %10154 = vmatprep.mubr.f32.mxu0 0.0
    %10155 = vmatmul.mubr.f32.gmra.mrb[0].mxu0 %v8248
    %v10156 = vpop.f32.mrb[0].mxu0
    %v10157 = vadd.f32 0.0, %v10156
    %v10158 = vpop.f32.mrb[0].mxu0
    %10159 = vmatprep.mubr.f32.mxu0 0.0
    %10160 = vmatmul.mubr.f32.gmra.mrb[0].mxu0 %v8251
    %v10161 = vpop.f32.mrb[0].mxu0
    %v10162 = vadd.f32 0.0, %v10161
    %v10163 = vpop.f32.mrb[0].mxu0
    %10164 = vmatprep.mubr.f32.mxu0 0.0
    %10165 = vmatmul.mubr.f32.gmra.mrb[0].mxu0 %v8254
    %v10166 = vpop.f32.mrb[0].mxu0
    %v10167 = vadd.f32 0.0, %v10166
    %v10168 = vpop.f32.mrb[0].mxu0
    %10169 = vmatprep.mubr.f32.mxu0 0.0
    %10170 = vmatmul.mubr.f32.gmra.mrb[0].mxu0 %v8257
    %v10171 = vpop.f32.mrb[0].mxu0
    %v10172 = vadd.f32 0.0, %v10171
    %v10173 = vpop.f32.mrb[0].mxu0
    %10174 = vmatprep.mubr.f32.mxu0 0.0
    %10175 = vmatmul.mubr.f32.gmra.mrb[0].mxu0 %v8260
    %v10176 = vpop.f32.mrb[0].mxu0
    %v10177 = vadd.f32 0.0, %v10176
    %v10178 = vpop.f32.mrb[0].mxu0
    %10179 = vmatprep.mubr.f32.mxu0 0.0
    %10180 = vmatmul.mubr.f32.gmra.mrb[0].mxu0 %v8263
    %v10181 = vpop.f32.mrb[0].mxu0
    %v10182 = vadd.f32 0.0, %v10181
    %v10183 = vpop.f32.mrb[0].mxu0
    %10184 = vmatprep.mubr.f32.mxu0 0.0
    %10185 = vmatmul.mubr.f32.gmra.mrb[0].mxu0 %v8266
    %v10186 = vpop.f32.mrb[0].mxu0
    %v10187 = vadd.f32 0.0, %v10186
    %v10188 = vpop.f32.mrb[0].mxu0
    %10189 = vmatprep.mubr.f32.mxu0 0.0
    %10190 = vmatmul.mubr.f32.gmra.mrb[0].mxu0 %v8269
    %v10191 = vpop.f32.mrb[0].mxu0
    %v10192 = vadd.f32 0.0, %v10191
    %v10193 = vpop.f32.mrb[0].mxu0
    %10194 = vmatprep.mubr.f32.mxu0 0.0
    %10195 = vmatmul.mubr.f32.gmra.mrb[0].mxu0 %v8272
    %v10196 = vpop.f32.mrb[0].mxu0
    %v10197 = vadd.f32 0.0, %v10196
    %v10198 = vpop.f32.mrb[0].mxu0
    %10199 = vmatprep.mubr.f32.mxu0 0.0
    %10200 = vmatmul.mubr.f32.gmra.mrb[0].mxu0 %v8275
    %v10201 = vpop.f32.mrb[0].mxu0
    %v10202 = vadd.f32 0.0, %v10201
    %v10203 = vpop.f32.mrb[0].mxu0
    %10204 = vmatprep.mubr.f32.mxu0 0.0
    %10205 = vmatmul.mubr.f32.gmra.mrb[0].mxu0 %v8278
    %v10206 = vpop.f32.mrb[0].mxu0
    %v10207 = vadd.f32 0.0, %v10206
    %v10208 = vpop.f32.mrb[0].mxu0
    %10209 = vmatprep.mubr.f32.mxu0 0.0
    %10210 = vmatmul.mubr.f32.gmra.mrb[0].mxu0 %v8281
    %v10211 = vpop.f32.mrb[0].mxu0
    %v10212 = vadd.f32 0.0, %v10211
    %v10213 = vpop.f32.mrb[0].mxu0
    %10214 = vmatprep.mubr.f32.mxu0 0.0
    %10215 = vmatmul.mubr.f32.gmra.mrb[0].mxu0 %v8284
    %v10216 = vpop.f32.mrb[0].mxu0
    %v10217 = vadd.f32 0.0, %v10216
    %v10218 = vpop.f32.mrb[0].mxu0
    %10219 = vmatprep.mubr.f32.mxu0 0.0
    %10220 = vmatmul.mubr.f32.gmra.mrb[0].mxu0 %v8287
    %v10221 = vpop.f32.mrb[0].mxu0
    %v10222 = vadd.f32 0.0, %v10221
    %v10223 = vpop.f32.mrb[0].mxu0
    %10224 = vmatprep.mubr.f32.mxu0 0.0
    %10225 = vmatmul.mubr.f32.gmra.mrb[0].mxu0 %v8290
    %v10226 = vpop.f32.mrb[0].mxu0
    %v10227 = vadd.f32 0.0, %v10226
    %v10228 = vpop.f32.mrb[0].mxu0
    %10229 = vdwg.mxu0
    %10234 = vrot.lane.b32.xlu0 %v10072, 16
    %v10235 = vpop.permute.xlu0 %10234
    %10236 = vrot.lane.b32.xlu0 %v10077, 16
    %v10237 = vpop.permute.xlu0 %10236
    %10238 = vrot.lane.b32.xlu0 %v10082, 16
    %v10239 = vpop.permute.xlu0 %10238
    %10240 = vrot.lane.b32.xlu0 %v10087, 16
    %v10241 = vpop.permute.xlu0 %10240
    %10250 = vrot.lane.b32.xlu0 %v10092, 32
    %v10251 = vpop.permute.xlu0 %10250
    %10252 = vrot.lane.b32.xlu0 %v10097, 32
    %v10253 = vpop.permute.xlu0 %10252
    %10254 = vrot.lane.b32.xlu0 %v10102, 32
    %v10255 = vpop.permute.xlu0 %10254
    %10256 = vrot.lane.b32.xlu0 %v10107, 32
    %v10257 = vpop.permute.xlu0 %10256
    %10266 = vrot.lane.b32.xlu0 %v10112, 48
    %v10267 = vpop.permute.xlu0 %10266
    %10268 = vrot.lane.b32.xlu0 %v10117, 48
    %v10269 = vpop.permute.xlu0 %10268
    %10270 = vrot.lane.b32.xlu0 %v10122, 48
    %v10271 = vpop.permute.xlu0 %10270
    %10272 = vrot.lane.b32.xlu0 %v10127, 48
    %v10273 = vpop.permute.xlu0 %10272
    %10282 = vrot.lane.b32.xlu0 %v10132, 64
    %v10283 = vpop.permute.xlu0 %10282
    %10284 = vrot.lane.b32.xlu0 %v10137, 64
    %v10285 = vpop.permute.xlu0 %10284
    %10286 = vrot.lane.b32.xlu0 %v10142, 64
    %v10287 = vpop.permute.xlu0 %10286
    %10288 = vrot.lane.b32.xlu0 %v10147, 64
    %v10289 = vpop.permute.xlu0 %10288
    %10298 = vrot.lane.b32.xlu0 %v10152, 80
    %v10299 = vpop.permute.xlu0 %10298
    %10300 = vrot.lane.b32.xlu0 %v10157, 80
    %v10301 = vpop.permute.xlu0 %10300
    %10302 = vrot.lane.b32.xlu0 %v10162, 80
    %v10303 = vpop.permute.xlu0 %10302
    %10304 = vrot.lane.b32.xlu0 %v10167, 80
    %v10305 = vpop.permute.xlu0 %10304
    %10314 = vrot.lane.b32.xlu0 %v10172, 96
    %v10315 = vpop.permute.xlu0 %10314
    %10316 = vrot.lane.b32.xlu0 %v10177, 96
    %v10317 = vpop.permute.xlu0 %10316
    %10318 = vrot.lane.b32.xlu0 %v10182, 96
    %v10319 = vpop.permute.xlu0 %10318
    %10320 = vrot.lane.b32.xlu0 %v10187, 96
    %v10321 = vpop.permute.xlu0 %10320
    %10330 = vrot.lane.b32.xlu0 %v10192, 112
    %v10331 = vpop.permute.xlu0 %10330
    %10332 = vrot.lane.b32.xlu0 %v10197, 112
    %v10333 = vpop.permute.xlu0 %10332
    %10334 = vrot.lane.b32.xlu0 %v10202, 112
    %v10335 = vpop.permute.xlu0 %10334
    %10336 = vrot.lane.b32.xlu0 %v10207, 112
    %v10337 = vpop.permute.xlu0 %10336
    %v10342 = vsel %vm2010, %v10052, %v10235
    %v10343 = vsel %vm2010, %v10057, %v10237
    %v10344 = vsel %vm2010, %v10062, %v10239
    %v10345 = vsel %vm2010, %v10067, %v10241
    %v10346 = vsel %vm2078, %v10342, %v10251
    %v10347 = vsel %vm2078, %v10343, %v10253
    %v10348 = vsel %vm2078, %v10344, %v10255
    %v10349 = vsel %vm2078, %v10345, %v10257
    %v10350 = vsel %vm3599, %v10346, %v10267
    %v10351 = vsel %vm3599, %v10347, %v10269
    %v10352 = vsel %vm3599, %v10348, %v10271
    %v10353 = vsel %vm3599, %v10349, %v10273
    %v10354 = vsel %vm3616, %v10350, %v10283
    %v10355 = vsel %vm3616, %v10351, %v10285
    %v10356 = vsel %vm3616, %v10352, %v10287
    %v10357 = vsel %vm3616, %v10353, %v10289
    %v10358 = vsel %vm3633, %v10354, %v10299
    %v10359 = vsel %vm3633, %v10355, %v10301
    %v10360 = vsel %vm3633, %v10356, %v10303
    %v10361 = vsel %vm3633, %v10357, %v10305
    %v10362 = vsel %vm3650, %v10358, %v10315
    %v10363 = vsel %vm3650, %v10359, %v10317
    %v10364 = vsel %vm3650, %v10360, %v10319
    %v10365 = vsel %vm3650, %v10361, %v10321
    %v10366 = vsel %vm3667, %v10362, %v10331
    %v10367 = vsel %vm3667, %v10363, %v10333
    %v10368 = vsel %vm3667, %v10364, %v10335
    %v10369 = vsel %vm3667, %v10365, %v10337
    %v10371 = vlaneseq
    %v10372 = vshrl.u32 %v10371, 7
    %v10373 = vsub.s32 0, %v10372
    %v10374 = vrot.slane %v9984, %v10373
    %v10377 = vsel %vm2010, %v10212, 0
    %v10380 = vsel %vm2010, %v10217, 0
    %v10383 = vsel %vm2010, %v10222, 0
    %v10386 = vsel %vm2010, %v10227, 0
    %10388 = vmatprep.subr.mxu0 0.0
    %10389 = vmatpush1.msra.mxu0 %v9966
    %10390 = vmatprep.subr.mxu0 0.0
    %10391 = vmatpush1.msra.mxu0 %v9967
    %10392 = vmatprep.subr.mxu0 0.0
    %10393 = vmatpush1.msra.mxu0 %v9968
    %10394 = vmatprep.subr.mxu0 0.0
    %10395 = vmatpush1.msra.mxu0 %v9969
    %10396 = vmatprep.subr.mxu0 0.0
    %10397 = vmatpush1.msra.mxu0 %v9970
    %10398 = vmatprep.subr.mxu0 0.0
    %10399 = vmatpush1.msra.mxu0 %v9971
    %10400 = vmatprep.subr.mxu0 0.0
    %10401 = vmatpush1.msra.mxu0 %v9972
    %10402 = vmatprep.subr.mxu0 0.0
    %10403 = vmatpush1.msra.mxu0 %v9973
    %10404 = vmatprep.subr.mxu0 0.0
    %10405 = vmatpush1.msra.mxu0 %v9974
    %10406 = vmatprep.subr.mxu0 0.0
    %10407 = vmatpush1.msra.mxu0 %v9975
    %10408 = vmatprep.subr.mxu0 0.0
    %10409 = vmatpush1.msra.mxu0 %v9976
    %10410 = vmatprep.subr.mxu0 0.0
    %10411 = vmatpush1.msra.mxu0 %v9977
    %10412 = vmatprep.subr.mxu0 0.0
    %10413 = vmatpush1.msra.mxu0 %v9978
    %10414 = vmatprep.subr.mxu0 0.0
    %10415 = vmatpush1.msra.mxu0 %v9979
    %10416 = vmatprep.subr.mxu0 0.0
    %10417 = vmatpush1.msra.mxu0 %v9980
    %10418 = vmatprep.subr.mxu0 0.0
    %10419 = vmatpush1.msra.mxu0 %v9981
    %10420 = vmatprep.subr.mxu0 0.0
    %10421 = vmatpush1.msra.mxu0 %v9982
    %10422 = vmatprep.subr.mxu0 0.0
    %10423 = vmatpush1.msra.mxu0 %v9983
    %10424 = vmatprep.subr.mxu0 0.0
    %10425 = vmatpush1.msra.mxu0 0.0
    %10426 = vmatprep.subr.mxu0 0.0
    %10427 = vmatpush1.msra.mxu0 0.0
    %10428 = vmatprep.subr.mxu0 0.0
    %10429 = vmatpush1.msra.mxu0 0.0
    %10430 = vmatprep.subr.mxu0 0.0
    %10431 = vmatpush1.msra.mxu0 0.0
    %10432 = vmatprep.subr.mxu0 0.0
    %10433 = vmatpush1.msra.mxu0 0.0
    %10434 = vmatprep.subr.mxu0 0.0
    %10435 = vmatpush1.msra.mxu0 0.0
    %10436 = vmatprep.subr.mxu0 0.0
    %10437 = vmatpush1.msra.mxu0 0.0
    %10438 = vmatprep.subr.mxu0 0.0
    %10439 = vmatpush1.msra.mxu0 0.0
    %10440 = vmatprep.subr.mxu0 0.0
    %10441 = vmatpush1.msra.mxu0 0.0
    %10442 = vmatprep.subr.mxu0 0.0
    %10443 = vmatpush1.msra.mxu0 0.0
    %10444 = vmatprep.subr.mxu0 0.0
    %10445 = vmatpush1.msra.mxu0 0.0
    %10446 = vmatprep.subr.mxu0 0.0
    %10447 = vmatpush1.msra.mxu0 0.0
    %10448 = vmatprep.subr.mxu0 0.0
    %10449 = vmatpush1.msra.mxu0 0.0
    %10450 = vmatprep.subr.mxu0 0.0
    %10451 = vmatpush1.msra.mxu0 0.0
    %10452 = vmatprep.mubr.f32.mxu0 %v10377
    %10453 = vmatmul.mubr.f32.gmra.mrb[0].mxu0 %v10366
    %v10454 = vpop.f32.mrb[0].mxu0
    %v10455 = vadd.f32 %v10374, %v10454
    %v10456 = vpop.f32.mrb[0].mxu0
    %10457 = vmatprep.mubr.f32.mxu0 %v10380
    %10458 = vmatmul.mubr.f32.gmra.mrb[0].mxu0 %v10367
    %v10459 = vpop.f32.mrb[0].mxu0
    %v10460 = vadd.f32 %v10374, %v10459
    %v10461 = vpop.f32.mrb[0].mxu0
    %10462 = vmatprep.mubr.f32.mxu0 %v10383
    %10463 = vmatmul.mubr.f32.gmra.mrb[0].mxu0 %v10368
    %v10464 = vpop.f32.mrb[0].mxu0
    %v10465 = vadd.f32 %v10374, %v10464
    %v10466 = vpop.f32.mrb[0].mxu0
    %10467 = vmatprep.mubr.f32.mxu0 %v10386
    %10468 = vmatmul.mubr.f32.gmra.mrb[0].mxu0 %v10369
    %v10469 = vpop.f32.mrb[0].mxu0
    %v10470 = vadd.f32 %v10374, %v10469
    %v10471 = vpop.f32.mrb[0].mxu0
    %10472 = vdwg.mxu0
    %v10473 = vld [vmem:[%s24] sm:$0x1]
    %v10474 = vsub.f32 0.0, %v10473
    %v10475 = vmul.f32 %v10474, 1.442695
    %v10476 = vpow.pop %v10475
    %v10478 = vlaneseq
    %v10479 = vshrl.u32 %v10478, 7
    %v10480 = vsub.s32 0, %v10479
    %v10481 = vrot.slane %v10476, %v10480
    %v10483 = vmul.f32 %v10455, %v10481
    %v10484 = vmul.f32 %v10460, %v10481
    %v10485 = vmul.f32 %v10465, %v10481
    %v10486 = vmul.f32 %v10470, %v10481
    %v10487 = vtanh.pop %v10483
    %v10488 = vtanh.pop %v10484
    %v10489 = vtanh.pop %v10485
    %v10490 = vtanh.pop %v10486
    %v10491 = vmul.f32 %v10473, 1.442695
    %v10492 = vpow.pop %v10491
    %v10494 = vlaneseq
    %v10495 = vshrl.u32 %v10494, 7
    %v10496 = vsub.s32 0, %v10495
    %v10497 = vrot.slane %v10492, %v10496
    %v10499 = vmul.f32 %v10487, %v10497
    %v10500 = vmul.f32 %v10488, %v10497
    %v10501 = vmul.f32 %v10489, %v10497
    %v10502 = vmul.f32 %v10490, %v10497
    %10507 = vrot.lane.b32.xlu0 %v10455, 120
    %v10508 = vpop.permute.xlu0 %10507
    %10509 = vrot.lane.b32.xlu0 %v10460, 120
    %v10510 = vpop.permute.xlu0 %10509
    %10511 = vrot.lane.b32.xlu0 %v10465, 120
    %v10512 = vpop.permute.xlu0 %10511
    %10513 = vrot.lane.b32.xlu0 %v10470, 120
    %v10514 = vpop.permute.xlu0 %10513
    %v10519 = vadd.f32 %v8134, %v10508
    %v10520 = vadd.f32 %v8135, %v10510
    %v10521 = vadd.f32 %v8136, %v10512
    %v10522 = vadd.f32 %v8137, %v10514
    %v10523 = vmul.f32 %v10499, 1.442695
    %v10524 = vpow.pop %v10523
    %v10525 = vmul.f32 %v10500, 1.442695
    %v10526 = vpow.pop %v10525
    %v10527 = vmul.f32 %v10501, 1.442695
    %v10528 = vpow.pop %v10527
    %v10529 = vmul.f32 %v10502, 1.442695
    %v10530 = vpow.pop %v10529
    %v10531 = vmul.f32 %v10519, %v10524
    %v10532 = vmul.f32 %v10520, %v10526
    %v10533 = vmul.f32 %v10521, %v10528
    %v10534 = vmul.f32 %v10522, %v10530
    %v10535 = vsel %vm292, %v10499, 0.0
    %10536 = vadd.xlane.f32.xlu0 %v10535
    %v10537 = vpop.xlane.xlu0 %10536
    %v10538 = vsel %vm292, %v10500, 0.0
    %10539 = vadd.xlane.f32.xlu0 %v10538
    %v10540 = vpop.xlane.xlu0 %10539
    %v10541 = vsel %vm292, %v10501, 0.0
    %10542 = vadd.xlane.f32.xlu0 %v10541
    %v10543 = vpop.xlane.xlu0 %10542
    %v10544 = vsel %vm292, %v10502, 0.0
    %10545 = vadd.xlane.f32.xlu0 %v10544
    %v10546 = vpop.xlane.xlu0 %10545
    %v10547 = vmul.f32 %v9406, %v10537
    %v10548 = vmul.f32 %v9407, %v10540
    %v10549 = vmul.f32 %v9408, %v10543
    %v10550 = vmul.f32 %v9409, %v10546
    %v10551 = vsel %vm458, %v10547, 0.0
    %v10552 = vsel %vm458, %v10548, 0.0
    %v10553 = vadd.f32 %v10551, %v10552
    %v10554 = vsel %vm458, %v10549, 0.0
    %v10555 = vadd.f32 %v10553, %v10554
    %v10556 = vsel %vm458, %v10550, 0.0
    %v10557 = vadd.f32 %v10555, %v10556
    %v10558 = vrot.slane %v10557, 4
    %v10559 = vadd.f32 %v10557, %v10558
    %v10560 = vrot.slane %v10559, 2
    %v10561 = vadd.f32 %v10559, %v10560
    %v10562 = vrot.slane %v10561, 1
    %v10563 = vadd.f32 %v10561, %v10562
    %v10564 = vadd.f32 %v9427, %v10563
    %v10565 = vsel %vm292, %v10531, %v9372
    %v10566 = vsel %vm292, %v10532, %v9373
    %v10567 = vsel %vm292, %v10533, %v9374
    %v10568 = vsel %vm292, %v10534, %v9375
    %v10569 = vmul.f32 %v10565, -0.5
    %v10570 = vmul.f32 %v10566, -0.5
    %v10571 = vmul.f32 %v10567, -0.5
    %v10572 = vmul.f32 %v10568, -0.5
    %v10573 = vmul.f32 %v10569, %v10565
    %v10574 = vmul.f32 %v10570, %v10566
    %v10575 = vmul.f32 %v10571, %v10567
    %v10576 = vmul.f32 %v10572, %v10568
    %v10577 = vsub.f32 %v10573, 0.9189385
    %v10578 = vsub.f32 %v10574, 0.9189385
    %v10579 = vsub.f32 %v10575, 0.9189385
    %v10580 = vsub.f32 %v10576, 0.9189385
    %v10581 = vsel %vm2010, %v10577, 0.0
    %10582 = vadd.xlane.f32.xlu0 %v10581
    %v10583 = vpop.xlane.xlu0 %10582
    %v10584 = vsel %vm2010, %v10578, 0.0
    %10585 = vadd.xlane.f32.xlu0 %v10584
    %v10586 = vpop.xlane.xlu0 %10585
    %v10587 = vsel %vm2010, %v10579, 0.0
    %10588 = vadd.xlane.f32.xlu0 %v10587
    %v10589 = vpop.xlane.xlu0 %10588
    %v10590 = vsel %vm2010, %v10580, 0.0
    %10591 = vadd.xlane.f32.xlu0 %v10590
    %v10592 = vpop.xlane.xlu0 %10591
    %v10593 = vmul.f32 %v9406, %v10583
    %v10594 = vmul.f32 %v9407, %v10586
    %v10595 = vmul.f32 %v9408, %v10589
    %v10596 = vmul.f32 %v9409, %v10592
    %v10597 = vsel %vm458, %v10593, 0.0
    %v10598 = vsel %vm458, %v10594, 0.0
    %v10599 = vadd.f32 %v10597, %v10598
    %v10600 = vsel %vm458, %v10595, 0.0
    %v10601 = vadd.f32 %v10599, %v10600
    %v10602 = vsel %vm458, %v10596, 0.0
    %v10603 = vadd.f32 %v10601, %v10602
    %v10604 = vrot.slane %v10603, 4
    %v10605 = vadd.f32 %v10603, %v10604
    %v10606 = vrot.slane %v10605, 2
    %v10607 = vadd.f32 %v10605, %v10606
    %v10608 = vrot.slane %v10607, 1
    %v10609 = vadd.f32 %v10607, %v10608
    %v10610 = vadd.f32 %v7900, %v10609
    %10611 = vst.msk [vmem:[#allocation2] sm:$0xff] %vm2010, %v10565
    %10612 = vst.msk [vmem:[#allocation2 + $0x8] sm:$0xff] %vm2010, %v10566
    %10613 = vst.msk [vmem:[#allocation2 + $0x10] sm:$0xff] %vm2010, %v10567
    %10614 = vst.msk [vmem:[#allocation2 + $0x18] sm:$0xff] %vm2010, %v10568
    %10616 = vrot.lane.b32.xlu0 %v10610, 2
    %v10617 = vpop.permute.xlu0 %10616
    %v10619 = vsel %vm458, %v10564, %v10617
    %vm10620 = vcmask 24576
    %10621 = vst.msk [vmem:[%s27] sm:$0x1] %vm10620, %v10619
    // Predicated region
    $region102: #{_lambda_.1} parent=1 // pred_check
      _
    $region103: #{_lambda_.1} parent=1 // pred_check_branch
      %10623 = sbr.rel (0) target = $region105
    $region104: #{_lambda_.1} parent=1 // pred_region
      _
    $region105: #{_lambda_.1} parent=1 // pred_fallthru
      _
    // Predicated region
    $region106: #{_lambda_.1} parent=1 // pred_check
      _
    $region107: #{_lambda_.1} parent=1 // pred_check_branch
      %10625 = sbr.rel (0) target = $region109
    $region108: #{_lambda_.1} parent=1 // pred_region
      %s10627 = ssub.s32 512, 512
      %10628 = vsyncadd [#allocation3], %s10627
      %s10629 = sshll.u32 [#allocation2], 4
      %s10630 = int_to_ptr.vmem [resolvable:$true] %s10629
      %10635 = dma.vmem_to_hbm [thread:$0]  %s10630, 512, %s26, [#allocation3], 128, 128, 8
    $region109: #{_lambda_.1} parent=1 // pred_fallthru
      _
    // Predicated region
    $region110: #{_lambda_.1} parent=1 // pred_check
      _
    $region111: #{_lambda_.1} parent=1 // pred_check_branch
      %10637 = sbr.rel (0) target = $region113
    $region112: #{_lambda_.1} parent=1 // pred_region
      _
    $region113: #{_lambda_.1} parent=1 // pred_fallthru
      _
    // Predicated region
    $region114: #{_lambda_.1} parent=1 // pred_check
      _
    $region115: #{_lambda_.1} parent=1 // pred_check_branch
      %10639 = sbr.rel (0) target = $region117
    $region116: #{_lambda_.1} parent=1 // pred_region
      _
    $region117: #{_lambda_.1} parent=1 // pred_fallthru
      _
    // Predicated region
    $region118: #{_lambda_.1} parent=1 // pred_check
      _
    $region119: #{_lambda_.1} parent=1 // pred_check_branch
      %10641 = sbr.rel (0) target = $region121
    $region120: #{_lambda_.1} parent=1 // pred_region
      %10642 = dma.done [#allocation3], 512
    $region121: #{_lambda_.1} parent=1 // pred_fallthru
      _
    // Predicated region
    $region122: #{_lambda_.1} parent=1 // pred_check
      _
    $region123: #{_lambda_.1} parent=1 // pred_check_branch
      %10644 = sbr.rel (0) target = $region125
    $region124: #{_lambda_.1} parent=1 // pred_region
      _
    $region125: #{_lambda_.1} parent=1 // pred_fallthru
      _
    %10645 = vsyncpa [#allocation3], 1

</llo_original>
